<compile_context>
chip_gen: v5e
topology: v5e:2x2
jax: 0.10.0
libtpu: 0.0.40
codegen_flags: <defaults>
</compile_context>

<pallas_src>
import functools

import jax
import jax.numpy as jnp
from jax.experimental import pallas as pl
from jax.experimental.pallas import tpu as pltpu

jax.config.update("jax_default_matmul_precision", "highest")


# ---------------------------------------------------------------------------
# Pallas kernel: EMA attention for `nb` images (rows = nb * groups * Cg).
# ---------------------------------------------------------------------------
def _ema_kernel(x_ref, x2_ref, pool_ref, expand_ref, w1_ref, grp_ref, par_ref,
                o_ref, *, h, w, padded):
    f32 = jnp.float32
    hw = h * w
    x = x_ref[...].astype(f32)          # (R, HWp)  group_x rows, lane-dense
    x2 = x2_ref[...].astype(f32)        # (R, HWp)  conv3x3(group_x)
    inv_hw = 1.0 / hw

    b1 = par_ref[:, 0:1]                # conv1x1 bias      (R, 1)
    gn_w = par_ref[:, 1:2]              # GroupNorm weight  (R, 1)
    gn_b = par_ref[:, 2:3]              # GroupNorm bias    (R, 1)

    # pool_h / pool_w (+ torch.cat along the pooled axis) as one matmul with a
    # constant (HWp, h+w) mean-pooling matrix.
    pooled = jnp.dot(x, pool_ref[...], preferred_element_type=f32)          # (R, h+w)
    # conv1x1 channel mix inside each group == block-diagonal matmul.
    mixed = jnp.dot(w1_ref[...], pooled, preferred_element_type=f32) + b1   # (R, h+w)
    gate_h = jax.nn.sigmoid(mixed[:, :h])                                   # (R, h)
    gate_w = jax.nn.sigmoid(mixed[:, h:])                                   # (R, w)
    # Broadcast the directional gates back to every spatial position.
    expand = expand_ref[...]
    gate = (jnp.dot(gate_h, expand[:h, :], preferred_element_type=f32) *
            jnp.dot(gate_w, expand[h:, :], preferred_element_type=f32))     # (R, HWp)

    x1 = x * gate                       # padded lanes of x are 0 -> stay 0

    # GroupNorm(Cg, Cg): per-channel (per-row) normalization over the true H*W.
    mu = jnp.sum(x1, axis=-1, keepdims=True) * inv_hw
    cen = x1 - mu
    if padded:
        lane = jax.lax.broadcasted_iota(jnp.int32, x.shape, 1)
        lane_mask = (lane < hw).astype(f32)
        cen = cen * lane_mask
    var = jnp.sum(cen * cen, axis=-1, keepdims=True) * inv_hw
    x1n = cen * jax.lax.rsqrt(var + 1e-5) * gn_w + gn_b
    if padded:
        x1n = x1n * lane_mask

    # AdaptiveAvgPool2d(1) on both branches.
    m1 = jnp.sum(x1n, axis=-1, keepdims=True) * inv_hw   # (R, 1)
    m2 = jnp.sum(x2, axis=-1, keepdims=True) * inv_hw    # (R, 1)

    # Per-group softmax over the Cg channels.  Subtracting one global constant
    # leaves every group's softmax unchanged, so a full-column max suffices;
    # the per-group sum (and broadcast back) is a block-diagonal ones matmul.
    grp = grp_ref[...]
    e1 = jnp.exp(m1 - jnp.max(m1, axis=0, keepdims=True))
    e2 = jnp.exp(m2 - jnp.max(m2, axis=0, keepdims=True))
    a1 = e1 / jnp.dot(grp, e1, preferred_element_type=f32)   # x11, per channel row
    a2 = e2 / jnp.dot(grp, e2, preferred_element_type=f32)   # x21, per channel row

    # weights = x11 @ x12 + x21 @ x22, broadcast back onto each group's rows.
    wts = jnp.dot(grp, a1 * x2 + a2 * x1n, preferred_element_type=f32)      # (R, HWp)
    o_ref[...] = (x * jax.nn.sigmoid(wts)).astype(o_ref.dtype)


def _pool_expand_mats(h, w, hwp):
    """Constant matrices: mean pooling over W / over H, and their 0/1 expanders."""
    hw = h * w
    p = jnp.arange(hwp)
    row = p // w
    col = p % w
    valid = p < hw
    rh = ((row[:, None] == jnp.arange(h)[None, :]) & valid[:, None]).astype(jnp.float32)
    rw = ((col[:, None] == jnp.arange(w)[None, :]) & valid[:, None]).astype(jnp.float32)
    pool = jnp.concatenate([rh / w, rw / h], axis=1)      # (hwp, h+w)
    expand = jnp.concatenate([rh, rw], axis=1).T          # (h+w, hwp)
    return pool, expand


def ema_forward(x, p, groups=32, *, row_cap=512, block_bytes_cap=2 << 20):
    """EMA attention (Pallas).  x: (B, C, H, W) -> (B, C, H, W)."""
    b, c, h, w = x.shape
    assert c % groups == 0, (c, groups)
    cg = c // groups
    bg = b * groups
    hw = h * w
    hwp = ((hw + 127) // 128) * 128
    padded = hwp != hw

    gx = x.reshape(bg, cg, h, w)
    # EMA's dense 3x3 conv (Cg -> Cg, pad 1, with bias) -> XLA conv.
    x2 = jax.lax.conv_general_dilated(
        gx, p["w3"], (1, 1), ((1, 1), (1, 1)),
        dimension_numbers=("NCHW", "OIHW", "NCHW")) + p["b3"][None, :, None, None]

    def _flat(t):
        t = t.reshape(bg * cg, hw).astype(jnp.float32)
        if padded:
            t = jnp.pad(t, ((0, 0), (0, hwp - hw)))
        return t

    xf, x2f = _flat(gx), _flat(x2)

    # Images per grid step: largest divisor of B that keeps the block small
    # enough for VMEM (and keeps the block-diagonal constants cheap).
    nb = 1
    for d in range(b, 0, -1):
        if b % d == 0 and d * c <= row_cap and d * c * hwp * 4 <= block_bytes_cap:
            nb = d
            break
    rows = nb * c                       # rows per grid step
    ngrp = nb * groups

    pool, expand = _pool_expand_mats(h, w, hwp)
    eye = jnp.eye(ngrp, dtype=jnp.float32)
    w1_blk = jnp.kron(eye, p["w1"].astype(jnp.float32))              # (rows, rows)
    grp_blk = jnp.kron(eye, jnp.ones((cg, cg), jnp.float32))         # (rows, rows)
    par = jnp.tile(
        jnp.stack([p["b1"], p["gn_w"], p["gn_b"]], axis=1).astype(jnp.float32),
        (ngrp, 1))                                                   # (rows, 3)

    out_flat = pl.pallas_call(
        functools.partial(_ema_kernel, h=h, w=w, padded=padded),
        out_shape=jax.ShapeDtypeStruct((b * c, hwp), jnp.float32),
        grid_spec=pltpu.PrefetchScalarGridSpec(
            num_scalar_prefetch=0,
            grid=(b // nb,),
            in_specs=[
                pl.BlockSpec((rows, hwp), lambda i: (i, 0)),
                pl.BlockSpec((rows, hwp), lambda i: (i, 0)),
                pl.BlockSpec((hwp, h + w), lambda i: (0, 0)),
                pl.BlockSpec((h + w, hwp), lambda i: (0, 0)),
                pl.BlockSpec((rows, rows), lambda i: (0, 0)),
                pl.BlockSpec((rows, rows), lambda i: (0, 0)),
                pl.BlockSpec((rows, 3), lambda i: (0, 0)),
            ],
            out_specs=pl.BlockSpec((rows, hwp), lambda i: (i, 0)),
        ),
        compiler_params=pltpu.CompilerParams(
            dimension_semantics=("parallel",)),
    )(xf, x2f, pool, expand, w1_blk, grp_blk, par)

    return out_flat[:, :hw].reshape(b, c, h, w).astype(x.dtype)


# ---------------------------------------------------------------------------
# Pure-JAX reference for the EMA module (mirrors the PyTorch forward exactly).
# ---------------------------------------------------------------------------
def ema_reference(x, p, groups=32):
    b, c, h, w = x.shape
    cg = c // groups
    gx = x.reshape(b * groups, cg, h, w)
    x_h = jnp.mean(gx, axis=3, keepdims=True)                              # pool_h
    x_w = jnp.mean(gx, axis=2, keepdims=True).transpose(0, 1, 3, 2)        # pool_w^T
    cat = jnp.concatenate([x_h, x_w], axis=2)                              # (bg,cg,h+w,1)
    mix = jnp.einsum("oc,bckl->bokl", p["w1"], cat) + p["b1"][None, :, None, None]
    g_h, g_w = mix[:, :, :h, :], mix[:, :, h:, :]
    x1 = gx * jax.nn.sigmoid(g_h) * jax.nn.sigmoid(g_w.transpose(0, 1, 3, 2))
    mu = jnp.mean(x1, axis=(2, 3), keepdims=True)
    var = jnp.mean((x1 - mu) ** 2, axis=(2, 3), keepdims=True)
    x1 = (x1 - mu) / jnp.sqrt(var + 1e-5) * p["gn_w"][None, :, None, None] \
         + p["gn_b"][None, :, None, None]
    x2 = jax.lax.conv_general_dilated(
        gx, p["w3"], (1, 1), ((1, 1), (1, 1)),
        dimension_numbers=("NCHW", "OIHW", "NCHW")) + p["b3"][None, :, None, None]
    x11 = jax.nn.softmax(jnp.mean(x1, axis=(2, 3))[:, None, :], axis=-1)   # (bg,1,cg)
    x12 = x2.reshape(b * groups, cg, h * w)
    x21 = jax.nn.softmax(jnp.mean(x2, axis=(2, 3))[:, None, :], axis=-1)
    x22 = x1.reshape(b * groups, cg, h * w)
    wts = (jnp.matmul(x11, x12) + jnp.matmul(x21, x22)).reshape(b * groups, 1, h, w)
    return (gx * jax.nn.sigmoid(wts)).reshape(b, c, h, w)


# ---------------------------------------------------------------------------
# C2f_EMA wrapper: cv1 -> Bottleneck -> cv2 -> EMA attention.
# ---------------------------------------------------------------------------
def _conv_bn_silu(x, wgt, bn, *, padding=0):
    y = jax.lax.conv_general_dilated(
        x, wgt, (1, 1), ((padding, padding), (padding, padding)),
        dimension_numbers=("NCHW", "OIHW", "NCHW"))
    gamma, beta, mean, var = bn
    scale = gamma * jax.lax.rsqrt(var + 1e-3)
    y = y * scale[None, :, None, None] + (beta - mean * scale)[None, :, None, None]
    return y * jax.nn.sigmoid(y)          # SiLU


def c2f_ema_forward(x, params, *, use_pallas=True):
    p = params
    y = _conv_bn_silu(x, p["cv1_w"], p["cv1_bn"])                         # cv1 (1x1)
    cmid = y.shape[1] // 2
    y0, y1 = y[:, :cmid], y[:, cmid:]                                     # chunk(2, 1)
    t = _conv_bn_silu(y1, p["m0_cv1_w"], p["m0_cv1_bn"], padding=1)       # Bottleneck
    y2 = _conv_bn_silu(t, p["m0_cv2_w"], p["m0_cv2_bn"], padding=1)       # (no shortcut)
    z = _conv_bn_silu(jnp.concatenate([y0, y1, y2], axis=1),
                      p["cv2_w"], p["cv2_bn"])                            # cv2 (1x1)
    ema = ema_forward if use_pallas else ema_reference
    return ema(z, p["ema"], groups=32)


def _init_params(key, c1, c2, e=0.5, n=1):
    c = int(c2 * e)
    cg = c2 // 32
    ks = iter(jax.random.split(key, 32))

    def conv_w(co, ci, k):
        return jax.random.normal(next(ks), (co, ci, k, k), jnp.float32) * (
            1.0 / float(ci * k * k) ** 0.5)

    def bn(ch):
        return (1.0 + 0.05 * jax.random.normal(next(ks), (ch,), jnp.float32),
                0.05 * jax.random.normal(next(ks), (ch,), jnp.float32),
                0.05 * jax.random.normal(next(ks), (ch,), jnp.float32),
                1.0 + 0.05 * jnp.abs(jax.random.normal(next(ks), (ch,), jnp.float32)))

    return {
        "cv1_w": conv_w(2 * c, c1, 1), "cv1_bn": bn(2 * c),
        "m0_cv1_w": conv_w(c, c, 3), "m0_cv1_bn": bn(c),
        "m0_cv2_w": conv_w(c, c, 3), "m0_cv2_bn": bn(c),
        "cv2_w": conv_w(c2, (2 + n) * c, 1), "cv2_bn": bn(c2),
        "ema": {
            "w1": jax.random.normal(next(ks), (cg, cg), jnp.float32) * (1.0 / cg ** 0.5),
            "b1": 0.1 * jax.random.normal(next(ks), (cg,), jnp.float32),
            "w3": conv_w(cg, cg, 3),
            "b3": 0.1 * jax.random.normal(next(ks), (cg,), jnp.float32),
            "gn_w": 1.0 + 0.1 * jax.random.normal(next(ks), (cg,), jnp.float32),
            "gn_b": 0.1 * jax.random.normal(next(ks), (cg,), jnp.float32),
        },
    }


if __name__ == "__main__":
    B, C1, C2, H, W = 2, 32, 64, 16, 16          # EMA(C2): groups=32, Cg=2
    key = jax.random.PRNGKey(0)
    params = _init_params(key, C1, C2)
    x = jax.random.normal(jax.random.fold_in(key, 999), (B, C1, H, W), jnp.float32)

    run_pallas = jax.jit(functools.partial(c2f_ema_forward, use_pallas=True))
    run_ref = jax.jit(functools.partial(c2f_ema_forward, use_pallas=False))

    out = jax.block_until_ready(run_pallas(x, params))
    ref = jax.block_until_ready(run_ref(x, params))

    assert out.shape == (B, C2, H, W), out.shape
    assert jnp.allclose(out, ref, atol=2e-3, rtol=2e-3), \
        float(jnp.max(jnp.abs(out - ref)))
    print("KERNEL_OK")
</pallas_src>

<mosaic_0001>
module attributes {stable_mosaic.version = 11 : i64} {
  func.func @_ema_kernel(%arg0: i32, %arg1: memref<128x256xf32, #tpu.memory_space<vmem>>, %arg2: memref<128x256xf32, #tpu.memory_space<vmem>>, %arg3: memref<256x32xf32, #tpu.memory_space<vmem>>, %arg4: memref<32x256xf32, #tpu.memory_space<vmem>>, %arg5: memref<128x128xf32, #tpu.memory_space<vmem>>, %arg6: memref<128x128xf32, #tpu.memory_space<vmem>>, %arg7: memref<128x3xf32, #tpu.memory_space<vmem>>, %arg8: memref<128x256xf32, #tpu.memory_space<vmem>>) attributes {dimension_semantics = [#tpu.dimension_semantics<parallel>], iteration_bounds = array<i64: 1>, scalar_prefetch = 0 : i64, scratch_operands = 0 : i64, tpu.core_type = #tpu.core_type<tc>, window_params = [{transform_indices = @transform_0, window_bounds = array<i64: 128, 256>}, {transform_indices = @transform_1, window_bounds = array<i64: 128, 256>}, {pipeline_mode = #tpu.pipeline_mode<synchronous>, transform_indices = @transform_2, window_bounds = array<i64: 256, 32>}, {pipeline_mode = #tpu.pipeline_mode<synchronous>, transform_indices = @transform_3, window_bounds = array<i64: 32, 256>}, {pipeline_mode = #tpu.pipeline_mode<synchronous>, transform_indices = @transform_4, window_bounds = array<i64: 128, 128>}, {pipeline_mode = #tpu.pipeline_mode<synchronous>, transform_indices = @transform_5, window_bounds = array<i64: 128, 128>}, {pipeline_mode = #tpu.pipeline_mode<synchronous>, transform_indices = @transform_6, window_bounds = array<i64: 128, 3>}, {transform_indices = @transform_7, window_bounds = array<i64: 128, 256>}]} {
    %c0 = arith.constant 0 : index
    %c0_0 = arith.constant 0 : index
    %0 = vector.load %arg1[%c0, %c0_0] : memref<128x256xf32, #tpu.memory_space<vmem>>, vector<128x256xf32>
    %c0_1 = arith.constant 0 : index
    %c0_2 = arith.constant 0 : index
    %1 = vector.load %arg2[%c0_1, %c0_2] : memref<128x256xf32, #tpu.memory_space<vmem>>, vector<128x256xf32>
    %c0_3 = arith.constant 0 : index
    %c0_4 = arith.constant 0 : index
    %2 = vector.load %arg7[%c0_3, %c0_4] : memref<128x3xf32, #tpu.memory_space<vmem>>, vector<128x1xf32>
    %c0_5 = arith.constant 0 : index
    %c1 = arith.constant 1 : index
    %3 = vector.load %arg7[%c0_5, %c1] : memref<128x3xf32, #tpu.memory_space<vmem>>, vector<128x1xf32>
    %c0_6 = arith.constant 0 : index
    %c2 = arith.constant 2 : index
    %4 = vector.load %arg7[%c0_6, %c2] : memref<128x3xf32, #tpu.memory_space<vmem>>, vector<128x1xf32>
    %c0_7 = arith.constant 0 : index
    %c0_8 = arith.constant 0 : index
    %5 = vector.load %arg3[%c0_7, %c0_8] : memref<256x32xf32, #tpu.memory_space<vmem>>, vector<256x32xf32>
    %cst = arith.constant dense<0.000000e+00> : vector<128x32xf32>
    %6 = tpu.matmul %0, %5, %cst {dimension_numbers = #tpu.dot_dimension_numbers<[1], [0], [0], [1], [0, 0, 1, 1], [], []>, precision = #tpu.contract_precision<fp32>} : vector<128x256xf32>, vector<256x32xf32>, vector<128x32xf32> -> vector<128x32xf32>
    %c0_9 = arith.constant 0 : index
    %c0_10 = arith.constant 0 : index
    %7 = vector.load %arg5[%c0_9, %c0_10] : memref<128x128xf32, #tpu.memory_space<vmem>>, vector<128x128xf32>
    %cst_11 = arith.constant dense<0.000000e+00> : vector<128x32xf32>
    %8 = tpu.matmul %7, %6, %cst_11 {dimension_numbers = #tpu.dot_dimension_numbers<[1], [0], [0], [1], [0, 0, 1, 1], [], []>, precision = #tpu.contract_precision<fp32>} : vector<128x128xf32>, vector<128x32xf32>, vector<128x32xf32> -> vector<128x32xf32>
    %9 = vector.broadcast %2 : vector<128x1xf32> to vector<128x32xf32>
    %10 = arith.addf %8, %9 : vector<128x32xf32>
    %11 = vector.extract_strided_slice %10 {offsets = [0, 0], sizes = [128, 16], strides = [1, 1]} : vector<128x32xf32> to vector<128x16xf32>
    %12 = arith.negf %11 : vector<128x16xf32>
    %13 = math.exp %12 : vector<128x16xf32>
    %cst_12 = arith.constant 1.000000e+00 : f32
    %14 = vector.broadcast %cst_12 : f32 to vector<128x16xf32>
    %15 = arith.addf %14, %13 : vector<128x16xf32>
    %16 = arith.divf %14, %15 : vector<128x16xf32>
    %17 = vector.extract_strided_slice %10 {offsets = [0, 16], sizes = [128, 16], strides = [1, 1]} : vector<128x32xf32> to vector<128x16xf32>
    %18 = arith.negf %17 : vector<128x16xf32>
    %19 = math.exp %18 : vector<128x16xf32>
    %cst_13 = arith.constant 1.000000e+00 : f32
    %20 = vector.broadcast %cst_13 : f32 to vector<128x16xf32>
    %21 = arith.addf %20, %19 : vector<128x16xf32>
    %22 = arith.divf %20, %21 : vector<128x16xf32>
    %c0_14 = arith.constant 0 : index
    %c0_15 = arith.constant 0 : index
    %23 = vector.load %arg4[%c0_14, %c0_15] : memref<32x256xf32, #tpu.memory_space<vmem>>, vector<32x256xf32>
    %24 = vector.extract_strided_slice %23 {offsets = [0, 0], sizes = [16, 256], strides = [1, 1]} : vector<32x256xf32> to vector<16x256xf32>
    %cst_16 = arith.constant dense<0.000000e+00> : vector<128x256xf32>
    %25 = tpu.matmul %16, %24, %cst_16 {dimension_numbers = #tpu.dot_dimension_numbers<[1], [0], [0], [1], [0, 0, 1, 1], [], []>, precision = #tpu.contract_precision<fp32>} : vector<128x16xf32>, vector<16x256xf32>, vector<128x256xf32> -> vector<128x256xf32>
    %26 = vector.extract_strided_slice %23 {offsets = [16, 0], sizes = [16, 256], strides = [1, 1]} : vector<32x256xf32> to vector<16x256xf32>
    %cst_17 = arith.constant dense<0.000000e+00> : vector<128x256xf32>
    %27 = tpu.matmul %22, %26, %cst_17 {dimension_numbers = #tpu.dot_dimension_numbers<[1], [0], [0], [1], [0, 0, 1, 1], [], []>, precision = #tpu.contract_precision<fp32>} : vector<128x16xf32>, vector<16x256xf32>, vector<128x256xf32> -> vector<128x256xf32>
    %28 = arith.mulf %25, %27 : vector<128x256xf32>
    %29 = arith.mulf %0, %28 : vector<128x256xf32>
    %cst_18 = arith.constant dense<0.000000e+00> : vector<128xf32>
    %30 = vector.multi_reduction <add>, %29, %cst_18 [1] : vector<128x256xf32> to vector<128xf32>
    %31 = vector.shape_cast %30 : vector<128xf32> to vector<128x1xf32>
    %cst_19 = arith.constant 3.906250e-03 : f32
    %32 = vector.broadcast %cst_19 : f32 to vector<128x1xf32>
    %33 = arith.mulf %31, %32 : vector<128x1xf32>
    %34 = vector.broadcast %33 : vector<128x1xf32> to vector<128x256xf32>
    %35 = arith.subf %29, %34 : vector<128x256xf32>
    %36 = arith.mulf %35, %35 : vector<128x256xf32>
    %cst_20 = arith.constant dense<0.000000e+00> : vector<128xf32>
    %37 = vector.multi_reduction <add>, %36, %cst_20 [1] : vector<128x256xf32> to vector<128xf32>
    %38 = vector.shape_cast %37 : vector<128xf32> to vector<128x1xf32>
    %cst_21 = arith.constant 3.906250e-03 : f32
    %39 = vector.broadcast %cst_21 : f32 to vector<128x1xf32>
    %40 = arith.mulf %38, %39 : vector<128x1xf32>
    %cst_22 = arith.constant 9.99999974E-6 : f32
    %41 = vector.broadcast %cst_22 : f32 to vector<128x1xf32>
    %42 = arith.addf %40, %41 : vector<128x1xf32>
    %43 = math.rsqrt %42 : vector<128x1xf32>
    %44 = vector.broadcast %43 : vector<128x1xf32> to vector<128x256xf32>
    %45 = arith.mulf %35, %44 : vector<128x256xf32>
    %46 = vector.broadcast %3 : vector<128x1xf32> to vector<128x256xf32>
    %47 = arith.mulf %45, %46 : vector<128x256xf32>
    %48 = vector.broadcast %4 : vector<128x1xf32> to vector<128x256xf32>
    %49 = arith.addf %47, %48 : vector<128x256xf32>
    %cst_23 = arith.constant dense<0.000000e+00> : vector<128xf32>
    %50 = vector.multi_reduction <add>, %49, %cst_23 [1] : vector<128x256xf32> to vector<128xf32>
    %51 = vector.shape_cast %50 : vector<128xf32> to vector<128x1xf32>
    %cst_24 = arith.constant 3.906250e-03 : f32
    %52 = vector.broadcast %cst_24 : f32 to vector<128x1xf32>
    %53 = arith.mulf %51, %52 : vector<128x1xf32>
    %cst_25 = arith.constant dense<0.000000e+00> : vector<128xf32>
    %54 = vector.multi_reduction <add>, %1, %cst_25 [1] : vector<128x256xf32> to vector<128xf32>
    %55 = vector.shape_cast %54 : vector<128xf32> to vector<128x1xf32>
    %cst_26 = arith.constant 3.906250e-03 : f32
    %56 = vector.broadcast %cst_26 : f32 to vector<128x1xf32>
    %57 = arith.mulf %55, %56 : vector<128x1xf32>
    %c0_27 = arith.constant 0 : index
    %c0_28 = arith.constant 0 : index
    %58 = vector.load %arg6[%c0_27, %c0_28] : memref<128x128xf32, #tpu.memory_space<vmem>>, vector<128x128xf32>
    %cst_29 = arith.constant dense<0xFF800000> : vector<1xf32>
    %59 = vector.multi_reduction <maximumf>, %53, %cst_29 [0] : vector<128x1xf32> to vector<1xf32>
    %60 = vector.shape_cast %59 : vector<1xf32> to vector<1x1xf32>
    %61 = vector.broadcast %60 : vector<1x1xf32> to vector<128x1xf32>
    %62 = arith.subf %53, %61 : vector<128x1xf32>
    %63 = math.exp %62 : vector<128x1xf32>
    %cst_30 = arith.constant dense<0xFF800000> : vector<1xf32>
    %64 = vector.multi_reduction <maximumf>, %57, %cst_30 [0] : vector<128x1xf32> to vector<1xf32>
    %65 = vector.shape_cast %64 : vector<1xf32> to vector<1x1xf32>
    %66 = vector.broadcast %65 : vector<1x1xf32> to vector<128x1xf32>
    %67 = arith.subf %57, %66 : vector<128x1xf32>
    %68 = math.exp %67 : vector<128x1xf32>
    %cst_31 = arith.constant dense<0.000000e+00> : vector<128x1xf32>
    %69 = tpu.matmul %58, %63, %cst_31 {dimension_numbers = #tpu.dot_dimension_numbers<[1], [0], [0], [1], [0, 0, 1, 1], [], []>, precision = #tpu.contract_precision<fp32>} : vector<128x128xf32>, vector<128x1xf32>, vector<128x1xf32> -> vector<128x1xf32>
    %70 = arith.divf %63, %69 : vector<128x1xf32>
    %cst_32 = arith.constant dense<0.000000e+00> : vector<128x1xf32>
    %71 = tpu.matmul %58, %68, %cst_32 {dimension_numbers = #tpu.dot_dimension_numbers<[1], [0], [0], [1], [0, 0, 1, 1], [], []>, precision = #tpu.contract_precision<fp32>} : vector<128x128xf32>, vector<128x1xf32>, vector<128x1xf32> -> vector<128x1xf32>
    %72 = arith.divf %68, %71 : vector<128x1xf32>
    %73 = vector.broadcast %70 : vector<128x1xf32> to vector<128x256xf32>
    %74 = arith.mulf %73, %1 : vector<128x256xf32>
    %75 = vector.broadcast %72 : vector<128x1xf32> to vector<128x256xf32>
    %76 = arith.mulf %75, %49 : vector<128x256xf32>
    %77 = arith.addf %74, %76 : vector<128x256xf32>
    %cst_33 = arith.constant dense<0.000000e+00> : vector<128x256xf32>
    %78 = tpu.matmul %58, %77, %cst_33 {dimension_numbers = #tpu.dot_dimension_numbers<[1], [0], [0], [1], [0, 0, 1, 1], [], []>, precision = #tpu.contract_precision<fp32>} : vector<128x128xf32>, vector<128x256xf32>, vector<128x256xf32> -> vector<128x256xf32>
    %79 = arith.negf %78 : vector<128x256xf32>
    %80 = math.exp %79 : vector<128x256xf32>
    %cst_34 = arith.constant 1.000000e+00 : f32
    %81 = vector.broadcast %cst_34 : f32 to vector<128x256xf32>
    %82 = arith.addf %81, %80 : vector<128x256xf32>
    %83 = arith.divf %81, %82 : vector<128x256xf32>
    %84 = arith.mulf %0, %83 : vector<128x256xf32>
    %c0_35 = arith.constant 0 : index
    %c0_36 = arith.constant 0 : index
    %85 = vector.load %arg8[%c0_35, %c0_36] : memref<128x256xf32, #tpu.memory_space<vmem>>, vector<128x256xf32>
    tpu.vector_store %arg8[%c0_35, %c0_36], %84 {strides = array<i32>} : memref<128x256xf32, #tpu.memory_space<vmem>>, vector<128x256xf32>,
    return
  }
  func.func @transform_0(%arg0: i32) -> (i32, i32) {
    %c0_i32 = arith.constant 0 : i32
    %c0_i32_0 = arith.constant 0 : i32
    return %arg0, %c0_i32 : i32, i32
  }
  func.func @transform_1(%arg0: i32) -> (i32, i32) {
    %c0_i32 = arith.constant 0 : i32
    %c0_i32_0 = arith.constant 0 : i32
    return %arg0, %c0_i32 : i32, i32
  }
  func.func @transform_2(%arg0: i32) -> (i32, i32) {
    %c0_i32 = arith.constant 0 : i32
    %c0_i32_0 = arith.constant 0 : i32
    %c0_i32_1 = arith.constant 0 : i32
    return %c0_i32, %c0_i32_0 : i32, i32
  }
  func.func @transform_3(%arg0: i32) -> (i32, i32) {
    %c0_i32 = arith.constant 0 : i32
    %c0_i32_0 = arith.constant 0 : i32
    %c0_i32_1 = arith.constant 0 : i32
    return %c0_i32, %c0_i32_0 : i32, i32
  }
  func.func @transform_4(%arg0: i32) -> (i32, i32) {
    %c0_i32 = arith.constant 0 : i32
    %c0_i32_0 = arith.constant 0 : i32
    %c0_i32_1 = arith.constant 0 : i32
    return %c0_i32, %c0_i32_0 : i32, i32
  }
  func.func @transform_5(%arg0: i32) -> (i32, i32) {
    %c0_i32 = arith.constant 0 : i32
    %c0_i32_0 = arith.constant 0 : i32
    %c0_i32_1 = arith.constant 0 : i32
    return %c0_i32, %c0_i32_0 : i32, i32
  }
  func.func @transform_6(%arg0: i32) -> (i32, i32) {
    %c0_i32 = arith.constant 0 : i32
    %c0_i32_0 = arith.constant 0 : i32
    %c0_i32_1 = arith.constant 0 : i32
    return %c0_i32, %c0_i32_0 : i32, i32
  }
  func.func @transform_7(%arg0: i32) -> (i32, i32) {
    %c0_i32 = arith.constant 0 : i32
    %c0_i32_0 = arith.constant 0 : i32
    return %arg0, %c0_i32 : i32, i32
  }
}

</mosaic_0001>

<llo_original>
// kernel: mul.14
$region0: #{mul.14}
  #allocation0 [shape = 's32[1]{0}', space=sflag, size = 0x4, scoped, tag = 'scoped memory for mul.14']
  %s0 = inlined_call_operand.vmem [shape: f32[128,128], index: 0, kind: input, shape index: {}]
  %s1 = inlined_call_operand.vmem [shape: f32[128,128], index: 1, kind: input, shape index: {}]
  %s2 = inlined_call_operand.vmem [shape: f32[128,128], index: 2, kind: output, shape index: {}]
  %v3 = vld [vmem:[%s0] sm:$0xff]
  %v4 = vld [vmem:[%s1] sm:$0xff]
  %5 = xla_tuple %v3, %v4
  %6 = xla_tuple %5
  %v7 = vmul.f32 %v3, %v4
  %8 = xla_tuple %v7
  %9 = vst [vmem:[%s2] sm:$0xff] %v7
  %s10 = scalar_lea.vmem %s0, 8
  %v11 = vld [vmem:[%s10] sm:$0xff]
  %s12 = scalar_lea.vmem %s1, 8
  %v13 = vld [vmem:[%s12] sm:$0xff]
  %14 = xla_tuple %v11, %v13
  %15 = xla_tuple %14
  %v16 = vmul.f32 %v11, %v13
  %17 = xla_tuple %v16
  %s18 = scalar_lea.vmem %s2, 8
  %19 = vst [vmem:[%s18] sm:$0xff] %v16
  %s20 = scalar_lea.vmem %s0, 16
  %v21 = vld [vmem:[%s20] sm:$0xff]
  %s22 = scalar_lea.vmem %s1, 16
  %v23 = vld [vmem:[%s22] sm:$0xff]
  %24 = xla_tuple %v21, %v23
  %25 = xla_tuple %24
  %v26 = vmul.f32 %v21, %v23
  %27 = xla_tuple %v26
  %s28 = scalar_lea.vmem %s2, 16
  %29 = vst [vmem:[%s28] sm:$0xff] %v26
  %s30 = scalar_lea.vmem %s0, 24
  %v31 = vld [vmem:[%s30] sm:$0xff]
  %s32 = scalar_lea.vmem %s1, 24
  %v33 = vld [vmem:[%s32] sm:$0xff]
  %34 = xla_tuple %v31, %v33
  %35 = xla_tuple %34
  %v36 = vmul.f32 %v31, %v33
  %37 = xla_tuple %v36
  %s38 = scalar_lea.vmem %s2, 24
  %39 = vst [vmem:[%s38] sm:$0xff] %v36
  %s40 = scalar_lea.vmem %s0, 32
  %v41 = vld [vmem:[%s40] sm:$0xff]
  %s42 = scalar_lea.vmem %s1, 32
  %v43 = vld [vmem:[%s42] sm:$0xff]
  %44 = xla_tuple %v41, %v43
  %45 = xla_tuple %44
  %v46 = vmul.f32 %v41, %v43
  %47 = xla_tuple %v46
  %s48 = scalar_lea.vmem %s2, 32
  %49 = vst [vmem:[%s48] sm:$0xff] %v46
  %s50 = scalar_lea.vmem %s0, 40
  %v51 = vld [vmem:[%s50] sm:$0xff]
  %s52 = scalar_lea.vmem %s1, 40
  %v53 = vld [vmem:[%s52] sm:$0xff]
  %54 = xla_tuple %v51, %v53
  %55 = xla_tuple %54
  %v56 = vmul.f32 %v51, %v53
  %57 = xla_tuple %v56
  %s58 = scalar_lea.vmem %s2, 40
  %59 = vst [vmem:[%s58] sm:$0xff] %v56
  %s60 = scalar_lea.vmem %s0, 48
  %v61 = vld [vmem:[%s60] sm:$0xff]
  %s62 = scalar_lea.vmem %s1, 48
  %v63 = vld [vmem:[%s62] sm:$0xff]
  %64 = xla_tuple %v61, %v63
  %65 = xla_tuple %64
  %v66 = vmul.f32 %v61, %v63
  %67 = xla_tuple %v66
  %s68 = scalar_lea.vmem %s2, 48
  %69 = vst [vmem:[%s68] sm:$0xff] %v66
  %s70 = scalar_lea.vmem %s0, 56
  %v71 = vld [vmem:[%s70] sm:$0xff]
  %s72 = scalar_lea.vmem %s1, 56
  %v73 = vld [vmem:[%s72] sm:$0xff]
  %74 = xla_tuple %v71, %v73
  %75 = xla_tuple %74
  %v76 = vmul.f32 %v71, %v73
  %77 = xla_tuple %v76
  %s78 = scalar_lea.vmem %s2, 56
  %79 = vst [vmem:[%s78] sm:$0xff] %v76
  %s80 = scalar_lea.vmem %s0, 64
  %v81 = vld [vmem:[%s80] sm:$0xff]
  %s82 = scalar_lea.vmem %s1, 64
  %v83 = vld [vmem:[%s82] sm:$0xff]
  %84 = xla_tuple %v81, %v83
  %85 = xla_tuple %84
  %v86 = vmul.f32 %v81, %v83
  %87 = xla_tuple %v86
  %s88 = scalar_lea.vmem %s2, 64
  %89 = vst [vmem:[%s88] sm:$0xff] %v86
  %s90 = scalar_lea.vmem %s0, 72
  %v91 = vld [vmem:[%s90] sm:$0xff]
  %s92 = scalar_lea.vmem %s1, 72
  %v93 = vld [vmem:[%s92] sm:$0xff]
  %94 = xla_tuple %v91, %v93
  %95 = xla_tuple %94
  %v96 = vmul.f32 %v91, %v93
  %97 = xla_tuple %v96
  %s98 = scalar_lea.vmem %s2, 72
  %99 = vst [vmem:[%s98] sm:$0xff] %v96
  %s100 = scalar_lea.vmem %s0, 80
  %v101 = vld [vmem:[%s100] sm:$0xff]
  %s102 = scalar_lea.vmem %s1, 80
  %v103 = vld [vmem:[%s102] sm:$0xff]
  %104 = xla_tuple %v101, %v103
  %105 = xla_tuple %104
  %v106 = vmul.f32 %v101, %v103
  %107 = xla_tuple %v106
  %s108 = scalar_lea.vmem %s2, 80
  %109 = vst [vmem:[%s108] sm:$0xff] %v106
  %s110 = scalar_lea.vmem %s0, 88
  %v111 = vld [vmem:[%s110] sm:$0xff]
  %s112 = scalar_lea.vmem %s1, 88
  %v113 = vld [vmem:[%s112] sm:$0xff]
  %114 = xla_tuple %v111, %v113
  %115 = xla_tuple %114
  %v116 = vmul.f32 %v111, %v113
  %117 = xla_tuple %v116
  %s118 = scalar_lea.vmem %s2, 88
  %119 = vst [vmem:[%s118] sm:$0xff] %v116
  %s120 = scalar_lea.vmem %s0, 96
  %v121 = vld [vmem:[%s120] sm:$0xff]
  %s122 = scalar_lea.vmem %s1, 96
  %v123 = vld [vmem:[%s122] sm:$0xff]
  %124 = xla_tuple %v121, %v123
  %125 = xla_tuple %124
  %v126 = vmul.f32 %v121, %v123
  %127 = xla_tuple %v126
  %s128 = scalar_lea.vmem %s2, 96
  %129 = vst [vmem:[%s128] sm:$0xff] %v126
  %s130 = scalar_lea.vmem %s0, 104
  %v131 = vld [vmem:[%s130] sm:$0xff]
  %s132 = scalar_lea.vmem %s1, 104
  %v133 = vld [vmem:[%s132] sm:$0xff]
  %134 = xla_tuple %v131, %v133
  %135 = xla_tuple %134
  %v136 = vmul.f32 %v131, %v133
  %137 = xla_tuple %v136
  %s138 = scalar_lea.vmem %s2, 104
  %139 = vst [vmem:[%s138] sm:$0xff] %v136
  %s140 = scalar_lea.vmem %s0, 112
  %v141 = vld [vmem:[%s140] sm:$0xff]
  %s142 = scalar_lea.vmem %s1, 112
  %v143 = vld [vmem:[%s142] sm:$0xff]
  %144 = xla_tuple %v141, %v143
  %145 = xla_tuple %144
  %v146 = vmul.f32 %v141, %v143
  %147 = xla_tuple %v146
  %s148 = scalar_lea.vmem %s2, 112
  %149 = vst [vmem:[%s148] sm:$0xff] %v146
  %s150 = scalar_lea.vmem %s0, 120
  %v151 = vld [vmem:[%s150] sm:$0xff]
  %s152 = scalar_lea.vmem %s1, 120
  %v153 = vld [vmem:[%s152] sm:$0xff]
  %154 = xla_tuple %v151, %v153
  %155 = xla_tuple %154
  %v156 = vmul.f32 %v151, %v153
  %157 = xla_tuple %v156
  %s158 = scalar_lea.vmem %s2, 120
  %159 = vst [vmem:[%s158] sm:$0xff] %v156

// kernel: c2f_ema_forward.1
$region0: #{c2f_ema_forward.1}
  #allocation0 [shape = 'u32[]', space=smem, size = 0x4, offset = 0x4, fixed_abs, tag = 'smem constant byte address 0x4 - core index']
  #allocation1 [shape = 'u32[72,128]{1,0:T(1,128)}', space=vmem, size = 0x9000, scoped, tag = 'internal scratch']
  %s0 = inlined_call_operand.vmem [shape: f32[128,256], index: 0, kind: input, shape index: {}]
  %s1 = inlined_call_operand.vmem [shape: f32[128,256], index: 1, kind: input, shape index: {}]
  %s2 = inlined_call_operand.vmem [shape: f32[256,32], index: 2, kind: input, shape index: {}]
  %s3 = inlined_call_operand.vmem [shape: f32[32,256], index: 3, kind: input, shape index: {}]
  %s4 = inlined_call_operand.vmem [shape: f32[128,128], index: 4, kind: input, shape index: {}]
  %s5 = inlined_call_operand.vmem [shape: f32[128,128], index: 5, kind: input, shape index: {}]
  %s6 = inlined_call_operand.vmem [shape: f32[128,3], index: 6, kind: input, shape index: {}]
  %s7 = inlined_call_operand.vmem [shape: f32[128,256], index: 7, kind: output, shape index: {}]
  %s8 = sld [smem:[#allocation0]]
  $region38: #{c2f_ema_forward.1} parent=0
    _
  %s10 = ssub.s32 1, %s8
  %s11 = scalar_select 0, %s10, %s8
  // Predicated region
  $region2: #{c2f_ema_forward.1} parent=0 // pred_check
    _
  $region3: #{c2f_ema_forward.1} parent=0 // pred_check_branch
    %13 = sbr.rel (0) target = $region5
  $region4: #{c2f_ema_forward.1} parent=0 // pred_region
    _
  $region5: #{c2f_ema_forward.1} parent=0 // pred_fallthru
    _
  // Predicated region
  $region6: #{c2f_ema_forward.1} parent=0 // pred_check
    _
  $region7: #{c2f_ema_forward.1} parent=0 // pred_check_branch
    %15 = sbr.rel (0) target = $region9
  $region8: #{c2f_ema_forward.1} parent=0 // pred_region
    _
  $region9: #{c2f_ema_forward.1} parent=0 // pred_fallthru
    _
  // Predicated region
  $region10: #{c2f_ema_forward.1} parent=0 // pred_check
    _
  $region11: #{c2f_ema_forward.1} parent=0 // pred_check_branch
    %17 = sbr.rel (0) target = $region13
  $region12: #{c2f_ema_forward.1} parent=0 // pred_region
    _
  $region13: #{c2f_ema_forward.1} parent=0 // pred_fallthru
    _
  // Predicated region
  $region14: #{c2f_ema_forward.1} parent=0 // pred_check
    _
  $region15: #{c2f_ema_forward.1} parent=0 // pred_check_branch
    %19 = sbr.rel (0) target = $region17
  $region16: #{c2f_ema_forward.1} parent=0 // pred_region
    _
  $region17: #{c2f_ema_forward.1} parent=0 // pred_fallthru
    _
  // Predicated region
  $region18: #{c2f_ema_forward.1} parent=0 // pred_check
    _
  $region19: #{c2f_ema_forward.1} parent=0 // pred_check_branch
    %21 = sbr.rel (0) target = $region21
  $region20: #{c2f_ema_forward.1} parent=0 // pred_region
    _
  $region21: #{c2f_ema_forward.1} parent=0 // pred_fallthru
    _
  // Predicated region
  $region22: #{c2f_ema_forward.1} parent=0 // pred_check
    _
  $region23: #{c2f_ema_forward.1} parent=0 // pred_check_branch
    %23 = sbr.rel (0) target = $region25
  $region24: #{c2f_ema_forward.1} parent=0 // pred_region
    _
  $region25: #{c2f_ema_forward.1} parent=0 // pred_fallthru
    _
  // Predicated region
  $region26: #{c2f_ema_forward.1} parent=0 // pred_check
    _
  $region27: #{c2f_ema_forward.1} parent=0 // pred_check_branch
    %25 = sbr.rel (0) target = $region29
  $region28: #{c2f_ema_forward.1} parent=0 // pred_region
    _
  $region29: #{c2f_ema_forward.1} parent=0 // pred_fallthru
    _
  %v26 = vld [vmem:[%s0] sm:$0xff]
  %v27 = vld [vmem:[%s0 + $0x8] sm:$0xff]
  %v28 = vld [vmem:[%s0 + $0x10] sm:$0xff]
  %v29 = vld [vmem:[%s0 + $0x18] sm:$0xff]
  %v30 = vld [vmem:[%s0 + $0x20] sm:$0xff]
  %v31 = vld [vmem:[%s0 + $0x28] sm:$0xff]
  %v32 = vld [vmem:[%s0 + $0x30] sm:$0xff]
  %v33 = vld [vmem:[%s0 + $0x38] sm:$0xff]
  %v34 = vld [vmem:[%s0 + $0x40] sm:$0xff]
  %v35 = vld [vmem:[%s0 + $0x48] sm:$0xff]
  %v36 = vld [vmem:[%s0 + $0x50] sm:$0xff]
  %v37 = vld [vmem:[%s0 + $0x58] sm:$0xff]
  %v38 = vld [vmem:[%s0 + $0x60] sm:$0xff]
  %v39 = vld [vmem:[%s0 + $0x68] sm:$0xff]
  %v40 = vld [vmem:[%s0 + $0x70] sm:$0xff]
  %v41 = vld [vmem:[%s0 + $0x78] sm:$0xff]
  %v42 = vld [vmem:[%s0 + $0x80] sm:$0xff]
  %v43 = vld [vmem:[%s0 + $0x88] sm:$0xff]
  %v44 = vld [vmem:[%s0 + $0x90] sm:$0xff]
  %v45 = vld [vmem:[%s0 + $0x98] sm:$0xff]
  %v46 = vld [vmem:[%s0 + $0xa0] sm:$0xff]
  %v47 = vld [vmem:[%s0 + $0xa8] sm:$0xff]
  %v48 = vld [vmem:[%s0 + $0xb0] sm:$0xff]
  %v49 = vld [vmem:[%s0 + $0xb8] sm:$0xff]
  %v50 = vld [vmem:[%s0 + $0xc0] sm:$0xff]
  %v51 = vld [vmem:[%s0 + $0xc8] sm:$0xff]
  %v52 = vld [vmem:[%s0 + $0xd0] sm:$0xff]
  %v53 = vld [vmem:[%s0 + $0xd8] sm:$0xff]
  %v54 = vld [vmem:[%s0 + $0xe0] sm:$0xff]
  %v55 = vld [vmem:[%s0 + $0xe8] sm:$0xff]
  %v56 = vld [vmem:[%s0 + $0xf0] sm:$0xff]
  %v57 = vld [vmem:[%s0 + $0xf8] sm:$0xff]
  %v58 = vld [vmem:[%s1] sm:$0xff]
  %v59 = vld [vmem:[%s1 + $0x8] sm:$0xff]
  %v60 = vld [vmem:[%s1 + $0x10] sm:$0xff]
  %v61 = vld [vmem:[%s1 + $0x18] sm:$0xff]
  %v62 = vld [vmem:[%s1 + $0x20] sm:$0xff]
  %v63 = vld [vmem:[%s1 + $0x28] sm:$0xff]
  %v64 = vld [vmem:[%s1 + $0x30] sm:$0xff]
  %v65 = vld [vmem:[%s1 + $0x38] sm:$0xff]
  %v66 = vld [vmem:[%s1 + $0x40] sm:$0xff]
  %v67 = vld [vmem:[%s1 + $0x48] sm:$0xff]
  %v68 = vld [vmem:[%s1 + $0x50] sm:$0xff]
  %v69 = vld [vmem:[%s1 + $0x58] sm:$0xff]
  %v70 = vld [vmem:[%s1 + $0x60] sm:$0xff]
  %v71 = vld [vmem:[%s1 + $0x68] sm:$0xff]
  %v72 = vld [vmem:[%s1 + $0x70] sm:$0xff]
  %v73 = vld [vmem:[%s1 + $0x78] sm:$0xff]
  %v74 = vld [vmem:[%s1 + $0x80] sm:$0xff]
  %v75 = vld [vmem:[%s1 + $0x88] sm:$0xff]
  %v76 = vld [vmem:[%s1 + $0x90] sm:$0xff]
  %v77 = vld [vmem:[%s1 + $0x98] sm:$0xff]
  %v78 = vld [vmem:[%s1 + $0xa0] sm:$0xff]
  %v79 = vld [vmem:[%s1 + $0xa8] sm:$0xff]
  %v80 = vld [vmem:[%s1 + $0xb0] sm:$0xff]
  %v81 = vld [vmem:[%s1 + $0xb8] sm:$0xff]
  %v82 = vld [vmem:[%s1 + $0xc0] sm:$0xff]
  %v83 = vld [vmem:[%s1 + $0xc8] sm:$0xff]
  %v84 = vld [vmem:[%s1 + $0xd0] sm:$0xff]
  %v85 = vld [vmem:[%s1 + $0xd8] sm:$0xff]
  %v86 = vld [vmem:[%s1 + $0xe0] sm:$0xff]
  %v87 = vld [vmem:[%s1 + $0xe8] sm:$0xff]
  %v88 = vld [vmem:[%s1 + $0xf0] sm:$0xff]
  %v89 = vld [vmem:[%s1 + $0xf8] sm:$0xff]
  %v90 = vld [vmem:[%s6] sm:$0xff]
  %v91 = vld [vmem:[%s6 + $0x8] sm:$0xff]
  %v92 = vld [vmem:[%s6 + $0x10] sm:$0xff]
  %v93 = vld [vmem:[%s6 + $0x18] sm:$0xff]
  %v94 = vld [vmem:[%s6 + $0x20] sm:$0xff]
  %v95 = vld [vmem:[%s6 + $0x28] sm:$0xff]
  %v96 = vld [vmem:[%s6 + $0x30] sm:$0xff]
  %v97 = vld [vmem:[%s6 + $0x38] sm:$0xff]
  %v98 = vld [vmem:[%s6 + $0x40] sm:$0xff]
  %v99 = vld [vmem:[%s6 + $0x48] sm:$0xff]
  %v100 = vld [vmem:[%s6 + $0x50] sm:$0xff]
  %v101 = vld [vmem:[%s6 + $0x58] sm:$0xff]
  %v102 = vld [vmem:[%s6 + $0x60] sm:$0xff]
  %v103 = vld [vmem:[%s6 + $0x68] sm:$0xff]
  %v104 = vld [vmem:[%s6 + $0x70] sm:$0xff]
  %v105 = vld [vmem:[%s6 + $0x78] sm:$0xff]
  %v106 = vld [vmem:[%s2] sm:$0xff]
  %v107 = vld [vmem:[%s2 + $0x8] sm:$0xff]
  %v108 = vld [vmem:[%s2 + $0x10] sm:$0xff]
  %v109 = vld [vmem:[%s2 + $0x18] sm:$0xff]
  %v110 = vld [vmem:[%s2 + $0x20] sm:$0xff]
  %v111 = vld [vmem:[%s2 + $0x28] sm:$0xff]
  %v112 = vld [vmem:[%s2 + $0x30] sm:$0xff]
  %v113 = vld [vmem:[%s2 + $0x38] sm:$0xff]
  %v114 = vld [vmem:[%s2 + $0x40] sm:$0xff]
  %v115 = vld [vmem:[%s2 + $0x48] sm:$0xff]
  %v116 = vld [vmem:[%s2 + $0x50] sm:$0xff]
  %v117 = vld [vmem:[%s2 + $0x58] sm:$0xff]
  %v118 = vld [vmem:[%s2 + $0x60] sm:$0xff]
  %v119 = vld [vmem:[%s2 + $0x68] sm:$0xff]
  %v120 = vld [vmem:[%s2 + $0x70] sm:$0xff]
  %v121 = vld [vmem:[%s2 + $0x78] sm:$0xff]
  %v122 = vld [vmem:[%s2 + $0x80] sm:$0xff]
  %v123 = vld [vmem:[%s2 + $0x88] sm:$0xff]
  %v124 = vld [vmem:[%s2 + $0x90] sm:$0xff]
  %v125 = vld [vmem:[%s2 + $0x98] sm:$0xff]
  %v126 = vld [vmem:[%s2 + $0xa0] sm:$0xff]
  %v127 = vld [vmem:[%s2 + $0xa8] sm:$0xff]
  %v128 = vld [vmem:[%s2 + $0xb0] sm:$0xff]
  %v129 = vld [vmem:[%s2 + $0xb8] sm:$0xff]
  %v130 = vld [vmem:[%s2 + $0xc0] sm:$0xff]
  %v131 = vld [vmem:[%s2 + $0xc8] sm:$0xff]
  %v132 = vld [vmem:[%s2 + $0xd0] sm:$0xff]
  %v133 = vld [vmem:[%s2 + $0xd8] sm:$0xff]
  %v134 = vld [vmem:[%s2 + $0xe0] sm:$0xff]
  %v135 = vld [vmem:[%s2 + $0xe8] sm:$0xff]
  %v136 = vld [vmem:[%s2 + $0xf0] sm:$0xff]
  %v137 = vld [vmem:[%s2 + $0xf8] sm:$0xff]
  %v138 = vand.u32 %v121, 4294901760
  %139 = vmatpush.msra.mxu0 %v138
  %v140 = vand.u32 %v120, 4294901760
  %141 = vmatpush.msra.mxu0 %v140
  %v142 = vand.u32 %v119, 4294901760
  %143 = vmatpush.msra.mxu0 %v142
  %v144 = vand.u32 %v118, 4294901760
  %145 = vmatpush.msra.mxu0 %v144
  %v146 = vand.u32 %v117, 4294901760
  %147 = vmatpush.msra.mxu0 %v146
  %v148 = vand.u32 %v116, 4294901760
  %149 = vmatpush.msra.mxu0 %v148
  %v150 = vand.u32 %v115, 4294901760
  %151 = vmatpush.msra.mxu0 %v150
  %v152 = vand.u32 %v114, 4294901760
  %153 = vmatpush.msra.mxu0 %v152
  %v154 = vand.u32 %v113, 4294901760
  %155 = vmatpush.msra.mxu0 %v154
  %v156 = vand.u32 %v112, 4294901760
  %157 = vmatpush.msra.mxu0 %v156
  %v158 = vand.u32 %v111, 4294901760
  %159 = vmatpush.msra.mxu0 %v158
  %v160 = vand.u32 %v110, 4294901760
  %161 = vmatpush.msra.mxu0 %v160
  %v162 = vand.u32 %v109, 4294901760
  %163 = vmatpush.msra.mxu0 %v162
  %v164 = vand.u32 %v108, 4294901760
  %165 = vmatpush.msra.mxu0 %v164
  %v166 = vand.u32 %v107, 4294901760
  %167 = vmatpush.msra.mxu0 %v166
  %v168 = vand.u32 %v106, 4294901760
  %169 = vmatpush.msra.mxu0 %v168
  %v170 = vand.u32 %v26, 4294901760
  %v171 = vsub.f32 %v26, %v170
  %v172 = vand.u32 %v171, 4294901760
  %v173 = vsub.f32 %v171, %v172
  %v174 = vand.u32 %v173, 4294901760
  %175 = vmatmul.f32.gmra.mxu0 %v174
  %v176 = vpop.f32.mrf.mxu0
  %v177 = vadd.f32 0.0, %v176
  %v178 = vand.u32 %v28, 4294901760
  %v179 = vsub.f32 %v28, %v178
  %v180 = vand.u32 %v179, 4294901760
  %v181 = vsub.f32 %v179, %v180
  %v182 = vand.u32 %v181, 4294901760
  %183 = vmatmul.f32.gmra.mxu0 %v182
  %v184 = vpop.f32.mrf.mxu0
  %v185 = vadd.f32 0.0, %v184
  %v186 = vand.u32 %v30, 4294901760
  %v187 = vsub.f32 %v30, %v186
  %v188 = vand.u32 %v187, 4294901760
  %v189 = vsub.f32 %v187, %v188
  %v190 = vand.u32 %v189, 4294901760
  %191 = vmatmul.f32.gmra.mxu0 %v190
  %v192 = vpop.f32.mrf.mxu0
  %v193 = vadd.f32 0.0, %v192
  %v194 = vand.u32 %v32, 4294901760
  %v195 = vsub.f32 %v32, %v194
  %v196 = vand.u32 %v195, 4294901760
  %v197 = vsub.f32 %v195, %v196
  %v198 = vand.u32 %v197, 4294901760
  %199 = vmatmul.f32.gmra.mxu0 %v198
  %v200 = vpop.f32.mrf.mxu0
  %v201 = vadd.f32 0.0, %v200
  %v202 = vand.u32 %v34, 4294901760
  %v203 = vsub.f32 %v34, %v202
  %v204 = vand.u32 %v203, 4294901760
  %v205 = vsub.f32 %v203, %v204
  %v206 = vand.u32 %v205, 4294901760
  %207 = vmatmul.f32.gmra.mxu0 %v206
  %v208 = vpop.f32.mrf.mxu0
  %v209 = vadd.f32 0.0, %v208
  %v210 = vand.u32 %v36, 4294901760
  %v211 = vsub.f32 %v36, %v210
  %v212 = vand.u32 %v211, 4294901760
  %v213 = vsub.f32 %v211, %v212
  %v214 = vand.u32 %v213, 4294901760
  %215 = vmatmul.f32.gmra.mxu0 %v214
  %v216 = vpop.f32.mrf.mxu0
  %v217 = vadd.f32 0.0, %v216
  %v218 = vand.u32 %v38, 4294901760
  %v219 = vsub.f32 %v38, %v218
  %v220 = vand.u32 %v219, 4294901760
  %v221 = vsub.f32 %v219, %v220
  %v222 = vand.u32 %v221, 4294901760
  %223 = vmatmul.f32.gmra.mxu0 %v222
  %v224 = vpop.f32.mrf.mxu0
  %v225 = vadd.f32 0.0, %v224
  %v226 = vand.u32 %v40, 4294901760
  %v227 = vsub.f32 %v40, %v226
  %v228 = vand.u32 %v227, 4294901760
  %v229 = vsub.f32 %v227, %v228
  %v230 = vand.u32 %v229, 4294901760
  %231 = vmatmul.f32.gmra.mxu0 %v230
  %v232 = vpop.f32.mrf.mxu0
  %v233 = vadd.f32 0.0, %v232
  %v234 = vand.u32 %v42, 4294901760
  %v235 = vsub.f32 %v42, %v234
  %v236 = vand.u32 %v235, 4294901760
  %v237 = vsub.f32 %v235, %v236
  %v238 = vand.u32 %v237, 4294901760
  %239 = vmatmul.f32.gmra.mxu0 %v238
  %v240 = vpop.f32.mrf.mxu0
  %v241 = vadd.f32 0.0, %v240
  %v242 = vand.u32 %v44, 4294901760
  %v243 = vsub.f32 %v44, %v242
  %v244 = vand.u32 %v243, 4294901760
  %v245 = vsub.f32 %v243, %v244
  %v246 = vand.u32 %v245, 4294901760
  %247 = vmatmul.f32.gmra.mxu0 %v246
  %v248 = vpop.f32.mrf.mxu0
  %v249 = vadd.f32 0.0, %v248
  %v250 = vand.u32 %v46, 4294901760
  %v251 = vsub.f32 %v46, %v250
  %v252 = vand.u32 %v251, 4294901760
  %v253 = vsub.f32 %v251, %v252
  %v254 = vand.u32 %v253, 4294901760
  %255 = vmatmul.f32.gmra.mxu0 %v254
  %v256 = vpop.f32.mrf.mxu0
  %v257 = vadd.f32 0.0, %v256
  %v258 = vand.u32 %v48, 4294901760
  %v259 = vsub.f32 %v48, %v258
  %v260 = vand.u32 %v259, 4294901760
  %v261 = vsub.f32 %v259, %v260
  %v262 = vand.u32 %v261, 4294901760
  %263 = vmatmul.f32.gmra.mxu0 %v262
  %v264 = vpop.f32.mrf.mxu0
  %v265 = vadd.f32 0.0, %v264
  %v266 = vand.u32 %v50, 4294901760
  %v267 = vsub.f32 %v50, %v266
  %v268 = vand.u32 %v267, 4294901760
  %v269 = vsub.f32 %v267, %v268
  %v270 = vand.u32 %v269, 4294901760
  %271 = vmatmul.f32.gmra.mxu0 %v270
  %v272 = vpop.f32.mrf.mxu0
  %v273 = vadd.f32 0.0, %v272
  %v274 = vand.u32 %v52, 4294901760
  %v275 = vsub.f32 %v52, %v274
  %v276 = vand.u32 %v275, 4294901760
  %v277 = vsub.f32 %v275, %v276
  %v278 = vand.u32 %v277, 4294901760
  %279 = vmatmul.f32.gmra.mxu0 %v278
  %v280 = vpop.f32.mrf.mxu0
  %v281 = vadd.f32 0.0, %v280
  %v282 = vand.u32 %v54, 4294901760
  %v283 = vsub.f32 %v54, %v282
  %v284 = vand.u32 %v283, 4294901760
  %v285 = vsub.f32 %v283, %v284
  %v286 = vand.u32 %v285, 4294901760
  %287 = vmatmul.f32.gmra.mxu0 %v286
  %v288 = vpop.f32.mrf.mxu0
  %v289 = vadd.f32 0.0, %v288
  %v290 = vand.u32 %v56, 4294901760
  %v291 = vsub.f32 %v56, %v290
  %v292 = vand.u32 %v291, 4294901760
  %v293 = vsub.f32 %v291, %v292
  %v294 = vand.u32 %v293, 4294901760
  %295 = vmatmul.f32.gmra.mxu0 %v294
  %v296 = vpop.f32.mrf.mxu0
  %v297 = vadd.f32 0.0, %v296
  %298 = vdwg.mxu0
  %v299 = vand.u32 %v121, 4294901760
  %v300 = vsub.f32 %v121, %v299
  %v301 = vand.u32 %v300, 4294901760
  %v302 = vsub.f32 %v300, %v301
  %v303 = vand.u32 %v302, 4294901760
  %304 = vmatpush.msra.mxu0 %v303
  %v305 = vand.u32 %v120, 4294901760
  %v306 = vsub.f32 %v120, %v305
  %v307 = vand.u32 %v306, 4294901760
  %v308 = vsub.f32 %v306, %v307
  %v309 = vand.u32 %v308, 4294901760
  %310 = vmatpush.msra.mxu0 %v309
  %v311 = vand.u32 %v119, 4294901760
  %v312 = vsub.f32 %v119, %v311
  %v313 = vand.u32 %v312, 4294901760
  %v314 = vsub.f32 %v312, %v313
  %v315 = vand.u32 %v314, 4294901760
  %316 = vmatpush.msra.mxu0 %v315
  %v317 = vand.u32 %v118, 4294901760
  %v318 = vsub.f32 %v118, %v317
  %v319 = vand.u32 %v318, 4294901760
  %v320 = vsub.f32 %v318, %v319
  %v321 = vand.u32 %v320, 4294901760
  %322 = vmatpush.msra.mxu0 %v321
  %v323 = vand.u32 %v117, 4294901760
  %v324 = vsub.f32 %v117, %v323
  %v325 = vand.u32 %v324, 4294901760
  %v326 = vsub.f32 %v324, %v325
  %v327 = vand.u32 %v326, 4294901760
  %328 = vmatpush.msra.mxu0 %v327
  %v329 = vand.u32 %v116, 4294901760
  %v330 = vsub.f32 %v116, %v329
  %v331 = vand.u32 %v330, 4294901760
  %v332 = vsub.f32 %v330, %v331
  %v333 = vand.u32 %v332, 4294901760
  %334 = vmatpush.msra.mxu0 %v333
  %v335 = vand.u32 %v115, 4294901760
  %v336 = vsub.f32 %v115, %v335
  %v337 = vand.u32 %v336, 4294901760
  %v338 = vsub.f32 %v336, %v337
  %v339 = vand.u32 %v338, 4294901760
  %340 = vmatpush.msra.mxu0 %v339
  %v341 = vand.u32 %v114, 4294901760
  %v342 = vsub.f32 %v114, %v341
  %v343 = vand.u32 %v342, 4294901760
  %v344 = vsub.f32 %v342, %v343
  %v345 = vand.u32 %v344, 4294901760
  %346 = vmatpush.msra.mxu0 %v345
  %v347 = vand.u32 %v113, 4294901760
  %v348 = vsub.f32 %v113, %v347
  %v349 = vand.u32 %v348, 4294901760
  %v350 = vsub.f32 %v348, %v349
  %v351 = vand.u32 %v350, 4294901760
  %352 = vmatpush.msra.mxu0 %v351
  %v353 = vand.u32 %v112, 4294901760
  %v354 = vsub.f32 %v112, %v353
  %v355 = vand.u32 %v354, 4294901760
  %v356 = vsub.f32 %v354, %v355
  %v357 = vand.u32 %v356, 4294901760
  %358 = vmatpush.msra.mxu0 %v357
  %v359 = vand.u32 %v111, 4294901760
  %v360 = vsub.f32 %v111, %v359
  %v361 = vand.u32 %v360, 4294901760
  %v362 = vsub.f32 %v360, %v361
  %v363 = vand.u32 %v362, 4294901760
  %364 = vmatpush.msra.mxu0 %v363
  %v365 = vand.u32 %v110, 4294901760
  %v366 = vsub.f32 %v110, %v365
  %v367 = vand.u32 %v366, 4294901760
  %v368 = vsub.f32 %v366, %v367
  %v369 = vand.u32 %v368, 4294901760
  %370 = vmatpush.msra.mxu0 %v369
  %v371 = vand.u32 %v109, 4294901760
  %v372 = vsub.f32 %v109, %v371
  %v373 = vand.u32 %v372, 4294901760
  %v374 = vsub.f32 %v372, %v373
  %v375 = vand.u32 %v374, 4294901760
  %376 = vmatpush.msra.mxu0 %v375
  %v377 = vand.u32 %v108, 4294901760
  %v378 = vsub.f32 %v108, %v377
  %v379 = vand.u32 %v378, 4294901760
  %v380 = vsub.f32 %v378, %v379
  %v381 = vand.u32 %v380, 4294901760
  %382 = vmatpush.msra.mxu0 %v381
  %v383 = vand.u32 %v107, 4294901760
  %v384 = vsub.f32 %v107, %v383
  %v385 = vand.u32 %v384, 4294901760
  %v386 = vsub.f32 %v384, %v385
  %v387 = vand.u32 %v386, 4294901760
  %388 = vmatpush.msra.mxu0 %v387
  %v389 = vand.u32 %v106, 4294901760
  %v390 = vsub.f32 %v106, %v389
  %v391 = vand.u32 %v390, 4294901760
  %v392 = vsub.f32 %v390, %v391
  %v393 = vand.u32 %v392, 4294901760
  %394 = vmatpush.msra.mxu0 %v393
  %v395 = vand.u32 %v26, 4294901760
  %396 = vmatmul.f32.gmra.mxu0 %v395
  %v397 = vpop.f32.mrf.mxu0
  %v398 = vadd.f32 %v177, %v397
  %v399 = vand.u32 %v28, 4294901760
  %400 = vmatmul.f32.gmra.mxu0 %v399
  %v401 = vpop.f32.mrf.mxu0
  %v402 = vadd.f32 %v185, %v401
  %v403 = vand.u32 %v30, 4294901760
  %404 = vmatmul.f32.gmra.mxu0 %v403
  %v405 = vpop.f32.mrf.mxu0
  %v406 = vadd.f32 %v193, %v405
  %v407 = vand.u32 %v32, 4294901760
  %408 = vmatmul.f32.gmra.mxu0 %v407
  %v409 = vpop.f32.mrf.mxu0
  %v410 = vadd.f32 %v201, %v409
  %v411 = vand.u32 %v34, 4294901760
  %412 = vmatmul.f32.gmra.mxu0 %v411
  %v413 = vpop.f32.mrf.mxu0
  %v414 = vadd.f32 %v209, %v413
  %v415 = vand.u32 %v36, 4294901760
  %416 = vmatmul.f32.gmra.mxu0 %v415
  %v417 = vpop.f32.mrf.mxu0
  %v418 = vadd.f32 %v217, %v417
  %v419 = vand.u32 %v38, 4294901760
  %420 = vmatmul.f32.gmra.mxu0 %v419
  %v421 = vpop.f32.mrf.mxu0
  %v422 = vadd.f32 %v225, %v421
  %v423 = vand.u32 %v40, 4294901760
  %424 = vmatmul.f32.gmra.mxu0 %v423
  %v425 = vpop.f32.mrf.mxu0
  %v426 = vadd.f32 %v233, %v425
  %v427 = vand.u32 %v42, 4294901760
  %428 = vmatmul.f32.gmra.mxu0 %v427
  %v429 = vpop.f32.mrf.mxu0
  %v430 = vadd.f32 %v241, %v429
  %v431 = vand.u32 %v44, 4294901760
  %432 = vmatmul.f32.gmra.mxu0 %v431
  %v433 = vpop.f32.mrf.mxu0
  %v434 = vadd.f32 %v249, %v433
  %v435 = vand.u32 %v46, 4294901760
  %436 = vmatmul.f32.gmra.mxu0 %v435
  %v437 = vpop.f32.mrf.mxu0
  %v438 = vadd.f32 %v257, %v437
  %v439 = vand.u32 %v48, 4294901760
  %440 = vmatmul.f32.gmra.mxu0 %v439
  %v441 = vpop.f32.mrf.mxu0
  %v442 = vadd.f32 %v265, %v441
  %v443 = vand.u32 %v50, 4294901760
  %444 = vmatmul.f32.gmra.mxu0 %v443
  %v445 = vpop.f32.mrf.mxu0
  %v446 = vadd.f32 %v273, %v445
  %v447 = vand.u32 %v52, 4294901760
  %448 = vmatmul.f32.gmra.mxu0 %v447
  %v449 = vpop.f32.mrf.mxu0
  %v450 = vadd.f32 %v281, %v449
  %v451 = vand.u32 %v54, 4294901760
  %452 = vmatmul.f32.gmra.mxu0 %v451
  %v453 = vpop.f32.mrf.mxu0
  %v454 = vadd.f32 %v289, %v453
  %v455 = vand.u32 %v56, 4294901760
  %456 = vmatmul.f32.gmra.mxu0 %v455
  %v457 = vpop.f32.mrf.mxu0
  %v458 = vadd.f32 %v297, %v457
  %459 = vdwg.mxu0
  %v460 = vand.u32 %v121, 4294901760
  %v461 = vsub.f32 %v121, %v460
  %462 = vmatpush.msra.mxu0 %v461
  %v463 = vand.u32 %v120, 4294901760
  %v464 = vsub.f32 %v120, %v463
  %465 = vmatpush.msra.mxu0 %v464
  %v466 = vand.u32 %v119, 4294901760
  %v467 = vsub.f32 %v119, %v466
  %468 = vmatpush.msra.mxu0 %v467
  %v469 = vand.u32 %v118, 4294901760
  %v470 = vsub.f32 %v118, %v469
  %471 = vmatpush.msra.mxu0 %v470
  %v472 = vand.u32 %v117, 4294901760
  %v473 = vsub.f32 %v117, %v472
  %474 = vmatpush.msra.mxu0 %v473
  %v475 = vand.u32 %v116, 4294901760
  %v476 = vsub.f32 %v116, %v475
  %477 = vmatpush.msra.mxu0 %v476
  %v478 = vand.u32 %v115, 4294901760
  %v479 = vsub.f32 %v115, %v478
  %480 = vmatpush.msra.mxu0 %v479
  %v481 = vand.u32 %v114, 4294901760
  %v482 = vsub.f32 %v114, %v481
  %483 = vmatpush.msra.mxu0 %v482
  %v484 = vand.u32 %v113, 4294901760
  %v485 = vsub.f32 %v113, %v484
  %486 = vmatpush.msra.mxu0 %v485
  %v487 = vand.u32 %v112, 4294901760
  %v488 = vsub.f32 %v112, %v487
  %489 = vmatpush.msra.mxu0 %v488
  %v490 = vand.u32 %v111, 4294901760
  %v491 = vsub.f32 %v111, %v490
  %492 = vmatpush.msra.mxu0 %v491
  %v493 = vand.u32 %v110, 4294901760
  %v494 = vsub.f32 %v110, %v493
  %495 = vmatpush.msra.mxu0 %v494
  %v496 = vand.u32 %v109, 4294901760
  %v497 = vsub.f32 %v109, %v496
  %498 = vmatpush.msra.mxu0 %v497
  %v499 = vand.u32 %v108, 4294901760
  %v500 = vsub.f32 %v108, %v499
  %501 = vmatpush.msra.mxu0 %v500
  %v502 = vand.u32 %v107, 4294901760
  %v503 = vsub.f32 %v107, %v502
  %504 = vmatpush.msra.mxu0 %v503
  %v505 = vand.u32 %v106, 4294901760
  %v506 = vsub.f32 %v106, %v505
  %507 = vmatpush.msra.mxu0 %v506
  %v508 = vand.u32 %v26, 4294901760
  %v509 = vsub.f32 %v26, %v508
  %510 = vmatmul.f32.gmra.mxu0 %v509
  %v511 = vpop.f32.mrf.mxu0
  %v512 = vadd.f32 %v398, %v511
  %v513 = vand.u32 %v28, 4294901760
  %v514 = vsub.f32 %v28, %v513
  %515 = vmatmul.f32.gmra.mxu0 %v514
  %v516 = vpop.f32.mrf.mxu0
  %v517 = vadd.f32 %v402, %v516
  %v518 = vand.u32 %v30, 4294901760
  %v519 = vsub.f32 %v30, %v518
  %520 = vmatmul.f32.gmra.mxu0 %v519
  %v521 = vpop.f32.mrf.mxu0
  %v522 = vadd.f32 %v406, %v521
  %v523 = vand.u32 %v32, 4294901760
  %v524 = vsub.f32 %v32, %v523
  %525 = vmatmul.f32.gmra.mxu0 %v524
  %v526 = vpop.f32.mrf.mxu0
  %v527 = vadd.f32 %v410, %v526
  %v528 = vand.u32 %v34, 4294901760
  %v529 = vsub.f32 %v34, %v528
  %530 = vmatmul.f32.gmra.mxu0 %v529
  %v531 = vpop.f32.mrf.mxu0
  %v532 = vadd.f32 %v414, %v531
  %v533 = vand.u32 %v36, 4294901760
  %v534 = vsub.f32 %v36, %v533
  %535 = vmatmul.f32.gmra.mxu0 %v534
  %v536 = vpop.f32.mrf.mxu0
  %v537 = vadd.f32 %v418, %v536
  %v538 = vand.u32 %v38, 4294901760
  %v539 = vsub.f32 %v38, %v538
  %540 = vmatmul.f32.gmra.mxu0 %v539
  %v541 = vpop.f32.mrf.mxu0
  %v542 = vadd.f32 %v422, %v541
  %v543 = vand.u32 %v40, 4294901760
  %v544 = vsub.f32 %v40, %v543
  %545 = vmatmul.f32.gmra.mxu0 %v544
  %v546 = vpop.f32.mrf.mxu0
  %v547 = vadd.f32 %v426, %v546
  %v548 = vand.u32 %v42, 4294901760
  %v549 = vsub.f32 %v42, %v548
  %550 = vmatmul.f32.gmra.mxu0 %v549
  %v551 = vpop.f32.mrf.mxu0
  %v552 = vadd.f32 %v430, %v551
  %v553 = vand.u32 %v44, 4294901760
  %v554 = vsub.f32 %v44, %v553
  %555 = vmatmul.f32.gmra.mxu0 %v554
  %v556 = vpop.f32.mrf.mxu0
  %v557 = vadd.f32 %v434, %v556
  %v558 = vand.u32 %v46, 4294901760
  %v559 = vsub.f32 %v46, %v558
  %560 = vmatmul.f32.gmra.mxu0 %v559
  %v561 = vpop.f32.mrf.mxu0
  %v562 = vadd.f32 %v438, %v561
  %v563 = vand.u32 %v48, 4294901760
  %v564 = vsub.f32 %v48, %v563
  %565 = vmatmul.f32.gmra.mxu0 %v564
  %v566 = vpop.f32.mrf.mxu0
  %v567 = vadd.f32 %v442, %v566
  %v568 = vand.u32 %v50, 4294901760
  %v569 = vsub.f32 %v50, %v568
  %570 = vmatmul.f32.gmra.mxu0 %v569
  %v571 = vpop.f32.mrf.mxu0
  %v572 = vadd.f32 %v446, %v571
  %v573 = vand.u32 %v52, 4294901760
  %v574 = vsub.f32 %v52, %v573
  %575 = vmatmul.f32.gmra.mxu0 %v574
  %v576 = vpop.f32.mrf.mxu0
  %v577 = vadd.f32 %v450, %v576
  %v578 = vand.u32 %v54, 4294901760
  %v579 = vsub.f32 %v54, %v578
  %580 = vmatmul.f32.gmra.mxu0 %v579
  %v581 = vpop.f32.mrf.mxu0
  %v582 = vadd.f32 %v454, %v581
  %v583 = vand.u32 %v56, 4294901760
  %v584 = vsub.f32 %v56, %v583
  %585 = vmatmul.f32.gmra.mxu0 %v584
  %v586 = vpop.f32.mrf.mxu0
  %v587 = vadd.f32 %v458, %v586
  %588 = vdwg.mxu0
  %v589 = vand.u32 %v121, 4294901760
  %590 = vmatpush.msra.mxu0 %v589
  %v591 = vand.u32 %v120, 4294901760
  %592 = vmatpush.msra.mxu0 %v591
  %v593 = vand.u32 %v119, 4294901760
  %594 = vmatpush.msra.mxu0 %v593
  %v595 = vand.u32 %v118, 4294901760
  %596 = vmatpush.msra.mxu0 %v595
  %v597 = vand.u32 %v117, 4294901760
  %598 = vmatpush.msra.mxu0 %v597
  %v599 = vand.u32 %v116, 4294901760
  %600 = vmatpush.msra.mxu0 %v599
  %v601 = vand.u32 %v115, 4294901760
  %602 = vmatpush.msra.mxu0 %v601
  %v603 = vand.u32 %v114, 4294901760
  %604 = vmatpush.msra.mxu0 %v603
  %v605 = vand.u32 %v113, 4294901760
  %606 = vmatpush.msra.mxu0 %v605
  %v607 = vand.u32 %v112, 4294901760
  %608 = vmatpush.msra.mxu0 %v607
  %v609 = vand.u32 %v111, 4294901760
  %610 = vmatpush.msra.mxu0 %v609
  %v611 = vand.u32 %v110, 4294901760
  %612 = vmatpush.msra.mxu0 %v611
  %v613 = vand.u32 %v109, 4294901760
  %614 = vmatpush.msra.mxu0 %v613
  %v615 = vand.u32 %v108, 4294901760
  %616 = vmatpush.msra.mxu0 %v615
  %v617 = vand.u32 %v107, 4294901760
  %618 = vmatpush.msra.mxu0 %v617
  %v619 = vand.u32 %v106, 4294901760
  %620 = vmatpush.msra.mxu0 %v619
  %v621 = vand.u32 %v26, 4294901760
  %v622 = vsub.f32 %v26, %v621
  %v623 = vand.u32 %v622, 4294901760
  %624 = vmatmul.f32.gmra.mxu0 %v623
  %v625 = vpop.f32.mrf.mxu0
  %v626 = vadd.f32 %v512, %v625
  %v627 = vand.u32 %v28, 4294901760
  %v628 = vsub.f32 %v28, %v627
  %v629 = vand.u32 %v628, 4294901760
  %630 = vmatmul.f32.gmra.mxu0 %v629
  %v631 = vpop.f32.mrf.mxu0
  %v632 = vadd.f32 %v517, %v631
  %v633 = vand.u32 %v30, 4294901760
  %v634 = vsub.f32 %v30, %v633
  %v635 = vand.u32 %v634, 4294901760
  %636 = vmatmul.f32.gmra.mxu0 %v635
  %v637 = vpop.f32.mrf.mxu0
  %v638 = vadd.f32 %v522, %v637
  %v639 = vand.u32 %v32, 4294901760
  %v640 = vsub.f32 %v32, %v639
  %v641 = vand.u32 %v640, 4294901760
  %642 = vmatmul.f32.gmra.mxu0 %v641
  %v643 = vpop.f32.mrf.mxu0
  %v644 = vadd.f32 %v527, %v643
  %v645 = vand.u32 %v34, 4294901760
  %v646 = vsub.f32 %v34, %v645
  %v647 = vand.u32 %v646, 4294901760
  %648 = vmatmul.f32.gmra.mxu0 %v647
  %v649 = vpop.f32.mrf.mxu0
  %v650 = vadd.f32 %v532, %v649
  %v651 = vand.u32 %v36, 4294901760
  %v652 = vsub.f32 %v36, %v651
  %v653 = vand.u32 %v652, 4294901760
  %654 = vmatmul.f32.gmra.mxu0 %v653
  %v655 = vpop.f32.mrf.mxu0
  %v656 = vadd.f32 %v537, %v655
  %v657 = vand.u32 %v38, 4294901760
  %v658 = vsub.f32 %v38, %v657
  %v659 = vand.u32 %v658, 4294901760
  %660 = vmatmul.f32.gmra.mxu0 %v659
  %v661 = vpop.f32.mrf.mxu0
  %v662 = vadd.f32 %v542, %v661
  %v663 = vand.u32 %v40, 4294901760
  %v664 = vsub.f32 %v40, %v663
  %v665 = vand.u32 %v664, 4294901760
  %666 = vmatmul.f32.gmra.mxu0 %v665
  %v667 = vpop.f32.mrf.mxu0
  %v668 = vadd.f32 %v547, %v667
  %v669 = vand.u32 %v42, 4294901760
  %v670 = vsub.f32 %v42, %v669
  %v671 = vand.u32 %v670, 4294901760
  %672 = vmatmul.f32.gmra.mxu0 %v671
  %v673 = vpop.f32.mrf.mxu0
  %v674 = vadd.f32 %v552, %v673
  %v675 = vand.u32 %v44, 4294901760
  %v676 = vsub.f32 %v44, %v675
  %v677 = vand.u32 %v676, 4294901760
  %678 = vmatmul.f32.gmra.mxu0 %v677
  %v679 = vpop.f32.mrf.mxu0
  %v680 = vadd.f32 %v557, %v679
  %v681 = vand.u32 %v46, 4294901760
  %v682 = vsub.f32 %v46, %v681
  %v683 = vand.u32 %v682, 4294901760
  %684 = vmatmul.f32.gmra.mxu0 %v683
  %v685 = vpop.f32.mrf.mxu0
  %v686 = vadd.f32 %v562, %v685
  %v687 = vand.u32 %v48, 4294901760
  %v688 = vsub.f32 %v48, %v687
  %v689 = vand.u32 %v688, 4294901760
  %690 = vmatmul.f32.gmra.mxu0 %v689
  %v691 = vpop.f32.mrf.mxu0
  %v692 = vadd.f32 %v567, %v691
  %v693 = vand.u32 %v50, 4294901760
  %v694 = vsub.f32 %v50, %v693
  %v695 = vand.u32 %v694, 4294901760
  %696 = vmatmul.f32.gmra.mxu0 %v695
  %v697 = vpop.f32.mrf.mxu0
  %v698 = vadd.f32 %v572, %v697
  %v699 = vand.u32 %v52, 4294901760
  %v700 = vsub.f32 %v52, %v699
  %v701 = vand.u32 %v700, 4294901760
  %702 = vmatmul.f32.gmra.mxu0 %v701
  %v703 = vpop.f32.mrf.mxu0
  %v704 = vadd.f32 %v577, %v703
  %v705 = vand.u32 %v54, 4294901760
  %v706 = vsub.f32 %v54, %v705
  %v707 = vand.u32 %v706, 4294901760
  %708 = vmatmul.f32.gmra.mxu0 %v707
  %v709 = vpop.f32.mrf.mxu0
  %v710 = vadd.f32 %v582, %v709
  %v711 = vand.u32 %v56, 4294901760
  %v712 = vsub.f32 %v56, %v711
  %v713 = vand.u32 %v712, 4294901760
  %714 = vmatmul.f32.gmra.mxu0 %v713
  %v715 = vpop.f32.mrf.mxu0
  %v716 = vadd.f32 %v587, %v715
  %717 = vdwg.mxu0
  %v718 = vand.u32 %v121, 4294901760
  %v719 = vsub.f32 %v121, %v718
  %v720 = vand.u32 %v719, 4294901760
  %721 = vmatpush.msra.mxu0 %v720
  %v722 = vand.u32 %v120, 4294901760
  %v723 = vsub.f32 %v120, %v722
  %v724 = vand.u32 %v723, 4294901760
  %725 = vmatpush.msra.mxu0 %v724
  %v726 = vand.u32 %v119, 4294901760
  %v727 = vsub.f32 %v119, %v726
  %v728 = vand.u32 %v727, 4294901760
  %729 = vmatpush.msra.mxu0 %v728
  %v730 = vand.u32 %v118, 4294901760
  %v731 = vsub.f32 %v118, %v730
  %v732 = vand.u32 %v731, 4294901760
  %733 = vmatpush.msra.mxu0 %v732
  %v734 = vand.u32 %v117, 4294901760
  %v735 = vsub.f32 %v117, %v734
  %v736 = vand.u32 %v735, 4294901760
  %737 = vmatpush.msra.mxu0 %v736
  %v738 = vand.u32 %v116, 4294901760
  %v739 = vsub.f32 %v116, %v738
  %v740 = vand.u32 %v739, 4294901760
  %741 = vmatpush.msra.mxu0 %v740
  %v742 = vand.u32 %v115, 4294901760
  %v743 = vsub.f32 %v115, %v742
  %v744 = vand.u32 %v743, 4294901760
  %745 = vmatpush.msra.mxu0 %v744
  %v746 = vand.u32 %v114, 4294901760
  %v747 = vsub.f32 %v114, %v746
  %v748 = vand.u32 %v747, 4294901760
  %749 = vmatpush.msra.mxu0 %v748
  %v750 = vand.u32 %v113, 4294901760
  %v751 = vsub.f32 %v113, %v750
  %v752 = vand.u32 %v751, 4294901760
  %753 = vmatpush.msra.mxu0 %v752
  %v754 = vand.u32 %v112, 4294901760
  %v755 = vsub.f32 %v112, %v754
  %v756 = vand.u32 %v755, 4294901760
  %757 = vmatpush.msra.mxu0 %v756
  %v758 = vand.u32 %v111, 4294901760
  %v759 = vsub.f32 %v111, %v758
  %v760 = vand.u32 %v759, 4294901760
  %761 = vmatpush.msra.mxu0 %v760
  %v762 = vand.u32 %v110, 4294901760
  %v763 = vsub.f32 %v110, %v762
  %v764 = vand.u32 %v763, 4294901760
  %765 = vmatpush.msra.mxu0 %v764
  %v766 = vand.u32 %v109, 4294901760
  %v767 = vsub.f32 %v109, %v766
  %v768 = vand.u32 %v767, 4294901760
  %769 = vmatpush.msra.mxu0 %v768
  %v770 = vand.u32 %v108, 4294901760
  %v771 = vsub.f32 %v108, %v770
  %v772 = vand.u32 %v771, 4294901760
  %773 = vmatpush.msra.mxu0 %v772
  %v774 = vand.u32 %v107, 4294901760
  %v775 = vsub.f32 %v107, %v774
  %v776 = vand.u32 %v775, 4294901760
  %777 = vmatpush.msra.mxu0 %v776
  %v778 = vand.u32 %v106, 4294901760
  %v779 = vsub.f32 %v106, %v778
  %v780 = vand.u32 %v779, 4294901760
  %781 = vmatpush.msra.mxu0 %v780
  %v782 = vand.u32 %v26, 4294901760
  %783 = vmatmul.f32.gmra.mxu0 %v782
  %v784 = vpop.f32.mrf.mxu0
  %v785 = vadd.f32 %v626, %v784
  %v786 = vand.u32 %v28, 4294901760
  %787 = vmatmul.f32.gmra.mxu0 %v786
  %v788 = vpop.f32.mrf.mxu0
  %v789 = vadd.f32 %v632, %v788
  %v790 = vand.u32 %v30, 4294901760
  %791 = vmatmul.f32.gmra.mxu0 %v790
  %v792 = vpop.f32.mrf.mxu0
  %v793 = vadd.f32 %v638, %v792
  %v794 = vand.u32 %v32, 4294901760
  %795 = vmatmul.f32.gmra.mxu0 %v794
  %v796 = vpop.f32.mrf.mxu0
  %v797 = vadd.f32 %v644, %v796
  %v798 = vand.u32 %v34, 4294901760
  %799 = vmatmul.f32.gmra.mxu0 %v798
  %v800 = vpop.f32.mrf.mxu0
  %v801 = vadd.f32 %v650, %v800
  %v802 = vand.u32 %v36, 4294901760
  %803 = vmatmul.f32.gmra.mxu0 %v802
  %v804 = vpop.f32.mrf.mxu0
  %v805 = vadd.f32 %v656, %v804
  %v806 = vand.u32 %v38, 4294901760
  %807 = vmatmul.f32.gmra.mxu0 %v806
  %v808 = vpop.f32.mrf.mxu0
  %v809 = vadd.f32 %v662, %v808
  %v810 = vand.u32 %v40, 4294901760
  %811 = vmatmul.f32.gmra.mxu0 %v810
  %v812 = vpop.f32.mrf.mxu0
  %v813 = vadd.f32 %v668, %v812
  %v814 = vand.u32 %v42, 4294901760
  %815 = vmatmul.f32.gmra.mxu0 %v814
  %v816 = vpop.f32.mrf.mxu0
  %v817 = vadd.f32 %v674, %v816
  %v818 = vand.u32 %v44, 4294901760
  %819 = vmatmul.f32.gmra.mxu0 %v818
  %v820 = vpop.f32.mrf.mxu0
  %v821 = vadd.f32 %v680, %v820
  %v822 = vand.u32 %v46, 4294901760
  %823 = vmatmul.f32.gmra.mxu0 %v822
  %v824 = vpop.f32.mrf.mxu0
  %v825 = vadd.f32 %v686, %v824
  %v826 = vand.u32 %v48, 4294901760
  %827 = vmatmul.f32.gmra.mxu0 %v826
  %v828 = vpop.f32.mrf.mxu0
  %v829 = vadd.f32 %v692, %v828
  %v830 = vand.u32 %v50, 4294901760
  %831 = vmatmul.f32.gmra.mxu0 %v830
  %v832 = vpop.f32.mrf.mxu0
  %v833 = vadd.f32 %v698, %v832
  %v834 = vand.u32 %v52, 4294901760
  %835 = vmatmul.f32.gmra.mxu0 %v834
  %v836 = vpop.f32.mrf.mxu0
  %v837 = vadd.f32 %v704, %v836
  %v838 = vand.u32 %v54, 4294901760
  %839 = vmatmul.f32.gmra.mxu0 %v838
  %v840 = vpop.f32.mrf.mxu0
  %v841 = vadd.f32 %v710, %v840
  %v842 = vand.u32 %v56, 4294901760
  %843 = vmatmul.f32.gmra.mxu0 %v842
  %v844 = vpop.f32.mrf.mxu0
  %v845 = vadd.f32 %v716, %v844
  %846 = vdwg.mxu0
  %v847 = vand.u32 %v121, 4294901760
  %848 = vmatpush.msra.mxu0 %v847
  %v849 = vand.u32 %v120, 4294901760
  %850 = vmatpush.msra.mxu0 %v849
  %v851 = vand.u32 %v119, 4294901760
  %852 = vmatpush.msra.mxu0 %v851
  %v853 = vand.u32 %v118, 4294901760
  %854 = vmatpush.msra.mxu0 %v853
  %v855 = vand.u32 %v117, 4294901760
  %856 = vmatpush.msra.mxu0 %v855
  %v857 = vand.u32 %v116, 4294901760
  %858 = vmatpush.msra.mxu0 %v857
  %v859 = vand.u32 %v115, 4294901760
  %860 = vmatpush.msra.mxu0 %v859
  %v861 = vand.u32 %v114, 4294901760
  %862 = vmatpush.msra.mxu0 %v861
  %v863 = vand.u32 %v113, 4294901760
  %864 = vmatpush.msra.mxu0 %v863
  %v865 = vand.u32 %v112, 4294901760
  %866 = vmatpush.msra.mxu0 %v865
  %v867 = vand.u32 %v111, 4294901760
  %868 = vmatpush.msra.mxu0 %v867
  %v869 = vand.u32 %v110, 4294901760
  %870 = vmatpush.msra.mxu0 %v869
  %v871 = vand.u32 %v109, 4294901760
  %872 = vmatpush.msra.mxu0 %v871
  %v873 = vand.u32 %v108, 4294901760
  %874 = vmatpush.msra.mxu0 %v873
  %v875 = vand.u32 %v107, 4294901760
  %876 = vmatpush.msra.mxu0 %v875
  %v877 = vand.u32 %v106, 4294901760
  %878 = vmatpush.msra.mxu0 %v877
  %v879 = vand.u32 %v26, 4294901760
  %880 = vmatmul.f32.gmra.mxu0 %v879
  %v881 = vpop.f32.mrf.mxu0
  %v882 = vadd.f32 %v785, %v881
  %v883 = vand.u32 %v28, 4294901760
  %884 = vmatmul.f32.gmra.mxu0 %v883
  %v885 = vpop.f32.mrf.mxu0
  %v886 = vadd.f32 %v789, %v885
  %v887 = vand.u32 %v30, 4294901760
  %888 = vmatmul.f32.gmra.mxu0 %v887
  %v889 = vpop.f32.mrf.mxu0
  %v890 = vadd.f32 %v793, %v889
  %v891 = vand.u32 %v32, 4294901760
  %892 = vmatmul.f32.gmra.mxu0 %v891
  %v893 = vpop.f32.mrf.mxu0
  %v894 = vadd.f32 %v797, %v893
  %v895 = vand.u32 %v34, 4294901760
  %896 = vmatmul.f32.gmra.mxu0 %v895
  %v897 = vpop.f32.mrf.mxu0
  %v898 = vadd.f32 %v801, %v897
  %v899 = vand.u32 %v36, 4294901760
  %900 = vmatmul.f32.gmra.mxu0 %v899
  %v901 = vpop.f32.mrf.mxu0
  %v902 = vadd.f32 %v805, %v901
  %v903 = vand.u32 %v38, 4294901760
  %904 = vmatmul.f32.gmra.mxu0 %v903
  %v905 = vpop.f32.mrf.mxu0
  %v906 = vadd.f32 %v809, %v905
  %v907 = vand.u32 %v40, 4294901760
  %908 = vmatmul.f32.gmra.mxu0 %v907
  %v909 = vpop.f32.mrf.mxu0
  %v910 = vadd.f32 %v813, %v909
  %v911 = vand.u32 %v42, 4294901760
  %912 = vmatmul.f32.gmra.mxu0 %v911
  %v913 = vpop.f32.mrf.mxu0
  %v914 = vadd.f32 %v817, %v913
  %v915 = vand.u32 %v44, 4294901760
  %916 = vmatmul.f32.gmra.mxu0 %v915
  %v917 = vpop.f32.mrf.mxu0
  %v918 = vadd.f32 %v821, %v917
  %v919 = vand.u32 %v46, 4294901760
  %920 = vmatmul.f32.gmra.mxu0 %v919
  %v921 = vpop.f32.mrf.mxu0
  %v922 = vadd.f32 %v825, %v921
  %v923 = vand.u32 %v48, 4294901760
  %924 = vmatmul.f32.gmra.mxu0 %v923
  %v925 = vpop.f32.mrf.mxu0
  %v926 = vadd.f32 %v829, %v925
  %v927 = vand.u32 %v50, 4294901760
  %928 = vmatmul.f32.gmra.mxu0 %v927
  %v929 = vpop.f32.mrf.mxu0
  %v930 = vadd.f32 %v833, %v929
  %v931 = vand.u32 %v52, 4294901760
  %932 = vmatmul.f32.gmra.mxu0 %v931
  %v933 = vpop.f32.mrf.mxu0
  %v934 = vadd.f32 %v837, %v933
  %v935 = vand.u32 %v54, 4294901760
  %936 = vmatmul.f32.gmra.mxu0 %v935
  %v937 = vpop.f32.mrf.mxu0
  %v938 = vadd.f32 %v841, %v937
  %v939 = vand.u32 %v56, 4294901760
  %940 = vmatmul.f32.gmra.mxu0 %v939
  %v941 = vpop.f32.mrf.mxu0
  %v942 = vadd.f32 %v845, %v941
  %943 = vdwg.mxu0
  %v944 = vand.u32 %v137, 4294901760
  %945 = vmatpush.msra.mxu0 %v944
  %v946 = vand.u32 %v136, 4294901760
  %947 = vmatpush.msra.mxu0 %v946
  %v948 = vand.u32 %v135, 4294901760
  %949 = vmatpush.msra.mxu0 %v948
  %v950 = vand.u32 %v134, 4294901760
  %951 = vmatpush.msra.mxu0 %v950
  %v952 = vand.u32 %v133, 4294901760
  %953 = vmatpush.msra.mxu0 %v952
  %v954 = vand.u32 %v132, 4294901760
  %955 = vmatpush.msra.mxu0 %v954
  %v956 = vand.u32 %v131, 4294901760
  %957 = vmatpush.msra.mxu0 %v956
  %v958 = vand.u32 %v130, 4294901760
  %959 = vmatpush.msra.mxu0 %v958
  %v960 = vand.u32 %v129, 4294901760
  %961 = vmatpush.msra.mxu0 %v960
  %v962 = vand.u32 %v128, 4294901760
  %963 = vmatpush.msra.mxu0 %v962
  %v964 = vand.u32 %v127, 4294901760
  %965 = vmatpush.msra.mxu0 %v964
  %v966 = vand.u32 %v126, 4294901760
  %967 = vmatpush.msra.mxu0 %v966
  %v968 = vand.u32 %v125, 4294901760
  %969 = vmatpush.msra.mxu0 %v968
  %v970 = vand.u32 %v124, 4294901760
  %971 = vmatpush.msra.mxu0 %v970
  %v972 = vand.u32 %v123, 4294901760
  %973 = vmatpush.msra.mxu0 %v972
  %v974 = vand.u32 %v122, 4294901760
  %975 = vmatpush.msra.mxu0 %v974
  %v976 = vand.u32 %v27, 4294901760
  %v977 = vsub.f32 %v27, %v976
  %v978 = vand.u32 %v977, 4294901760
  %v979 = vsub.f32 %v977, %v978
  %v980 = vand.u32 %v979, 4294901760
  %981 = vmatmul.f32.gmra.mxu0 %v980
  %v982 = vpop.f32.mrf.mxu0
  %v983 = vadd.f32 %v882, %v982
  %v984 = vand.u32 %v29, 4294901760
  %v985 = vsub.f32 %v29, %v984
  %v986 = vand.u32 %v985, 4294901760
  %v987 = vsub.f32 %v985, %v986
  %v988 = vand.u32 %v987, 4294901760
  %989 = vmatmul.f32.gmra.mxu0 %v988
  %v990 = vpop.f32.mrf.mxu0
  %v991 = vadd.f32 %v886, %v990
  %v992 = vand.u32 %v31, 4294901760
  %v993 = vsub.f32 %v31, %v992
  %v994 = vand.u32 %v993, 4294901760
  %v995 = vsub.f32 %v993, %v994
  %v996 = vand.u32 %v995, 4294901760
  %997 = vmatmul.f32.gmra.mxu0 %v996
  %v998 = vpop.f32.mrf.mxu0
  %v999 = vadd.f32 %v890, %v998
  %v1000 = vand.u32 %v33, 4294901760
  %v1001 = vsub.f32 %v33, %v1000
  %v1002 = vand.u32 %v1001, 4294901760
  %v1003 = vsub.f32 %v1001, %v1002
  %v1004 = vand.u32 %v1003, 4294901760
  %1005 = vmatmul.f32.gmra.mxu0 %v1004
  %v1006 = vpop.f32.mrf.mxu0
  %v1007 = vadd.f32 %v894, %v1006
  %v1008 = vand.u32 %v35, 4294901760
  %v1009 = vsub.f32 %v35, %v1008
  %v1010 = vand.u32 %v1009, 4294901760
  %v1011 = vsub.f32 %v1009, %v1010
  %v1012 = vand.u32 %v1011, 4294901760
  %1013 = vmatmul.f32.gmra.mxu0 %v1012
  %v1014 = vpop.f32.mrf.mxu0
  %v1015 = vadd.f32 %v898, %v1014
  %v1016 = vand.u32 %v37, 4294901760
  %v1017 = vsub.f32 %v37, %v1016
  %v1018 = vand.u32 %v1017, 4294901760
  %v1019 = vsub.f32 %v1017, %v1018
  %v1020 = vand.u32 %v1019, 4294901760
  %1021 = vmatmul.f32.gmra.mxu0 %v1020
  %v1022 = vpop.f32.mrf.mxu0
  %v1023 = vadd.f32 %v902, %v1022
  %v1024 = vand.u32 %v39, 4294901760
  %v1025 = vsub.f32 %v39, %v1024
  %v1026 = vand.u32 %v1025, 4294901760
  %v1027 = vsub.f32 %v1025, %v1026
  %v1028 = vand.u32 %v1027, 4294901760
  %1029 = vmatmul.f32.gmra.mxu0 %v1028
  %v1030 = vpop.f32.mrf.mxu0
  %v1031 = vadd.f32 %v906, %v1030
  %v1032 = vand.u32 %v41, 4294901760
  %v1033 = vsub.f32 %v41, %v1032
  %v1034 = vand.u32 %v1033, 4294901760
  %v1035 = vsub.f32 %v1033, %v1034
  %v1036 = vand.u32 %v1035, 4294901760
  %1037 = vmatmul.f32.gmra.mxu0 %v1036
  %v1038 = vpop.f32.mrf.mxu0
  %v1039 = vadd.f32 %v910, %v1038
  %v1040 = vand.u32 %v43, 4294901760
  %v1041 = vsub.f32 %v43, %v1040
  %v1042 = vand.u32 %v1041, 4294901760
  %v1043 = vsub.f32 %v1041, %v1042
  %v1044 = vand.u32 %v1043, 4294901760
  %1045 = vmatmul.f32.gmra.mxu0 %v1044
  %v1046 = vpop.f32.mrf.mxu0
  %v1047 = vadd.f32 %v914, %v1046
  %v1048 = vand.u32 %v45, 4294901760
  %v1049 = vsub.f32 %v45, %v1048
  %v1050 = vand.u32 %v1049, 4294901760
  %v1051 = vsub.f32 %v1049, %v1050
  %v1052 = vand.u32 %v1051, 4294901760
  %1053 = vmatmul.f32.gmra.mxu0 %v1052
  %v1054 = vpop.f32.mrf.mxu0
  %v1055 = vadd.f32 %v918, %v1054
  %v1056 = vand.u32 %v47, 4294901760
  %v1057 = vsub.f32 %v47, %v1056
  %v1058 = vand.u32 %v1057, 4294901760
  %v1059 = vsub.f32 %v1057, %v1058
  %v1060 = vand.u32 %v1059, 4294901760
  %1061 = vmatmul.f32.gmra.mxu0 %v1060
  %v1062 = vpop.f32.mrf.mxu0
  %v1063 = vadd.f32 %v922, %v1062
  %v1064 = vand.u32 %v49, 4294901760
  %v1065 = vsub.f32 %v49, %v1064
  %v1066 = vand.u32 %v1065, 4294901760
  %v1067 = vsub.f32 %v1065, %v1066
  %v1068 = vand.u32 %v1067, 4294901760
  %1069 = vmatmul.f32.gmra.mxu0 %v1068
  %v1070 = vpop.f32.mrf.mxu0
  %v1071 = vadd.f32 %v926, %v1070
  %v1072 = vand.u32 %v51, 4294901760
  %v1073 = vsub.f32 %v51, %v1072
  %v1074 = vand.u32 %v1073, 4294901760
  %v1075 = vsub.f32 %v1073, %v1074
  %v1076 = vand.u32 %v1075, 4294901760
  %1077 = vmatmul.f32.gmra.mxu0 %v1076
  %v1078 = vpop.f32.mrf.mxu0
  %v1079 = vadd.f32 %v930, %v1078
  %v1080 = vand.u32 %v53, 4294901760
  %v1081 = vsub.f32 %v53, %v1080
  %v1082 = vand.u32 %v1081, 4294901760
  %v1083 = vsub.f32 %v1081, %v1082
  %v1084 = vand.u32 %v1083, 4294901760
  %1085 = vmatmul.f32.gmra.mxu0 %v1084
  %v1086 = vpop.f32.mrf.mxu0
  %v1087 = vadd.f32 %v934, %v1086
  %v1088 = vand.u32 %v55, 4294901760
  %v1089 = vsub.f32 %v55, %v1088
  %v1090 = vand.u32 %v1089, 4294901760
  %v1091 = vsub.f32 %v1089, %v1090
  %v1092 = vand.u32 %v1091, 4294901760
  %1093 = vmatmul.f32.gmra.mxu0 %v1092
  %v1094 = vpop.f32.mrf.mxu0
  %v1095 = vadd.f32 %v938, %v1094
  %v1096 = vand.u32 %v57, 4294901760
  %v1097 = vsub.f32 %v57, %v1096
  %v1098 = vand.u32 %v1097, 4294901760
  %v1099 = vsub.f32 %v1097, %v1098
  %v1100 = vand.u32 %v1099, 4294901760
  %1101 = vmatmul.f32.gmra.mxu0 %v1100
  %v1102 = vpop.f32.mrf.mxu0
  %v1103 = vadd.f32 %v942, %v1102
  %1104 = vdwg.mxu0
  %v1105 = vand.u32 %v137, 4294901760
  %v1106 = vsub.f32 %v137, %v1105
  %v1107 = vand.u32 %v1106, 4294901760
  %v1108 = vsub.f32 %v1106, %v1107
  %v1109 = vand.u32 %v1108, 4294901760
  %1110 = vmatpush.msra.mxu0 %v1109
  %v1111 = vand.u32 %v136, 4294901760
  %v1112 = vsub.f32 %v136, %v1111
  %v1113 = vand.u32 %v1112, 4294901760
  %v1114 = vsub.f32 %v1112, %v1113
  %v1115 = vand.u32 %v1114, 4294901760
  %1116 = vmatpush.msra.mxu0 %v1115
  %v1117 = vand.u32 %v135, 4294901760
  %v1118 = vsub.f32 %v135, %v1117
  %v1119 = vand.u32 %v1118, 4294901760
  %v1120 = vsub.f32 %v1118, %v1119
  %v1121 = vand.u32 %v1120, 4294901760
  %1122 = vmatpush.msra.mxu0 %v1121
  %v1123 = vand.u32 %v134, 4294901760
  %v1124 = vsub.f32 %v134, %v1123
  %v1125 = vand.u32 %v1124, 4294901760
  %v1126 = vsub.f32 %v1124, %v1125
  %v1127 = vand.u32 %v1126, 4294901760
  %1128 = vmatpush.msra.mxu0 %v1127
  %v1129 = vand.u32 %v133, 4294901760
  %v1130 = vsub.f32 %v133, %v1129
  %v1131 = vand.u32 %v1130, 4294901760
  %v1132 = vsub.f32 %v1130, %v1131
  %v1133 = vand.u32 %v1132, 4294901760
  %1134 = vmatpush.msra.mxu0 %v1133
  %v1135 = vand.u32 %v132, 4294901760
  %v1136 = vsub.f32 %v132, %v1135
  %v1137 = vand.u32 %v1136, 4294901760
  %v1138 = vsub.f32 %v1136, %v1137
  %v1139 = vand.u32 %v1138, 4294901760
  %1140 = vmatpush.msra.mxu0 %v1139
  %v1141 = vand.u32 %v131, 4294901760
  %v1142 = vsub.f32 %v131, %v1141
  %v1143 = vand.u32 %v1142, 4294901760
  %v1144 = vsub.f32 %v1142, %v1143
  %v1145 = vand.u32 %v1144, 4294901760
  %1146 = vmatpush.msra.mxu0 %v1145
  %v1147 = vand.u32 %v130, 4294901760
  %v1148 = vsub.f32 %v130, %v1147
  %v1149 = vand.u32 %v1148, 4294901760
  %v1150 = vsub.f32 %v1148, %v1149
  %v1151 = vand.u32 %v1150, 4294901760
  %1152 = vmatpush.msra.mxu0 %v1151
  %v1153 = vand.u32 %v129, 4294901760
  %v1154 = vsub.f32 %v129, %v1153
  %v1155 = vand.u32 %v1154, 4294901760
  %v1156 = vsub.f32 %v1154, %v1155
  %v1157 = vand.u32 %v1156, 4294901760
  %1158 = vmatpush.msra.mxu0 %v1157
  %v1159 = vand.u32 %v128, 4294901760
  %v1160 = vsub.f32 %v128, %v1159
  %v1161 = vand.u32 %v1160, 4294901760
  %v1162 = vsub.f32 %v1160, %v1161
  %v1163 = vand.u32 %v1162, 4294901760
  %1164 = vmatpush.msra.mxu0 %v1163
  %v1165 = vand.u32 %v127, 4294901760
  %v1166 = vsub.f32 %v127, %v1165
  %v1167 = vand.u32 %v1166, 4294901760
  %v1168 = vsub.f32 %v1166, %v1167
  %v1169 = vand.u32 %v1168, 4294901760
  %1170 = vmatpush.msra.mxu0 %v1169
  %v1171 = vand.u32 %v126, 4294901760
  %v1172 = vsub.f32 %v126, %v1171
  %v1173 = vand.u32 %v1172, 4294901760
  %v1174 = vsub.f32 %v1172, %v1173
  %v1175 = vand.u32 %v1174, 4294901760
  %1176 = vmatpush.msra.mxu0 %v1175
  %v1177 = vand.u32 %v125, 4294901760
  %v1178 = vsub.f32 %v125, %v1177
  %v1179 = vand.u32 %v1178, 4294901760
  %v1180 = vsub.f32 %v1178, %v1179
  %v1181 = vand.u32 %v1180, 4294901760
  %1182 = vmatpush.msra.mxu0 %v1181
  %v1183 = vand.u32 %v124, 4294901760
  %v1184 = vsub.f32 %v124, %v1183
  %v1185 = vand.u32 %v1184, 4294901760
  %v1186 = vsub.f32 %v1184, %v1185
  %v1187 = vand.u32 %v1186, 4294901760
  %1188 = vmatpush.msra.mxu0 %v1187
  %v1189 = vand.u32 %v123, 4294901760
  %v1190 = vsub.f32 %v123, %v1189
  %v1191 = vand.u32 %v1190, 4294901760
  %v1192 = vsub.f32 %v1190, %v1191
  %v1193 = vand.u32 %v1192, 4294901760
  %1194 = vmatpush.msra.mxu0 %v1193
  %v1195 = vand.u32 %v122, 4294901760
  %v1196 = vsub.f32 %v122, %v1195
  %v1197 = vand.u32 %v1196, 4294901760
  %v1198 = vsub.f32 %v1196, %v1197
  %v1199 = vand.u32 %v1198, 4294901760
  %1200 = vmatpush.msra.mxu0 %v1199
  %v1201 = vand.u32 %v27, 4294901760
  %1202 = vmatmul.f32.gmra.mxu0 %v1201
  %v1203 = vpop.f32.mrf.mxu0
  %v1204 = vadd.f32 %v983, %v1203
  %v1205 = vand.u32 %v29, 4294901760
  %1206 = vmatmul.f32.gmra.mxu0 %v1205
  %v1207 = vpop.f32.mrf.mxu0
  %v1208 = vadd.f32 %v991, %v1207
  %v1209 = vand.u32 %v31, 4294901760
  %1210 = vmatmul.f32.gmra.mxu0 %v1209
  %v1211 = vpop.f32.mrf.mxu0
  %v1212 = vadd.f32 %v999, %v1211
  %v1213 = vand.u32 %v33, 4294901760
  %1214 = vmatmul.f32.gmra.mxu0 %v1213
  %v1215 = vpop.f32.mrf.mxu0
  %v1216 = vadd.f32 %v1007, %v1215
  %v1217 = vand.u32 %v35, 4294901760
  %1218 = vmatmul.f32.gmra.mxu0 %v1217
  %v1219 = vpop.f32.mrf.mxu0
  %v1220 = vadd.f32 %v1015, %v1219
  %v1221 = vand.u32 %v37, 4294901760
  %1222 = vmatmul.f32.gmra.mxu0 %v1221
  %v1223 = vpop.f32.mrf.mxu0
  %v1224 = vadd.f32 %v1023, %v1223
  %v1225 = vand.u32 %v39, 4294901760
  %1226 = vmatmul.f32.gmra.mxu0 %v1225
  %v1227 = vpop.f32.mrf.mxu0
  %v1228 = vadd.f32 %v1031, %v1227
  %v1229 = vand.u32 %v41, 4294901760
  %1230 = vmatmul.f32.gmra.mxu0 %v1229
  %v1231 = vpop.f32.mrf.mxu0
  %v1232 = vadd.f32 %v1039, %v1231
  %v1233 = vand.u32 %v43, 4294901760
  %1234 = vmatmul.f32.gmra.mxu0 %v1233
  %v1235 = vpop.f32.mrf.mxu0
  %v1236 = vadd.f32 %v1047, %v1235
  %v1237 = vand.u32 %v45, 4294901760
  %1238 = vmatmul.f32.gmra.mxu0 %v1237
  %v1239 = vpop.f32.mrf.mxu0
  %v1240 = vadd.f32 %v1055, %v1239
  %v1241 = vand.u32 %v47, 4294901760
  %1242 = vmatmul.f32.gmra.mxu0 %v1241
  %v1243 = vpop.f32.mrf.mxu0
  %v1244 = vadd.f32 %v1063, %v1243
  %v1245 = vand.u32 %v49, 4294901760
  %1246 = vmatmul.f32.gmra.mxu0 %v1245
  %v1247 = vpop.f32.mrf.mxu0
  %v1248 = vadd.f32 %v1071, %v1247
  %v1249 = vand.u32 %v51, 4294901760
  %1250 = vmatmul.f32.gmra.mxu0 %v1249
  %v1251 = vpop.f32.mrf.mxu0
  %v1252 = vadd.f32 %v1079, %v1251
  %v1253 = vand.u32 %v53, 4294901760
  %1254 = vmatmul.f32.gmra.mxu0 %v1253
  %v1255 = vpop.f32.mrf.mxu0
  %v1256 = vadd.f32 %v1087, %v1255
  %v1257 = vand.u32 %v55, 4294901760
  %1258 = vmatmul.f32.gmra.mxu0 %v1257
  %v1259 = vpop.f32.mrf.mxu0
  %v1260 = vadd.f32 %v1095, %v1259
  %v1261 = vand.u32 %v57, 4294901760
  %1262 = vmatmul.f32.gmra.mxu0 %v1261
  %v1263 = vpop.f32.mrf.mxu0
  %v1264 = vadd.f32 %v1103, %v1263
  %1265 = vdwg.mxu0
  %v1266 = vand.u32 %v137, 4294901760
  %v1267 = vsub.f32 %v137, %v1266
  %1268 = vmatpush.msra.mxu0 %v1267
  %v1269 = vand.u32 %v136, 4294901760
  %v1270 = vsub.f32 %v136, %v1269
  %1271 = vmatpush.msra.mxu0 %v1270
  %v1272 = vand.u32 %v135, 4294901760
  %v1273 = vsub.f32 %v135, %v1272
  %1274 = vmatpush.msra.mxu0 %v1273
  %v1275 = vand.u32 %v134, 4294901760
  %v1276 = vsub.f32 %v134, %v1275
  %1277 = vmatpush.msra.mxu0 %v1276
  %v1278 = vand.u32 %v133, 4294901760
  %v1279 = vsub.f32 %v133, %v1278
  %1280 = vmatpush.msra.mxu0 %v1279
  %v1281 = vand.u32 %v132, 4294901760
  %v1282 = vsub.f32 %v132, %v1281
  %1283 = vmatpush.msra.mxu0 %v1282
  %v1284 = vand.u32 %v131, 4294901760
  %v1285 = vsub.f32 %v131, %v1284
  %1286 = vmatpush.msra.mxu0 %v1285
  %v1287 = vand.u32 %v130, 4294901760
  %v1288 = vsub.f32 %v130, %v1287
  %1289 = vmatpush.msra.mxu0 %v1288
  %v1290 = vand.u32 %v129, 4294901760
  %v1291 = vsub.f32 %v129, %v1290
  %1292 = vmatpush.msra.mxu0 %v1291
  %v1293 = vand.u32 %v128, 4294901760
  %v1294 = vsub.f32 %v128, %v1293
  %1295 = vmatpush.msra.mxu0 %v1294
  %v1296 = vand.u32 %v127, 4294901760
  %v1297 = vsub.f32 %v127, %v1296
  %1298 = vmatpush.msra.mxu0 %v1297
  %v1299 = vand.u32 %v126, 4294901760
  %v1300 = vsub.f32 %v126, %v1299
  %1301 = vmatpush.msra.mxu0 %v1300
  %v1302 = vand.u32 %v125, 4294901760
  %v1303 = vsub.f32 %v125, %v1302
  %1304 = vmatpush.msra.mxu0 %v1303
  %v1305 = vand.u32 %v124, 4294901760
  %v1306 = vsub.f32 %v124, %v1305
  %1307 = vmatpush.msra.mxu0 %v1306
  %v1308 = vand.u32 %v123, 4294901760
  %v1309 = vsub.f32 %v123, %v1308
  %1310 = vmatpush.msra.mxu0 %v1309
  %v1311 = vand.u32 %v122, 4294901760
  %v1312 = vsub.f32 %v122, %v1311
  %1313 = vmatpush.msra.mxu0 %v1312
  %v1314 = vand.u32 %v27, 4294901760
  %v1315 = vsub.f32 %v27, %v1314
  %1316 = vmatmul.f32.gmra.mxu0 %v1315
  %v1317 = vpop.f32.mrf.mxu0
  %v1318 = vadd.f32 %v1204, %v1317
  %v1319 = vand.u32 %v29, 4294901760
  %v1320 = vsub.f32 %v29, %v1319
  %1321 = vmatmul.f32.gmra.mxu0 %v1320
  %v1322 = vpop.f32.mrf.mxu0
  %v1323 = vadd.f32 %v1208, %v1322
  %v1324 = vand.u32 %v31, 4294901760
  %v1325 = vsub.f32 %v31, %v1324
  %1326 = vmatmul.f32.gmra.mxu0 %v1325
  %v1327 = vpop.f32.mrf.mxu0
  %v1328 = vadd.f32 %v1212, %v1327
  %v1329 = vand.u32 %v33, 4294901760
  %v1330 = vsub.f32 %v33, %v1329
  %1331 = vmatmul.f32.gmra.mxu0 %v1330
  %v1332 = vpop.f32.mrf.mxu0
  %v1333 = vadd.f32 %v1216, %v1332
  %v1334 = vand.u32 %v35, 4294901760
  %v1335 = vsub.f32 %v35, %v1334
  %1336 = vmatmul.f32.gmra.mxu0 %v1335
  %v1337 = vpop.f32.mrf.mxu0
  %v1338 = vadd.f32 %v1220, %v1337
  %v1339 = vand.u32 %v37, 4294901760
  %v1340 = vsub.f32 %v37, %v1339
  %1341 = vmatmul.f32.gmra.mxu0 %v1340
  %v1342 = vpop.f32.mrf.mxu0
  %v1343 = vadd.f32 %v1224, %v1342
  %v1344 = vand.u32 %v39, 4294901760
  %v1345 = vsub.f32 %v39, %v1344
  %1346 = vmatmul.f32.gmra.mxu0 %v1345
  %v1347 = vpop.f32.mrf.mxu0
  %v1348 = vadd.f32 %v1228, %v1347
  %v1349 = vand.u32 %v41, 4294901760
  %v1350 = vsub.f32 %v41, %v1349
  %1351 = vmatmul.f32.gmra.mxu0 %v1350
  %v1352 = vpop.f32.mrf.mxu0
  %v1353 = vadd.f32 %v1232, %v1352
  %v1354 = vand.u32 %v43, 4294901760
  %v1355 = vsub.f32 %v43, %v1354
  %1356 = vmatmul.f32.gmra.mxu0 %v1355
  %v1357 = vpop.f32.mrf.mxu0
  %v1358 = vadd.f32 %v1236, %v1357
  %v1359 = vand.u32 %v45, 4294901760
  %v1360 = vsub.f32 %v45, %v1359
  %1361 = vmatmul.f32.gmra.mxu0 %v1360
  %v1362 = vpop.f32.mrf.mxu0
  %v1363 = vadd.f32 %v1240, %v1362
  %v1364 = vand.u32 %v47, 4294901760
  %v1365 = vsub.f32 %v47, %v1364
  %1366 = vmatmul.f32.gmra.mxu0 %v1365
  %v1367 = vpop.f32.mrf.mxu0
  %v1368 = vadd.f32 %v1244, %v1367
  %v1369 = vand.u32 %v49, 4294901760
  %v1370 = vsub.f32 %v49, %v1369
  %1371 = vmatmul.f32.gmra.mxu0 %v1370
  %v1372 = vpop.f32.mrf.mxu0
  %v1373 = vadd.f32 %v1248, %v1372
  %v1374 = vand.u32 %v51, 4294901760
  %v1375 = vsub.f32 %v51, %v1374
  %1376 = vmatmul.f32.gmra.mxu0 %v1375
  %v1377 = vpop.f32.mrf.mxu0
  %v1378 = vadd.f32 %v1252, %v1377
  %v1379 = vand.u32 %v53, 4294901760
  %v1380 = vsub.f32 %v53, %v1379
  %1381 = vmatmul.f32.gmra.mxu0 %v1380
  %v1382 = vpop.f32.mrf.mxu0
  %v1383 = vadd.f32 %v1256, %v1382
  %v1384 = vand.u32 %v55, 4294901760
  %v1385 = vsub.f32 %v55, %v1384
  %1386 = vmatmul.f32.gmra.mxu0 %v1385
  %v1387 = vpop.f32.mrf.mxu0
  %v1388 = vadd.f32 %v1260, %v1387
  %v1389 = vand.u32 %v57, 4294901760
  %v1390 = vsub.f32 %v57, %v1389
  %1391 = vmatmul.f32.gmra.mxu0 %v1390
  %v1392 = vpop.f32.mrf.mxu0
  %v1393 = vadd.f32 %v1264, %v1392
  %1394 = vdwg.mxu0
  %v1395 = vand.u32 %v137, 4294901760
  %1396 = vmatpush.msra.mxu0 %v1395
  %v1397 = vand.u32 %v136, 4294901760
  %1398 = vmatpush.msra.mxu0 %v1397
  %v1399 = vand.u32 %v135, 4294901760
  %1400 = vmatpush.msra.mxu0 %v1399
  %v1401 = vand.u32 %v134, 4294901760
  %1402 = vmatpush.msra.mxu0 %v1401
  %v1403 = vand.u32 %v133, 4294901760
  %1404 = vmatpush.msra.mxu0 %v1403
  %v1405 = vand.u32 %v132, 4294901760
  %1406 = vmatpush.msra.mxu0 %v1405
  %v1407 = vand.u32 %v131, 4294901760
  %1408 = vmatpush.msra.mxu0 %v1407
  %v1409 = vand.u32 %v130, 4294901760
  %1410 = vmatpush.msra.mxu0 %v1409
  %v1411 = vand.u32 %v129, 4294901760
  %1412 = vmatpush.msra.mxu0 %v1411
  %v1413 = vand.u32 %v128, 4294901760
  %1414 = vmatpush.msra.mxu0 %v1413
  %v1415 = vand.u32 %v127, 4294901760
  %1416 = vmatpush.msra.mxu0 %v1415
  %v1417 = vand.u32 %v126, 4294901760
  %1418 = vmatpush.msra.mxu0 %v1417
  %v1419 = vand.u32 %v125, 4294901760
  %1420 = vmatpush.msra.mxu0 %v1419
  %v1421 = vand.u32 %v124, 4294901760
  %1422 = vmatpush.msra.mxu0 %v1421
  %v1423 = vand.u32 %v123, 4294901760
  %1424 = vmatpush.msra.mxu0 %v1423
  %v1425 = vand.u32 %v122, 4294901760
  %1426 = vmatpush.msra.mxu0 %v1425
  %v1427 = vand.u32 %v27, 4294901760
  %v1428 = vsub.f32 %v27, %v1427
  %v1429 = vand.u32 %v1428, 4294901760
  %1430 = vmatmul.f32.gmra.mxu0 %v1429
  %v1431 = vpop.f32.mrf.mxu0
  %v1432 = vadd.f32 %v1318, %v1431
  %v1433 = vand.u32 %v29, 4294901760
  %v1434 = vsub.f32 %v29, %v1433
  %v1435 = vand.u32 %v1434, 4294901760
  %1436 = vmatmul.f32.gmra.mxu0 %v1435
  %v1437 = vpop.f32.mrf.mxu0
  %v1438 = vadd.f32 %v1323, %v1437
  %v1439 = vand.u32 %v31, 4294901760
  %v1440 = vsub.f32 %v31, %v1439
  %v1441 = vand.u32 %v1440, 4294901760
  %1442 = vmatmul.f32.gmra.mxu0 %v1441
  %v1443 = vpop.f32.mrf.mxu0
  %v1444 = vadd.f32 %v1328, %v1443
  %v1445 = vand.u32 %v33, 4294901760
  %v1446 = vsub.f32 %v33, %v1445
  %v1447 = vand.u32 %v1446, 4294901760
  %1448 = vmatmul.f32.gmra.mxu0 %v1447
  %v1449 = vpop.f32.mrf.mxu0
  %v1450 = vadd.f32 %v1333, %v1449
  %v1451 = vand.u32 %v35, 4294901760
  %v1452 = vsub.f32 %v35, %v1451
  %v1453 = vand.u32 %v1452, 4294901760
  %1454 = vmatmul.f32.gmra.mxu0 %v1453
  %v1455 = vpop.f32.mrf.mxu0
  %v1456 = vadd.f32 %v1338, %v1455
  %v1457 = vand.u32 %v37, 4294901760
  %v1458 = vsub.f32 %v37, %v1457
  %v1459 = vand.u32 %v1458, 4294901760
  %1460 = vmatmul.f32.gmra.mxu0 %v1459
  %v1461 = vpop.f32.mrf.mxu0
  %v1462 = vadd.f32 %v1343, %v1461
  %v1463 = vand.u32 %v39, 4294901760
  %v1464 = vsub.f32 %v39, %v1463
  %v1465 = vand.u32 %v1464, 4294901760
  %1466 = vmatmul.f32.gmra.mxu0 %v1465
  %v1467 = vpop.f32.mrf.mxu0
  %v1468 = vadd.f32 %v1348, %v1467
  %v1469 = vand.u32 %v41, 4294901760
  %v1470 = vsub.f32 %v41, %v1469
  %v1471 = vand.u32 %v1470, 4294901760
  %1472 = vmatmul.f32.gmra.mxu0 %v1471
  %v1473 = vpop.f32.mrf.mxu0
  %v1474 = vadd.f32 %v1353, %v1473
  %v1475 = vand.u32 %v43, 4294901760
  %v1476 = vsub.f32 %v43, %v1475
  %v1477 = vand.u32 %v1476, 4294901760
  %1478 = vmatmul.f32.gmra.mxu0 %v1477
  %v1479 = vpop.f32.mrf.mxu0
  %v1480 = vadd.f32 %v1358, %v1479
  %v1481 = vand.u32 %v45, 4294901760
  %v1482 = vsub.f32 %v45, %v1481
  %v1483 = vand.u32 %v1482, 4294901760
  %1484 = vmatmul.f32.gmra.mxu0 %v1483
  %v1485 = vpop.f32.mrf.mxu0
  %v1486 = vadd.f32 %v1363, %v1485
  %v1487 = vand.u32 %v47, 4294901760
  %v1488 = vsub.f32 %v47, %v1487
  %v1489 = vand.u32 %v1488, 4294901760
  %1490 = vmatmul.f32.gmra.mxu0 %v1489
  %v1491 = vpop.f32.mrf.mxu0
  %v1492 = vadd.f32 %v1368, %v1491
  %v1493 = vand.u32 %v49, 4294901760
  %v1494 = vsub.f32 %v49, %v1493
  %v1495 = vand.u32 %v1494, 4294901760
  %1496 = vmatmul.f32.gmra.mxu0 %v1495
  %v1497 = vpop.f32.mrf.mxu0
  %v1498 = vadd.f32 %v1373, %v1497
  %v1499 = vand.u32 %v51, 4294901760
  %v1500 = vsub.f32 %v51, %v1499
  %v1501 = vand.u32 %v1500, 4294901760
  %1502 = vmatmul.f32.gmra.mxu0 %v1501
  %v1503 = vpop.f32.mrf.mxu0
  %v1504 = vadd.f32 %v1378, %v1503
  %v1505 = vand.u32 %v53, 4294901760
  %v1506 = vsub.f32 %v53, %v1505
  %v1507 = vand.u32 %v1506, 4294901760
  %1508 = vmatmul.f32.gmra.mxu0 %v1507
  %v1509 = vpop.f32.mrf.mxu0
  %v1510 = vadd.f32 %v1383, %v1509
  %v1511 = vand.u32 %v55, 4294901760
  %v1512 = vsub.f32 %v55, %v1511
  %v1513 = vand.u32 %v1512, 4294901760
  %1514 = vmatmul.f32.gmra.mxu0 %v1513
  %v1515 = vpop.f32.mrf.mxu0
  %v1516 = vadd.f32 %v1388, %v1515
  %v1517 = vand.u32 %v57, 4294901760
  %v1518 = vsub.f32 %v57, %v1517
  %v1519 = vand.u32 %v1518, 4294901760
  %1520 = vmatmul.f32.gmra.mxu0 %v1519
  %v1521 = vpop.f32.mrf.mxu0
  %v1522 = vadd.f32 %v1393, %v1521
  %1523 = vdwg.mxu0
  %v1524 = vand.u32 %v137, 4294901760
  %v1525 = vsub.f32 %v137, %v1524
  %v1526 = vand.u32 %v1525, 4294901760
  %1527 = vmatpush.msra.mxu0 %v1526
  %v1528 = vand.u32 %v136, 4294901760
  %v1529 = vsub.f32 %v136, %v1528
  %v1530 = vand.u32 %v1529, 4294901760
  %1531 = vmatpush.msra.mxu0 %v1530
  %v1532 = vand.u32 %v135, 4294901760
  %v1533 = vsub.f32 %v135, %v1532
  %v1534 = vand.u32 %v1533, 4294901760
  %1535 = vmatpush.msra.mxu0 %v1534
  %v1536 = vand.u32 %v134, 4294901760
  %v1537 = vsub.f32 %v134, %v1536
  %v1538 = vand.u32 %v1537, 4294901760
  %1539 = vmatpush.msra.mxu0 %v1538
  %v1540 = vand.u32 %v133, 4294901760
  %v1541 = vsub.f32 %v133, %v1540
  %v1542 = vand.u32 %v1541, 4294901760
  %1543 = vmatpush.msra.mxu0 %v1542
  %v1544 = vand.u32 %v132, 4294901760
  %v1545 = vsub.f32 %v132, %v1544
  %v1546 = vand.u32 %v1545, 4294901760
  %1547 = vmatpush.msra.mxu0 %v1546
  %v1548 = vand.u32 %v131, 4294901760
  %v1549 = vsub.f32 %v131, %v1548
  %v1550 = vand.u32 %v1549, 4294901760
  %1551 = vmatpush.msra.mxu0 %v1550
  %v1552 = vand.u32 %v130, 4294901760
  %v1553 = vsub.f32 %v130, %v1552
  %v1554 = vand.u32 %v1553, 4294901760
  %1555 = vmatpush.msra.mxu0 %v1554
  %v1556 = vand.u32 %v129, 4294901760
  %v1557 = vsub.f32 %v129, %v1556
  %v1558 = vand.u32 %v1557, 4294901760
  %1559 = vmatpush.msra.mxu0 %v1558
  %v1560 = vand.u32 %v128, 4294901760
  %v1561 = vsub.f32 %v128, %v1560
  %v1562 = vand.u32 %v1561, 4294901760
  %1563 = vmatpush.msra.mxu0 %v1562
  %v1564 = vand.u32 %v127, 4294901760
  %v1565 = vsub.f32 %v127, %v1564
  %v1566 = vand.u32 %v1565, 4294901760
  %1567 = vmatpush.msra.mxu0 %v1566
  %v1568 = vand.u32 %v126, 4294901760
  %v1569 = vsub.f32 %v126, %v1568
  %v1570 = vand.u32 %v1569, 4294901760
  %1571 = vmatpush.msra.mxu0 %v1570
  %v1572 = vand.u32 %v125, 4294901760
  %v1573 = vsub.f32 %v125, %v1572
  %v1574 = vand.u32 %v1573, 4294901760
  %1575 = vmatpush.msra.mxu0 %v1574
  %v1576 = vand.u32 %v124, 4294901760
  %v1577 = vsub.f32 %v124, %v1576
  %v1578 = vand.u32 %v1577, 4294901760
  %1579 = vmatpush.msra.mxu0 %v1578
  %v1580 = vand.u32 %v123, 4294901760
  %v1581 = vsub.f32 %v123, %v1580
  %v1582 = vand.u32 %v1581, 4294901760
  %1583 = vmatpush.msra.mxu0 %v1582
  %v1584 = vand.u32 %v122, 4294901760
  %v1585 = vsub.f32 %v122, %v1584
  %v1586 = vand.u32 %v1585, 4294901760
  %1587 = vmatpush.msra.mxu0 %v1586
  %v1588 = vand.u32 %v27, 4294901760
  %1589 = vmatmul.f32.gmra.mxu0 %v1588
  %v1590 = vpop.f32.mrf.mxu0
  %v1591 = vadd.f32 %v1432, %v1590
  %v1592 = vand.u32 %v29, 4294901760
  %1593 = vmatmul.f32.gmra.mxu0 %v1592
  %v1594 = vpop.f32.mrf.mxu0
  %v1595 = vadd.f32 %v1438, %v1594
  %v1596 = vand.u32 %v31, 4294901760
  %1597 = vmatmul.f32.gmra.mxu0 %v1596
  %v1598 = vpop.f32.mrf.mxu0
  %v1599 = vadd.f32 %v1444, %v1598
  %v1600 = vand.u32 %v33, 4294901760
  %1601 = vmatmul.f32.gmra.mxu0 %v1600
  %v1602 = vpop.f32.mrf.mxu0
  %v1603 = vadd.f32 %v1450, %v1602
  %v1604 = vand.u32 %v35, 4294901760
  %1605 = vmatmul.f32.gmra.mxu0 %v1604
  %v1606 = vpop.f32.mrf.mxu0
  %v1607 = vadd.f32 %v1456, %v1606
  %v1608 = vand.u32 %v37, 4294901760
  %1609 = vmatmul.f32.gmra.mxu0 %v1608
  %v1610 = vpop.f32.mrf.mxu0
  %v1611 = vadd.f32 %v1462, %v1610
  %v1612 = vand.u32 %v39, 4294901760
  %1613 = vmatmul.f32.gmra.mxu0 %v1612
  %v1614 = vpop.f32.mrf.mxu0
  %v1615 = vadd.f32 %v1468, %v1614
  %v1616 = vand.u32 %v41, 4294901760
  %1617 = vmatmul.f32.gmra.mxu0 %v1616
  %v1618 = vpop.f32.mrf.mxu0
  %v1619 = vadd.f32 %v1474, %v1618
  %v1620 = vand.u32 %v43, 4294901760
  %1621 = vmatmul.f32.gmra.mxu0 %v1620
  %v1622 = vpop.f32.mrf.mxu0
  %v1623 = vadd.f32 %v1480, %v1622
  %v1624 = vand.u32 %v45, 4294901760
  %1625 = vmatmul.f32.gmra.mxu0 %v1624
  %v1626 = vpop.f32.mrf.mxu0
  %v1627 = vadd.f32 %v1486, %v1626
  %v1628 = vand.u32 %v47, 4294901760
  %1629 = vmatmul.f32.gmra.mxu0 %v1628
  %v1630 = vpop.f32.mrf.mxu0
  %v1631 = vadd.f32 %v1492, %v1630
  %v1632 = vand.u32 %v49, 4294901760
  %1633 = vmatmul.f32.gmra.mxu0 %v1632
  %v1634 = vpop.f32.mrf.mxu0
  %v1635 = vadd.f32 %v1498, %v1634
  %v1636 = vand.u32 %v51, 4294901760
  %1637 = vmatmul.f32.gmra.mxu0 %v1636
  %v1638 = vpop.f32.mrf.mxu0
  %v1639 = vadd.f32 %v1504, %v1638
  %v1640 = vand.u32 %v53, 4294901760
  %1641 = vmatmul.f32.gmra.mxu0 %v1640
  %v1642 = vpop.f32.mrf.mxu0
  %v1643 = vadd.f32 %v1510, %v1642
  %v1644 = vand.u32 %v55, 4294901760
  %1645 = vmatmul.f32.gmra.mxu0 %v1644
  %v1646 = vpop.f32.mrf.mxu0
  %v1647 = vadd.f32 %v1516, %v1646
  %v1648 = vand.u32 %v57, 4294901760
  %1649 = vmatmul.f32.gmra.mxu0 %v1648
  %v1650 = vpop.f32.mrf.mxu0
  %v1651 = vadd.f32 %v1522, %v1650
  %1652 = vdwg.mxu0
  %v1653 = vand.u32 %v137, 4294901760
  %1654 = vmatpush.msra.mxu0 %v1653
  %v1655 = vand.u32 %v136, 4294901760
  %1656 = vmatpush.msra.mxu0 %v1655
  %v1657 = vand.u32 %v135, 4294901760
  %1658 = vmatpush.msra.mxu0 %v1657
  %v1659 = vand.u32 %v134, 4294901760
  %1660 = vmatpush.msra.mxu0 %v1659
  %v1661 = vand.u32 %v133, 4294901760
  %1662 = vmatpush.msra.mxu0 %v1661
  %v1663 = vand.u32 %v132, 4294901760
  %1664 = vmatpush.msra.mxu0 %v1663
  %v1665 = vand.u32 %v131, 4294901760
  %1666 = vmatpush.msra.mxu0 %v1665
  %v1667 = vand.u32 %v130, 4294901760
  %1668 = vmatpush.msra.mxu0 %v1667
  %v1669 = vand.u32 %v129, 4294901760
  %1670 = vmatpush.msra.mxu0 %v1669
  %v1671 = vand.u32 %v128, 4294901760
  %1672 = vmatpush.msra.mxu0 %v1671
  %v1673 = vand.u32 %v127, 4294901760
  %1674 = vmatpush.msra.mxu0 %v1673
  %v1675 = vand.u32 %v126, 4294901760
  %1676 = vmatpush.msra.mxu0 %v1675
  %v1677 = vand.u32 %v125, 4294901760
  %1678 = vmatpush.msra.mxu0 %v1677
  %v1679 = vand.u32 %v124, 4294901760
  %1680 = vmatpush.msra.mxu0 %v1679
  %v1681 = vand.u32 %v123, 4294901760
  %1682 = vmatpush.msra.mxu0 %v1681
  %v1683 = vand.u32 %v122, 4294901760
  %1684 = vmatpush.msra.mxu0 %v1683
  %v1685 = vand.u32 %v27, 4294901760
  %1686 = vmatmul.f32.gmra.mxu0 %v1685
  %v1687 = vpop.f32.mrf.mxu0
  %v1688 = vadd.f32 %v1591, %v1687
  %v1689 = vand.u32 %v29, 4294901760
  %1690 = vmatmul.f32.gmra.mxu0 %v1689
  %v1691 = vpop.f32.mrf.mxu0
  %v1692 = vadd.f32 %v1595, %v1691
  %v1693 = vand.u32 %v31, 4294901760
  %1694 = vmatmul.f32.gmra.mxu0 %v1693
  %v1695 = vpop.f32.mrf.mxu0
  %v1696 = vadd.f32 %v1599, %v1695
  %v1697 = vand.u32 %v33, 4294901760
  %1698 = vmatmul.f32.gmra.mxu0 %v1697
  %v1699 = vpop.f32.mrf.mxu0
  %v1700 = vadd.f32 %v1603, %v1699
  %v1701 = vand.u32 %v35, 4294901760
  %1702 = vmatmul.f32.gmra.mxu0 %v1701
  %v1703 = vpop.f32.mrf.mxu0
  %v1704 = vadd.f32 %v1607, %v1703
  %v1705 = vand.u32 %v37, 4294901760
  %1706 = vmatmul.f32.gmra.mxu0 %v1705
  %v1707 = vpop.f32.mrf.mxu0
  %v1708 = vadd.f32 %v1611, %v1707
  %v1709 = vand.u32 %v39, 4294901760
  %1710 = vmatmul.f32.gmra.mxu0 %v1709
  %v1711 = vpop.f32.mrf.mxu0
  %v1712 = vadd.f32 %v1615, %v1711
  %v1713 = vand.u32 %v41, 4294901760
  %1714 = vmatmul.f32.gmra.mxu0 %v1713
  %v1715 = vpop.f32.mrf.mxu0
  %v1716 = vadd.f32 %v1619, %v1715
  %v1717 = vand.u32 %v43, 4294901760
  %1718 = vmatmul.f32.gmra.mxu0 %v1717
  %v1719 = vpop.f32.mrf.mxu0
  %v1720 = vadd.f32 %v1623, %v1719
  %v1721 = vand.u32 %v45, 4294901760
  %1722 = vmatmul.f32.gmra.mxu0 %v1721
  %v1723 = vpop.f32.mrf.mxu0
  %v1724 = vadd.f32 %v1627, %v1723
  %v1725 = vand.u32 %v47, 4294901760
  %1726 = vmatmul.f32.gmra.mxu0 %v1725
  %v1727 = vpop.f32.mrf.mxu0
  %v1728 = vadd.f32 %v1631, %v1727
  %v1729 = vand.u32 %v49, 4294901760
  %1730 = vmatmul.f32.gmra.mxu0 %v1729
  %v1731 = vpop.f32.mrf.mxu0
  %v1732 = vadd.f32 %v1635, %v1731
  %v1733 = vand.u32 %v51, 4294901760
  %1734 = vmatmul.f32.gmra.mxu0 %v1733
  %v1735 = vpop.f32.mrf.mxu0
  %v1736 = vadd.f32 %v1639, %v1735
  %v1737 = vand.u32 %v53, 4294901760
  %1738 = vmatmul.f32.gmra.mxu0 %v1737
  %v1739 = vpop.f32.mrf.mxu0
  %v1740 = vadd.f32 %v1643, %v1739
  %v1741 = vand.u32 %v55, 4294901760
  %1742 = vmatmul.f32.gmra.mxu0 %v1741
  %v1743 = vpop.f32.mrf.mxu0
  %v1744 = vadd.f32 %v1647, %v1743
  %v1745 = vand.u32 %v57, 4294901760
  %1746 = vmatmul.f32.gmra.mxu0 %v1745
  %v1747 = vpop.f32.mrf.mxu0
  %v1748 = vadd.f32 %v1651, %v1747
  %1749 = vdwg.mxu0
  %v1750 = vld [vmem:[%s4] sm:$0xff]
  %v1751 = vld [vmem:[%s4 + $0x8] sm:$0xff]
  %v1752 = vld [vmem:[%s4 + $0x10] sm:$0xff]
  %v1753 = vld [vmem:[%s4 + $0x18] sm:$0xff]
  %v1754 = vld [vmem:[%s4 + $0x20] sm:$0xff]
  %v1755 = vld [vmem:[%s4 + $0x28] sm:$0xff]
  %v1756 = vld [vmem:[%s4 + $0x30] sm:$0xff]
  %v1757 = vld [vmem:[%s4 + $0x38] sm:$0xff]
  %v1758 = vld [vmem:[%s4 + $0x40] sm:$0xff]
  %v1759 = vld [vmem:[%s4 + $0x48] sm:$0xff]
  %v1760 = vld [vmem:[%s4 + $0x50] sm:$0xff]
  %v1761 = vld [vmem:[%s4 + $0x58] sm:$0xff]
  %v1762 = vld [vmem:[%s4 + $0x60] sm:$0xff]
  %v1763 = vld [vmem:[%s4 + $0x68] sm:$0xff]
  %v1764 = vld [vmem:[%s4 + $0x70] sm:$0xff]
  %v1765 = vld [vmem:[%s4 + $0x78] sm:$0xff]
  %1767 = vset.pattern.permute.xlu0 0
  %1768 = vperm.xlu0 %1767, %v90
  %v1769 = vpop.permute.xlu0 %1768
  %1772 = vset.pattern.permute.xlu0 0
  %1773 = vperm.xlu0 %1772, %v91
  %v1774 = vpop.permute.xlu0 %1773
  %1777 = vset.pattern.permute.xlu0 0
  %1778 = vperm.xlu0 %1777, %v92
  %v1779 = vpop.permute.xlu0 %1778
  %1782 = vset.pattern.permute.xlu0 0
  %1783 = vperm.xlu0 %1782, %v93
  %v1784 = vpop.permute.xlu0 %1783
  %1787 = vset.pattern.permute.xlu0 0
  %1788 = vperm.xlu0 %1787, %v94
  %v1789 = vpop.permute.xlu0 %1788
  %1792 = vset.pattern.permute.xlu0 0
  %1793 = vperm.xlu0 %1792, %v95
  %v1794 = vpop.permute.xlu0 %1793
  %1797 = vset.pattern.permute.xlu0 0
  %1798 = vperm.xlu0 %1797, %v96
  %v1799 = vpop.permute.xlu0 %1798
  %1802 = vset.pattern.permute.xlu0 0
  %1803 = vperm.xlu0 %1802, %v97
  %v1804 = vpop.permute.xlu0 %1803
  %1807 = vset.pattern.permute.xlu0 0
  %1808 = vperm.xlu0 %1807, %v98
  %v1809 = vpop.permute.xlu0 %1808
  %1812 = vset.pattern.permute.xlu0 0
  %1813 = vperm.xlu0 %1812, %v99
  %v1814 = vpop.permute.xlu0 %1813
  %1817 = vset.pattern.permute.xlu0 0
  %1818 = vperm.xlu0 %1817, %v100
  %v1819 = vpop.permute.xlu0 %1818
  %1822 = vset.pattern.permute.xlu0 0
  %1823 = vperm.xlu0 %1822, %v101
  %v1824 = vpop.permute.xlu0 %1823
  %1827 = vset.pattern.permute.xlu0 0
  %1828 = vperm.xlu0 %1827, %v102
  %v1829 = vpop.permute.xlu0 %1828
  %1832 = vset.pattern.permute.xlu0 0
  %1833 = vperm.xlu0 %1832, %v103
  %v1834 = vpop.permute.xlu0 %1833
  %1837 = vset.pattern.permute.xlu0 0
  %1838 = vperm.xlu0 %1837, %v104
  %v1839 = vpop.permute.xlu0 %1838
  %1842 = vset.pattern.permute.xlu0 0
  %1843 = vperm.xlu0 %1842, %v105
  %v1844 = vpop.permute.xlu0 %1843
  %v1846 = vand.u32 %v1748, 4294901760
  %1847 = vmatpush.msra.mxu0 %v1846
  %v1848 = vand.u32 %v1744, 4294901760
  %1849 = vmatpush.msra.mxu0 %v1848
  %v1850 = vand.u32 %v1740, 4294901760
  %1851 = vmatpush.msra.mxu0 %v1850
  %v1852 = vand.u32 %v1736, 4294901760
  %1853 = vmatpush.msra.mxu0 %v1852
  %v1854 = vand.u32 %v1732, 4294901760
  %1855 = vmatpush.msra.mxu0 %v1854
  %v1856 = vand.u32 %v1728, 4294901760
  %1857 = vmatpush.msra.mxu0 %v1856
  %v1858 = vand.u32 %v1724, 4294901760
  %1859 = vmatpush.msra.mxu0 %v1858
  %v1860 = vand.u32 %v1720, 4294901760
  %1861 = vmatpush.msra.mxu0 %v1860
  %v1862 = vand.u32 %v1716, 4294901760
  %1863 = vmatpush.msra.mxu0 %v1862
  %v1864 = vand.u32 %v1712, 4294901760
  %1865 = vmatpush.msra.mxu0 %v1864
  %v1866 = vand.u32 %v1708, 4294901760
  %1867 = vmatpush.msra.mxu0 %v1866
  %v1868 = vand.u32 %v1704, 4294901760
  %1869 = vmatpush.msra.mxu0 %v1868
  %v1870 = vand.u32 %v1700, 4294901760
  %1871 = vmatpush.msra.mxu0 %v1870
  %v1872 = vand.u32 %v1696, 4294901760
  %1873 = vmatpush.msra.mxu0 %v1872
  %v1874 = vand.u32 %v1692, 4294901760
  %1875 = vmatpush.msra.mxu0 %v1874
  %v1876 = vand.u32 %v1688, 4294901760
  %1877 = vmatpush.msra.mxu0 %v1876
  %v1878 = vand.u32 %v1750, 4294901760
  %v1879 = vsub.f32 %v1750, %v1878
  %v1880 = vand.u32 %v1879, 4294901760
  %v1881 = vsub.f32 %v1879, %v1880
  %v1882 = vand.u32 %v1881, 4294901760
  %1883 = vmatmul.f32.gmra.mxu0 %v1882
  %v1884 = vpop.f32.mrf.mxu0
  %v1885 = vadd.f32 %v1769, %v1884
  %v1886 = vand.u32 %v1751, 4294901760
  %v1887 = vsub.f32 %v1751, %v1886
  %v1888 = vand.u32 %v1887, 4294901760
  %v1889 = vsub.f32 %v1887, %v1888
  %v1890 = vand.u32 %v1889, 4294901760
  %1891 = vmatmul.f32.gmra.mxu0 %v1890
  %v1892 = vpop.f32.mrf.mxu0
  %v1893 = vadd.f32 %v1774, %v1892
  %v1894 = vand.u32 %v1752, 4294901760
  %v1895 = vsub.f32 %v1752, %v1894
  %v1896 = vand.u32 %v1895, 4294901760
  %v1897 = vsub.f32 %v1895, %v1896
  %v1898 = vand.u32 %v1897, 4294901760
  %1899 = vmatmul.f32.gmra.mxu0 %v1898
  %v1900 = vpop.f32.mrf.mxu0
  %v1901 = vadd.f32 %v1779, %v1900
  %v1902 = vand.u32 %v1753, 4294901760
  %v1903 = vsub.f32 %v1753, %v1902
  %v1904 = vand.u32 %v1903, 4294901760
  %v1905 = vsub.f32 %v1903, %v1904
  %v1906 = vand.u32 %v1905, 4294901760
  %1907 = vmatmul.f32.gmra.mxu0 %v1906
  %v1908 = vpop.f32.mrf.mxu0
  %v1909 = vadd.f32 %v1784, %v1908
  %v1910 = vand.u32 %v1754, 4294901760
  %v1911 = vsub.f32 %v1754, %v1910
  %v1912 = vand.u32 %v1911, 4294901760
  %v1913 = vsub.f32 %v1911, %v1912
  %v1914 = vand.u32 %v1913, 4294901760
  %1915 = vmatmul.f32.gmra.mxu0 %v1914
  %v1916 = vpop.f32.mrf.mxu0
  %v1917 = vadd.f32 %v1789, %v1916
  %v1918 = vand.u32 %v1755, 4294901760
  %v1919 = vsub.f32 %v1755, %v1918
  %v1920 = vand.u32 %v1919, 4294901760
  %v1921 = vsub.f32 %v1919, %v1920
  %v1922 = vand.u32 %v1921, 4294901760
  %1923 = vmatmul.f32.gmra.mxu0 %v1922
  %v1924 = vpop.f32.mrf.mxu0
  %v1925 = vadd.f32 %v1794, %v1924
  %v1926 = vand.u32 %v1756, 4294901760
  %v1927 = vsub.f32 %v1756, %v1926
  %v1928 = vand.u32 %v1927, 4294901760
  %v1929 = vsub.f32 %v1927, %v1928
  %v1930 = vand.u32 %v1929, 4294901760
  %1931 = vmatmul.f32.gmra.mxu0 %v1930
  %v1932 = vpop.f32.mrf.mxu0
  %v1933 = vadd.f32 %v1799, %v1932
  %v1934 = vand.u32 %v1757, 4294901760
  %v1935 = vsub.f32 %v1757, %v1934
  %v1936 = vand.u32 %v1935, 4294901760
  %v1937 = vsub.f32 %v1935, %v1936
  %v1938 = vand.u32 %v1937, 4294901760
  %1939 = vmatmul.f32.gmra.mxu0 %v1938
  %v1940 = vpop.f32.mrf.mxu0
  %v1941 = vadd.f32 %v1804, %v1940
  %v1942 = vand.u32 %v1758, 4294901760
  %v1943 = vsub.f32 %v1758, %v1942
  %v1944 = vand.u32 %v1943, 4294901760
  %v1945 = vsub.f32 %v1943, %v1944
  %v1946 = vand.u32 %v1945, 4294901760
  %1947 = vmatmul.f32.gmra.mxu0 %v1946
  %v1948 = vpop.f32.mrf.mxu0
  %v1949 = vadd.f32 %v1809, %v1948
  %v1950 = vand.u32 %v1759, 4294901760
  %v1951 = vsub.f32 %v1759, %v1950
  %v1952 = vand.u32 %v1951, 4294901760
  %v1953 = vsub.f32 %v1951, %v1952
  %v1954 = vand.u32 %v1953, 4294901760
  %1955 = vmatmul.f32.gmra.mxu0 %v1954
  %v1956 = vpop.f32.mrf.mxu0
  %v1957 = vadd.f32 %v1814, %v1956
  %v1958 = vand.u32 %v1760, 4294901760
  %v1959 = vsub.f32 %v1760, %v1958
  %v1960 = vand.u32 %v1959, 4294901760
  %v1961 = vsub.f32 %v1959, %v1960
  %v1962 = vand.u32 %v1961, 4294901760
  %1963 = vmatmul.f32.gmra.mxu0 %v1962
  %v1964 = vpop.f32.mrf.mxu0
  %v1965 = vadd.f32 %v1819, %v1964
  %v1966 = vand.u32 %v1761, 4294901760
  %v1967 = vsub.f32 %v1761, %v1966
  %v1968 = vand.u32 %v1967, 4294901760
  %v1969 = vsub.f32 %v1967, %v1968
  %v1970 = vand.u32 %v1969, 4294901760
  %1971 = vmatmul.f32.gmra.mxu0 %v1970
  %v1972 = vpop.f32.mrf.mxu0
  %v1973 = vadd.f32 %v1824, %v1972
  %v1974 = vand.u32 %v1762, 4294901760
  %v1975 = vsub.f32 %v1762, %v1974
  %v1976 = vand.u32 %v1975, 4294901760
  %v1977 = vsub.f32 %v1975, %v1976
  %v1978 = vand.u32 %v1977, 4294901760
  %1979 = vmatmul.f32.gmra.mxu0 %v1978
  %v1980 = vpop.f32.mrf.mxu0
  %v1981 = vadd.f32 %v1829, %v1980
  %v1982 = vand.u32 %v1763, 4294901760
  %v1983 = vsub.f32 %v1763, %v1982
  %v1984 = vand.u32 %v1983, 4294901760
  %v1985 = vsub.f32 %v1983, %v1984
  %v1986 = vand.u32 %v1985, 4294901760
  %1987 = vmatmul.f32.gmra.mxu0 %v1986
  %v1988 = vpop.f32.mrf.mxu0
  %v1989 = vadd.f32 %v1834, %v1988
  %v1990 = vand.u32 %v1764, 4294901760
  %v1991 = vsub.f32 %v1764, %v1990
  %v1992 = vand.u32 %v1991, 4294901760
  %v1993 = vsub.f32 %v1991, %v1992
  %v1994 = vand.u32 %v1993, 4294901760
  %1995 = vmatmul.f32.gmra.mxu0 %v1994
  %v1996 = vpop.f32.mrf.mxu0
  %v1997 = vadd.f32 %v1839, %v1996
  %v1998 = vand.u32 %v1765, 4294901760
  %v1999 = vsub.f32 %v1765, %v1998
  %v2000 = vand.u32 %v1999, 4294901760
  %v2001 = vsub.f32 %v1999, %v2000
  %v2002 = vand.u32 %v2001, 4294901760
  %2003 = vmatmul.f32.gmra.mxu0 %v2002
  %v2004 = vpop.f32.mrf.mxu0
  %v2005 = vadd.f32 %v1844, %v2004
  %2006 = vdwg.mxu0
  %v2007 = vand.u32 %v1748, 4294901760
  %v2008 = vsub.f32 %v1748, %v2007
  %v2009 = vand.u32 %v2008, 4294901760
  %v2010 = vsub.f32 %v2008, %v2009
  %v2011 = vand.u32 %v2010, 4294901760
  %2012 = vmatpush.msra.mxu0 %v2011
  %v2013 = vand.u32 %v1744, 4294901760
  %v2014 = vsub.f32 %v1744, %v2013
  %v2015 = vand.u32 %v2014, 4294901760
  %v2016 = vsub.f32 %v2014, %v2015
  %v2017 = vand.u32 %v2016, 4294901760
  %2018 = vmatpush.msra.mxu0 %v2017
  %v2019 = vand.u32 %v1740, 4294901760
  %v2020 = vsub.f32 %v1740, %v2019
  %v2021 = vand.u32 %v2020, 4294901760
  %v2022 = vsub.f32 %v2020, %v2021
  %v2023 = vand.u32 %v2022, 4294901760
  %2024 = vmatpush.msra.mxu0 %v2023
  %v2025 = vand.u32 %v1736, 4294901760
  %v2026 = vsub.f32 %v1736, %v2025
  %v2027 = vand.u32 %v2026, 4294901760
  %v2028 = vsub.f32 %v2026, %v2027
  %v2029 = vand.u32 %v2028, 4294901760
  %2030 = vmatpush.msra.mxu0 %v2029
  %v2031 = vand.u32 %v1732, 4294901760
  %v2032 = vsub.f32 %v1732, %v2031
  %v2033 = vand.u32 %v2032, 4294901760
  %v2034 = vsub.f32 %v2032, %v2033
  %v2035 = vand.u32 %v2034, 4294901760
  %2036 = vmatpush.msra.mxu0 %v2035
  %v2037 = vand.u32 %v1728, 4294901760
  %v2038 = vsub.f32 %v1728, %v2037
  %v2039 = vand.u32 %v2038, 4294901760
  %v2040 = vsub.f32 %v2038, %v2039
  %v2041 = vand.u32 %v2040, 4294901760
  %2042 = vmatpush.msra.mxu0 %v2041
  %v2043 = vand.u32 %v1724, 4294901760
  %v2044 = vsub.f32 %v1724, %v2043
  %v2045 = vand.u32 %v2044, 4294901760
  %v2046 = vsub.f32 %v2044, %v2045
  %v2047 = vand.u32 %v2046, 4294901760
  %2048 = vmatpush.msra.mxu0 %v2047
  %v2049 = vand.u32 %v1720, 4294901760
  %v2050 = vsub.f32 %v1720, %v2049
  %v2051 = vand.u32 %v2050, 4294901760
  %v2052 = vsub.f32 %v2050, %v2051
  %v2053 = vand.u32 %v2052, 4294901760
  %2054 = vmatpush.msra.mxu0 %v2053
  %v2055 = vand.u32 %v1716, 4294901760
  %v2056 = vsub.f32 %v1716, %v2055
  %v2057 = vand.u32 %v2056, 4294901760
  %v2058 = vsub.f32 %v2056, %v2057
  %v2059 = vand.u32 %v2058, 4294901760
  %2060 = vmatpush.msra.mxu0 %v2059
  %v2061 = vand.u32 %v1712, 4294901760
  %v2062 = vsub.f32 %v1712, %v2061
  %v2063 = vand.u32 %v2062, 4294901760
  %v2064 = vsub.f32 %v2062, %v2063
  %v2065 = vand.u32 %v2064, 4294901760
  %2066 = vmatpush.msra.mxu0 %v2065
  %v2067 = vand.u32 %v1708, 4294901760
  %v2068 = vsub.f32 %v1708, %v2067
  %v2069 = vand.u32 %v2068, 4294901760
  %v2070 = vsub.f32 %v2068, %v2069
  %v2071 = vand.u32 %v2070, 4294901760
  %2072 = vmatpush.msra.mxu0 %v2071
  %v2073 = vand.u32 %v1704, 4294901760
  %v2074 = vsub.f32 %v1704, %v2073
  %v2075 = vand.u32 %v2074, 4294901760
  %v2076 = vsub.f32 %v2074, %v2075
  %v2077 = vand.u32 %v2076, 4294901760
  %2078 = vmatpush.msra.mxu0 %v2077
  %v2079 = vand.u32 %v1700, 4294901760
  %v2080 = vsub.f32 %v1700, %v2079
  %v2081 = vand.u32 %v2080, 4294901760
  %v2082 = vsub.f32 %v2080, %v2081
  %v2083 = vand.u32 %v2082, 4294901760
  %2084 = vmatpush.msra.mxu0 %v2083
  %v2085 = vand.u32 %v1696, 4294901760
  %v2086 = vsub.f32 %v1696, %v2085
  %v2087 = vand.u32 %v2086, 4294901760
  %v2088 = vsub.f32 %v2086, %v2087
  %v2089 = vand.u32 %v2088, 4294901760
  %2090 = vmatpush.msra.mxu0 %v2089
  %v2091 = vand.u32 %v1692, 4294901760
  %v2092 = vsub.f32 %v1692, %v2091
  %v2093 = vand.u32 %v2092, 4294901760
  %v2094 = vsub.f32 %v2092, %v2093
  %v2095 = vand.u32 %v2094, 4294901760
  %2096 = vmatpush.msra.mxu0 %v2095
  %v2097 = vand.u32 %v1688, 4294901760
  %v2098 = vsub.f32 %v1688, %v2097
  %v2099 = vand.u32 %v2098, 4294901760
  %v2100 = vsub.f32 %v2098, %v2099
  %v2101 = vand.u32 %v2100, 4294901760
  %2102 = vmatpush.msra.mxu0 %v2101
  %v2103 = vand.u32 %v1750, 4294901760
  %2104 = vmatmul.f32.gmra.mxu0 %v2103
  %v2105 = vpop.f32.mrf.mxu0
  %v2106 = vadd.f32 %v1885, %v2105
  %v2107 = vand.u32 %v1751, 4294901760
  %2108 = vmatmul.f32.gmra.mxu0 %v2107
  %v2109 = vpop.f32.mrf.mxu0
  %v2110 = vadd.f32 %v1893, %v2109
  %v2111 = vand.u32 %v1752, 4294901760
  %2112 = vmatmul.f32.gmra.mxu0 %v2111
  %v2113 = vpop.f32.mrf.mxu0
  %v2114 = vadd.f32 %v1901, %v2113
  %v2115 = vand.u32 %v1753, 4294901760
  %2116 = vmatmul.f32.gmra.mxu0 %v2115
  %v2117 = vpop.f32.mrf.mxu0
  %v2118 = vadd.f32 %v1909, %v2117
  %v2119 = vand.u32 %v1754, 4294901760
  %2120 = vmatmul.f32.gmra.mxu0 %v2119
  %v2121 = vpop.f32.mrf.mxu0
  %v2122 = vadd.f32 %v1917, %v2121
  %v2123 = vand.u32 %v1755, 4294901760
  %2124 = vmatmul.f32.gmra.mxu0 %v2123
  %v2125 = vpop.f32.mrf.mxu0
  %v2126 = vadd.f32 %v1925, %v2125
  %v2127 = vand.u32 %v1756, 4294901760
  %2128 = vmatmul.f32.gmra.mxu0 %v2127
  %v2129 = vpop.f32.mrf.mxu0
  %v2130 = vadd.f32 %v1933, %v2129
  %v2131 = vand.u32 %v1757, 4294901760
  %2132 = vmatmul.f32.gmra.mxu0 %v2131
  %v2133 = vpop.f32.mrf.mxu0
  %v2134 = vadd.f32 %v1941, %v2133
  %v2135 = vand.u32 %v1758, 4294901760
  %2136 = vmatmul.f32.gmra.mxu0 %v2135
  %v2137 = vpop.f32.mrf.mxu0
  %v2138 = vadd.f32 %v1949, %v2137
  %v2139 = vand.u32 %v1759, 4294901760
  %2140 = vmatmul.f32.gmra.mxu0 %v2139
  %v2141 = vpop.f32.mrf.mxu0
  %v2142 = vadd.f32 %v1957, %v2141
  %v2143 = vand.u32 %v1760, 4294901760
  %2144 = vmatmul.f32.gmra.mxu0 %v2143
  %v2145 = vpop.f32.mrf.mxu0
  %v2146 = vadd.f32 %v1965, %v2145
  %v2147 = vand.u32 %v1761, 4294901760
  %2148 = vmatmul.f32.gmra.mxu0 %v2147
  %v2149 = vpop.f32.mrf.mxu0
  %v2150 = vadd.f32 %v1973, %v2149
  %v2151 = vand.u32 %v1762, 4294901760
  %2152 = vmatmul.f32.gmra.mxu0 %v2151
  %v2153 = vpop.f32.mrf.mxu0
  %v2154 = vadd.f32 %v1981, %v2153
  %v2155 = vand.u32 %v1763, 4294901760
  %2156 = vmatmul.f32.gmra.mxu0 %v2155
  %v2157 = vpop.f32.mrf.mxu0
  %v2158 = vadd.f32 %v1989, %v2157
  %v2159 = vand.u32 %v1764, 4294901760
  %2160 = vmatmul.f32.gmra.mxu0 %v2159
  %v2161 = vpop.f32.mrf.mxu0
  %v2162 = vadd.f32 %v1997, %v2161
  %v2163 = vand.u32 %v1765, 4294901760
  %2164 = vmatmul.f32.gmra.mxu0 %v2163
  %v2165 = vpop.f32.mrf.mxu0
  %v2166 = vadd.f32 %v2005, %v2165
  %2167 = vdwg.mxu0
  %v2168 = vand.u32 %v1748, 4294901760
  %v2169 = vsub.f32 %v1748, %v2168
  %2170 = vmatpush.msra.mxu0 %v2169
  %v2171 = vand.u32 %v1744, 4294901760
  %v2172 = vsub.f32 %v1744, %v2171
  %2173 = vmatpush.msra.mxu0 %v2172
  %v2174 = vand.u32 %v1740, 4294901760
  %v2175 = vsub.f32 %v1740, %v2174
  %2176 = vmatpush.msra.mxu0 %v2175
  %v2177 = vand.u32 %v1736, 4294901760
  %v2178 = vsub.f32 %v1736, %v2177
  %2179 = vmatpush.msra.mxu0 %v2178
  %v2180 = vand.u32 %v1732, 4294901760
  %v2181 = vsub.f32 %v1732, %v2180
  %2182 = vmatpush.msra.mxu0 %v2181
  %v2183 = vand.u32 %v1728, 4294901760
  %v2184 = vsub.f32 %v1728, %v2183
  %2185 = vmatpush.msra.mxu0 %v2184
  %v2186 = vand.u32 %v1724, 4294901760
  %v2187 = vsub.f32 %v1724, %v2186
  %2188 = vmatpush.msra.mxu0 %v2187
  %v2189 = vand.u32 %v1720, 4294901760
  %v2190 = vsub.f32 %v1720, %v2189
  %2191 = vmatpush.msra.mxu0 %v2190
  %v2192 = vand.u32 %v1716, 4294901760
  %v2193 = vsub.f32 %v1716, %v2192
  %2194 = vmatpush.msra.mxu0 %v2193
  %v2195 = vand.u32 %v1712, 4294901760
  %v2196 = vsub.f32 %v1712, %v2195
  %2197 = vmatpush.msra.mxu0 %v2196
  %v2198 = vand.u32 %v1708, 4294901760
  %v2199 = vsub.f32 %v1708, %v2198
  %2200 = vmatpush.msra.mxu0 %v2199
  %v2201 = vand.u32 %v1704, 4294901760
  %v2202 = vsub.f32 %v1704, %v2201
  %2203 = vmatpush.msra.mxu0 %v2202
  %v2204 = vand.u32 %v1700, 4294901760
  %v2205 = vsub.f32 %v1700, %v2204
  %2206 = vmatpush.msra.mxu0 %v2205
  %v2207 = vand.u32 %v1696, 4294901760
  %v2208 = vsub.f32 %v1696, %v2207
  %2209 = vmatpush.msra.mxu0 %v2208
  %v2210 = vand.u32 %v1692, 4294901760
  %v2211 = vsub.f32 %v1692, %v2210
  %2212 = vmatpush.msra.mxu0 %v2211
  %v2213 = vand.u32 %v1688, 4294901760
  %v2214 = vsub.f32 %v1688, %v2213
  %2215 = vmatpush.msra.mxu0 %v2214
  %v2216 = vand.u32 %v1750, 4294901760
  %v2217 = vsub.f32 %v1750, %v2216
  %2218 = vmatmul.f32.gmra.mxu0 %v2217
  %v2219 = vpop.f32.mrf.mxu0
  %v2220 = vadd.f32 %v2106, %v2219
  %v2221 = vand.u32 %v1751, 4294901760
  %v2222 = vsub.f32 %v1751, %v2221
  %2223 = vmatmul.f32.gmra.mxu0 %v2222
  %v2224 = vpop.f32.mrf.mxu0
  %v2225 = vadd.f32 %v2110, %v2224
  %v2226 = vand.u32 %v1752, 4294901760
  %v2227 = vsub.f32 %v1752, %v2226
  %2228 = vmatmul.f32.gmra.mxu0 %v2227
  %v2229 = vpop.f32.mrf.mxu0
  %v2230 = vadd.f32 %v2114, %v2229
  %v2231 = vand.u32 %v1753, 4294901760
  %v2232 = vsub.f32 %v1753, %v2231
  %2233 = vmatmul.f32.gmra.mxu0 %v2232
  %v2234 = vpop.f32.mrf.mxu0
  %v2235 = vadd.f32 %v2118, %v2234
  %v2236 = vand.u32 %v1754, 4294901760
  %v2237 = vsub.f32 %v1754, %v2236
  %2238 = vmatmul.f32.gmra.mxu0 %v2237
  %v2239 = vpop.f32.mrf.mxu0
  %v2240 = vadd.f32 %v2122, %v2239
  %v2241 = vand.u32 %v1755, 4294901760
  %v2242 = vsub.f32 %v1755, %v2241
  %2243 = vmatmul.f32.gmra.mxu0 %v2242
  %v2244 = vpop.f32.mrf.mxu0
  %v2245 = vadd.f32 %v2126, %v2244
  %v2246 = vand.u32 %v1756, 4294901760
  %v2247 = vsub.f32 %v1756, %v2246
  %2248 = vmatmul.f32.gmra.mxu0 %v2247
  %v2249 = vpop.f32.mrf.mxu0
  %v2250 = vadd.f32 %v2130, %v2249
  %v2251 = vand.u32 %v1757, 4294901760
  %v2252 = vsub.f32 %v1757, %v2251
  %2253 = vmatmul.f32.gmra.mxu0 %v2252
  %v2254 = vpop.f32.mrf.mxu0
  %v2255 = vadd.f32 %v2134, %v2254
  %v2256 = vand.u32 %v1758, 4294901760
  %v2257 = vsub.f32 %v1758, %v2256
  %2258 = vmatmul.f32.gmra.mxu0 %v2257
  %v2259 = vpop.f32.mrf.mxu0
  %v2260 = vadd.f32 %v2138, %v2259
  %v2261 = vand.u32 %v1759, 4294901760
  %v2262 = vsub.f32 %v1759, %v2261
  %2263 = vmatmul.f32.gmra.mxu0 %v2262
  %v2264 = vpop.f32.mrf.mxu0
  %v2265 = vadd.f32 %v2142, %v2264
  %v2266 = vand.u32 %v1760, 4294901760
  %v2267 = vsub.f32 %v1760, %v2266
  %2268 = vmatmul.f32.gmra.mxu0 %v2267
  %v2269 = vpop.f32.mrf.mxu0
  %v2270 = vadd.f32 %v2146, %v2269
  %v2271 = vand.u32 %v1761, 4294901760
  %v2272 = vsub.f32 %v1761, %v2271
  %2273 = vmatmul.f32.gmra.mxu0 %v2272
  %v2274 = vpop.f32.mrf.mxu0
  %v2275 = vadd.f32 %v2150, %v2274
  %v2276 = vand.u32 %v1762, 4294901760
  %v2277 = vsub.f32 %v1762, %v2276
  %2278 = vmatmul.f32.gmra.mxu0 %v2277
  %v2279 = vpop.f32.mrf.mxu0
  %v2280 = vadd.f32 %v2154, %v2279
  %v2281 = vand.u32 %v1763, 4294901760
  %v2282 = vsub.f32 %v1763, %v2281
  %2283 = vmatmul.f32.gmra.mxu0 %v2282
  %v2284 = vpop.f32.mrf.mxu0
  %v2285 = vadd.f32 %v2158, %v2284
  %v2286 = vand.u32 %v1764, 4294901760
  %v2287 = vsub.f32 %v1764, %v2286
  %2288 = vmatmul.f32.gmra.mxu0 %v2287
  %v2289 = vpop.f32.mrf.mxu0
  %v2290 = vadd.f32 %v2162, %v2289
  %v2291 = vand.u32 %v1765, 4294901760
  %v2292 = vsub.f32 %v1765, %v2291
  %2293 = vmatmul.f32.gmra.mxu0 %v2292
  %v2294 = vpop.f32.mrf.mxu0
  %v2295 = vadd.f32 %v2166, %v2294
  %2296 = vdwg.mxu0
  %v2297 = vand.u32 %v1748, 4294901760
  %2298 = vmatpush.msra.mxu0 %v2297
  %v2299 = vand.u32 %v1744, 4294901760
  %2300 = vmatpush.msra.mxu0 %v2299
  %v2301 = vand.u32 %v1740, 4294901760
  %2302 = vmatpush.msra.mxu0 %v2301
  %v2303 = vand.u32 %v1736, 4294901760
  %2304 = vmatpush.msra.mxu0 %v2303
  %v2305 = vand.u32 %v1732, 4294901760
  %2306 = vmatpush.msra.mxu0 %v2305
  %v2307 = vand.u32 %v1728, 4294901760
  %2308 = vmatpush.msra.mxu0 %v2307
  %v2309 = vand.u32 %v1724, 4294901760
  %2310 = vmatpush.msra.mxu0 %v2309
  %v2311 = vand.u32 %v1720, 4294901760
  %2312 = vmatpush.msra.mxu0 %v2311
  %v2313 = vand.u32 %v1716, 4294901760
  %2314 = vmatpush.msra.mxu0 %v2313
  %v2315 = vand.u32 %v1712, 4294901760
  %2316 = vmatpush.msra.mxu0 %v2315
  %v2317 = vand.u32 %v1708, 4294901760
  %2318 = vmatpush.msra.mxu0 %v2317
  %v2319 = vand.u32 %v1704, 4294901760
  %2320 = vmatpush.msra.mxu0 %v2319
  %v2321 = vand.u32 %v1700, 4294901760
  %2322 = vmatpush.msra.mxu0 %v2321
  %v2323 = vand.u32 %v1696, 4294901760
  %2324 = vmatpush.msra.mxu0 %v2323
  %v2325 = vand.u32 %v1692, 4294901760
  %2326 = vmatpush.msra.mxu0 %v2325
  %v2327 = vand.u32 %v1688, 4294901760
  %2328 = vmatpush.msra.mxu0 %v2327
  %v2329 = vand.u32 %v1750, 4294901760
  %v2330 = vsub.f32 %v1750, %v2329
  %v2331 = vand.u32 %v2330, 4294901760
  %2332 = vmatmul.f32.gmra.mxu0 %v2331
  %v2333 = vpop.f32.mrf.mxu0
  %v2334 = vadd.f32 %v2220, %v2333
  %v2335 = vand.u32 %v1751, 4294901760
  %v2336 = vsub.f32 %v1751, %v2335
  %v2337 = vand.u32 %v2336, 4294901760
  %2338 = vmatmul.f32.gmra.mxu0 %v2337
  %v2339 = vpop.f32.mrf.mxu0
  %v2340 = vadd.f32 %v2225, %v2339
  %v2341 = vand.u32 %v1752, 4294901760
  %v2342 = vsub.f32 %v1752, %v2341
  %v2343 = vand.u32 %v2342, 4294901760
  %2344 = vmatmul.f32.gmra.mxu0 %v2343
  %v2345 = vpop.f32.mrf.mxu0
  %v2346 = vadd.f32 %v2230, %v2345
  %v2347 = vand.u32 %v1753, 4294901760
  %v2348 = vsub.f32 %v1753, %v2347
  %v2349 = vand.u32 %v2348, 4294901760
  %2350 = vmatmul.f32.gmra.mxu0 %v2349
  %v2351 = vpop.f32.mrf.mxu0
  %v2352 = vadd.f32 %v2235, %v2351
  %v2353 = vand.u32 %v1754, 4294901760
  %v2354 = vsub.f32 %v1754, %v2353
  %v2355 = vand.u32 %v2354, 4294901760
  %2356 = vmatmul.f32.gmra.mxu0 %v2355
  %v2357 = vpop.f32.mrf.mxu0
  %v2358 = vadd.f32 %v2240, %v2357
  %v2359 = vand.u32 %v1755, 4294901760
  %v2360 = vsub.f32 %v1755, %v2359
  %v2361 = vand.u32 %v2360, 4294901760
  %2362 = vmatmul.f32.gmra.mxu0 %v2361
  %v2363 = vpop.f32.mrf.mxu0
  %v2364 = vadd.f32 %v2245, %v2363
  %v2365 = vand.u32 %v1756, 4294901760
  %v2366 = vsub.f32 %v1756, %v2365
  %v2367 = vand.u32 %v2366, 4294901760
  %2368 = vmatmul.f32.gmra.mxu0 %v2367
  %v2369 = vpop.f32.mrf.mxu0
  %v2370 = vadd.f32 %v2250, %v2369
  %v2371 = vand.u32 %v1757, 4294901760
  %v2372 = vsub.f32 %v1757, %v2371
  %v2373 = vand.u32 %v2372, 4294901760
  %2374 = vmatmul.f32.gmra.mxu0 %v2373
  %v2375 = vpop.f32.mrf.mxu0
  %v2376 = vadd.f32 %v2255, %v2375
  %v2377 = vand.u32 %v1758, 4294901760
  %v2378 = vsub.f32 %v1758, %v2377
  %v2379 = vand.u32 %v2378, 4294901760
  %2380 = vmatmul.f32.gmra.mxu0 %v2379
  %v2381 = vpop.f32.mrf.mxu0
  %v2382 = vadd.f32 %v2260, %v2381
  %v2383 = vand.u32 %v1759, 4294901760
  %v2384 = vsub.f32 %v1759, %v2383
  %v2385 = vand.u32 %v2384, 4294901760
  %2386 = vmatmul.f32.gmra.mxu0 %v2385
  %v2387 = vpop.f32.mrf.mxu0
  %v2388 = vadd.f32 %v2265, %v2387
  %v2389 = vand.u32 %v1760, 4294901760
  %v2390 = vsub.f32 %v1760, %v2389
  %v2391 = vand.u32 %v2390, 4294901760
  %2392 = vmatmul.f32.gmra.mxu0 %v2391
  %v2393 = vpop.f32.mrf.mxu0
  %v2394 = vadd.f32 %v2270, %v2393
  %v2395 = vand.u32 %v1761, 4294901760
  %v2396 = vsub.f32 %v1761, %v2395
  %v2397 = vand.u32 %v2396, 4294901760
  %2398 = vmatmul.f32.gmra.mxu0 %v2397
  %v2399 = vpop.f32.mrf.mxu0
  %v2400 = vadd.f32 %v2275, %v2399
  %v2401 = vand.u32 %v1762, 4294901760
  %v2402 = vsub.f32 %v1762, %v2401
  %v2403 = vand.u32 %v2402, 4294901760
  %2404 = vmatmul.f32.gmra.mxu0 %v2403
  %v2405 = vpop.f32.mrf.mxu0
  %v2406 = vadd.f32 %v2280, %v2405
  %v2407 = vand.u32 %v1763, 4294901760
  %v2408 = vsub.f32 %v1763, %v2407
  %v2409 = vand.u32 %v2408, 4294901760
  %2410 = vmatmul.f32.gmra.mxu0 %v2409
  %v2411 = vpop.f32.mrf.mxu0
  %v2412 = vadd.f32 %v2285, %v2411
  %v2413 = vand.u32 %v1764, 4294901760
  %v2414 = vsub.f32 %v1764, %v2413
  %v2415 = vand.u32 %v2414, 4294901760
  %2416 = vmatmul.f32.gmra.mxu0 %v2415
  %v2417 = vpop.f32.mrf.mxu0
  %v2418 = vadd.f32 %v2290, %v2417
  %v2419 = vand.u32 %v1765, 4294901760
  %v2420 = vsub.f32 %v1765, %v2419
  %v2421 = vand.u32 %v2420, 4294901760
  %2422 = vmatmul.f32.gmra.mxu0 %v2421
  %v2423 = vpop.f32.mrf.mxu0
  %v2424 = vadd.f32 %v2295, %v2423
  %2425 = vdwg.mxu0
  %v2426 = vand.u32 %v1748, 4294901760
  %v2427 = vsub.f32 %v1748, %v2426
  %v2428 = vand.u32 %v2427, 4294901760
  %2429 = vmatpush.msra.mxu0 %v2428
  %v2430 = vand.u32 %v1744, 4294901760
  %v2431 = vsub.f32 %v1744, %v2430
  %v2432 = vand.u32 %v2431, 4294901760
  %2433 = vmatpush.msra.mxu0 %v2432
  %v2434 = vand.u32 %v1740, 4294901760
  %v2435 = vsub.f32 %v1740, %v2434
  %v2436 = vand.u32 %v2435, 4294901760
  %2437 = vmatpush.msra.mxu0 %v2436
  %v2438 = vand.u32 %v1736, 4294901760
  %v2439 = vsub.f32 %v1736, %v2438
  %v2440 = vand.u32 %v2439, 4294901760
  %2441 = vmatpush.msra.mxu0 %v2440
  %v2442 = vand.u32 %v1732, 4294901760
  %v2443 = vsub.f32 %v1732, %v2442
  %v2444 = vand.u32 %v2443, 4294901760
  %2445 = vmatpush.msra.mxu0 %v2444
  %v2446 = vand.u32 %v1728, 4294901760
  %v2447 = vsub.f32 %v1728, %v2446
  %v2448 = vand.u32 %v2447, 4294901760
  %2449 = vmatpush.msra.mxu0 %v2448
  %v2450 = vand.u32 %v1724, 4294901760
  %v2451 = vsub.f32 %v1724, %v2450
  %v2452 = vand.u32 %v2451, 4294901760
  %2453 = vmatpush.msra.mxu0 %v2452
  %v2454 = vand.u32 %v1720, 4294901760
  %v2455 = vsub.f32 %v1720, %v2454
  %v2456 = vand.u32 %v2455, 4294901760
  %2457 = vmatpush.msra.mxu0 %v2456
  %v2458 = vand.u32 %v1716, 4294901760
  %v2459 = vsub.f32 %v1716, %v2458
  %v2460 = vand.u32 %v2459, 4294901760
  %2461 = vmatpush.msra.mxu0 %v2460
  %v2462 = vand.u32 %v1712, 4294901760
  %v2463 = vsub.f32 %v1712, %v2462
  %v2464 = vand.u32 %v2463, 4294901760
  %2465 = vmatpush.msra.mxu0 %v2464
  %v2466 = vand.u32 %v1708, 4294901760
  %v2467 = vsub.f32 %v1708, %v2466
  %v2468 = vand.u32 %v2467, 4294901760
  %2469 = vmatpush.msra.mxu0 %v2468
  %v2470 = vand.u32 %v1704, 4294901760
  %v2471 = vsub.f32 %v1704, %v2470
  %v2472 = vand.u32 %v2471, 4294901760
  %2473 = vmatpush.msra.mxu0 %v2472
  %v2474 = vand.u32 %v1700, 4294901760
  %v2475 = vsub.f32 %v1700, %v2474
  %v2476 = vand.u32 %v2475, 4294901760
  %2477 = vmatpush.msra.mxu0 %v2476
  %v2478 = vand.u32 %v1696, 4294901760
  %v2479 = vsub.f32 %v1696, %v2478
  %v2480 = vand.u32 %v2479, 4294901760
  %2481 = vmatpush.msra.mxu0 %v2480
  %v2482 = vand.u32 %v1692, 4294901760
  %v2483 = vsub.f32 %v1692, %v2482
  %v2484 = vand.u32 %v2483, 4294901760
  %2485 = vmatpush.msra.mxu0 %v2484
  %v2486 = vand.u32 %v1688, 4294901760
  %v2487 = vsub.f32 %v1688, %v2486
  %v2488 = vand.u32 %v2487, 4294901760
  %2489 = vmatpush.msra.mxu0 %v2488
  %v2490 = vand.u32 %v1750, 4294901760
  %2491 = vmatmul.f32.gmra.mxu0 %v2490
  %v2492 = vpop.f32.mrf.mxu0
  %v2493 = vadd.f32 %v2334, %v2492
  %v2494 = vand.u32 %v1751, 4294901760
  %2495 = vmatmul.f32.gmra.mxu0 %v2494
  %v2496 = vpop.f32.mrf.mxu0
  %v2497 = vadd.f32 %v2340, %v2496
  %v2498 = vand.u32 %v1752, 4294901760
  %2499 = vmatmul.f32.gmra.mxu0 %v2498
  %v2500 = vpop.f32.mrf.mxu0
  %v2501 = vadd.f32 %v2346, %v2500
  %v2502 = vand.u32 %v1753, 4294901760
  %2503 = vmatmul.f32.gmra.mxu0 %v2502
  %v2504 = vpop.f32.mrf.mxu0
  %v2505 = vadd.f32 %v2352, %v2504
  %v2506 = vand.u32 %v1754, 4294901760
  %2507 = vmatmul.f32.gmra.mxu0 %v2506
  %v2508 = vpop.f32.mrf.mxu0
  %v2509 = vadd.f32 %v2358, %v2508
  %v2510 = vand.u32 %v1755, 4294901760
  %2511 = vmatmul.f32.gmra.mxu0 %v2510
  %v2512 = vpop.f32.mrf.mxu0
  %v2513 = vadd.f32 %v2364, %v2512
  %v2514 = vand.u32 %v1756, 4294901760
  %2515 = vmatmul.f32.gmra.mxu0 %v2514
  %v2516 = vpop.f32.mrf.mxu0
  %v2517 = vadd.f32 %v2370, %v2516
  %v2518 = vand.u32 %v1757, 4294901760
  %2519 = vmatmul.f32.gmra.mxu0 %v2518
  %v2520 = vpop.f32.mrf.mxu0
  %v2521 = vadd.f32 %v2376, %v2520
  %v2522 = vand.u32 %v1758, 4294901760
  %2523 = vmatmul.f32.gmra.mxu0 %v2522
  %v2524 = vpop.f32.mrf.mxu0
  %v2525 = vadd.f32 %v2382, %v2524
  %v2526 = vand.u32 %v1759, 4294901760
  %2527 = vmatmul.f32.gmra.mxu0 %v2526
  %v2528 = vpop.f32.mrf.mxu0
  %v2529 = vadd.f32 %v2388, %v2528
  %v2530 = vand.u32 %v1760, 4294901760
  %2531 = vmatmul.f32.gmra.mxu0 %v2530
  %v2532 = vpop.f32.mrf.mxu0
  %v2533 = vadd.f32 %v2394, %v2532
  %v2534 = vand.u32 %v1761, 4294901760
  %2535 = vmatmul.f32.gmra.mxu0 %v2534
  %v2536 = vpop.f32.mrf.mxu0
  %v2537 = vadd.f32 %v2400, %v2536
  %v2538 = vand.u32 %v1762, 4294901760
  %2539 = vmatmul.f32.gmra.mxu0 %v2538
  %v2540 = vpop.f32.mrf.mxu0
  %v2541 = vadd.f32 %v2406, %v2540
  %v2542 = vand.u32 %v1763, 4294901760
  %2543 = vmatmul.f32.gmra.mxu0 %v2542
  %v2544 = vpop.f32.mrf.mxu0
  %v2545 = vadd.f32 %v2412, %v2544
  %v2546 = vand.u32 %v1764, 4294901760
  %2547 = vmatmul.f32.gmra.mxu0 %v2546
  %v2548 = vpop.f32.mrf.mxu0
  %v2549 = vadd.f32 %v2418, %v2548
  %v2550 = vand.u32 %v1765, 4294901760
  %2551 = vmatmul.f32.gmra.mxu0 %v2550
  %v2552 = vpop.f32.mrf.mxu0
  %v2553 = vadd.f32 %v2424, %v2552
  %2554 = vdwg.mxu0
  %v2555 = vand.u32 %v1748, 4294901760
  %2556 = vmatpush.msra.mxu0 %v2555
  %v2557 = vand.u32 %v1744, 4294901760
  %2558 = vmatpush.msra.mxu0 %v2557
  %v2559 = vand.u32 %v1740, 4294901760
  %2560 = vmatpush.msra.mxu0 %v2559
  %v2561 = vand.u32 %v1736, 4294901760
  %2562 = vmatpush.msra.mxu0 %v2561
  %v2563 = vand.u32 %v1732, 4294901760
  %2564 = vmatpush.msra.mxu0 %v2563
  %v2565 = vand.u32 %v1728, 4294901760
  %2566 = vmatpush.msra.mxu0 %v2565
  %v2567 = vand.u32 %v1724, 4294901760
  %2568 = vmatpush.msra.mxu0 %v2567
  %v2569 = vand.u32 %v1720, 4294901760
  %2570 = vmatpush.msra.mxu0 %v2569
  %v2571 = vand.u32 %v1716, 4294901760
  %2572 = vmatpush.msra.mxu0 %v2571
  %v2573 = vand.u32 %v1712, 4294901760
  %2574 = vmatpush.msra.mxu0 %v2573
  %v2575 = vand.u32 %v1708, 4294901760
  %2576 = vmatpush.msra.mxu0 %v2575
  %v2577 = vand.u32 %v1704, 4294901760
  %2578 = vmatpush.msra.mxu0 %v2577
  %v2579 = vand.u32 %v1700, 4294901760
  %2580 = vmatpush.msra.mxu0 %v2579
  %v2581 = vand.u32 %v1696, 4294901760
  %2582 = vmatpush.msra.mxu0 %v2581
  %v2583 = vand.u32 %v1692, 4294901760
  %2584 = vmatpush.msra.mxu0 %v2583
  %v2585 = vand.u32 %v1688, 4294901760
  %2586 = vmatpush.msra.mxu0 %v2585
  %v2587 = vand.u32 %v1750, 4294901760
  %2588 = vmatmul.f32.gmra.mxu0 %v2587
  %v2589 = vpop.f32.mrf.mxu0
  %v2590 = vadd.f32 %v2493, %v2589
  %v2591 = vand.u32 %v1751, 4294901760
  %2592 = vmatmul.f32.gmra.mxu0 %v2591
  %v2593 = vpop.f32.mrf.mxu0
  %v2594 = vadd.f32 %v2497, %v2593
  %v2595 = vand.u32 %v1752, 4294901760
  %2596 = vmatmul.f32.gmra.mxu0 %v2595
  %v2597 = vpop.f32.mrf.mxu0
  %v2598 = vadd.f32 %v2501, %v2597
  %v2599 = vand.u32 %v1753, 4294901760
  %2600 = vmatmul.f32.gmra.mxu0 %v2599
  %v2601 = vpop.f32.mrf.mxu0
  %v2602 = vadd.f32 %v2505, %v2601
  %v2603 = vand.u32 %v1754, 4294901760
  %2604 = vmatmul.f32.gmra.mxu0 %v2603
  %v2605 = vpop.f32.mrf.mxu0
  %v2606 = vadd.f32 %v2509, %v2605
  %v2607 = vand.u32 %v1755, 4294901760
  %2608 = vmatmul.f32.gmra.mxu0 %v2607
  %v2609 = vpop.f32.mrf.mxu0
  %v2610 = vadd.f32 %v2513, %v2609
  %v2611 = vand.u32 %v1756, 4294901760
  %2612 = vmatmul.f32.gmra.mxu0 %v2611
  %v2613 = vpop.f32.mrf.mxu0
  %v2614 = vadd.f32 %v2517, %v2613
  %v2615 = vand.u32 %v1757, 4294901760
  %2616 = vmatmul.f32.gmra.mxu0 %v2615
  %v2617 = vpop.f32.mrf.mxu0
  %v2618 = vadd.f32 %v2521, %v2617
  %v2619 = vand.u32 %v1758, 4294901760
  %2620 = vmatmul.f32.gmra.mxu0 %v2619
  %v2621 = vpop.f32.mrf.mxu0
  %v2622 = vadd.f32 %v2525, %v2621
  %v2623 = vand.u32 %v1759, 4294901760
  %2624 = vmatmul.f32.gmra.mxu0 %v2623
  %v2625 = vpop.f32.mrf.mxu0
  %v2626 = vadd.f32 %v2529, %v2625
  %v2627 = vand.u32 %v1760, 4294901760
  %2628 = vmatmul.f32.gmra.mxu0 %v2627
  %v2629 = vpop.f32.mrf.mxu0
  %v2630 = vadd.f32 %v2533, %v2629
  %v2631 = vand.u32 %v1761, 4294901760
  %2632 = vmatmul.f32.gmra.mxu0 %v2631
  %v2633 = vpop.f32.mrf.mxu0
  %v2634 = vadd.f32 %v2537, %v2633
  %v2635 = vand.u32 %v1762, 4294901760
  %2636 = vmatmul.f32.gmra.mxu0 %v2635
  %v2637 = vpop.f32.mrf.mxu0
  %v2638 = vadd.f32 %v2541, %v2637
  %v2639 = vand.u32 %v1763, 4294901760
  %2640 = vmatmul.f32.gmra.mxu0 %v2639
  %v2641 = vpop.f32.mrf.mxu0
  %v2642 = vadd.f32 %v2545, %v2641
  %v2643 = vand.u32 %v1764, 4294901760
  %2644 = vmatmul.f32.gmra.mxu0 %v2643
  %v2645 = vpop.f32.mrf.mxu0
  %v2646 = vadd.f32 %v2549, %v2645
  %v2647 = vand.u32 %v1765, 4294901760
  %2648 = vmatmul.f32.gmra.mxu0 %v2647
  %v2649 = vpop.f32.mrf.mxu0
  %v2650 = vadd.f32 %v2553, %v2649
  %2651 = vdwg.mxu0
  %v2652 = vxor.u32 %v2590, 2147483648
  %v2653 = vxor.u32 %v2594, 2147483648
  %v2654 = vxor.u32 %v2598, 2147483648
  %v2655 = vxor.u32 %v2602, 2147483648
  %v2656 = vxor.u32 %v2606, 2147483648
  %v2657 = vxor.u32 %v2610, 2147483648
  %v2658 = vxor.u32 %v2614, 2147483648
  %v2659 = vxor.u32 %v2618, 2147483648
  %v2660 = vxor.u32 %v2622, 2147483648
  %v2661 = vxor.u32 %v2626, 2147483648
  %v2662 = vxor.u32 %v2630, 2147483648
  %v2663 = vxor.u32 %v2634, 2147483648
  %v2664 = vxor.u32 %v2638, 2147483648
  %v2665 = vxor.u32 %v2642, 2147483648
  %v2666 = vxor.u32 %v2646, 2147483648
  %v2667 = vxor.u32 %v2650, 2147483648
  %v2668 = vmul.f32 %v2652, 1.442695
  %v2669 = vpow.pop %v2668
  %v2670 = vmul.f32 %v2653, 1.442695
  %v2671 = vpow.pop %v2670
  %v2672 = vmul.f32 %v2654, 1.442695
  %v2673 = vpow.pop %v2672
  %v2674 = vmul.f32 %v2655, 1.442695
  %v2675 = vpow.pop %v2674
  %v2676 = vmul.f32 %v2656, 1.442695
  %v2677 = vpow.pop %v2676
  %v2678 = vmul.f32 %v2657, 1.442695
  %v2679 = vpow.pop %v2678
  %v2680 = vmul.f32 %v2658, 1.442695
  %v2681 = vpow.pop %v2680
  %v2682 = vmul.f32 %v2659, 1.442695
  %v2683 = vpow.pop %v2682
  %v2684 = vmul.f32 %v2660, 1.442695
  %v2685 = vpow.pop %v2684
  %v2686 = vmul.f32 %v2661, 1.442695
  %v2687 = vpow.pop %v2686
  %v2688 = vmul.f32 %v2662, 1.442695
  %v2689 = vpow.pop %v2688
  %v2690 = vmul.f32 %v2663, 1.442695
  %v2691 = vpow.pop %v2690
  %v2692 = vmul.f32 %v2664, 1.442695
  %v2693 = vpow.pop %v2692
  %v2694 = vmul.f32 %v2665, 1.442695
  %v2695 = vpow.pop %v2694
  %v2696 = vmul.f32 %v2666, 1.442695
  %v2697 = vpow.pop %v2696
  %v2698 = vmul.f32 %v2667, 1.442695
  %v2699 = vpow.pop %v2698
  %v2700 = vadd.f32 %v2669, 1.0
  %v2701 = vadd.f32 %v2671, 1.0
  %v2702 = vadd.f32 %v2673, 1.0
  %v2703 = vadd.f32 %v2675, 1.0
  %v2704 = vadd.f32 %v2677, 1.0
  %v2705 = vadd.f32 %v2679, 1.0
  %v2706 = vadd.f32 %v2681, 1.0
  %v2707 = vadd.f32 %v2683, 1.0
  %v2708 = vadd.f32 %v2685, 1.0
  %v2709 = vadd.f32 %v2687, 1.0
  %v2710 = vadd.f32 %v2689, 1.0
  %v2711 = vadd.f32 %v2691, 1.0
  %v2712 = vadd.f32 %v2693, 1.0
  %v2713 = vadd.f32 %v2695, 1.0
  %v2714 = vadd.f32 %v2697, 1.0
  %v2715 = vadd.f32 %v2699, 1.0
  %v2716 = vrcp.pop %v2700
  %v2717 = vmul.f32 %v2700, %v2716
  %v2718 = vsub.f32 1.0, %v2717
  %v2719 = vmul.f32 %v2716, %v2718
  %v2720 = vadd.f32 %v2716, %v2719
  %vm2721 = vweird.f32 %v2700
  %vm2722 = vweird.f32 %v2716
  %vm2723 = vmor %vm2721, %vm2722
  %v2724 = vsel %vm2723, %v2716, %v2720
  %v2725 = vand.u32 2147483647, %v2700
  %vm2726 = vcmp.eq.f32.partialorder %v2725, 8.507059e+37
  %v2727 = vand.u32 %v2700, 2147483648
  %v2728 = vor.u32 1.1754944e-38, %v2727
  %v2729 = vsel %vm2726, %v2728, %v2724
  %v2730 = vmul.f32 1.0, %v2729
  %v2731 = vrcp.pop %v2701
  %v2732 = vmul.f32 %v2701, %v2731
  %v2733 = vsub.f32 1.0, %v2732
  %v2734 = vmul.f32 %v2731, %v2733
  %v2735 = vadd.f32 %v2731, %v2734
  %vm2736 = vweird.f32 %v2701
  %vm2737 = vweird.f32 %v2731
  %vm2738 = vmor %vm2736, %vm2737
  %v2739 = vsel %vm2738, %v2731, %v2735
  %v2740 = vand.u32 2147483647, %v2701
  %vm2741 = vcmp.eq.f32.partialorder %v2740, 8.507059e+37
  %v2742 = vand.u32 %v2701, 2147483648
  %v2743 = vor.u32 1.1754944e-38, %v2742
  %v2744 = vsel %vm2741, %v2743, %v2739
  %v2745 = vmul.f32 1.0, %v2744
  %v2746 = vrcp.pop %v2702
  %v2747 = vmul.f32 %v2702, %v2746
  %v2748 = vsub.f32 1.0, %v2747
  %v2749 = vmul.f32 %v2746, %v2748
  %v2750 = vadd.f32 %v2746, %v2749
  %vm2751 = vweird.f32 %v2702
  %vm2752 = vweird.f32 %v2746
  %vm2753 = vmor %vm2751, %vm2752
  %v2754 = vsel %vm2753, %v2746, %v2750
  %v2755 = vand.u32 2147483647, %v2702
  %vm2756 = vcmp.eq.f32.partialorder %v2755, 8.507059e+37
  %v2757 = vand.u32 %v2702, 2147483648
  %v2758 = vor.u32 1.1754944e-38, %v2757
  %v2759 = vsel %vm2756, %v2758, %v2754
  %v2760 = vmul.f32 1.0, %v2759
  %v2761 = vrcp.pop %v2703
  %v2762 = vmul.f32 %v2703, %v2761
  %v2763 = vsub.f32 1.0, %v2762
  %v2764 = vmul.f32 %v2761, %v2763
  %v2765 = vadd.f32 %v2761, %v2764
  %vm2766 = vweird.f32 %v2703
  %vm2767 = vweird.f32 %v2761
  %vm2768 = vmor %vm2766, %vm2767
  %v2769 = vsel %vm2768, %v2761, %v2765
  %v2770 = vand.u32 2147483647, %v2703
  %vm2771 = vcmp.eq.f32.partialorder %v2770, 8.507059e+37
  %v2772 = vand.u32 %v2703, 2147483648
  %v2773 = vor.u32 1.1754944e-38, %v2772
  %v2774 = vsel %vm2771, %v2773, %v2769
  %v2775 = vmul.f32 1.0, %v2774
  %v2776 = vrcp.pop %v2704
  %v2777 = vmul.f32 %v2704, %v2776
  %v2778 = vsub.f32 1.0, %v2777
  %v2779 = vmul.f32 %v2776, %v2778
  %v2780 = vadd.f32 %v2776, %v2779
  %vm2781 = vweird.f32 %v2704
  %vm2782 = vweird.f32 %v2776
  %vm2783 = vmor %vm2781, %vm2782
  %v2784 = vsel %vm2783, %v2776, %v2780
  %v2785 = vand.u32 2147483647, %v2704
  %vm2786 = vcmp.eq.f32.partialorder %v2785, 8.507059e+37
  %v2787 = vand.u32 %v2704, 2147483648
  %v2788 = vor.u32 1.1754944e-38, %v2787
  %v2789 = vsel %vm2786, %v2788, %v2784
  %v2790 = vmul.f32 1.0, %v2789
  %v2791 = vrcp.pop %v2705
  %v2792 = vmul.f32 %v2705, %v2791
  %v2793 = vsub.f32 1.0, %v2792
  %v2794 = vmul.f32 %v2791, %v2793
  %v2795 = vadd.f32 %v2791, %v2794
  %vm2796 = vweird.f32 %v2705
  %vm2797 = vweird.f32 %v2791
  %vm2798 = vmor %vm2796, %vm2797
  %v2799 = vsel %vm2798, %v2791, %v2795
  %v2800 = vand.u32 2147483647, %v2705
  %vm2801 = vcmp.eq.f32.partialorder %v2800, 8.507059e+37
  %v2802 = vand.u32 %v2705, 2147483648
  %v2803 = vor.u32 1.1754944e-38, %v2802
  %v2804 = vsel %vm2801, %v2803, %v2799
  %v2805 = vmul.f32 1.0, %v2804
  %v2806 = vrcp.pop %v2706
  %v2807 = vmul.f32 %v2706, %v2806
  %v2808 = vsub.f32 1.0, %v2807
  %v2809 = vmul.f32 %v2806, %v2808
  %v2810 = vadd.f32 %v2806, %v2809
  %vm2811 = vweird.f32 %v2706
  %vm2812 = vweird.f32 %v2806
  %vm2813 = vmor %vm2811, %vm2812
  %v2814 = vsel %vm2813, %v2806, %v2810
  %v2815 = vand.u32 2147483647, %v2706
  %vm2816 = vcmp.eq.f32.partialorder %v2815, 8.507059e+37
  %v2817 = vand.u32 %v2706, 2147483648
  %v2818 = vor.u32 1.1754944e-38, %v2817
  %v2819 = vsel %vm2816, %v2818, %v2814
  %v2820 = vmul.f32 1.0, %v2819
  %v2821 = vrcp.pop %v2707
  %v2822 = vmul.f32 %v2707, %v2821
  %v2823 = vsub.f32 1.0, %v2822
  %v2824 = vmul.f32 %v2821, %v2823
  %v2825 = vadd.f32 %v2821, %v2824
  %vm2826 = vweird.f32 %v2707
  %vm2827 = vweird.f32 %v2821
  %vm2828 = vmor %vm2826, %vm2827
  %v2829 = vsel %vm2828, %v2821, %v2825
  %v2830 = vand.u32 2147483647, %v2707
  %vm2831 = vcmp.eq.f32.partialorder %v2830, 8.507059e+37
  %v2832 = vand.u32 %v2707, 2147483648
  %v2833 = vor.u32 1.1754944e-38, %v2832
  %v2834 = vsel %vm2831, %v2833, %v2829
  %v2835 = vmul.f32 1.0, %v2834
  %v2836 = vrcp.pop %v2708
  %v2837 = vmul.f32 %v2708, %v2836
  %v2838 = vsub.f32 1.0, %v2837
  %v2839 = vmul.f32 %v2836, %v2838
  %v2840 = vadd.f32 %v2836, %v2839
  %vm2841 = vweird.f32 %v2708
  %vm2842 = vweird.f32 %v2836
  %vm2843 = vmor %vm2841, %vm2842
  %v2844 = vsel %vm2843, %v2836, %v2840
  %v2845 = vand.u32 2147483647, %v2708
  %vm2846 = vcmp.eq.f32.partialorder %v2845, 8.507059e+37
  %v2847 = vand.u32 %v2708, 2147483648
  %v2848 = vor.u32 1.1754944e-38, %v2847
  %v2849 = vsel %vm2846, %v2848, %v2844
  %v2850 = vmul.f32 1.0, %v2849
  %v2851 = vrcp.pop %v2709
  %v2852 = vmul.f32 %v2709, %v2851
  %v2853 = vsub.f32 1.0, %v2852
  %v2854 = vmul.f32 %v2851, %v2853
  %v2855 = vadd.f32 %v2851, %v2854
  %vm2856 = vweird.f32 %v2709
  %vm2857 = vweird.f32 %v2851
  %vm2858 = vmor %vm2856, %vm2857
  %v2859 = vsel %vm2858, %v2851, %v2855
  %v2860 = vand.u32 2147483647, %v2709
  %vm2861 = vcmp.eq.f32.partialorder %v2860, 8.507059e+37
  %v2862 = vand.u32 %v2709, 2147483648
  %v2863 = vor.u32 1.1754944e-38, %v2862
  %v2864 = vsel %vm2861, %v2863, %v2859
  %v2865 = vmul.f32 1.0, %v2864
  %v2866 = vrcp.pop %v2710
  %v2867 = vmul.f32 %v2710, %v2866
  %v2868 = vsub.f32 1.0, %v2867
  %v2869 = vmul.f32 %v2866, %v2868
  %v2870 = vadd.f32 %v2866, %v2869
  %vm2871 = vweird.f32 %v2710
  %vm2872 = vweird.f32 %v2866
  %vm2873 = vmor %vm2871, %vm2872
  %v2874 = vsel %vm2873, %v2866, %v2870
  %v2875 = vand.u32 2147483647, %v2710
  %vm2876 = vcmp.eq.f32.partialorder %v2875, 8.507059e+37
  %v2877 = vand.u32 %v2710, 2147483648
  %v2878 = vor.u32 1.1754944e-38, %v2877
  %v2879 = vsel %vm2876, %v2878, %v2874
  %v2880 = vmul.f32 1.0, %v2879
  %v2881 = vrcp.pop %v2711
  %v2882 = vmul.f32 %v2711, %v2881
  %v2883 = vsub.f32 1.0, %v2882
  %v2884 = vmul.f32 %v2881, %v2883
  %v2885 = vadd.f32 %v2881, %v2884
  %vm2886 = vweird.f32 %v2711
  %vm2887 = vweird.f32 %v2881
  %vm2888 = vmor %vm2886, %vm2887
  %v2889 = vsel %vm2888, %v2881, %v2885
  %v2890 = vand.u32 2147483647, %v2711
  %vm2891 = vcmp.eq.f32.partialorder %v2890, 8.507059e+37
  %v2892 = vand.u32 %v2711, 2147483648
  %v2893 = vor.u32 1.1754944e-38, %v2892
  %v2894 = vsel %vm2891, %v2893, %v2889
  %v2895 = vmul.f32 1.0, %v2894
  %v2896 = vrcp.pop %v2712
  %v2897 = vmul.f32 %v2712, %v2896
  %v2898 = vsub.f32 1.0, %v2897
  %v2899 = vmul.f32 %v2896, %v2898
  %v2900 = vadd.f32 %v2896, %v2899
  %vm2901 = vweird.f32 %v2712
  %vm2902 = vweird.f32 %v2896
  %vm2903 = vmor %vm2901, %vm2902
  %v2904 = vsel %vm2903, %v2896, %v2900
  %v2905 = vand.u32 2147483647, %v2712
  %vm2906 = vcmp.eq.f32.partialorder %v2905, 8.507059e+37
  %v2907 = vand.u32 %v2712, 2147483648
  %v2908 = vor.u32 1.1754944e-38, %v2907
  %v2909 = vsel %vm2906, %v2908, %v2904
  %v2910 = vmul.f32 1.0, %v2909
  %v2911 = vrcp.pop %v2713
  %v2912 = vmul.f32 %v2713, %v2911
  %v2913 = vsub.f32 1.0, %v2912
  %v2914 = vmul.f32 %v2911, %v2913
  %v2915 = vadd.f32 %v2911, %v2914
  %vm2916 = vweird.f32 %v2713
  %vm2917 = vweird.f32 %v2911
  %vm2918 = vmor %vm2916, %vm2917
  %v2919 = vsel %vm2918, %v2911, %v2915
  %v2920 = vand.u32 2147483647, %v2713
  %vm2921 = vcmp.eq.f32.partialorder %v2920, 8.507059e+37
  %v2922 = vand.u32 %v2713, 2147483648
  %v2923 = vor.u32 1.1754944e-38, %v2922
  %v2924 = vsel %vm2921, %v2923, %v2919
  %v2925 = vmul.f32 1.0, %v2924
  %v2926 = vrcp.pop %v2714
  %v2927 = vmul.f32 %v2714, %v2926
  %v2928 = vsub.f32 1.0, %v2927
  %v2929 = vmul.f32 %v2926, %v2928
  %v2930 = vadd.f32 %v2926, %v2929
  %vm2931 = vweird.f32 %v2714
  %vm2932 = vweird.f32 %v2926
  %vm2933 = vmor %vm2931, %vm2932
  %v2934 = vsel %vm2933, %v2926, %v2930
  %v2935 = vand.u32 2147483647, %v2714
  %vm2936 = vcmp.eq.f32.partialorder %v2935, 8.507059e+37
  %v2937 = vand.u32 %v2714, 2147483648
  %v2938 = vor.u32 1.1754944e-38, %v2937
  %v2939 = vsel %vm2936, %v2938, %v2934
  %v2940 = vmul.f32 1.0, %v2939
  %v2941 = vrcp.pop %v2715
  %v2942 = vmul.f32 %v2715, %v2941
  %v2943 = vsub.f32 1.0, %v2942
  %v2944 = vmul.f32 %v2941, %v2943
  %v2945 = vadd.f32 %v2941, %v2944
  %vm2946 = vweird.f32 %v2715
  %vm2947 = vweird.f32 %v2941
  %vm2948 = vmor %vm2946, %vm2947
  %v2949 = vsel %vm2948, %v2941, %v2945
  %v2950 = vand.u32 2147483647, %v2715
  %vm2951 = vcmp.eq.f32.partialorder %v2950, 8.507059e+37
  %v2952 = vand.u32 %v2715, 2147483648
  %v2953 = vor.u32 1.1754944e-38, %v2952
  %v2954 = vsel %vm2951, %v2953, %v2949
  %v2955 = vmul.f32 1.0, %v2954
  %v2956 = vld [vmem:[%s3] sm:$0xff]
  %v2957 = vld [vmem:[%s3 + $0x8] sm:$0xff]
  %v2958 = vld [vmem:[%s3 + $0x10] sm:$0xff]
  %v2959 = vld [vmem:[%s3 + $0x18] sm:$0xff]
  %v2960 = vld [vmem:[%s3 + $0x20] sm:$0xff]
  %v2961 = vld [vmem:[%s3 + $0x28] sm:$0xff]
  %v2962 = vld [vmem:[%s3 + $0x30] sm:$0xff]
  %v2963 = vld [vmem:[%s3 + $0x38] sm:$0xff]
  %vm2964 = vcmask 130048
  %v2966 = vsel %vm2964, %v2730, 0
  %v2969 = vsel %vm2964, %v2745, 0
  %v2972 = vsel %vm2964, %v2760, 0
  %v2975 = vsel %vm2964, %v2775, 0
  %v2978 = vsel %vm2964, %v2790, 0
  %v2981 = vsel %vm2964, %v2805, 0
  %v2984 = vsel %vm2964, %v2820, 0
  %v2987 = vsel %vm2964, %v2835, 0
  %v2990 = vsel %vm2964, %v2850, 0
  %v2993 = vsel %vm2964, %v2865, 0
  %v2996 = vsel %vm2964, %v2880, 0
  %v2999 = vsel %vm2964, %v2895, 0
  %v3002 = vsel %vm2964, %v2910, 0
  %v3005 = vsel %vm2964, %v2925, 0
  %v3008 = vsel %vm2964, %v2940, 0
  %v3011 = vsel %vm2964, %v2955, 0
  %3013 = vmatpush.msra.mxu0 0.0
  %3014 = vmatpush.msra.mxu0 0.0
  %3015 = vmatpush.msra.mxu0 0.0
  %3016 = vmatpush.msra.mxu0 0.0
  %3017 = vmatpush.msra.mxu0 0.0
  %3018 = vmatpush.msra.mxu0 0.0
  %3019 = vmatpush.msra.mxu0 0.0
  %3020 = vmatpush.msra.mxu0 0.0
  %3021 = vmatpush.msra.mxu0 0.0
  %3022 = vmatpush.msra.mxu0 0.0
  %3023 = vmatpush.msra.mxu0 0.0
  %3024 = vmatpush.msra.mxu0 0.0
  %3025 = vmatpush.msra.mxu0 0.0
  %3026 = vmatpush.msra.mxu0 0.0
  %v3027 = vand.u32 %v2958, 4294901760
  %3028 = vmatpush.msra.mxu0 %v3027
  %v3029 = vand.u32 %v2956, 4294901760
  %3030 = vmatpush.msra.mxu0 %v3029
  %v3031 = vand.u32 %v2966, 4294901760
  %v3032 = vsub.f32 %v2966, %v3031
  %v3033 = vand.u32 %v3032, 4294901760
  %v3034 = vsub.f32 %v3032, %v3033
  %v3035 = vand.u32 %v3034, 4294901760
  %3036 = vmatmul.f32.gmra.mxu0 %v3035
  %v3037 = vpop.f32.mrf.mxu0
  %v3038 = vadd.f32 0.0, %v3037
  %v3039 = vand.u32 %v2969, 4294901760
  %v3040 = vsub.f32 %v2969, %v3039
  %v3041 = vand.u32 %v3040, 4294901760
  %v3042 = vsub.f32 %v3040, %v3041
  %v3043 = vand.u32 %v3042, 4294901760
  %3044 = vmatmul.f32.gmra.mxu0 %v3043
  %v3045 = vpop.f32.mrf.mxu0
  %v3046 = vadd.f32 0.0, %v3045
  %v3047 = vand.u32 %v2972, 4294901760
  %v3048 = vsub.f32 %v2972, %v3047
  %v3049 = vand.u32 %v3048, 4294901760
  %v3050 = vsub.f32 %v3048, %v3049
  %v3051 = vand.u32 %v3050, 4294901760
  %3052 = vmatmul.f32.gmra.mxu0 %v3051
  %v3053 = vpop.f32.mrf.mxu0
  %v3054 = vadd.f32 0.0, %v3053
  %v3055 = vand.u32 %v2975, 4294901760
  %v3056 = vsub.f32 %v2975, %v3055
  %v3057 = vand.u32 %v3056, 4294901760
  %v3058 = vsub.f32 %v3056, %v3057
  %v3059 = vand.u32 %v3058, 4294901760
  %3060 = vmatmul.f32.gmra.mxu0 %v3059
  %v3061 = vpop.f32.mrf.mxu0
  %v3062 = vadd.f32 0.0, %v3061
  %v3063 = vand.u32 %v2978, 4294901760
  %v3064 = vsub.f32 %v2978, %v3063
  %v3065 = vand.u32 %v3064, 4294901760
  %v3066 = vsub.f32 %v3064, %v3065
  %v3067 = vand.u32 %v3066, 4294901760
  %3068 = vmatmul.f32.gmra.mxu0 %v3067
  %v3069 = vpop.f32.mrf.mxu0
  %v3070 = vadd.f32 0.0, %v3069
  %v3071 = vand.u32 %v2981, 4294901760
  %v3072 = vsub.f32 %v2981, %v3071
  %v3073 = vand.u32 %v3072, 4294901760
  %v3074 = vsub.f32 %v3072, %v3073
  %v3075 = vand.u32 %v3074, 4294901760
  %3076 = vmatmul.f32.gmra.mxu0 %v3075
  %v3077 = vpop.f32.mrf.mxu0
  %v3078 = vadd.f32 0.0, %v3077
  %v3079 = vand.u32 %v2984, 4294901760
  %v3080 = vsub.f32 %v2984, %v3079
  %v3081 = vand.u32 %v3080, 4294901760
  %v3082 = vsub.f32 %v3080, %v3081
  %v3083 = vand.u32 %v3082, 4294901760
  %3084 = vmatmul.f32.gmra.mxu0 %v3083
  %v3085 = vpop.f32.mrf.mxu0
  %v3086 = vadd.f32 0.0, %v3085
  %v3087 = vand.u32 %v2987, 4294901760
  %v3088 = vsub.f32 %v2987, %v3087
  %v3089 = vand.u32 %v3088, 4294901760
  %v3090 = vsub.f32 %v3088, %v3089
  %v3091 = vand.u32 %v3090, 4294901760
  %3092 = vmatmul.f32.gmra.mxu0 %v3091
  %v3093 = vpop.f32.mrf.mxu0
  %v3094 = vadd.f32 0.0, %v3093
  %v3095 = vand.u32 %v2990, 4294901760
  %v3096 = vsub.f32 %v2990, %v3095
  %v3097 = vand.u32 %v3096, 4294901760
  %v3098 = vsub.f32 %v3096, %v3097
  %v3099 = vand.u32 %v3098, 4294901760
  %3100 = vmatmul.f32.gmra.mxu0 %v3099
  %v3101 = vpop.f32.mrf.mxu0
  %v3102 = vadd.f32 0.0, %v3101
  %v3103 = vand.u32 %v2993, 4294901760
  %v3104 = vsub.f32 %v2993, %v3103
  %v3105 = vand.u32 %v3104, 4294901760
  %v3106 = vsub.f32 %v3104, %v3105
  %v3107 = vand.u32 %v3106, 4294901760
  %3108 = vmatmul.f32.gmra.mxu0 %v3107
  %v3109 = vpop.f32.mrf.mxu0
  %v3110 = vadd.f32 0.0, %v3109
  %v3111 = vand.u32 %v2996, 4294901760
  %v3112 = vsub.f32 %v2996, %v3111
  %v3113 = vand.u32 %v3112, 4294901760
  %v3114 = vsub.f32 %v3112, %v3113
  %v3115 = vand.u32 %v3114, 4294901760
  %3116 = vmatmul.f32.gmra.mxu0 %v3115
  %v3117 = vpop.f32.mrf.mxu0
  %v3118 = vadd.f32 0.0, %v3117
  %v3119 = vand.u32 %v2999, 4294901760
  %v3120 = vsub.f32 %v2999, %v3119
  %v3121 = vand.u32 %v3120, 4294901760
  %v3122 = vsub.f32 %v3120, %v3121
  %v3123 = vand.u32 %v3122, 4294901760
  %3124 = vmatmul.f32.gmra.mxu0 %v3123
  %v3125 = vpop.f32.mrf.mxu0
  %v3126 = vadd.f32 0.0, %v3125
  %v3127 = vand.u32 %v3002, 4294901760
  %v3128 = vsub.f32 %v3002, %v3127
  %v3129 = vand.u32 %v3128, 4294901760
  %v3130 = vsub.f32 %v3128, %v3129
  %v3131 = vand.u32 %v3130, 4294901760
  %3132 = vmatmul.f32.gmra.mxu0 %v3131
  %v3133 = vpop.f32.mrf.mxu0
  %v3134 = vadd.f32 0.0, %v3133
  %v3135 = vand.u32 %v3005, 4294901760
  %v3136 = vsub.f32 %v3005, %v3135
  %v3137 = vand.u32 %v3136, 4294901760
  %v3138 = vsub.f32 %v3136, %v3137
  %v3139 = vand.u32 %v3138, 4294901760
  %3140 = vmatmul.f32.gmra.mxu0 %v3139
  %v3141 = vpop.f32.mrf.mxu0
  %v3142 = vadd.f32 0.0, %v3141
  %v3143 = vand.u32 %v3008, 4294901760
  %v3144 = vsub.f32 %v3008, %v3143
  %v3145 = vand.u32 %v3144, 4294901760
  %v3146 = vsub.f32 %v3144, %v3145
  %v3147 = vand.u32 %v3146, 4294901760
  %3148 = vmatmul.f32.gmra.mxu0 %v3147
  %v3149 = vpop.f32.mrf.mxu0
  %v3150 = vadd.f32 0.0, %v3149
  %v3151 = vand.u32 %v3011, 4294901760
  %v3152 = vsub.f32 %v3011, %v3151
  %v3153 = vand.u32 %v3152, 4294901760
  %v3154 = vsub.f32 %v3152, %v3153
  %v3155 = vand.u32 %v3154, 4294901760
  %3156 = vmatmul.f32.gmra.mxu0 %v3155
  %v3157 = vpop.f32.mrf.mxu0
  %v3158 = vadd.f32 0.0, %v3157
  %3159 = vdwg.mxu0
  %3160 = vmatpush.msra.mxu0 0.0
  %3161 = vmatpush.msra.mxu0 0.0
  %3162 = vmatpush.msra.mxu0 0.0
  %3163 = vmatpush.msra.mxu0 0.0
  %3164 = vmatpush.msra.mxu0 0.0
  %3165 = vmatpush.msra.mxu0 0.0
  %3166 = vmatpush.msra.mxu0 0.0
  %3167 = vmatpush.msra.mxu0 0.0
  %3168 = vmatpush.msra.mxu0 0.0
  %3169 = vmatpush.msra.mxu0 0.0
  %3170 = vmatpush.msra.mxu0 0.0
  %3171 = vmatpush.msra.mxu0 0.0
  %3172 = vmatpush.msra.mxu0 0.0
  %3173 = vmatpush.msra.mxu0 0.0
  %v3174 = vand.u32 %v2958, 4294901760
  %v3175 = vsub.f32 %v2958, %v3174
  %v3176 = vand.u32 %v3175, 4294901760
  %v3177 = vsub.f32 %v3175, %v3176
  %v3178 = vand.u32 %v3177, 4294901760
  %3179 = vmatpush.msra.mxu0 %v3178
  %v3180 = vand.u32 %v2956, 4294901760
  %v3181 = vsub.f32 %v2956, %v3180
  %v3182 = vand.u32 %v3181, 4294901760
  %v3183 = vsub.f32 %v3181, %v3182
  %v3184 = vand.u32 %v3183, 4294901760
  %3185 = vmatpush.msra.mxu0 %v3184
  %v3186 = vand.u32 %v2966, 4294901760
  %3187 = vmatmul.f32.gmra.mxu0 %v3186
  %v3188 = vpop.f32.mrf.mxu0
  %v3189 = vadd.f32 %v3038, %v3188
  %v3190 = vand.u32 %v2969, 4294901760
  %3191 = vmatmul.f32.gmra.mxu0 %v3190
  %v3192 = vpop.f32.mrf.mxu0
  %v3193 = vadd.f32 %v3046, %v3192
  %v3194 = vand.u32 %v2972, 4294901760
  %3195 = vmatmul.f32.gmra.mxu0 %v3194
  %v3196 = vpop.f32.mrf.mxu0
  %v3197 = vadd.f32 %v3054, %v3196
  %v3198 = vand.u32 %v2975, 4294901760
  %3199 = vmatmul.f32.gmra.mxu0 %v3198
  %v3200 = vpop.f32.mrf.mxu0
  %v3201 = vadd.f32 %v3062, %v3200
  %v3202 = vand.u32 %v2978, 4294901760
  %3203 = vmatmul.f32.gmra.mxu0 %v3202
  %v3204 = vpop.f32.mrf.mxu0
  %v3205 = vadd.f32 %v3070, %v3204
  %v3206 = vand.u32 %v2981, 4294901760
  %3207 = vmatmul.f32.gmra.mxu0 %v3206
  %v3208 = vpop.f32.mrf.mxu0
  %v3209 = vadd.f32 %v3078, %v3208
  %v3210 = vand.u32 %v2984, 4294901760
  %3211 = vmatmul.f32.gmra.mxu0 %v3210
  %v3212 = vpop.f32.mrf.mxu0
  %v3213 = vadd.f32 %v3086, %v3212
  %v3214 = vand.u32 %v2987, 4294901760
  %3215 = vmatmul.f32.gmra.mxu0 %v3214
  %v3216 = vpop.f32.mrf.mxu0
  %v3217 = vadd.f32 %v3094, %v3216
  %v3218 = vand.u32 %v2990, 4294901760
  %3219 = vmatmul.f32.gmra.mxu0 %v3218
  %v3220 = vpop.f32.mrf.mxu0
  %v3221 = vadd.f32 %v3102, %v3220
  %v3222 = vand.u32 %v2993, 4294901760
  %3223 = vmatmul.f32.gmra.mxu0 %v3222
  %v3224 = vpop.f32.mrf.mxu0
  %v3225 = vadd.f32 %v3110, %v3224
  %v3226 = vand.u32 %v2996, 4294901760
  %3227 = vmatmul.f32.gmra.mxu0 %v3226
  %v3228 = vpop.f32.mrf.mxu0
  %v3229 = vadd.f32 %v3118, %v3228
  %v3230 = vand.u32 %v2999, 4294901760
  %3231 = vmatmul.f32.gmra.mxu0 %v3230
  %v3232 = vpop.f32.mrf.mxu0
  %v3233 = vadd.f32 %v3126, %v3232
  %v3234 = vand.u32 %v3002, 4294901760
  %3235 = vmatmul.f32.gmra.mxu0 %v3234
  %v3236 = vpop.f32.mrf.mxu0
  %v3237 = vadd.f32 %v3134, %v3236
  %v3238 = vand.u32 %v3005, 4294901760
  %3239 = vmatmul.f32.gmra.mxu0 %v3238
  %v3240 = vpop.f32.mrf.mxu0
  %v3241 = vadd.f32 %v3142, %v3240
  %v3242 = vand.u32 %v3008, 4294901760
  %3243 = vmatmul.f32.gmra.mxu0 %v3242
  %v3244 = vpop.f32.mrf.mxu0
  %v3245 = vadd.f32 %v3150, %v3244
  %v3246 = vand.u32 %v3011, 4294901760
  %3247 = vmatmul.f32.gmra.mxu0 %v3246
  %v3248 = vpop.f32.mrf.mxu0
  %v3249 = vadd.f32 %v3158, %v3248
  %3250 = vdwg.mxu0
  %3251 = vmatpush.msra.mxu0 0.0
  %3252 = vmatpush.msra.mxu0 0.0
  %3253 = vmatpush.msra.mxu0 0.0
  %3254 = vmatpush.msra.mxu0 0.0
  %3255 = vmatpush.msra.mxu0 0.0
  %3256 = vmatpush.msra.mxu0 0.0
  %3257 = vmatpush.msra.mxu0 0.0
  %3258 = vmatpush.msra.mxu0 0.0
  %3259 = vmatpush.msra.mxu0 0.0
  %3260 = vmatpush.msra.mxu0 0.0
  %3261 = vmatpush.msra.mxu0 0.0
  %3262 = vmatpush.msra.mxu0 0.0
  %3263 = vmatpush.msra.mxu0 0.0
  %3264 = vmatpush.msra.mxu0 0.0
  %v3265 = vand.u32 %v2958, 4294901760
  %v3266 = vsub.f32 %v2958, %v3265
  %3267 = vmatpush.msra.mxu0 %v3266
  %v3268 = vand.u32 %v2956, 4294901760
  %v3269 = vsub.f32 %v2956, %v3268
  %3270 = vmatpush.msra.mxu0 %v3269
  %v3271 = vand.u32 %v2966, 4294901760
  %v3272 = vsub.f32 %v2966, %v3271
  %3273 = vmatmul.f32.gmra.mxu0 %v3272
  %v3274 = vpop.f32.mrf.mxu0
  %v3275 = vadd.f32 %v3189, %v3274
  %v3276 = vand.u32 %v2969, 4294901760
  %v3277 = vsub.f32 %v2969, %v3276
  %3278 = vmatmul.f32.gmra.mxu0 %v3277
  %v3279 = vpop.f32.mrf.mxu0
  %v3280 = vadd.f32 %v3193, %v3279
  %v3281 = vand.u32 %v2972, 4294901760
  %v3282 = vsub.f32 %v2972, %v3281
  %3283 = vmatmul.f32.gmra.mxu0 %v3282
  %v3284 = vpop.f32.mrf.mxu0
  %v3285 = vadd.f32 %v3197, %v3284
  %v3286 = vand.u32 %v2975, 4294901760
  %v3287 = vsub.f32 %v2975, %v3286
  %3288 = vmatmul.f32.gmra.mxu0 %v3287
  %v3289 = vpop.f32.mrf.mxu0
  %v3290 = vadd.f32 %v3201, %v3289
  %v3291 = vand.u32 %v2978, 4294901760
  %v3292 = vsub.f32 %v2978, %v3291
  %3293 = vmatmul.f32.gmra.mxu0 %v3292
  %v3294 = vpop.f32.mrf.mxu0
  %v3295 = vadd.f32 %v3205, %v3294
  %v3296 = vand.u32 %v2981, 4294901760
  %v3297 = vsub.f32 %v2981, %v3296
  %3298 = vmatmul.f32.gmra.mxu0 %v3297
  %v3299 = vpop.f32.mrf.mxu0
  %v3300 = vadd.f32 %v3209, %v3299
  %v3301 = vand.u32 %v2984, 4294901760
  %v3302 = vsub.f32 %v2984, %v3301
  %3303 = vmatmul.f32.gmra.mxu0 %v3302
  %v3304 = vpop.f32.mrf.mxu0
  %v3305 = vadd.f32 %v3213, %v3304
  %v3306 = vand.u32 %v2987, 4294901760
  %v3307 = vsub.f32 %v2987, %v3306
  %3308 = vmatmul.f32.gmra.mxu0 %v3307
  %v3309 = vpop.f32.mrf.mxu0
  %v3310 = vadd.f32 %v3217, %v3309
  %v3311 = vand.u32 %v2990, 4294901760
  %v3312 = vsub.f32 %v2990, %v3311
  %3313 = vmatmul.f32.gmra.mxu0 %v3312
  %v3314 = vpop.f32.mrf.mxu0
  %v3315 = vadd.f32 %v3221, %v3314
  %v3316 = vand.u32 %v2993, 4294901760
  %v3317 = vsub.f32 %v2993, %v3316
  %3318 = vmatmul.f32.gmra.mxu0 %v3317
  %v3319 = vpop.f32.mrf.mxu0
  %v3320 = vadd.f32 %v3225, %v3319
  %v3321 = vand.u32 %v2996, 4294901760
  %v3322 = vsub.f32 %v2996, %v3321
  %3323 = vmatmul.f32.gmra.mxu0 %v3322
  %v3324 = vpop.f32.mrf.mxu0
  %v3325 = vadd.f32 %v3229, %v3324
  %v3326 = vand.u32 %v2999, 4294901760
  %v3327 = vsub.f32 %v2999, %v3326
  %3328 = vmatmul.f32.gmra.mxu0 %v3327
  %v3329 = vpop.f32.mrf.mxu0
  %v3330 = vadd.f32 %v3233, %v3329
  %v3331 = vand.u32 %v3002, 4294901760
  %v3332 = vsub.f32 %v3002, %v3331
  %3333 = vmatmul.f32.gmra.mxu0 %v3332
  %v3334 = vpop.f32.mrf.mxu0
  %v3335 = vadd.f32 %v3237, %v3334
  %v3336 = vand.u32 %v3005, 4294901760
  %v3337 = vsub.f32 %v3005, %v3336
  %3338 = vmatmul.f32.gmra.mxu0 %v3337
  %v3339 = vpop.f32.mrf.mxu0
  %v3340 = vadd.f32 %v3241, %v3339
  %v3341 = vand.u32 %v3008, 4294901760
  %v3342 = vsub.f32 %v3008, %v3341
  %3343 = vmatmul.f32.gmra.mxu0 %v3342
  %v3344 = vpop.f32.mrf.mxu0
  %v3345 = vadd.f32 %v3245, %v3344
  %v3346 = vand.u32 %v3011, 4294901760
  %v3347 = vsub.f32 %v3011, %v3346
  %3348 = vmatmul.f32.gmra.mxu0 %v3347
  %v3349 = vpop.f32.mrf.mxu0
  %v3350 = vadd.f32 %v3249, %v3349
  %3351 = vdwg.mxu0
  %3352 = vmatpush.msra.mxu0 0.0
  %3353 = vmatpush.msra.mxu0 0.0
  %3354 = vmatpush.msra.mxu0 0.0
  %3355 = vmatpush.msra.mxu0 0.0
  %3356 = vmatpush.msra.mxu0 0.0
  %3357 = vmatpush.msra.mxu0 0.0
  %3358 = vmatpush.msra.mxu0 0.0
  %3359 = vmatpush.msra.mxu0 0.0
  %3360 = vmatpush.msra.mxu0 0.0
  %3361 = vmatpush.msra.mxu0 0.0
  %3362 = vmatpush.msra.mxu0 0.0
  %3363 = vmatpush.msra.mxu0 0.0
  %3364 = vmatpush.msra.mxu0 0.0
  %3365 = vmatpush.msra.mxu0 0.0
  %v3366 = vand.u32 %v2958, 4294901760
  %3367 = vmatpush.msra.mxu0 %v3366
  %v3368 = vand.u32 %v2956, 4294901760
  %3369 = vmatpush.msra.mxu0 %v3368
  %v3370 = vand.u32 %v2966, 4294901760
  %v3371 = vsub.f32 %v2966, %v3370
  %v3372 = vand.u32 %v3371, 4294901760
  %3373 = vmatmul.f32.gmra.mxu0 %v3372
  %v3374 = vpop.f32.mrf.mxu0
  %v3375 = vadd.f32 %v3275, %v3374
  %v3376 = vand.u32 %v2969, 4294901760
  %v3377 = vsub.f32 %v2969, %v3376
  %v3378 = vand.u32 %v3377, 4294901760
  %3379 = vmatmul.f32.gmra.mxu0 %v3378
  %v3380 = vpop.f32.mrf.mxu0
  %v3381 = vadd.f32 %v3280, %v3380
  %v3382 = vand.u32 %v2972, 4294901760
  %v3383 = vsub.f32 %v2972, %v3382
  %v3384 = vand.u32 %v3383, 4294901760
  %3385 = vmatmul.f32.gmra.mxu0 %v3384
  %v3386 = vpop.f32.mrf.mxu0
  %v3387 = vadd.f32 %v3285, %v3386
  %v3388 = vand.u32 %v2975, 4294901760
  %v3389 = vsub.f32 %v2975, %v3388
  %v3390 = vand.u32 %v3389, 4294901760
  %3391 = vmatmul.f32.gmra.mxu0 %v3390
  %v3392 = vpop.f32.mrf.mxu0
  %v3393 = vadd.f32 %v3290, %v3392
  %v3394 = vand.u32 %v2978, 4294901760
  %v3395 = vsub.f32 %v2978, %v3394
  %v3396 = vand.u32 %v3395, 4294901760
  %3397 = vmatmul.f32.gmra.mxu0 %v3396
  %v3398 = vpop.f32.mrf.mxu0
  %v3399 = vadd.f32 %v3295, %v3398
  %v3400 = vand.u32 %v2981, 4294901760
  %v3401 = vsub.f32 %v2981, %v3400
  %v3402 = vand.u32 %v3401, 4294901760
  %3403 = vmatmul.f32.gmra.mxu0 %v3402
  %v3404 = vpop.f32.mrf.mxu0
  %v3405 = vadd.f32 %v3300, %v3404
  %v3406 = vand.u32 %v2984, 4294901760
  %v3407 = vsub.f32 %v2984, %v3406
  %v3408 = vand.u32 %v3407, 4294901760
  %3409 = vmatmul.f32.gmra.mxu0 %v3408
  %v3410 = vpop.f32.mrf.mxu0
  %v3411 = vadd.f32 %v3305, %v3410
  %v3412 = vand.u32 %v2987, 4294901760
  %v3413 = vsub.f32 %v2987, %v3412
  %v3414 = vand.u32 %v3413, 4294901760
  %3415 = vmatmul.f32.gmra.mxu0 %v3414
  %v3416 = vpop.f32.mrf.mxu0
  %v3417 = vadd.f32 %v3310, %v3416
  %v3418 = vand.u32 %v2990, 4294901760
  %v3419 = vsub.f32 %v2990, %v3418
  %v3420 = vand.u32 %v3419, 4294901760
  %3421 = vmatmul.f32.gmra.mxu0 %v3420
  %v3422 = vpop.f32.mrf.mxu0
  %v3423 = vadd.f32 %v3315, %v3422
  %v3424 = vand.u32 %v2993, 4294901760
  %v3425 = vsub.f32 %v2993, %v3424
  %v3426 = vand.u32 %v3425, 4294901760
  %3427 = vmatmul.f32.gmra.mxu0 %v3426
  %v3428 = vpop.f32.mrf.mxu0
  %v3429 = vadd.f32 %v3320, %v3428
  %v3430 = vand.u32 %v2996, 4294901760
  %v3431 = vsub.f32 %v2996, %v3430
  %v3432 = vand.u32 %v3431, 4294901760
  %3433 = vmatmul.f32.gmra.mxu0 %v3432
  %v3434 = vpop.f32.mrf.mxu0
  %v3435 = vadd.f32 %v3325, %v3434
  %v3436 = vand.u32 %v2999, 4294901760
  %v3437 = vsub.f32 %v2999, %v3436
  %v3438 = vand.u32 %v3437, 4294901760
  %3439 = vmatmul.f32.gmra.mxu0 %v3438
  %v3440 = vpop.f32.mrf.mxu0
  %v3441 = vadd.f32 %v3330, %v3440
  %v3442 = vand.u32 %v3002, 4294901760
  %v3443 = vsub.f32 %v3002, %v3442
  %v3444 = vand.u32 %v3443, 4294901760
  %3445 = vmatmul.f32.gmra.mxu0 %v3444
  %v3446 = vpop.f32.mrf.mxu0
  %v3447 = vadd.f32 %v3335, %v3446
  %v3448 = vand.u32 %v3005, 4294901760
  %v3449 = vsub.f32 %v3005, %v3448
  %v3450 = vand.u32 %v3449, 4294901760
  %3451 = vmatmul.f32.gmra.mxu0 %v3450
  %v3452 = vpop.f32.mrf.mxu0
  %v3453 = vadd.f32 %v3340, %v3452
  %v3454 = vand.u32 %v3008, 4294901760
  %v3455 = vsub.f32 %v3008, %v3454
  %v3456 = vand.u32 %v3455, 4294901760
  %3457 = vmatmul.f32.gmra.mxu0 %v3456
  %v3458 = vpop.f32.mrf.mxu0
  %v3459 = vadd.f32 %v3345, %v3458
  %v3460 = vand.u32 %v3011, 4294901760
  %v3461 = vsub.f32 %v3011, %v3460
  %v3462 = vand.u32 %v3461, 4294901760
  %3463 = vmatmul.f32.gmra.mxu0 %v3462
  %v3464 = vpop.f32.mrf.mxu0
  %v3465 = vadd.f32 %v3350, %v3464
  %3466 = vdwg.mxu0
  %3467 = vmatpush.msra.mxu0 0.0
  %3468 = vmatpush.msra.mxu0 0.0
  %3469 = vmatpush.msra.mxu0 0.0
  %3470 = vmatpush.msra.mxu0 0.0
  %3471 = vmatpush.msra.mxu0 0.0
  %3472 = vmatpush.msra.mxu0 0.0
  %3473 = vmatpush.msra.mxu0 0.0
  %3474 = vmatpush.msra.mxu0 0.0
  %3475 = vmatpush.msra.mxu0 0.0
  %3476 = vmatpush.msra.mxu0 0.0
  %3477 = vmatpush.msra.mxu0 0.0
  %3478 = vmatpush.msra.mxu0 0.0
  %3479 = vmatpush.msra.mxu0 0.0
  %3480 = vmatpush.msra.mxu0 0.0
  %v3481 = vand.u32 %v2958, 4294901760
  %v3482 = vsub.f32 %v2958, %v3481
  %v3483 = vand.u32 %v3482, 4294901760
  %3484 = vmatpush.msra.mxu0 %v3483
  %v3485 = vand.u32 %v2956, 4294901760
  %v3486 = vsub.f32 %v2956, %v3485
  %v3487 = vand.u32 %v3486, 4294901760
  %3488 = vmatpush.msra.mxu0 %v3487
  %v3489 = vand.u32 %v2966, 4294901760
  %3490 = vmatmul.f32.gmra.mxu0 %v3489
  %v3491 = vpop.f32.mrf.mxu0
  %v3492 = vadd.f32 %v3375, %v3491
  %v3493 = vand.u32 %v2969, 4294901760
  %3494 = vmatmul.f32.gmra.mxu0 %v3493
  %v3495 = vpop.f32.mrf.mxu0
  %v3496 = vadd.f32 %v3381, %v3495
  %v3497 = vand.u32 %v2972, 4294901760
  %3498 = vmatmul.f32.gmra.mxu0 %v3497
  %v3499 = vpop.f32.mrf.mxu0
  %v3500 = vadd.f32 %v3387, %v3499
  %v3501 = vand.u32 %v2975, 4294901760
  %3502 = vmatmul.f32.gmra.mxu0 %v3501
  %v3503 = vpop.f32.mrf.mxu0
  %v3504 = vadd.f32 %v3393, %v3503
  %v3505 = vand.u32 %v2978, 4294901760
  %3506 = vmatmul.f32.gmra.mxu0 %v3505
  %v3507 = vpop.f32.mrf.mxu0
  %v3508 = vadd.f32 %v3399, %v3507
  %v3509 = vand.u32 %v2981, 4294901760
  %3510 = vmatmul.f32.gmra.mxu0 %v3509
  %v3511 = vpop.f32.mrf.mxu0
  %v3512 = vadd.f32 %v3405, %v3511
  %v3513 = vand.u32 %v2984, 4294901760
  %3514 = vmatmul.f32.gmra.mxu0 %v3513
  %v3515 = vpop.f32.mrf.mxu0
  %v3516 = vadd.f32 %v3411, %v3515
  %v3517 = vand.u32 %v2987, 4294901760
  %3518 = vmatmul.f32.gmra.mxu0 %v3517
  %v3519 = vpop.f32.mrf.mxu0
  %v3520 = vadd.f32 %v3417, %v3519
  %v3521 = vand.u32 %v2990, 4294901760
  %3522 = vmatmul.f32.gmra.mxu0 %v3521
  %v3523 = vpop.f32.mrf.mxu0
  %v3524 = vadd.f32 %v3423, %v3523
  %v3525 = vand.u32 %v2993, 4294901760
  %3526 = vmatmul.f32.gmra.mxu0 %v3525
  %v3527 = vpop.f32.mrf.mxu0
  %v3528 = vadd.f32 %v3429, %v3527
  %v3529 = vand.u32 %v2996, 4294901760
  %3530 = vmatmul.f32.gmra.mxu0 %v3529
  %v3531 = vpop.f32.mrf.mxu0
  %v3532 = vadd.f32 %v3435, %v3531
  %v3533 = vand.u32 %v2999, 4294901760
  %3534 = vmatmul.f32.gmra.mxu0 %v3533
  %v3535 = vpop.f32.mrf.mxu0
  %v3536 = vadd.f32 %v3441, %v3535
  %v3537 = vand.u32 %v3002, 4294901760
  %3538 = vmatmul.f32.gmra.mxu0 %v3537
  %v3539 = vpop.f32.mrf.mxu0
  %v3540 = vadd.f32 %v3447, %v3539
  %v3541 = vand.u32 %v3005, 4294901760
  %3542 = vmatmul.f32.gmra.mxu0 %v3541
  %v3543 = vpop.f32.mrf.mxu0
  %v3544 = vadd.f32 %v3453, %v3543
  %v3545 = vand.u32 %v3008, 4294901760
  %3546 = vmatmul.f32.gmra.mxu0 %v3545
  %v3547 = vpop.f32.mrf.mxu0
  %v3548 = vadd.f32 %v3459, %v3547
  %v3549 = vand.u32 %v3011, 4294901760
  %3550 = vmatmul.f32.gmra.mxu0 %v3549
  %v3551 = vpop.f32.mrf.mxu0
  %v3552 = vadd.f32 %v3465, %v3551
  %3553 = vdwg.mxu0
  %3554 = vmatpush.msra.mxu0 0.0
  %3555 = vmatpush.msra.mxu0 0.0
  %3556 = vmatpush.msra.mxu0 0.0
  %3557 = vmatpush.msra.mxu0 0.0
  %3558 = vmatpush.msra.mxu0 0.0
  %3559 = vmatpush.msra.mxu0 0.0
  %3560 = vmatpush.msra.mxu0 0.0
  %3561 = vmatpush.msra.mxu0 0.0
  %3562 = vmatpush.msra.mxu0 0.0
  %3563 = vmatpush.msra.mxu0 0.0
  %3564 = vmatpush.msra.mxu0 0.0
  %3565 = vmatpush.msra.mxu0 0.0
  %3566 = vmatpush.msra.mxu0 0.0
  %3567 = vmatpush.msra.mxu0 0.0
  %v3568 = vand.u32 %v2958, 4294901760
  %3569 = vmatpush.msra.mxu0 %v3568
  %v3570 = vand.u32 %v2956, 4294901760
  %3571 = vmatpush.msra.mxu0 %v3570
  %v3572 = vand.u32 %v2966, 4294901760
  %3573 = vmatmul.f32.gmra.mxu0 %v3572
  %v3574 = vpop.f32.mrf.mxu0
  %v3575 = vadd.f32 %v3492, %v3574
  %v3576 = vand.u32 %v2969, 4294901760
  %3577 = vmatmul.f32.gmra.mxu0 %v3576
  %v3578 = vpop.f32.mrf.mxu0
  %v3579 = vadd.f32 %v3496, %v3578
  %v3580 = vand.u32 %v2972, 4294901760
  %3581 = vmatmul.f32.gmra.mxu0 %v3580
  %v3582 = vpop.f32.mrf.mxu0
  %v3583 = vadd.f32 %v3500, %v3582
  %v3584 = vand.u32 %v2975, 4294901760
  %3585 = vmatmul.f32.gmra.mxu0 %v3584
  %v3586 = vpop.f32.mrf.mxu0
  %v3587 = vadd.f32 %v3504, %v3586
  %v3588 = vand.u32 %v2978, 4294901760
  %3589 = vmatmul.f32.gmra.mxu0 %v3588
  %v3590 = vpop.f32.mrf.mxu0
  %v3591 = vadd.f32 %v3508, %v3590
  %v3592 = vand.u32 %v2981, 4294901760
  %3593 = vmatmul.f32.gmra.mxu0 %v3592
  %v3594 = vpop.f32.mrf.mxu0
  %v3595 = vadd.f32 %v3512, %v3594
  %v3596 = vand.u32 %v2984, 4294901760
  %3597 = vmatmul.f32.gmra.mxu0 %v3596
  %v3598 = vpop.f32.mrf.mxu0
  %v3599 = vadd.f32 %v3516, %v3598
  %v3600 = vand.u32 %v2987, 4294901760
  %3601 = vmatmul.f32.gmra.mxu0 %v3600
  %v3602 = vpop.f32.mrf.mxu0
  %v3603 = vadd.f32 %v3520, %v3602
  %v3604 = vand.u32 %v2990, 4294901760
  %3605 = vmatmul.f32.gmra.mxu0 %v3604
  %v3606 = vpop.f32.mrf.mxu0
  %v3607 = vadd.f32 %v3524, %v3606
  %v3608 = vand.u32 %v2993, 4294901760
  %3609 = vmatmul.f32.gmra.mxu0 %v3608
  %v3610 = vpop.f32.mrf.mxu0
  %v3611 = vadd.f32 %v3528, %v3610
  %v3612 = vand.u32 %v2996, 4294901760
  %3613 = vmatmul.f32.gmra.mxu0 %v3612
  %v3614 = vpop.f32.mrf.mxu0
  %v3615 = vadd.f32 %v3532, %v3614
  %v3616 = vand.u32 %v2999, 4294901760
  %3617 = vmatmul.f32.gmra.mxu0 %v3616
  %v3618 = vpop.f32.mrf.mxu0
  %v3619 = vadd.f32 %v3536, %v3618
  %v3620 = vand.u32 %v3002, 4294901760
  %3621 = vmatmul.f32.gmra.mxu0 %v3620
  %v3622 = vpop.f32.mrf.mxu0
  %v3623 = vadd.f32 %v3540, %v3622
  %v3624 = vand.u32 %v3005, 4294901760
  %3625 = vmatmul.f32.gmra.mxu0 %v3624
  %v3626 = vpop.f32.mrf.mxu0
  %v3627 = vadd.f32 %v3544, %v3626
  %v3628 = vand.u32 %v3008, 4294901760
  %3629 = vmatmul.f32.gmra.mxu0 %v3628
  %v3630 = vpop.f32.mrf.mxu0
  %v3631 = vadd.f32 %v3548, %v3630
  %v3632 = vand.u32 %v3011, 4294901760
  %3633 = vmatmul.f32.gmra.mxu0 %v3632
  %v3634 = vpop.f32.mrf.mxu0
  %v3635 = vadd.f32 %v3552, %v3634
  %3636 = vdwg.mxu0
  %3637 = vmatpush.msra.mxu0 0.0
  %3638 = vmatpush.msra.mxu0 0.0
  %3639 = vmatpush.msra.mxu0 0.0
  %3640 = vmatpush.msra.mxu0 0.0
  %3641 = vmatpush.msra.mxu0 0.0
  %3642 = vmatpush.msra.mxu0 0.0
  %3643 = vmatpush.msra.mxu0 0.0
  %3644 = vmatpush.msra.mxu0 0.0
  %3645 = vmatpush.msra.mxu0 0.0
  %3646 = vmatpush.msra.mxu0 0.0
  %3647 = vmatpush.msra.mxu0 0.0
  %3648 = vmatpush.msra.mxu0 0.0
  %3649 = vmatpush.msra.mxu0 0.0
  %3650 = vmatpush.msra.mxu0 0.0
  %v3651 = vand.u32 %v2959, 4294901760
  %3652 = vmatpush.msra.mxu0 %v3651
  %v3653 = vand.u32 %v2957, 4294901760
  %3654 = vmatpush.msra.mxu0 %v3653
  %v3655 = vand.u32 %v2966, 4294901760
  %v3656 = vsub.f32 %v2966, %v3655
  %v3657 = vand.u32 %v3656, 4294901760
  %v3658 = vsub.f32 %v3656, %v3657
  %v3659 = vand.u32 %v3658, 4294901760
  %3660 = vmatmul.f32.gmra.mxu0 %v3659
  %v3661 = vpop.f32.mrf.mxu0
  %v3662 = vadd.f32 0.0, %v3661
  %v3663 = vand.u32 %v2969, 4294901760
  %v3664 = vsub.f32 %v2969, %v3663
  %v3665 = vand.u32 %v3664, 4294901760
  %v3666 = vsub.f32 %v3664, %v3665
  %v3667 = vand.u32 %v3666, 4294901760
  %3668 = vmatmul.f32.gmra.mxu0 %v3667
  %v3669 = vpop.f32.mrf.mxu0
  %v3670 = vadd.f32 0.0, %v3669
  %v3671 = vand.u32 %v2972, 4294901760
  %v3672 = vsub.f32 %v2972, %v3671
  %v3673 = vand.u32 %v3672, 4294901760
  %v3674 = vsub.f32 %v3672, %v3673
  %v3675 = vand.u32 %v3674, 4294901760
  %3676 = vmatmul.f32.gmra.mxu0 %v3675
  %v3677 = vpop.f32.mrf.mxu0
  %v3678 = vadd.f32 0.0, %v3677
  %v3679 = vand.u32 %v2975, 4294901760
  %v3680 = vsub.f32 %v2975, %v3679
  %v3681 = vand.u32 %v3680, 4294901760
  %v3682 = vsub.f32 %v3680, %v3681
  %v3683 = vand.u32 %v3682, 4294901760
  %3684 = vmatmul.f32.gmra.mxu0 %v3683
  %v3685 = vpop.f32.mrf.mxu0
  %v3686 = vadd.f32 0.0, %v3685
  %v3687 = vand.u32 %v2978, 4294901760
  %v3688 = vsub.f32 %v2978, %v3687
  %v3689 = vand.u32 %v3688, 4294901760
  %v3690 = vsub.f32 %v3688, %v3689
  %v3691 = vand.u32 %v3690, 4294901760
  %3692 = vmatmul.f32.gmra.mxu0 %v3691
  %v3693 = vpop.f32.mrf.mxu0
  %v3694 = vadd.f32 0.0, %v3693
  %v3695 = vand.u32 %v2981, 4294901760
  %v3696 = vsub.f32 %v2981, %v3695
  %v3697 = vand.u32 %v3696, 4294901760
  %v3698 = vsub.f32 %v3696, %v3697
  %v3699 = vand.u32 %v3698, 4294901760
  %3700 = vmatmul.f32.gmra.mxu0 %v3699
  %v3701 = vpop.f32.mrf.mxu0
  %v3702 = vadd.f32 0.0, %v3701
  %v3703 = vand.u32 %v2984, 4294901760
  %v3704 = vsub.f32 %v2984, %v3703
  %v3705 = vand.u32 %v3704, 4294901760
  %v3706 = vsub.f32 %v3704, %v3705
  %v3707 = vand.u32 %v3706, 4294901760
  %3708 = vmatmul.f32.gmra.mxu0 %v3707
  %v3709 = vpop.f32.mrf.mxu0
  %v3710 = vadd.f32 0.0, %v3709
  %v3711 = vand.u32 %v2987, 4294901760
  %v3712 = vsub.f32 %v2987, %v3711
  %v3713 = vand.u32 %v3712, 4294901760
  %v3714 = vsub.f32 %v3712, %v3713
  %v3715 = vand.u32 %v3714, 4294901760
  %3716 = vmatmul.f32.gmra.mxu0 %v3715
  %v3717 = vpop.f32.mrf.mxu0
  %v3718 = vadd.f32 0.0, %v3717
  %v3719 = vand.u32 %v2990, 4294901760
  %v3720 = vsub.f32 %v2990, %v3719
  %v3721 = vand.u32 %v3720, 4294901760
  %v3722 = vsub.f32 %v3720, %v3721
  %v3723 = vand.u32 %v3722, 4294901760
  %3724 = vmatmul.f32.gmra.mxu0 %v3723
  %v3725 = vpop.f32.mrf.mxu0
  %v3726 = vadd.f32 0.0, %v3725
  %v3727 = vand.u32 %v2993, 4294901760
  %v3728 = vsub.f32 %v2993, %v3727
  %v3729 = vand.u32 %v3728, 4294901760
  %v3730 = vsub.f32 %v3728, %v3729
  %v3731 = vand.u32 %v3730, 4294901760
  %3732 = vmatmul.f32.gmra.mxu0 %v3731
  %v3733 = vpop.f32.mrf.mxu0
  %v3734 = vadd.f32 0.0, %v3733
  %v3735 = vand.u32 %v2996, 4294901760
  %v3736 = vsub.f32 %v2996, %v3735
  %v3737 = vand.u32 %v3736, 4294901760
  %v3738 = vsub.f32 %v3736, %v3737
  %v3739 = vand.u32 %v3738, 4294901760
  %3740 = vmatmul.f32.gmra.mxu0 %v3739
  %v3741 = vpop.f32.mrf.mxu0
  %v3742 = vadd.f32 0.0, %v3741
  %v3743 = vand.u32 %v2999, 4294901760
  %v3744 = vsub.f32 %v2999, %v3743
  %v3745 = vand.u32 %v3744, 4294901760
  %v3746 = vsub.f32 %v3744, %v3745
  %v3747 = vand.u32 %v3746, 4294901760
  %3748 = vmatmul.f32.gmra.mxu0 %v3747
  %v3749 = vpop.f32.mrf.mxu0
  %v3750 = vadd.f32 0.0, %v3749
  %v3751 = vand.u32 %v3002, 4294901760
  %v3752 = vsub.f32 %v3002, %v3751
  %v3753 = vand.u32 %v3752, 4294901760
  %v3754 = vsub.f32 %v3752, %v3753
  %v3755 = vand.u32 %v3754, 4294901760
  %3756 = vmatmul.f32.gmra.mxu0 %v3755
  %v3757 = vpop.f32.mrf.mxu0
  %v3758 = vadd.f32 0.0, %v3757
  %v3759 = vand.u32 %v3005, 4294901760
  %v3760 = vsub.f32 %v3005, %v3759
  %v3761 = vand.u32 %v3760, 4294901760
  %v3762 = vsub.f32 %v3760, %v3761
  %v3763 = vand.u32 %v3762, 4294901760
  %3764 = vmatmul.f32.gmra.mxu0 %v3763
  %v3765 = vpop.f32.mrf.mxu0
  %v3766 = vadd.f32 0.0, %v3765
  %v3767 = vand.u32 %v3008, 4294901760
  %v3768 = vsub.f32 %v3008, %v3767
  %v3769 = vand.u32 %v3768, 4294901760
  %v3770 = vsub.f32 %v3768, %v3769
  %v3771 = vand.u32 %v3770, 4294901760
  %3772 = vmatmul.f32.gmra.mxu0 %v3771
  %v3773 = vpop.f32.mrf.mxu0
  %v3774 = vadd.f32 0.0, %v3773
  %v3775 = vand.u32 %v3011, 4294901760
  %v3776 = vsub.f32 %v3011, %v3775
  %v3777 = vand.u32 %v3776, 4294901760
  %v3778 = vsub.f32 %v3776, %v3777
  %v3779 = vand.u32 %v3778, 4294901760
  %3780 = vmatmul.f32.gmra.mxu0 %v3779
  %v3781 = vpop.f32.mrf.mxu0
  %v3782 = vadd.f32 0.0, %v3781
  %3783 = vdwg.mxu0
  %3784 = vmatpush.msra.mxu0 0.0
  %3785 = vmatpush.msra.mxu0 0.0
  %3786 = vmatpush.msra.mxu0 0.0
  %3787 = vmatpush.msra.mxu0 0.0
  %3788 = vmatpush.msra.mxu0 0.0
  %3789 = vmatpush.msra.mxu0 0.0
  %3790 = vmatpush.msra.mxu0 0.0
  %3791 = vmatpush.msra.mxu0 0.0
  %3792 = vmatpush.msra.mxu0 0.0
  %3793 = vmatpush.msra.mxu0 0.0
  %3794 = vmatpush.msra.mxu0 0.0
  %3795 = vmatpush.msra.mxu0 0.0
  %3796 = vmatpush.msra.mxu0 0.0
  %3797 = vmatpush.msra.mxu0 0.0
  %v3798 = vand.u32 %v2959, 4294901760
  %v3799 = vsub.f32 %v2959, %v3798
  %v3800 = vand.u32 %v3799, 4294901760
  %v3801 = vsub.f32 %v3799, %v3800
  %v3802 = vand.u32 %v3801, 4294901760
  %3803 = vmatpush.msra.mxu0 %v3802
  %v3804 = vand.u32 %v2957, 4294901760
  %v3805 = vsub.f32 %v2957, %v3804
  %v3806 = vand.u32 %v3805, 4294901760
  %v3807 = vsub.f32 %v3805, %v3806
  %v3808 = vand.u32 %v3807, 4294901760
  %3809 = vmatpush.msra.mxu0 %v3808
  %v3810 = vand.u32 %v2966, 4294901760
  %3811 = vmatmul.f32.gmra.mxu0 %v3810
  %v3812 = vpop.f32.mrf.mxu0
  %v3813 = vadd.f32 %v3662, %v3812
  %v3814 = vand.u32 %v2969, 4294901760
  %3815 = vmatmul.f32.gmra.mxu0 %v3814
  %v3816 = vpop.f32.mrf.mxu0
  %v3817 = vadd.f32 %v3670, %v3816
  %v3818 = vand.u32 %v2972, 4294901760
  %3819 = vmatmul.f32.gmra.mxu0 %v3818
  %v3820 = vpop.f32.mrf.mxu0
  %v3821 = vadd.f32 %v3678, %v3820
  %v3822 = vand.u32 %v2975, 4294901760
  %3823 = vmatmul.f32.gmra.mxu0 %v3822
  %v3824 = vpop.f32.mrf.mxu0
  %v3825 = vadd.f32 %v3686, %v3824
  %v3826 = vand.u32 %v2978, 4294901760
  %3827 = vmatmul.f32.gmra.mxu0 %v3826
  %v3828 = vpop.f32.mrf.mxu0
  %v3829 = vadd.f32 %v3694, %v3828
  %v3830 = vand.u32 %v2981, 4294901760
  %3831 = vmatmul.f32.gmra.mxu0 %v3830
  %v3832 = vpop.f32.mrf.mxu0
  %v3833 = vadd.f32 %v3702, %v3832
  %v3834 = vand.u32 %v2984, 4294901760
  %3835 = vmatmul.f32.gmra.mxu0 %v3834
  %v3836 = vpop.f32.mrf.mxu0
  %v3837 = vadd.f32 %v3710, %v3836
  %v3838 = vand.u32 %v2987, 4294901760
  %3839 = vmatmul.f32.gmra.mxu0 %v3838
  %v3840 = vpop.f32.mrf.mxu0
  %v3841 = vadd.f32 %v3718, %v3840
  %v3842 = vand.u32 %v2990, 4294901760
  %3843 = vmatmul.f32.gmra.mxu0 %v3842
  %v3844 = vpop.f32.mrf.mxu0
  %v3845 = vadd.f32 %v3726, %v3844
  %v3846 = vand.u32 %v2993, 4294901760
  %3847 = vmatmul.f32.gmra.mxu0 %v3846
  %v3848 = vpop.f32.mrf.mxu0
  %v3849 = vadd.f32 %v3734, %v3848
  %v3850 = vand.u32 %v2996, 4294901760
  %3851 = vmatmul.f32.gmra.mxu0 %v3850
  %v3852 = vpop.f32.mrf.mxu0
  %v3853 = vadd.f32 %v3742, %v3852
  %v3854 = vand.u32 %v2999, 4294901760
  %3855 = vmatmul.f32.gmra.mxu0 %v3854
  %v3856 = vpop.f32.mrf.mxu0
  %v3857 = vadd.f32 %v3750, %v3856
  %v3858 = vand.u32 %v3002, 4294901760
  %3859 = vmatmul.f32.gmra.mxu0 %v3858
  %v3860 = vpop.f32.mrf.mxu0
  %v3861 = vadd.f32 %v3758, %v3860
  %v3862 = vand.u32 %v3005, 4294901760
  %3863 = vmatmul.f32.gmra.mxu0 %v3862
  %v3864 = vpop.f32.mrf.mxu0
  %v3865 = vadd.f32 %v3766, %v3864
  %v3866 = vand.u32 %v3008, 4294901760
  %3867 = vmatmul.f32.gmra.mxu0 %v3866
  %v3868 = vpop.f32.mrf.mxu0
  %v3869 = vadd.f32 %v3774, %v3868
  %v3870 = vand.u32 %v3011, 4294901760
  %3871 = vmatmul.f32.gmra.mxu0 %v3870
  %v3872 = vpop.f32.mrf.mxu0
  %v3873 = vadd.f32 %v3782, %v3872
  %3874 = vdwg.mxu0
  %3875 = vmatpush.msra.mxu0 0.0
  %3876 = vmatpush.msra.mxu0 0.0
  %3877 = vmatpush.msra.mxu0 0.0
  %3878 = vmatpush.msra.mxu0 0.0
  %3879 = vmatpush.msra.mxu0 0.0
  %3880 = vmatpush.msra.mxu0 0.0
  %3881 = vmatpush.msra.mxu0 0.0
  %3882 = vmatpush.msra.mxu0 0.0
  %3883 = vmatpush.msra.mxu0 0.0
  %3884 = vmatpush.msra.mxu0 0.0
  %3885 = vmatpush.msra.mxu0 0.0
  %3886 = vmatpush.msra.mxu0 0.0
  %3887 = vmatpush.msra.mxu0 0.0
  %3888 = vmatpush.msra.mxu0 0.0
  %v3889 = vand.u32 %v2959, 4294901760
  %v3890 = vsub.f32 %v2959, %v3889
  %3891 = vmatpush.msra.mxu0 %v3890
  %v3892 = vand.u32 %v2957, 4294901760
  %v3893 = vsub.f32 %v2957, %v3892
  %3894 = vmatpush.msra.mxu0 %v3893
  %v3895 = vand.u32 %v2966, 4294901760
  %v3896 = vsub.f32 %v2966, %v3895
  %3897 = vmatmul.f32.gmra.mxu0 %v3896
  %v3898 = vpop.f32.mrf.mxu0
  %v3899 = vadd.f32 %v3813, %v3898
  %v3900 = vand.u32 %v2969, 4294901760
  %v3901 = vsub.f32 %v2969, %v3900
  %3902 = vmatmul.f32.gmra.mxu0 %v3901
  %v3903 = vpop.f32.mrf.mxu0
  %v3904 = vadd.f32 %v3817, %v3903
  %v3905 = vand.u32 %v2972, 4294901760
  %v3906 = vsub.f32 %v2972, %v3905
  %3907 = vmatmul.f32.gmra.mxu0 %v3906
  %v3908 = vpop.f32.mrf.mxu0
  %v3909 = vadd.f32 %v3821, %v3908
  %v3910 = vand.u32 %v2975, 4294901760
  %v3911 = vsub.f32 %v2975, %v3910
  %3912 = vmatmul.f32.gmra.mxu0 %v3911
  %v3913 = vpop.f32.mrf.mxu0
  %v3914 = vadd.f32 %v3825, %v3913
  %v3915 = vand.u32 %v2978, 4294901760
  %v3916 = vsub.f32 %v2978, %v3915
  %3917 = vmatmul.f32.gmra.mxu0 %v3916
  %v3918 = vpop.f32.mrf.mxu0
  %v3919 = vadd.f32 %v3829, %v3918
  %v3920 = vand.u32 %v2981, 4294901760
  %v3921 = vsub.f32 %v2981, %v3920
  %3922 = vmatmul.f32.gmra.mxu0 %v3921
  %v3923 = vpop.f32.mrf.mxu0
  %v3924 = vadd.f32 %v3833, %v3923
  %v3925 = vand.u32 %v2984, 4294901760
  %v3926 = vsub.f32 %v2984, %v3925
  %3927 = vmatmul.f32.gmra.mxu0 %v3926
  %v3928 = vpop.f32.mrf.mxu0
  %v3929 = vadd.f32 %v3837, %v3928
  %v3930 = vand.u32 %v2987, 4294901760
  %v3931 = vsub.f32 %v2987, %v3930
  %3932 = vmatmul.f32.gmra.mxu0 %v3931
  %v3933 = vpop.f32.mrf.mxu0
  %v3934 = vadd.f32 %v3841, %v3933
  %v3935 = vand.u32 %v2990, 4294901760
  %v3936 = vsub.f32 %v2990, %v3935
  %3937 = vmatmul.f32.gmra.mxu0 %v3936
  %v3938 = vpop.f32.mrf.mxu0
  %v3939 = vadd.f32 %v3845, %v3938
  %v3940 = vand.u32 %v2993, 4294901760
  %v3941 = vsub.f32 %v2993, %v3940
  %3942 = vmatmul.f32.gmra.mxu0 %v3941
  %v3943 = vpop.f32.mrf.mxu0
  %v3944 = vadd.f32 %v3849, %v3943
  %v3945 = vand.u32 %v2996, 4294901760
  %v3946 = vsub.f32 %v2996, %v3945
  %3947 = vmatmul.f32.gmra.mxu0 %v3946
  %v3948 = vpop.f32.mrf.mxu0
  %v3949 = vadd.f32 %v3853, %v3948
  %v3950 = vand.u32 %v2999, 4294901760
  %v3951 = vsub.f32 %v2999, %v3950
  %3952 = vmatmul.f32.gmra.mxu0 %v3951
  %v3953 = vpop.f32.mrf.mxu0
  %v3954 = vadd.f32 %v3857, %v3953
  %v3955 = vand.u32 %v3002, 4294901760
  %v3956 = vsub.f32 %v3002, %v3955
  %3957 = vmatmul.f32.gmra.mxu0 %v3956
  %v3958 = vpop.f32.mrf.mxu0
  %v3959 = vadd.f32 %v3861, %v3958
  %v3960 = vand.u32 %v3005, 4294901760
  %v3961 = vsub.f32 %v3005, %v3960
  %3962 = vmatmul.f32.gmra.mxu0 %v3961
  %v3963 = vpop.f32.mrf.mxu0
  %v3964 = vadd.f32 %v3865, %v3963
  %v3965 = vand.u32 %v3008, 4294901760
  %v3966 = vsub.f32 %v3008, %v3965
  %3967 = vmatmul.f32.gmra.mxu0 %v3966
  %v3968 = vpop.f32.mrf.mxu0
  %v3969 = vadd.f32 %v3869, %v3968
  %v3970 = vand.u32 %v3011, 4294901760
  %v3971 = vsub.f32 %v3011, %v3970
  %3972 = vmatmul.f32.gmra.mxu0 %v3971
  %v3973 = vpop.f32.mrf.mxu0
  %v3974 = vadd.f32 %v3873, %v3973
  %3975 = vdwg.mxu0
  %3976 = vmatpush.msra.mxu0 0.0
  %3977 = vmatpush.msra.mxu0 0.0
  %3978 = vmatpush.msra.mxu0 0.0
  %3979 = vmatpush.msra.mxu0 0.0
  %3980 = vmatpush.msra.mxu0 0.0
  %3981 = vmatpush.msra.mxu0 0.0
  %3982 = vmatpush.msra.mxu0 0.0
  %3983 = vmatpush.msra.mxu0 0.0
  %3984 = vmatpush.msra.mxu0 0.0
  %3985 = vmatpush.msra.mxu0 0.0
  %3986 = vmatpush.msra.mxu0 0.0
  %3987 = vmatpush.msra.mxu0 0.0
  %3988 = vmatpush.msra.mxu0 0.0
  %3989 = vmatpush.msra.mxu0 0.0
  %v3990 = vand.u32 %v2959, 4294901760
  %3991 = vmatpush.msra.mxu0 %v3990
  %v3992 = vand.u32 %v2957, 4294901760
  %3993 = vmatpush.msra.mxu0 %v3992
  %v3994 = vand.u32 %v2966, 4294901760
  %v3995 = vsub.f32 %v2966, %v3994
  %v3996 = vand.u32 %v3995, 4294901760
  %3997 = vmatmul.f32.gmra.mxu0 %v3996
  %v3998 = vpop.f32.mrf.mxu0
  %v3999 = vadd.f32 %v3899, %v3998
  %v4000 = vand.u32 %v2969, 4294901760
  %v4001 = vsub.f32 %v2969, %v4000
  %v4002 = vand.u32 %v4001, 4294901760
  %4003 = vmatmul.f32.gmra.mxu0 %v4002
  %v4004 = vpop.f32.mrf.mxu0
  %v4005 = vadd.f32 %v3904, %v4004
  %v4006 = vand.u32 %v2972, 4294901760
  %v4007 = vsub.f32 %v2972, %v4006
  %v4008 = vand.u32 %v4007, 4294901760
  %4009 = vmatmul.f32.gmra.mxu0 %v4008
  %v4010 = vpop.f32.mrf.mxu0
  %v4011 = vadd.f32 %v3909, %v4010
  %v4012 = vand.u32 %v2975, 4294901760
  %v4013 = vsub.f32 %v2975, %v4012
  %v4014 = vand.u32 %v4013, 4294901760
  %4015 = vmatmul.f32.gmra.mxu0 %v4014
  %v4016 = vpop.f32.mrf.mxu0
  %v4017 = vadd.f32 %v3914, %v4016
  %v4018 = vand.u32 %v2978, 4294901760
  %v4019 = vsub.f32 %v2978, %v4018
  %v4020 = vand.u32 %v4019, 4294901760
  %4021 = vmatmul.f32.gmra.mxu0 %v4020
  %v4022 = vpop.f32.mrf.mxu0
  %v4023 = vadd.f32 %v3919, %v4022
  %v4024 = vand.u32 %v2981, 4294901760
  %v4025 = vsub.f32 %v2981, %v4024
  %v4026 = vand.u32 %v4025, 4294901760
  %4027 = vmatmul.f32.gmra.mxu0 %v4026
  %v4028 = vpop.f32.mrf.mxu0
  %v4029 = vadd.f32 %v3924, %v4028
  %v4030 = vand.u32 %v2984, 4294901760
  %v4031 = vsub.f32 %v2984, %v4030
  %v4032 = vand.u32 %v4031, 4294901760
  %4033 = vmatmul.f32.gmra.mxu0 %v4032
  %v4034 = vpop.f32.mrf.mxu0
  %v4035 = vadd.f32 %v3929, %v4034
  %v4036 = vand.u32 %v2987, 4294901760
  %v4037 = vsub.f32 %v2987, %v4036
  %v4038 = vand.u32 %v4037, 4294901760
  %4039 = vmatmul.f32.gmra.mxu0 %v4038
  %v4040 = vpop.f32.mrf.mxu0
  %v4041 = vadd.f32 %v3934, %v4040
  %v4042 = vand.u32 %v2990, 4294901760
  %v4043 = vsub.f32 %v2990, %v4042
  %v4044 = vand.u32 %v4043, 4294901760
  %4045 = vmatmul.f32.gmra.mxu0 %v4044
  %v4046 = vpop.f32.mrf.mxu0
  %v4047 = vadd.f32 %v3939, %v4046
  %v4048 = vand.u32 %v2993, 4294901760
  %v4049 = vsub.f32 %v2993, %v4048
  %v4050 = vand.u32 %v4049, 4294901760
  %4051 = vmatmul.f32.gmra.mxu0 %v4050
  %v4052 = vpop.f32.mrf.mxu0
  %v4053 = vadd.f32 %v3944, %v4052
  %v4054 = vand.u32 %v2996, 4294901760
  %v4055 = vsub.f32 %v2996, %v4054
  %v4056 = vand.u32 %v4055, 4294901760
  %4057 = vmatmul.f32.gmra.mxu0 %v4056
  %v4058 = vpop.f32.mrf.mxu0
  %v4059 = vadd.f32 %v3949, %v4058
  %v4060 = vand.u32 %v2999, 4294901760
  %v4061 = vsub.f32 %v2999, %v4060
  %v4062 = vand.u32 %v4061, 4294901760
  %4063 = vmatmul.f32.gmra.mxu0 %v4062
  %v4064 = vpop.f32.mrf.mxu0
  %v4065 = vadd.f32 %v3954, %v4064
  %v4066 = vand.u32 %v3002, 4294901760
  %v4067 = vsub.f32 %v3002, %v4066
  %v4068 = vand.u32 %v4067, 4294901760
  %4069 = vmatmul.f32.gmra.mxu0 %v4068
  %v4070 = vpop.f32.mrf.mxu0
  %v4071 = vadd.f32 %v3959, %v4070
  %v4072 = vand.u32 %v3005, 4294901760
  %v4073 = vsub.f32 %v3005, %v4072
  %v4074 = vand.u32 %v4073, 4294901760
  %4075 = vmatmul.f32.gmra.mxu0 %v4074
  %v4076 = vpop.f32.mrf.mxu0
  %v4077 = vadd.f32 %v3964, %v4076
  %v4078 = vand.u32 %v3008, 4294901760
  %v4079 = vsub.f32 %v3008, %v4078
  %v4080 = vand.u32 %v4079, 4294901760
  %4081 = vmatmul.f32.gmra.mxu0 %v4080
  %v4082 = vpop.f32.mrf.mxu0
  %v4083 = vadd.f32 %v3969, %v4082
  %v4084 = vand.u32 %v3011, 4294901760
  %v4085 = vsub.f32 %v3011, %v4084
  %v4086 = vand.u32 %v4085, 4294901760
  %4087 = vmatmul.f32.gmra.mxu0 %v4086
  %v4088 = vpop.f32.mrf.mxu0
  %v4089 = vadd.f32 %v3974, %v4088
  %4090 = vdwg.mxu0
  %4091 = vmatpush.msra.mxu0 0.0
  %4092 = vmatpush.msra.mxu0 0.0
  %4093 = vmatpush.msra.mxu0 0.0
  %4094 = vmatpush.msra.mxu0 0.0
  %4095 = vmatpush.msra.mxu0 0.0
  %4096 = vmatpush.msra.mxu0 0.0
  %4097 = vmatpush.msra.mxu0 0.0
  %4098 = vmatpush.msra.mxu0 0.0
  %4099 = vmatpush.msra.mxu0 0.0
  %4100 = vmatpush.msra.mxu0 0.0
  %4101 = vmatpush.msra.mxu0 0.0
  %4102 = vmatpush.msra.mxu0 0.0
  %4103 = vmatpush.msra.mxu0 0.0
  %4104 = vmatpush.msra.mxu0 0.0
  %v4105 = vand.u32 %v2959, 4294901760
  %v4106 = vsub.f32 %v2959, %v4105
  %v4107 = vand.u32 %v4106, 4294901760
  %4108 = vmatpush.msra.mxu0 %v4107
  %v4109 = vand.u32 %v2957, 4294901760
  %v4110 = vsub.f32 %v2957, %v4109
  %v4111 = vand.u32 %v4110, 4294901760
  %4112 = vmatpush.msra.mxu0 %v4111
  %v4113 = vand.u32 %v2966, 4294901760
  %4114 = vmatmul.f32.gmra.mxu0 %v4113
  %v4115 = vpop.f32.mrf.mxu0
  %v4116 = vadd.f32 %v3999, %v4115
  %v4117 = vand.u32 %v2969, 4294901760
  %4118 = vmatmul.f32.gmra.mxu0 %v4117
  %v4119 = vpop.f32.mrf.mxu0
  %v4120 = vadd.f32 %v4005, %v4119
  %v4121 = vand.u32 %v2972, 4294901760
  %4122 = vmatmul.f32.gmra.mxu0 %v4121
  %v4123 = vpop.f32.mrf.mxu0
  %v4124 = vadd.f32 %v4011, %v4123
  %v4125 = vand.u32 %v2975, 4294901760
  %4126 = vmatmul.f32.gmra.mxu0 %v4125
  %v4127 = vpop.f32.mrf.mxu0
  %v4128 = vadd.f32 %v4017, %v4127
  %v4129 = vand.u32 %v2978, 4294901760
  %4130 = vmatmul.f32.gmra.mxu0 %v4129
  %v4131 = vpop.f32.mrf.mxu0
  %v4132 = vadd.f32 %v4023, %v4131
  %v4133 = vand.u32 %v2981, 4294901760
  %4134 = vmatmul.f32.gmra.mxu0 %v4133
  %v4135 = vpop.f32.mrf.mxu0
  %v4136 = vadd.f32 %v4029, %v4135
  %v4137 = vand.u32 %v2984, 4294901760
  %4138 = vmatmul.f32.gmra.mxu0 %v4137
  %v4139 = vpop.f32.mrf.mxu0
  %v4140 = vadd.f32 %v4035, %v4139
  %v4141 = vand.u32 %v2987, 4294901760
  %4142 = vmatmul.f32.gmra.mxu0 %v4141
  %v4143 = vpop.f32.mrf.mxu0
  %v4144 = vadd.f32 %v4041, %v4143
  %v4145 = vand.u32 %v2990, 4294901760
  %4146 = vmatmul.f32.gmra.mxu0 %v4145
  %v4147 = vpop.f32.mrf.mxu0
  %v4148 = vadd.f32 %v4047, %v4147
  %v4149 = vand.u32 %v2993, 4294901760
  %4150 = vmatmul.f32.gmra.mxu0 %v4149
  %v4151 = vpop.f32.mrf.mxu0
  %v4152 = vadd.f32 %v4053, %v4151
  %v4153 = vand.u32 %v2996, 4294901760
  %4154 = vmatmul.f32.gmra.mxu0 %v4153
  %v4155 = vpop.f32.mrf.mxu0
  %v4156 = vadd.f32 %v4059, %v4155
  %v4157 = vand.u32 %v2999, 4294901760
  %4158 = vmatmul.f32.gmra.mxu0 %v4157
  %v4159 = vpop.f32.mrf.mxu0
  %v4160 = vadd.f32 %v4065, %v4159
  %v4161 = vand.u32 %v3002, 4294901760
  %4162 = vmatmul.f32.gmra.mxu0 %v4161
  %v4163 = vpop.f32.mrf.mxu0
  %v4164 = vadd.f32 %v4071, %v4163
  %v4165 = vand.u32 %v3005, 4294901760
  %4166 = vmatmul.f32.gmra.mxu0 %v4165
  %v4167 = vpop.f32.mrf.mxu0
  %v4168 = vadd.f32 %v4077, %v4167
  %v4169 = vand.u32 %v3008, 4294901760
  %4170 = vmatmul.f32.gmra.mxu0 %v4169
  %v4171 = vpop.f32.mrf.mxu0
  %v4172 = vadd.f32 %v4083, %v4171
  %v4173 = vand.u32 %v3011, 4294901760
  %4174 = vmatmul.f32.gmra.mxu0 %v4173
  %v4175 = vpop.f32.mrf.mxu0
  %v4176 = vadd.f32 %v4089, %v4175
  %4177 = vdwg.mxu0
  %4178 = vmatpush.msra.mxu0 0.0
  %4179 = vmatpush.msra.mxu0 0.0
  %4180 = vmatpush.msra.mxu0 0.0
  %4181 = vmatpush.msra.mxu0 0.0
  %4182 = vmatpush.msra.mxu0 0.0
  %4183 = vmatpush.msra.mxu0 0.0
  %4184 = vmatpush.msra.mxu0 0.0
  %4185 = vmatpush.msra.mxu0 0.0
  %4186 = vmatpush.msra.mxu0 0.0
  %4187 = vmatpush.msra.mxu0 0.0
  %4188 = vmatpush.msra.mxu0 0.0
  %4189 = vmatpush.msra.mxu0 0.0
  %4190 = vmatpush.msra.mxu0 0.0
  %4191 = vmatpush.msra.mxu0 0.0
  %v4192 = vand.u32 %v2959, 4294901760
  %4193 = vmatpush.msra.mxu0 %v4192
  %v4194 = vand.u32 %v2957, 4294901760
  %4195 = vmatpush.msra.mxu0 %v4194
  %v4196 = vand.u32 %v2966, 4294901760
  %4197 = vmatmul.f32.gmra.mxu0 %v4196
  %v4198 = vpop.f32.mrf.mxu0
  %v4199 = vadd.f32 %v4116, %v4198
  %v4200 = vand.u32 %v2969, 4294901760
  %4201 = vmatmul.f32.gmra.mxu0 %v4200
  %v4202 = vpop.f32.mrf.mxu0
  %v4203 = vadd.f32 %v4120, %v4202
  %v4204 = vand.u32 %v2972, 4294901760
  %4205 = vmatmul.f32.gmra.mxu0 %v4204
  %v4206 = vpop.f32.mrf.mxu0
  %v4207 = vadd.f32 %v4124, %v4206
  %v4208 = vand.u32 %v2975, 4294901760
  %4209 = vmatmul.f32.gmra.mxu0 %v4208
  %v4210 = vpop.f32.mrf.mxu0
  %v4211 = vadd.f32 %v4128, %v4210
  %v4212 = vand.u32 %v2978, 4294901760
  %4213 = vmatmul.f32.gmra.mxu0 %v4212
  %v4214 = vpop.f32.mrf.mxu0
  %v4215 = vadd.f32 %v4132, %v4214
  %v4216 = vand.u32 %v2981, 4294901760
  %4217 = vmatmul.f32.gmra.mxu0 %v4216
  %v4218 = vpop.f32.mrf.mxu0
  %v4219 = vadd.f32 %v4136, %v4218
  %v4220 = vand.u32 %v2984, 4294901760
  %4221 = vmatmul.f32.gmra.mxu0 %v4220
  %v4222 = vpop.f32.mrf.mxu0
  %v4223 = vadd.f32 %v4140, %v4222
  %v4224 = vand.u32 %v2987, 4294901760
  %4225 = vmatmul.f32.gmra.mxu0 %v4224
  %v4226 = vpop.f32.mrf.mxu0
  %v4227 = vadd.f32 %v4144, %v4226
  %v4228 = vand.u32 %v2990, 4294901760
  %4229 = vmatmul.f32.gmra.mxu0 %v4228
  %v4230 = vpop.f32.mrf.mxu0
  %v4231 = vadd.f32 %v4148, %v4230
  %v4232 = vand.u32 %v2993, 4294901760
  %4233 = vmatmul.f32.gmra.mxu0 %v4232
  %v4234 = vpop.f32.mrf.mxu0
  %v4235 = vadd.f32 %v4152, %v4234
  %v4236 = vand.u32 %v2996, 4294901760
  %4237 = vmatmul.f32.gmra.mxu0 %v4236
  %v4238 = vpop.f32.mrf.mxu0
  %v4239 = vadd.f32 %v4156, %v4238
  %v4240 = vand.u32 %v2999, 4294901760
  %4241 = vmatmul.f32.gmra.mxu0 %v4240
  %v4242 = vpop.f32.mrf.mxu0
  %v4243 = vadd.f32 %v4160, %v4242
  %v4244 = vand.u32 %v3002, 4294901760
  %4245 = vmatmul.f32.gmra.mxu0 %v4244
  %v4246 = vpop.f32.mrf.mxu0
  %v4247 = vadd.f32 %v4164, %v4246
  %v4248 = vand.u32 %v3005, 4294901760
  %4249 = vmatmul.f32.gmra.mxu0 %v4248
  %v4250 = vpop.f32.mrf.mxu0
  %v4251 = vadd.f32 %v4168, %v4250
  %v4252 = vand.u32 %v3008, 4294901760
  %4253 = vmatmul.f32.gmra.mxu0 %v4252
  %v4254 = vpop.f32.mrf.mxu0
  %v4255 = vadd.f32 %v4172, %v4254
  %v4256 = vand.u32 %v3011, 4294901760
  %4257 = vmatmul.f32.gmra.mxu0 %v4256
  %v4258 = vpop.f32.mrf.mxu0
  %v4259 = vadd.f32 %v4176, %v4258
  %4260 = vdwg.mxu0
  %4261 = vrot.lane.b32.xlu0 %v2730, 112
  %v4262 = vpop.permute.xlu0 %4261
  %4263 = vrot.lane.b32.xlu0 %v2745, 112
  %v4264 = vpop.permute.xlu0 %4263
  %4265 = vrot.lane.b32.xlu0 %v2760, 112
  %v4266 = vpop.permute.xlu0 %4265
  %4267 = vrot.lane.b32.xlu0 %v2775, 112
  %v4268 = vpop.permute.xlu0 %4267
  %4269 = vrot.lane.b32.xlu0 %v2790, 112
  %v4270 = vpop.permute.xlu0 %4269
  %4271 = vrot.lane.b32.xlu0 %v2805, 112
  %v4272 = vpop.permute.xlu0 %4271
  %4273 = vrot.lane.b32.xlu0 %v2820, 112
  %v4274 = vpop.permute.xlu0 %4273
  %4275 = vrot.lane.b32.xlu0 %v2835, 112
  %v4276 = vpop.permute.xlu0 %4275
  %4277 = vrot.lane.b32.xlu0 %v2850, 112
  %v4278 = vpop.permute.xlu0 %4277
  %4279 = vrot.lane.b32.xlu0 %v2865, 112
  %v4280 = vpop.permute.xlu0 %4279
  %4281 = vrot.lane.b32.xlu0 %v2880, 112
  %v4282 = vpop.permute.xlu0 %4281
  %4283 = vrot.lane.b32.xlu0 %v2895, 112
  %v4284 = vpop.permute.xlu0 %4283
  %4285 = vrot.lane.b32.xlu0 %v2910, 112
  %v4286 = vpop.permute.xlu0 %4285
  %4287 = vrot.lane.b32.xlu0 %v2925, 112
  %v4288 = vpop.permute.xlu0 %4287
  %4289 = vrot.lane.b32.xlu0 %v2940, 112
  %v4290 = vpop.permute.xlu0 %4289
  %4291 = vrot.lane.b32.xlu0 %v2955, 112
  %v4292 = vpop.permute.xlu0 %4291
  %v4293 = vsel %vm2964, %v4262, 0
  %v4295 = vsel %vm2964, %v4264, 0
  %v4297 = vsel %vm2964, %v4266, 0
  %v4299 = vsel %vm2964, %v4268, 0
  %v4301 = vsel %vm2964, %v4270, 0
  %v4303 = vsel %vm2964, %v4272, 0
  %v4305 = vsel %vm2964, %v4274, 0
  %v4307 = vsel %vm2964, %v4276, 0
  %v4309 = vsel %vm2964, %v4278, 0
  %v4311 = vsel %vm2964, %v4280, 0
  %v4313 = vsel %vm2964, %v4282, 0
  %v4315 = vsel %vm2964, %v4284, 0
  %v4317 = vsel %vm2964, %v4286, 0
  %v4319 = vsel %vm2964, %v4288, 0
  %v4321 = vsel %vm2964, %v4290, 0
  %v4323 = vsel %vm2964, %v4292, 0
  %4325 = vmatpush.msra.mxu0 0.0
  %4326 = vmatpush.msra.mxu0 0.0
  %4327 = vmatpush.msra.mxu0 0.0
  %4328 = vmatpush.msra.mxu0 0.0
  %4329 = vmatpush.msra.mxu0 0.0
  %4330 = vmatpush.msra.mxu0 0.0
  %4331 = vmatpush.msra.mxu0 0.0
  %4332 = vmatpush.msra.mxu0 0.0
  %4333 = vmatpush.msra.mxu0 0.0
  %4334 = vmatpush.msra.mxu0 0.0
  %4335 = vmatpush.msra.mxu0 0.0
  %4336 = vmatpush.msra.mxu0 0.0
  %4337 = vmatpush.msra.mxu0 0.0
  %4338 = vmatpush.msra.mxu0 0.0
  %v4339 = vand.u32 %v2962, 4294901760
  %4340 = vmatpush.msra.mxu0 %v4339
  %v4341 = vand.u32 %v2960, 4294901760
  %4342 = vmatpush.msra.mxu0 %v4341
  %v4343 = vand.u32 %v4293, 4294901760
  %v4344 = vsub.f32 %v4293, %v4343
  %v4345 = vand.u32 %v4344, 4294901760
  %v4346 = vsub.f32 %v4344, %v4345
  %v4347 = vand.u32 %v4346, 4294901760
  %4348 = vmatmul.f32.gmra.mxu0 %v4347
  %v4349 = vpop.f32.mrf.mxu0
  %v4350 = vadd.f32 0.0, %v4349
  %v4351 = vand.u32 %v4295, 4294901760
  %v4352 = vsub.f32 %v4295, %v4351
  %v4353 = vand.u32 %v4352, 4294901760
  %v4354 = vsub.f32 %v4352, %v4353
  %v4355 = vand.u32 %v4354, 4294901760
  %4356 = vmatmul.f32.gmra.mxu0 %v4355
  %v4357 = vpop.f32.mrf.mxu0
  %v4358 = vadd.f32 0.0, %v4357
  %v4359 = vand.u32 %v4297, 4294901760
  %v4360 = vsub.f32 %v4297, %v4359
  %v4361 = vand.u32 %v4360, 4294901760
  %v4362 = vsub.f32 %v4360, %v4361
  %v4363 = vand.u32 %v4362, 4294901760
  %4364 = vmatmul.f32.gmra.mxu0 %v4363
  %v4365 = vpop.f32.mrf.mxu0
  %v4366 = vadd.f32 0.0, %v4365
  %v4367 = vand.u32 %v4299, 4294901760
  %v4368 = vsub.f32 %v4299, %v4367
  %v4369 = vand.u32 %v4368, 4294901760
  %v4370 = vsub.f32 %v4368, %v4369
  %v4371 = vand.u32 %v4370, 4294901760
  %4372 = vmatmul.f32.gmra.mxu0 %v4371
  %v4373 = vpop.f32.mrf.mxu0
  %v4374 = vadd.f32 0.0, %v4373
  %v4375 = vand.u32 %v4301, 4294901760
  %v4376 = vsub.f32 %v4301, %v4375
  %v4377 = vand.u32 %v4376, 4294901760
  %v4378 = vsub.f32 %v4376, %v4377
  %v4379 = vand.u32 %v4378, 4294901760
  %4380 = vmatmul.f32.gmra.mxu0 %v4379
  %v4381 = vpop.f32.mrf.mxu0
  %v4382 = vadd.f32 0.0, %v4381
  %v4383 = vand.u32 %v4303, 4294901760
  %v4384 = vsub.f32 %v4303, %v4383
  %v4385 = vand.u32 %v4384, 4294901760
  %v4386 = vsub.f32 %v4384, %v4385
  %v4387 = vand.u32 %v4386, 4294901760
  %4388 = vmatmul.f32.gmra.mxu0 %v4387
  %v4389 = vpop.f32.mrf.mxu0
  %v4390 = vadd.f32 0.0, %v4389
  %v4391 = vand.u32 %v4305, 4294901760
  %v4392 = vsub.f32 %v4305, %v4391
  %v4393 = vand.u32 %v4392, 4294901760
  %v4394 = vsub.f32 %v4392, %v4393
  %v4395 = vand.u32 %v4394, 4294901760
  %4396 = vmatmul.f32.gmra.mxu0 %v4395
  %v4397 = vpop.f32.mrf.mxu0
  %v4398 = vadd.f32 0.0, %v4397
  %v4399 = vand.u32 %v4307, 4294901760
  %v4400 = vsub.f32 %v4307, %v4399
  %v4401 = vand.u32 %v4400, 4294901760
  %v4402 = vsub.f32 %v4400, %v4401
  %v4403 = vand.u32 %v4402, 4294901760
  %4404 = vmatmul.f32.gmra.mxu0 %v4403
  %v4405 = vpop.f32.mrf.mxu0
  %v4406 = vadd.f32 0.0, %v4405
  %v4407 = vand.u32 %v4309, 4294901760
  %v4408 = vsub.f32 %v4309, %v4407
  %v4409 = vand.u32 %v4408, 4294901760
  %v4410 = vsub.f32 %v4408, %v4409
  %v4411 = vand.u32 %v4410, 4294901760
  %4412 = vmatmul.f32.gmra.mxu0 %v4411
  %v4413 = vpop.f32.mrf.mxu0
  %v4414 = vadd.f32 0.0, %v4413
  %v4415 = vand.u32 %v4311, 4294901760
  %v4416 = vsub.f32 %v4311, %v4415
  %v4417 = vand.u32 %v4416, 4294901760
  %v4418 = vsub.f32 %v4416, %v4417
  %v4419 = vand.u32 %v4418, 4294901760
  %4420 = vmatmul.f32.gmra.mxu0 %v4419
  %v4421 = vpop.f32.mrf.mxu0
  %v4422 = vadd.f32 0.0, %v4421
  %v4423 = vand.u32 %v4313, 4294901760
  %v4424 = vsub.f32 %v4313, %v4423
  %v4425 = vand.u32 %v4424, 4294901760
  %v4426 = vsub.f32 %v4424, %v4425
  %v4427 = vand.u32 %v4426, 4294901760
  %4428 = vmatmul.f32.gmra.mxu0 %v4427
  %v4429 = vpop.f32.mrf.mxu0
  %v4430 = vadd.f32 0.0, %v4429
  %v4431 = vand.u32 %v4315, 4294901760
  %v4432 = vsub.f32 %v4315, %v4431
  %v4433 = vand.u32 %v4432, 4294901760
  %v4434 = vsub.f32 %v4432, %v4433
  %v4435 = vand.u32 %v4434, 4294901760
  %4436 = vmatmul.f32.gmra.mxu0 %v4435
  %v4437 = vpop.f32.mrf.mxu0
  %v4438 = vadd.f32 0.0, %v4437
  %v4439 = vand.u32 %v4317, 4294901760
  %v4440 = vsub.f32 %v4317, %v4439
  %v4441 = vand.u32 %v4440, 4294901760
  %v4442 = vsub.f32 %v4440, %v4441
  %v4443 = vand.u32 %v4442, 4294901760
  %4444 = vmatmul.f32.gmra.mxu0 %v4443
  %v4445 = vpop.f32.mrf.mxu0
  %v4446 = vadd.f32 0.0, %v4445
  %v4447 = vand.u32 %v4319, 4294901760
  %v4448 = vsub.f32 %v4319, %v4447
  %v4449 = vand.u32 %v4448, 4294901760
  %v4450 = vsub.f32 %v4448, %v4449
  %v4451 = vand.u32 %v4450, 4294901760
  %4452 = vmatmul.f32.gmra.mxu0 %v4451
  %v4453 = vpop.f32.mrf.mxu0
  %v4454 = vadd.f32 0.0, %v4453
  %v4455 = vand.u32 %v4321, 4294901760
  %v4456 = vsub.f32 %v4321, %v4455
  %v4457 = vand.u32 %v4456, 4294901760
  %v4458 = vsub.f32 %v4456, %v4457
  %v4459 = vand.u32 %v4458, 4294901760
  %4460 = vmatmul.f32.gmra.mxu0 %v4459
  %v4461 = vpop.f32.mrf.mxu0
  %v4462 = vadd.f32 0.0, %v4461
  %v4463 = vand.u32 %v4323, 4294901760
  %v4464 = vsub.f32 %v4323, %v4463
  %v4465 = vand.u32 %v4464, 4294901760
  %v4466 = vsub.f32 %v4464, %v4465
  %v4467 = vand.u32 %v4466, 4294901760
  %4468 = vmatmul.f32.gmra.mxu0 %v4467
  %v4469 = vpop.f32.mrf.mxu0
  %v4470 = vadd.f32 0.0, %v4469
  %4471 = vdwg.mxu0
  %4472 = vmatpush.msra.mxu0 0.0
  %4473 = vmatpush.msra.mxu0 0.0
  %4474 = vmatpush.msra.mxu0 0.0
  %4475 = vmatpush.msra.mxu0 0.0
  %4476 = vmatpush.msra.mxu0 0.0
  %4477 = vmatpush.msra.mxu0 0.0
  %4478 = vmatpush.msra.mxu0 0.0
  %4479 = vmatpush.msra.mxu0 0.0
  %4480 = vmatpush.msra.mxu0 0.0
  %4481 = vmatpush.msra.mxu0 0.0
  %4482 = vmatpush.msra.mxu0 0.0
  %4483 = vmatpush.msra.mxu0 0.0
  %4484 = vmatpush.msra.mxu0 0.0
  %4485 = vmatpush.msra.mxu0 0.0
  %v4486 = vand.u32 %v2962, 4294901760
  %v4487 = vsub.f32 %v2962, %v4486
  %v4488 = vand.u32 %v4487, 4294901760
  %v4489 = vsub.f32 %v4487, %v4488
  %v4490 = vand.u32 %v4489, 4294901760
  %4491 = vmatpush.msra.mxu0 %v4490
  %v4492 = vand.u32 %v2960, 4294901760
  %v4493 = vsub.f32 %v2960, %v4492
  %v4494 = vand.u32 %v4493, 4294901760
  %v4495 = vsub.f32 %v4493, %v4494
  %v4496 = vand.u32 %v4495, 4294901760
  %4497 = vmatpush.msra.mxu0 %v4496
  %v4498 = vand.u32 %v4293, 4294901760
  %4499 = vmatmul.f32.gmra.mxu0 %v4498
  %v4500 = vpop.f32.mrf.mxu0
  %v4501 = vadd.f32 %v4350, %v4500
  %v4502 = vand.u32 %v4295, 4294901760
  %4503 = vmatmul.f32.gmra.mxu0 %v4502
  %v4504 = vpop.f32.mrf.mxu0
  %v4505 = vadd.f32 %v4358, %v4504
  %v4506 = vand.u32 %v4297, 4294901760
  %4507 = vmatmul.f32.gmra.mxu0 %v4506
  %v4508 = vpop.f32.mrf.mxu0
  %v4509 = vadd.f32 %v4366, %v4508
  %v4510 = vand.u32 %v4299, 4294901760
  %4511 = vmatmul.f32.gmra.mxu0 %v4510
  %v4512 = vpop.f32.mrf.mxu0
  %v4513 = vadd.f32 %v4374, %v4512
  %v4514 = vand.u32 %v4301, 4294901760
  %4515 = vmatmul.f32.gmra.mxu0 %v4514
  %v4516 = vpop.f32.mrf.mxu0
  %v4517 = vadd.f32 %v4382, %v4516
  %v4518 = vand.u32 %v4303, 4294901760
  %4519 = vmatmul.f32.gmra.mxu0 %v4518
  %v4520 = vpop.f32.mrf.mxu0
  %v4521 = vadd.f32 %v4390, %v4520
  %v4522 = vand.u32 %v4305, 4294901760
  %4523 = vmatmul.f32.gmra.mxu0 %v4522
  %v4524 = vpop.f32.mrf.mxu0
  %v4525 = vadd.f32 %v4398, %v4524
  %v4526 = vand.u32 %v4307, 4294901760
  %4527 = vmatmul.f32.gmra.mxu0 %v4526
  %v4528 = vpop.f32.mrf.mxu0
  %v4529 = vadd.f32 %v4406, %v4528
  %v4530 = vand.u32 %v4309, 4294901760
  %4531 = vmatmul.f32.gmra.mxu0 %v4530
  %v4532 = vpop.f32.mrf.mxu0
  %v4533 = vadd.f32 %v4414, %v4532
  %v4534 = vand.u32 %v4311, 4294901760
  %4535 = vmatmul.f32.gmra.mxu0 %v4534
  %v4536 = vpop.f32.mrf.mxu0
  %v4537 = vadd.f32 %v4422, %v4536
  %v4538 = vand.u32 %v4313, 4294901760
  %4539 = vmatmul.f32.gmra.mxu0 %v4538
  %v4540 = vpop.f32.mrf.mxu0
  %v4541 = vadd.f32 %v4430, %v4540
  %v4542 = vand.u32 %v4315, 4294901760
  %4543 = vmatmul.f32.gmra.mxu0 %v4542
  %v4544 = vpop.f32.mrf.mxu0
  %v4545 = vadd.f32 %v4438, %v4544
  %v4546 = vand.u32 %v4317, 4294901760
  %4547 = vmatmul.f32.gmra.mxu0 %v4546
  %v4548 = vpop.f32.mrf.mxu0
  %v4549 = vadd.f32 %v4446, %v4548
  %v4550 = vand.u32 %v4319, 4294901760
  %4551 = vmatmul.f32.gmra.mxu0 %v4550
  %v4552 = vpop.f32.mrf.mxu0
  %v4553 = vadd.f32 %v4454, %v4552
  %v4554 = vand.u32 %v4321, 4294901760
  %4555 = vmatmul.f32.gmra.mxu0 %v4554
  %v4556 = vpop.f32.mrf.mxu0
  %v4557 = vadd.f32 %v4462, %v4556
  %v4558 = vand.u32 %v4323, 4294901760
  %4559 = vmatmul.f32.gmra.mxu0 %v4558
  %v4560 = vpop.f32.mrf.mxu0
  %v4561 = vadd.f32 %v4470, %v4560
  %4562 = vdwg.mxu0
  %4563 = vmatpush.msra.mxu0 0.0
  %4564 = vmatpush.msra.mxu0 0.0
  %4565 = vmatpush.msra.mxu0 0.0
  %4566 = vmatpush.msra.mxu0 0.0
  %4567 = vmatpush.msra.mxu0 0.0
  %4568 = vmatpush.msra.mxu0 0.0
  %4569 = vmatpush.msra.mxu0 0.0
  %4570 = vmatpush.msra.mxu0 0.0
  %4571 = vmatpush.msra.mxu0 0.0
  %4572 = vmatpush.msra.mxu0 0.0
  %4573 = vmatpush.msra.mxu0 0.0
  %4574 = vmatpush.msra.mxu0 0.0
  %4575 = vmatpush.msra.mxu0 0.0
  %4576 = vmatpush.msra.mxu0 0.0
  %v4577 = vand.u32 %v2962, 4294901760
  %v4578 = vsub.f32 %v2962, %v4577
  %4579 = vmatpush.msra.mxu0 %v4578
  %v4580 = vand.u32 %v2960, 4294901760
  %v4581 = vsub.f32 %v2960, %v4580
  %4582 = vmatpush.msra.mxu0 %v4581
  %v4583 = vand.u32 %v4293, 4294901760
  %v4584 = vsub.f32 %v4293, %v4583
  %4585 = vmatmul.f32.gmra.mxu0 %v4584
  %v4586 = vpop.f32.mrf.mxu0
  %v4587 = vadd.f32 %v4501, %v4586
  %v4588 = vand.u32 %v4295, 4294901760
  %v4589 = vsub.f32 %v4295, %v4588
  %4590 = vmatmul.f32.gmra.mxu0 %v4589
  %v4591 = vpop.f32.mrf.mxu0
  %v4592 = vadd.f32 %v4505, %v4591
  %v4593 = vand.u32 %v4297, 4294901760
  %v4594 = vsub.f32 %v4297, %v4593
  %4595 = vmatmul.f32.gmra.mxu0 %v4594
  %v4596 = vpop.f32.mrf.mxu0
  %v4597 = vadd.f32 %v4509, %v4596
  %v4598 = vand.u32 %v4299, 4294901760
  %v4599 = vsub.f32 %v4299, %v4598
  %4600 = vmatmul.f32.gmra.mxu0 %v4599
  %v4601 = vpop.f32.mrf.mxu0
  %v4602 = vadd.f32 %v4513, %v4601
  %v4603 = vand.u32 %v4301, 4294901760
  %v4604 = vsub.f32 %v4301, %v4603
  %4605 = vmatmul.f32.gmra.mxu0 %v4604
  %v4606 = vpop.f32.mrf.mxu0
  %v4607 = vadd.f32 %v4517, %v4606
  %v4608 = vand.u32 %v4303, 4294901760
  %v4609 = vsub.f32 %v4303, %v4608
  %4610 = vmatmul.f32.gmra.mxu0 %v4609
  %v4611 = vpop.f32.mrf.mxu0
  %v4612 = vadd.f32 %v4521, %v4611
  %v4613 = vand.u32 %v4305, 4294901760
  %v4614 = vsub.f32 %v4305, %v4613
  %4615 = vmatmul.f32.gmra.mxu0 %v4614
  %v4616 = vpop.f32.mrf.mxu0
  %v4617 = vadd.f32 %v4525, %v4616
  %v4618 = vand.u32 %v4307, 4294901760
  %v4619 = vsub.f32 %v4307, %v4618
  %4620 = vmatmul.f32.gmra.mxu0 %v4619
  %v4621 = vpop.f32.mrf.mxu0
  %v4622 = vadd.f32 %v4529, %v4621
  %v4623 = vand.u32 %v4309, 4294901760
  %v4624 = vsub.f32 %v4309, %v4623
  %4625 = vmatmul.f32.gmra.mxu0 %v4624
  %v4626 = vpop.f32.mrf.mxu0
  %v4627 = vadd.f32 %v4533, %v4626
  %v4628 = vand.u32 %v4311, 4294901760
  %v4629 = vsub.f32 %v4311, %v4628
  %4630 = vmatmul.f32.gmra.mxu0 %v4629
  %v4631 = vpop.f32.mrf.mxu0
  %v4632 = vadd.f32 %v4537, %v4631
  %v4633 = vand.u32 %v4313, 4294901760
  %v4634 = vsub.f32 %v4313, %v4633
  %4635 = vmatmul.f32.gmra.mxu0 %v4634
  %v4636 = vpop.f32.mrf.mxu0
  %v4637 = vadd.f32 %v4541, %v4636
  %v4638 = vand.u32 %v4315, 4294901760
  %v4639 = vsub.f32 %v4315, %v4638
  %4640 = vmatmul.f32.gmra.mxu0 %v4639
  %v4641 = vpop.f32.mrf.mxu0
  %v4642 = vadd.f32 %v4545, %v4641
  %v4643 = vand.u32 %v4317, 4294901760
  %v4644 = vsub.f32 %v4317, %v4643
  %4645 = vmatmul.f32.gmra.mxu0 %v4644
  %v4646 = vpop.f32.mrf.mxu0
  %v4647 = vadd.f32 %v4549, %v4646
  %v4648 = vand.u32 %v4319, 4294901760
  %v4649 = vsub.f32 %v4319, %v4648
  %4650 = vmatmul.f32.gmra.mxu0 %v4649
  %v4651 = vpop.f32.mrf.mxu0
  %v4652 = vadd.f32 %v4553, %v4651
  %v4653 = vand.u32 %v4321, 4294901760
  %v4654 = vsub.f32 %v4321, %v4653
  %4655 = vmatmul.f32.gmra.mxu0 %v4654
  %v4656 = vpop.f32.mrf.mxu0
  %v4657 = vadd.f32 %v4557, %v4656
  %v4658 = vand.u32 %v4323, 4294901760
  %v4659 = vsub.f32 %v4323, %v4658
  %4660 = vmatmul.f32.gmra.mxu0 %v4659
  %v4661 = vpop.f32.mrf.mxu0
  %v4662 = vadd.f32 %v4561, %v4661
  %4663 = vdwg.mxu0
  %4664 = vmatpush.msra.mxu0 0.0
  %4665 = vmatpush.msra.mxu0 0.0
  %4666 = vmatpush.msra.mxu0 0.0
  %4667 = vmatpush.msra.mxu0 0.0
  %4668 = vmatpush.msra.mxu0 0.0
  %4669 = vmatpush.msra.mxu0 0.0
  %4670 = vmatpush.msra.mxu0 0.0
  %4671 = vmatpush.msra.mxu0 0.0
  %4672 = vmatpush.msra.mxu0 0.0
  %4673 = vmatpush.msra.mxu0 0.0
  %4674 = vmatpush.msra.mxu0 0.0
  %4675 = vmatpush.msra.mxu0 0.0
  %4676 = vmatpush.msra.mxu0 0.0
  %4677 = vmatpush.msra.mxu0 0.0
  %v4678 = vand.u32 %v2962, 4294901760
  %4679 = vmatpush.msra.mxu0 %v4678
  %v4680 = vand.u32 %v2960, 4294901760
  %4681 = vmatpush.msra.mxu0 %v4680
  %v4682 = vand.u32 %v4293, 4294901760
  %v4683 = vsub.f32 %v4293, %v4682
  %v4684 = vand.u32 %v4683, 4294901760
  %4685 = vmatmul.f32.gmra.mxu0 %v4684
  %v4686 = vpop.f32.mrf.mxu0
  %v4687 = vadd.f32 %v4587, %v4686
  %v4688 = vand.u32 %v4295, 4294901760
  %v4689 = vsub.f32 %v4295, %v4688
  %v4690 = vand.u32 %v4689, 4294901760
  %4691 = vmatmul.f32.gmra.mxu0 %v4690
  %v4692 = vpop.f32.mrf.mxu0
  %v4693 = vadd.f32 %v4592, %v4692
  %v4694 = vand.u32 %v4297, 4294901760
  %v4695 = vsub.f32 %v4297, %v4694
  %v4696 = vand.u32 %v4695, 4294901760
  %4697 = vmatmul.f32.gmra.mxu0 %v4696
  %v4698 = vpop.f32.mrf.mxu0
  %v4699 = vadd.f32 %v4597, %v4698
  %v4700 = vand.u32 %v4299, 4294901760
  %v4701 = vsub.f32 %v4299, %v4700
  %v4702 = vand.u32 %v4701, 4294901760
  %4703 = vmatmul.f32.gmra.mxu0 %v4702
  %v4704 = vpop.f32.mrf.mxu0
  %v4705 = vadd.f32 %v4602, %v4704
  %v4706 = vand.u32 %v4301, 4294901760
  %v4707 = vsub.f32 %v4301, %v4706
  %v4708 = vand.u32 %v4707, 4294901760
  %4709 = vmatmul.f32.gmra.mxu0 %v4708
  %v4710 = vpop.f32.mrf.mxu0
  %v4711 = vadd.f32 %v4607, %v4710
  %v4712 = vand.u32 %v4303, 4294901760
  %v4713 = vsub.f32 %v4303, %v4712
  %v4714 = vand.u32 %v4713, 4294901760
  %4715 = vmatmul.f32.gmra.mxu0 %v4714
  %v4716 = vpop.f32.mrf.mxu0
  %v4717 = vadd.f32 %v4612, %v4716
  %v4718 = vand.u32 %v4305, 4294901760
  %v4719 = vsub.f32 %v4305, %v4718
  %v4720 = vand.u32 %v4719, 4294901760
  %4721 = vmatmul.f32.gmra.mxu0 %v4720
  %v4722 = vpop.f32.mrf.mxu0
  %v4723 = vadd.f32 %v4617, %v4722
  %v4724 = vand.u32 %v4307, 4294901760
  %v4725 = vsub.f32 %v4307, %v4724
  %v4726 = vand.u32 %v4725, 4294901760
  %4727 = vmatmul.f32.gmra.mxu0 %v4726
  %v4728 = vpop.f32.mrf.mxu0
  %v4729 = vadd.f32 %v4622, %v4728
  %v4730 = vand.u32 %v4309, 4294901760
  %v4731 = vsub.f32 %v4309, %v4730
  %v4732 = vand.u32 %v4731, 4294901760
  %4733 = vmatmul.f32.gmra.mxu0 %v4732
  %v4734 = vpop.f32.mrf.mxu0
  %v4735 = vadd.f32 %v4627, %v4734
  %v4736 = vand.u32 %v4311, 4294901760
  %v4737 = vsub.f32 %v4311, %v4736
  %v4738 = vand.u32 %v4737, 4294901760
  %4739 = vmatmul.f32.gmra.mxu0 %v4738
  %v4740 = vpop.f32.mrf.mxu0
  %v4741 = vadd.f32 %v4632, %v4740
  %v4742 = vand.u32 %v4313, 4294901760
  %v4743 = vsub.f32 %v4313, %v4742
  %v4744 = vand.u32 %v4743, 4294901760
  %4745 = vmatmul.f32.gmra.mxu0 %v4744
  %v4746 = vpop.f32.mrf.mxu0
  %v4747 = vadd.f32 %v4637, %v4746
  %v4748 = vand.u32 %v4315, 4294901760
  %v4749 = vsub.f32 %v4315, %v4748
  %v4750 = vand.u32 %v4749, 4294901760
  %4751 = vmatmul.f32.gmra.mxu0 %v4750
  %v4752 = vpop.f32.mrf.mxu0
  %v4753 = vadd.f32 %v4642, %v4752
  %v4754 = vand.u32 %v4317, 4294901760
  %v4755 = vsub.f32 %v4317, %v4754
  %v4756 = vand.u32 %v4755, 4294901760
  %4757 = vmatmul.f32.gmra.mxu0 %v4756
  %v4758 = vpop.f32.mrf.mxu0
  %v4759 = vadd.f32 %v4647, %v4758
  %v4760 = vand.u32 %v4319, 4294901760
  %v4761 = vsub.f32 %v4319, %v4760
  %v4762 = vand.u32 %v4761, 4294901760
  %4763 = vmatmul.f32.gmra.mxu0 %v4762
  %v4764 = vpop.f32.mrf.mxu0
  %v4765 = vadd.f32 %v4652, %v4764
  %v4766 = vand.u32 %v4321, 4294901760
  %v4767 = vsub.f32 %v4321, %v4766
  %v4768 = vand.u32 %v4767, 4294901760
  %4769 = vmatmul.f32.gmra.mxu0 %v4768
  %v4770 = vpop.f32.mrf.mxu0
  %v4771 = vadd.f32 %v4657, %v4770
  %v4772 = vand.u32 %v4323, 4294901760
  %v4773 = vsub.f32 %v4323, %v4772
  %v4774 = vand.u32 %v4773, 4294901760
  %4775 = vmatmul.f32.gmra.mxu0 %v4774
  %v4776 = vpop.f32.mrf.mxu0
  %v4777 = vadd.f32 %v4662, %v4776
  %4778 = vdwg.mxu0
  %4779 = vmatpush.msra.mxu0 0.0
  %4780 = vmatpush.msra.mxu0 0.0
  %4781 = vmatpush.msra.mxu0 0.0
  %4782 = vmatpush.msra.mxu0 0.0
  %4783 = vmatpush.msra.mxu0 0.0
  %4784 = vmatpush.msra.mxu0 0.0
  %4785 = vmatpush.msra.mxu0 0.0
  %4786 = vmatpush.msra.mxu0 0.0
  %4787 = vmatpush.msra.mxu0 0.0
  %4788 = vmatpush.msra.mxu0 0.0
  %4789 = vmatpush.msra.mxu0 0.0
  %4790 = vmatpush.msra.mxu0 0.0
  %4791 = vmatpush.msra.mxu0 0.0
  %4792 = vmatpush.msra.mxu0 0.0
  %v4793 = vand.u32 %v2962, 4294901760
  %v4794 = vsub.f32 %v2962, %v4793
  %v4795 = vand.u32 %v4794, 4294901760
  %4796 = vmatpush.msra.mxu0 %v4795
  %v4797 = vand.u32 %v2960, 4294901760
  %v4798 = vsub.f32 %v2960, %v4797
  %v4799 = vand.u32 %v4798, 4294901760
  %4800 = vmatpush.msra.mxu0 %v4799
  %v4801 = vand.u32 %v4293, 4294901760
  %4802 = vmatmul.f32.gmra.mxu0 %v4801
  %v4803 = vpop.f32.mrf.mxu0
  %v4804 = vadd.f32 %v4687, %v4803
  %v4805 = vand.u32 %v4295, 4294901760
  %4806 = vmatmul.f32.gmra.mxu0 %v4805
  %v4807 = vpop.f32.mrf.mxu0
  %v4808 = vadd.f32 %v4693, %v4807
  %v4809 = vand.u32 %v4297, 4294901760
  %4810 = vmatmul.f32.gmra.mxu0 %v4809
  %v4811 = vpop.f32.mrf.mxu0
  %v4812 = vadd.f32 %v4699, %v4811
  %v4813 = vand.u32 %v4299, 4294901760
  %4814 = vmatmul.f32.gmra.mxu0 %v4813
  %v4815 = vpop.f32.mrf.mxu0
  %v4816 = vadd.f32 %v4705, %v4815
  %v4817 = vand.u32 %v4301, 4294901760
  %4818 = vmatmul.f32.gmra.mxu0 %v4817
  %v4819 = vpop.f32.mrf.mxu0
  %v4820 = vadd.f32 %v4711, %v4819
  %v4821 = vand.u32 %v4303, 4294901760
  %4822 = vmatmul.f32.gmra.mxu0 %v4821
  %v4823 = vpop.f32.mrf.mxu0
  %v4824 = vadd.f32 %v4717, %v4823
  %v4825 = vand.u32 %v4305, 4294901760
  %4826 = vmatmul.f32.gmra.mxu0 %v4825
  %v4827 = vpop.f32.mrf.mxu0
  %v4828 = vadd.f32 %v4723, %v4827
  %v4829 = vand.u32 %v4307, 4294901760
  %4830 = vmatmul.f32.gmra.mxu0 %v4829
  %v4831 = vpop.f32.mrf.mxu0
  %v4832 = vadd.f32 %v4729, %v4831
  %v4833 = vand.u32 %v4309, 4294901760
  %4834 = vmatmul.f32.gmra.mxu0 %v4833
  %v4835 = vpop.f32.mrf.mxu0
  %v4836 = vadd.f32 %v4735, %v4835
  %v4837 = vand.u32 %v4311, 4294901760
  %4838 = vmatmul.f32.gmra.mxu0 %v4837
  %v4839 = vpop.f32.mrf.mxu0
  %v4840 = vadd.f32 %v4741, %v4839
  %v4841 = vand.u32 %v4313, 4294901760
  %4842 = vmatmul.f32.gmra.mxu0 %v4841
  %v4843 = vpop.f32.mrf.mxu0
  %v4844 = vadd.f32 %v4747, %v4843
  %v4845 = vand.u32 %v4315, 4294901760
  %4846 = vmatmul.f32.gmra.mxu0 %v4845
  %v4847 = vpop.f32.mrf.mxu0
  %v4848 = vadd.f32 %v4753, %v4847
  %v4849 = vand.u32 %v4317, 4294901760
  %4850 = vmatmul.f32.gmra.mxu0 %v4849
  %v4851 = vpop.f32.mrf.mxu0
  %v4852 = vadd.f32 %v4759, %v4851
  %v4853 = vand.u32 %v4319, 4294901760
  %4854 = vmatmul.f32.gmra.mxu0 %v4853
  %v4855 = vpop.f32.mrf.mxu0
  %v4856 = vadd.f32 %v4765, %v4855
  %v4857 = vand.u32 %v4321, 4294901760
  %4858 = vmatmul.f32.gmra.mxu0 %v4857
  %v4859 = vpop.f32.mrf.mxu0
  %v4860 = vadd.f32 %v4771, %v4859
  %v4861 = vand.u32 %v4323, 4294901760
  %4862 = vmatmul.f32.gmra.mxu0 %v4861
  %v4863 = vpop.f32.mrf.mxu0
  %v4864 = vadd.f32 %v4777, %v4863
  %4865 = vdwg.mxu0
  %4866 = vmatpush.msra.mxu0 0.0
  %4867 = vmatpush.msra.mxu0 0.0
  %4868 = vmatpush.msra.mxu0 0.0
  %4869 = vmatpush.msra.mxu0 0.0
  %4870 = vmatpush.msra.mxu0 0.0
  %4871 = vmatpush.msra.mxu0 0.0
  %4872 = vmatpush.msra.mxu0 0.0
  %4873 = vmatpush.msra.mxu0 0.0
  %4874 = vmatpush.msra.mxu0 0.0
  %4875 = vmatpush.msra.mxu0 0.0
  %4876 = vmatpush.msra.mxu0 0.0
  %4877 = vmatpush.msra.mxu0 0.0
  %4878 = vmatpush.msra.mxu0 0.0
  %4879 = vmatpush.msra.mxu0 0.0
  %v4880 = vand.u32 %v2962, 4294901760
  %4881 = vmatpush.msra.mxu0 %v4880
  %v4882 = vand.u32 %v2960, 4294901760
  %4883 = vmatpush.msra.mxu0 %v4882
  %v4884 = vand.u32 %v4293, 4294901760
  %4885 = vmatmul.f32.gmra.mxu0 %v4884
  %v4886 = vpop.f32.mrf.mxu0
  %v4887 = vadd.f32 %v4804, %v4886
  %v4888 = vand.u32 %v4295, 4294901760
  %4889 = vmatmul.f32.gmra.mxu0 %v4888
  %v4890 = vpop.f32.mrf.mxu0
  %v4891 = vadd.f32 %v4808, %v4890
  %v4892 = vand.u32 %v4297, 4294901760
  %4893 = vmatmul.f32.gmra.mxu0 %v4892
  %v4894 = vpop.f32.mrf.mxu0
  %v4895 = vadd.f32 %v4812, %v4894
  %v4896 = vand.u32 %v4299, 4294901760
  %4897 = vmatmul.f32.gmra.mxu0 %v4896
  %v4898 = vpop.f32.mrf.mxu0
  %v4899 = vadd.f32 %v4816, %v4898
  %v4900 = vand.u32 %v4301, 4294901760
  %4901 = vmatmul.f32.gmra.mxu0 %v4900
  %v4902 = vpop.f32.mrf.mxu0
  %v4903 = vadd.f32 %v4820, %v4902
  %v4904 = vand.u32 %v4303, 4294901760
  %4905 = vmatmul.f32.gmra.mxu0 %v4904
  %v4906 = vpop.f32.mrf.mxu0
  %v4907 = vadd.f32 %v4824, %v4906
  %v4908 = vand.u32 %v4305, 4294901760
  %4909 = vmatmul.f32.gmra.mxu0 %v4908
  %v4910 = vpop.f32.mrf.mxu0
  %v4911 = vadd.f32 %v4828, %v4910
  %v4912 = vand.u32 %v4307, 4294901760
  %4913 = vmatmul.f32.gmra.mxu0 %v4912
  %v4914 = vpop.f32.mrf.mxu0
  %v4915 = vadd.f32 %v4832, %v4914
  %v4916 = vand.u32 %v4309, 4294901760
  %4917 = vmatmul.f32.gmra.mxu0 %v4916
  %v4918 = vpop.f32.mrf.mxu0
  %v4919 = vadd.f32 %v4836, %v4918
  %v4920 = vand.u32 %v4311, 4294901760
  %4921 = vmatmul.f32.gmra.mxu0 %v4920
  %v4922 = vpop.f32.mrf.mxu0
  %v4923 = vadd.f32 %v4840, %v4922
  %v4924 = vand.u32 %v4313, 4294901760
  %4925 = vmatmul.f32.gmra.mxu0 %v4924
  %v4926 = vpop.f32.mrf.mxu0
  %v4927 = vadd.f32 %v4844, %v4926
  %v4928 = vand.u32 %v4315, 4294901760
  %4929 = vmatmul.f32.gmra.mxu0 %v4928
  %v4930 = vpop.f32.mrf.mxu0
  %v4931 = vadd.f32 %v4848, %v4930
  %v4932 = vand.u32 %v4317, 4294901760
  %4933 = vmatmul.f32.gmra.mxu0 %v4932
  %v4934 = vpop.f32.mrf.mxu0
  %v4935 = vadd.f32 %v4852, %v4934
  %v4936 = vand.u32 %v4319, 4294901760
  %4937 = vmatmul.f32.gmra.mxu0 %v4936
  %v4938 = vpop.f32.mrf.mxu0
  %v4939 = vadd.f32 %v4856, %v4938
  %v4940 = vand.u32 %v4321, 4294901760
  %4941 = vmatmul.f32.gmra.mxu0 %v4940
  %v4942 = vpop.f32.mrf.mxu0
  %v4943 = vadd.f32 %v4860, %v4942
  %v4944 = vand.u32 %v4323, 4294901760
  %4945 = vmatmul.f32.gmra.mxu0 %v4944
  %v4946 = vpop.f32.mrf.mxu0
  %v4947 = vadd.f32 %v4864, %v4946
  %4948 = vdwg.mxu0
  %4949 = vmatpush.msra.mxu0 0.0
  %4950 = vmatpush.msra.mxu0 0.0
  %4951 = vmatpush.msra.mxu0 0.0
  %4952 = vmatpush.msra.mxu0 0.0
  %4953 = vmatpush.msra.mxu0 0.0
  %4954 = vmatpush.msra.mxu0 0.0
  %4955 = vmatpush.msra.mxu0 0.0
  %4956 = vmatpush.msra.mxu0 0.0
  %4957 = vmatpush.msra.mxu0 0.0
  %4958 = vmatpush.msra.mxu0 0.0
  %4959 = vmatpush.msra.mxu0 0.0
  %4960 = vmatpush.msra.mxu0 0.0
  %4961 = vmatpush.msra.mxu0 0.0
  %4962 = vmatpush.msra.mxu0 0.0
  %v4963 = vand.u32 %v2963, 4294901760
  %4964 = vmatpush.msra.mxu0 %v4963
  %v4965 = vand.u32 %v2961, 4294901760
  %4966 = vmatpush.msra.mxu0 %v4965
  %v4967 = vand.u32 %v4293, 4294901760
  %v4968 = vsub.f32 %v4293, %v4967
  %v4969 = vand.u32 %v4968, 4294901760
  %v4970 = vsub.f32 %v4968, %v4969
  %v4971 = vand.u32 %v4970, 4294901760
  %4972 = vmatmul.f32.gmra.mxu0 %v4971
  %v4973 = vpop.f32.mrf.mxu0
  %v4974 = vadd.f32 0.0, %v4973
  %v4975 = vand.u32 %v4295, 4294901760
  %v4976 = vsub.f32 %v4295, %v4975
  %v4977 = vand.u32 %v4976, 4294901760
  %v4978 = vsub.f32 %v4976, %v4977
  %v4979 = vand.u32 %v4978, 4294901760
  %4980 = vmatmul.f32.gmra.mxu0 %v4979
  %v4981 = vpop.f32.mrf.mxu0
  %v4982 = vadd.f32 0.0, %v4981
  %v4983 = vand.u32 %v4297, 4294901760
  %v4984 = vsub.f32 %v4297, %v4983
  %v4985 = vand.u32 %v4984, 4294901760
  %v4986 = vsub.f32 %v4984, %v4985
  %v4987 = vand.u32 %v4986, 4294901760
  %4988 = vmatmul.f32.gmra.mxu0 %v4987
  %v4989 = vpop.f32.mrf.mxu0
  %v4990 = vadd.f32 0.0, %v4989
  %v4991 = vand.u32 %v4299, 4294901760
  %v4992 = vsub.f32 %v4299, %v4991
  %v4993 = vand.u32 %v4992, 4294901760
  %v4994 = vsub.f32 %v4992, %v4993
  %v4995 = vand.u32 %v4994, 4294901760
  %4996 = vmatmul.f32.gmra.mxu0 %v4995
  %v4997 = vpop.f32.mrf.mxu0
  %v4998 = vadd.f32 0.0, %v4997
  %v4999 = vand.u32 %v4301, 4294901760
  %v5000 = vsub.f32 %v4301, %v4999
  %v5001 = vand.u32 %v5000, 4294901760
  %v5002 = vsub.f32 %v5000, %v5001
  %v5003 = vand.u32 %v5002, 4294901760
  %5004 = vmatmul.f32.gmra.mxu0 %v5003
  %v5005 = vpop.f32.mrf.mxu0
  %v5006 = vadd.f32 0.0, %v5005
  %v5007 = vand.u32 %v4303, 4294901760
  %v5008 = vsub.f32 %v4303, %v5007
  %v5009 = vand.u32 %v5008, 4294901760
  %v5010 = vsub.f32 %v5008, %v5009
  %v5011 = vand.u32 %v5010, 4294901760
  %5012 = vmatmul.f32.gmra.mxu0 %v5011
  %v5013 = vpop.f32.mrf.mxu0
  %v5014 = vadd.f32 0.0, %v5013
  %v5015 = vand.u32 %v4305, 4294901760
  %v5016 = vsub.f32 %v4305, %v5015
  %v5017 = vand.u32 %v5016, 4294901760
  %v5018 = vsub.f32 %v5016, %v5017
  %v5019 = vand.u32 %v5018, 4294901760
  %5020 = vmatmul.f32.gmra.mxu0 %v5019
  %v5021 = vpop.f32.mrf.mxu0
  %v5022 = vadd.f32 0.0, %v5021
  %v5023 = vand.u32 %v4307, 4294901760
  %v5024 = vsub.f32 %v4307, %v5023
  %v5025 = vand.u32 %v5024, 4294901760
  %v5026 = vsub.f32 %v5024, %v5025
  %v5027 = vand.u32 %v5026, 4294901760
  %5028 = vmatmul.f32.gmra.mxu0 %v5027
  %v5029 = vpop.f32.mrf.mxu0
  %v5030 = vadd.f32 0.0, %v5029
  %v5031 = vand.u32 %v4309, 4294901760
  %v5032 = vsub.f32 %v4309, %v5031
  %v5033 = vand.u32 %v5032, 4294901760
  %v5034 = vsub.f32 %v5032, %v5033
  %v5035 = vand.u32 %v5034, 4294901760
  %5036 = vmatmul.f32.gmra.mxu0 %v5035
  %v5037 = vpop.f32.mrf.mxu0
  %v5038 = vadd.f32 0.0, %v5037
  %v5039 = vand.u32 %v4311, 4294901760
  %v5040 = vsub.f32 %v4311, %v5039
  %v5041 = vand.u32 %v5040, 4294901760
  %v5042 = vsub.f32 %v5040, %v5041
  %v5043 = vand.u32 %v5042, 4294901760
  %5044 = vmatmul.f32.gmra.mxu0 %v5043
  %v5045 = vpop.f32.mrf.mxu0
  %v5046 = vadd.f32 0.0, %v5045
  %v5047 = vand.u32 %v4313, 4294901760
  %v5048 = vsub.f32 %v4313, %v5047
  %v5049 = vand.u32 %v5048, 4294901760
  %v5050 = vsub.f32 %v5048, %v5049
  %v5051 = vand.u32 %v5050, 4294901760
  %5052 = vmatmul.f32.gmra.mxu0 %v5051
  %v5053 = vpop.f32.mrf.mxu0
  %v5054 = vadd.f32 0.0, %v5053
  %v5055 = vand.u32 %v4315, 4294901760
  %v5056 = vsub.f32 %v4315, %v5055
  %v5057 = vand.u32 %v5056, 4294901760
  %v5058 = vsub.f32 %v5056, %v5057
  %v5059 = vand.u32 %v5058, 4294901760
  %5060 = vmatmul.f32.gmra.mxu0 %v5059
  %v5061 = vpop.f32.mrf.mxu0
  %v5062 = vadd.f32 0.0, %v5061
  %v5063 = vand.u32 %v4317, 4294901760
  %v5064 = vsub.f32 %v4317, %v5063
  %v5065 = vand.u32 %v5064, 4294901760
  %v5066 = vsub.f32 %v5064, %v5065
  %v5067 = vand.u32 %v5066, 4294901760
  %5068 = vmatmul.f32.gmra.mxu0 %v5067
  %v5069 = vpop.f32.mrf.mxu0
  %v5070 = vadd.f32 0.0, %v5069
  %v5071 = vand.u32 %v4319, 4294901760
  %v5072 = vsub.f32 %v4319, %v5071
  %v5073 = vand.u32 %v5072, 4294901760
  %v5074 = vsub.f32 %v5072, %v5073
  %v5075 = vand.u32 %v5074, 4294901760
  %5076 = vmatmul.f32.gmra.mxu0 %v5075
  %v5077 = vpop.f32.mrf.mxu0
  %v5078 = vadd.f32 0.0, %v5077
  %v5079 = vand.u32 %v4321, 4294901760
  %v5080 = vsub.f32 %v4321, %v5079
  %v5081 = vand.u32 %v5080, 4294901760
  %v5082 = vsub.f32 %v5080, %v5081
  %v5083 = vand.u32 %v5082, 4294901760
  %5084 = vmatmul.f32.gmra.mxu0 %v5083
  %v5085 = vpop.f32.mrf.mxu0
  %v5086 = vadd.f32 0.0, %v5085
  %v5087 = vand.u32 %v4323, 4294901760
  %v5088 = vsub.f32 %v4323, %v5087
  %v5089 = vand.u32 %v5088, 4294901760
  %v5090 = vsub.f32 %v5088, %v5089
  %v5091 = vand.u32 %v5090, 4294901760
  %5092 = vmatmul.f32.gmra.mxu0 %v5091
  %v5093 = vpop.f32.mrf.mxu0
  %v5094 = vadd.f32 0.0, %v5093
  %5095 = vdwg.mxu0
  %5096 = vmatpush.msra.mxu0 0.0
  %5097 = vmatpush.msra.mxu0 0.0
  %5098 = vmatpush.msra.mxu0 0.0
  %5099 = vmatpush.msra.mxu0 0.0
  %5100 = vmatpush.msra.mxu0 0.0
  %5101 = vmatpush.msra.mxu0 0.0
  %5102 = vmatpush.msra.mxu0 0.0
  %5103 = vmatpush.msra.mxu0 0.0
  %5104 = vmatpush.msra.mxu0 0.0
  %5105 = vmatpush.msra.mxu0 0.0
  %5106 = vmatpush.msra.mxu0 0.0
  %5107 = vmatpush.msra.mxu0 0.0
  %5108 = vmatpush.msra.mxu0 0.0
  %5109 = vmatpush.msra.mxu0 0.0
  %v5110 = vand.u32 %v2963, 4294901760
  %v5111 = vsub.f32 %v2963, %v5110
  %v5112 = vand.u32 %v5111, 4294901760
  %v5113 = vsub.f32 %v5111, %v5112
  %v5114 = vand.u32 %v5113, 4294901760
  %5115 = vmatpush.msra.mxu0 %v5114
  %v5116 = vand.u32 %v2961, 4294901760
  %v5117 = vsub.f32 %v2961, %v5116
  %v5118 = vand.u32 %v5117, 4294901760
  %v5119 = vsub.f32 %v5117, %v5118
  %v5120 = vand.u32 %v5119, 4294901760
  %5121 = vmatpush.msra.mxu0 %v5120
  %v5122 = vand.u32 %v4293, 4294901760
  %5123 = vmatmul.f32.gmra.mxu0 %v5122
  %v5124 = vpop.f32.mrf.mxu0
  %v5125 = vadd.f32 %v4974, %v5124
  %v5126 = vand.u32 %v4295, 4294901760
  %5127 = vmatmul.f32.gmra.mxu0 %v5126
  %v5128 = vpop.f32.mrf.mxu0
  %v5129 = vadd.f32 %v4982, %v5128
  %v5130 = vand.u32 %v4297, 4294901760
  %5131 = vmatmul.f32.gmra.mxu0 %v5130
  %v5132 = vpop.f32.mrf.mxu0
  %v5133 = vadd.f32 %v4990, %v5132
  %v5134 = vand.u32 %v4299, 4294901760
  %5135 = vmatmul.f32.gmra.mxu0 %v5134
  %v5136 = vpop.f32.mrf.mxu0
  %v5137 = vadd.f32 %v4998, %v5136
  %v5138 = vand.u32 %v4301, 4294901760
  %5139 = vmatmul.f32.gmra.mxu0 %v5138
  %v5140 = vpop.f32.mrf.mxu0
  %v5141 = vadd.f32 %v5006, %v5140
  %v5142 = vand.u32 %v4303, 4294901760
  %5143 = vmatmul.f32.gmra.mxu0 %v5142
  %v5144 = vpop.f32.mrf.mxu0
  %v5145 = vadd.f32 %v5014, %v5144
  %v5146 = vand.u32 %v4305, 4294901760
  %5147 = vmatmul.f32.gmra.mxu0 %v5146
  %v5148 = vpop.f32.mrf.mxu0
  %v5149 = vadd.f32 %v5022, %v5148
  %v5150 = vand.u32 %v4307, 4294901760
  %5151 = vmatmul.f32.gmra.mxu0 %v5150
  %v5152 = vpop.f32.mrf.mxu0
  %v5153 = vadd.f32 %v5030, %v5152
  %v5154 = vand.u32 %v4309, 4294901760
  %5155 = vmatmul.f32.gmra.mxu0 %v5154
  %v5156 = vpop.f32.mrf.mxu0
  %v5157 = vadd.f32 %v5038, %v5156
  %v5158 = vand.u32 %v4311, 4294901760
  %5159 = vmatmul.f32.gmra.mxu0 %v5158
  %v5160 = vpop.f32.mrf.mxu0
  %v5161 = vadd.f32 %v5046, %v5160
  %v5162 = vand.u32 %v4313, 4294901760
  %5163 = vmatmul.f32.gmra.mxu0 %v5162
  %v5164 = vpop.f32.mrf.mxu0
  %v5165 = vadd.f32 %v5054, %v5164
  %v5166 = vand.u32 %v4315, 4294901760
  %5167 = vmatmul.f32.gmra.mxu0 %v5166
  %v5168 = vpop.f32.mrf.mxu0
  %v5169 = vadd.f32 %v5062, %v5168
  %v5170 = vand.u32 %v4317, 4294901760
  %5171 = vmatmul.f32.gmra.mxu0 %v5170
  %v5172 = vpop.f32.mrf.mxu0
  %v5173 = vadd.f32 %v5070, %v5172
  %v5174 = vand.u32 %v4319, 4294901760
  %5175 = vmatmul.f32.gmra.mxu0 %v5174
  %v5176 = vpop.f32.mrf.mxu0
  %v5177 = vadd.f32 %v5078, %v5176
  %v5178 = vand.u32 %v4321, 4294901760
  %5179 = vmatmul.f32.gmra.mxu0 %v5178
  %v5180 = vpop.f32.mrf.mxu0
  %v5181 = vadd.f32 %v5086, %v5180
  %v5182 = vand.u32 %v4323, 4294901760
  %5183 = vmatmul.f32.gmra.mxu0 %v5182
  %v5184 = vpop.f32.mrf.mxu0
  %v5185 = vadd.f32 %v5094, %v5184
  %5186 = vdwg.mxu0
  %5187 = vmatpush.msra.mxu0 0.0
  %5188 = vmatpush.msra.mxu0 0.0
  %5189 = vmatpush.msra.mxu0 0.0
  %5190 = vmatpush.msra.mxu0 0.0
  %5191 = vmatpush.msra.mxu0 0.0
  %5192 = vmatpush.msra.mxu0 0.0
  %5193 = vmatpush.msra.mxu0 0.0
  %5194 = vmatpush.msra.mxu0 0.0
  %5195 = vmatpush.msra.mxu0 0.0
  %5196 = vmatpush.msra.mxu0 0.0
  %5197 = vmatpush.msra.mxu0 0.0
  %5198 = vmatpush.msra.mxu0 0.0
  %5199 = vmatpush.msra.mxu0 0.0
  %5200 = vmatpush.msra.mxu0 0.0
  %v5201 = vand.u32 %v2963, 4294901760
  %v5202 = vsub.f32 %v2963, %v5201
  %5203 = vmatpush.msra.mxu0 %v5202
  %v5204 = vand.u32 %v2961, 4294901760
  %v5205 = vsub.f32 %v2961, %v5204
  %5206 = vmatpush.msra.mxu0 %v5205
  %v5207 = vand.u32 %v4293, 4294901760
  %v5208 = vsub.f32 %v4293, %v5207
  %5209 = vmatmul.f32.gmra.mxu0 %v5208
  %v5210 = vpop.f32.mrf.mxu0
  %v5211 = vadd.f32 %v5125, %v5210
  %v5212 = vand.u32 %v4295, 4294901760
  %v5213 = vsub.f32 %v4295, %v5212
  %5214 = vmatmul.f32.gmra.mxu0 %v5213
  %v5215 = vpop.f32.mrf.mxu0
  %v5216 = vadd.f32 %v5129, %v5215
  %v5217 = vand.u32 %v4297, 4294901760
  %v5218 = vsub.f32 %v4297, %v5217
  %5219 = vmatmul.f32.gmra.mxu0 %v5218
  %v5220 = vpop.f32.mrf.mxu0
  %v5221 = vadd.f32 %v5133, %v5220
  %v5222 = vand.u32 %v4299, 4294901760
  %v5223 = vsub.f32 %v4299, %v5222
  %5224 = vmatmul.f32.gmra.mxu0 %v5223
  %v5225 = vpop.f32.mrf.mxu0
  %v5226 = vadd.f32 %v5137, %v5225
  %v5227 = vand.u32 %v4301, 4294901760
  %v5228 = vsub.f32 %v4301, %v5227
  %5229 = vmatmul.f32.gmra.mxu0 %v5228
  %v5230 = vpop.f32.mrf.mxu0
  %v5231 = vadd.f32 %v5141, %v5230
  %v5232 = vand.u32 %v4303, 4294901760
  %v5233 = vsub.f32 %v4303, %v5232
  %5234 = vmatmul.f32.gmra.mxu0 %v5233
  %v5235 = vpop.f32.mrf.mxu0
  %v5236 = vadd.f32 %v5145, %v5235
  %v5237 = vand.u32 %v4305, 4294901760
  %v5238 = vsub.f32 %v4305, %v5237
  %5239 = vmatmul.f32.gmra.mxu0 %v5238
  %v5240 = vpop.f32.mrf.mxu0
  %v5241 = vadd.f32 %v5149, %v5240
  %v5242 = vand.u32 %v4307, 4294901760
  %v5243 = vsub.f32 %v4307, %v5242
  %5244 = vmatmul.f32.gmra.mxu0 %v5243
  %v5245 = vpop.f32.mrf.mxu0
  %v5246 = vadd.f32 %v5153, %v5245
  %v5247 = vand.u32 %v4309, 4294901760
  %v5248 = vsub.f32 %v4309, %v5247
  %5249 = vmatmul.f32.gmra.mxu0 %v5248
  %v5250 = vpop.f32.mrf.mxu0
  %v5251 = vadd.f32 %v5157, %v5250
  %v5252 = vand.u32 %v4311, 4294901760
  %v5253 = vsub.f32 %v4311, %v5252
  %5254 = vmatmul.f32.gmra.mxu0 %v5253
  %v5255 = vpop.f32.mrf.mxu0
  %v5256 = vadd.f32 %v5161, %v5255
  %v5257 = vand.u32 %v4313, 4294901760
  %v5258 = vsub.f32 %v4313, %v5257
  %5259 = vmatmul.f32.gmra.mxu0 %v5258
  %v5260 = vpop.f32.mrf.mxu0
  %v5261 = vadd.f32 %v5165, %v5260
  %v5262 = vand.u32 %v4315, 4294901760
  %v5263 = vsub.f32 %v4315, %v5262
  %5264 = vmatmul.f32.gmra.mxu0 %v5263
  %v5265 = vpop.f32.mrf.mxu0
  %v5266 = vadd.f32 %v5169, %v5265
  %v5267 = vand.u32 %v4317, 4294901760
  %v5268 = vsub.f32 %v4317, %v5267
  %5269 = vmatmul.f32.gmra.mxu0 %v5268
  %v5270 = vpop.f32.mrf.mxu0
  %v5271 = vadd.f32 %v5173, %v5270
  %v5272 = vand.u32 %v4319, 4294901760
  %v5273 = vsub.f32 %v4319, %v5272
  %5274 = vmatmul.f32.gmra.mxu0 %v5273
  %v5275 = vpop.f32.mrf.mxu0
  %v5276 = vadd.f32 %v5177, %v5275
  %v5277 = vand.u32 %v4321, 4294901760
  %v5278 = vsub.f32 %v4321, %v5277
  %5279 = vmatmul.f32.gmra.mxu0 %v5278
  %v5280 = vpop.f32.mrf.mxu0
  %v5281 = vadd.f32 %v5181, %v5280
  %v5282 = vand.u32 %v4323, 4294901760
  %v5283 = vsub.f32 %v4323, %v5282
  %5284 = vmatmul.f32.gmra.mxu0 %v5283
  %v5285 = vpop.f32.mrf.mxu0
  %v5286 = vadd.f32 %v5185, %v5285
  %5287 = vdwg.mxu0
  %5288 = vmatpush.msra.mxu0 0.0
  %5289 = vmatpush.msra.mxu0 0.0
  %5290 = vmatpush.msra.mxu0 0.0
  %5291 = vmatpush.msra.mxu0 0.0
  %5292 = vmatpush.msra.mxu0 0.0
  %5293 = vmatpush.msra.mxu0 0.0
  %5294 = vmatpush.msra.mxu0 0.0
  %5295 = vmatpush.msra.mxu0 0.0
  %5296 = vmatpush.msra.mxu0 0.0
  %5297 = vmatpush.msra.mxu0 0.0
  %5298 = vmatpush.msra.mxu0 0.0
  %5299 = vmatpush.msra.mxu0 0.0
  %5300 = vmatpush.msra.mxu0 0.0
  %5301 = vmatpush.msra.mxu0 0.0
  %v5302 = vand.u32 %v2963, 4294901760
  %5303 = vmatpush.msra.mxu0 %v5302
  %v5304 = vand.u32 %v2961, 4294901760
  %5305 = vmatpush.msra.mxu0 %v5304
  %v5306 = vand.u32 %v4293, 4294901760
  %v5307 = vsub.f32 %v4293, %v5306
  %v5308 = vand.u32 %v5307, 4294901760
  %5309 = vmatmul.f32.gmra.mxu0 %v5308
  %v5310 = vpop.f32.mrf.mxu0
  %v5311 = vadd.f32 %v5211, %v5310
  %v5312 = vand.u32 %v4295, 4294901760
  %v5313 = vsub.f32 %v4295, %v5312
  %v5314 = vand.u32 %v5313, 4294901760
  %5315 = vmatmul.f32.gmra.mxu0 %v5314
  %v5316 = vpop.f32.mrf.mxu0
  %v5317 = vadd.f32 %v5216, %v5316
  %v5318 = vand.u32 %v4297, 4294901760
  %v5319 = vsub.f32 %v4297, %v5318
  %v5320 = vand.u32 %v5319, 4294901760
  %5321 = vmatmul.f32.gmra.mxu0 %v5320
  %v5322 = vpop.f32.mrf.mxu0
  %v5323 = vadd.f32 %v5221, %v5322
  %v5324 = vand.u32 %v4299, 4294901760
  %v5325 = vsub.f32 %v4299, %v5324
  %v5326 = vand.u32 %v5325, 4294901760
  %5327 = vmatmul.f32.gmra.mxu0 %v5326
  %v5328 = vpop.f32.mrf.mxu0
  %v5329 = vadd.f32 %v5226, %v5328
  %v5330 = vand.u32 %v4301, 4294901760
  %v5331 = vsub.f32 %v4301, %v5330
  %v5332 = vand.u32 %v5331, 4294901760
  %5333 = vmatmul.f32.gmra.mxu0 %v5332
  %v5334 = vpop.f32.mrf.mxu0
  %v5335 = vadd.f32 %v5231, %v5334
  %v5336 = vand.u32 %v4303, 4294901760
  %v5337 = vsub.f32 %v4303, %v5336
  %v5338 = vand.u32 %v5337, 4294901760
  %5339 = vmatmul.f32.gmra.mxu0 %v5338
  %v5340 = vpop.f32.mrf.mxu0
  %v5341 = vadd.f32 %v5236, %v5340
  %v5342 = vand.u32 %v4305, 4294901760
  %v5343 = vsub.f32 %v4305, %v5342
  %v5344 = vand.u32 %v5343, 4294901760
  %5345 = vmatmul.f32.gmra.mxu0 %v5344
  %v5346 = vpop.f32.mrf.mxu0
  %v5347 = vadd.f32 %v5241, %v5346
  %v5348 = vand.u32 %v4307, 4294901760
  %v5349 = vsub.f32 %v4307, %v5348
  %v5350 = vand.u32 %v5349, 4294901760
  %5351 = vmatmul.f32.gmra.mxu0 %v5350
  %v5352 = vpop.f32.mrf.mxu0
  %v5353 = vadd.f32 %v5246, %v5352
  %v5354 = vand.u32 %v4309, 4294901760
  %v5355 = vsub.f32 %v4309, %v5354
  %v5356 = vand.u32 %v5355, 4294901760
  %5357 = vmatmul.f32.gmra.mxu0 %v5356
  %v5358 = vpop.f32.mrf.mxu0
  %v5359 = vadd.f32 %v5251, %v5358
  %v5360 = vand.u32 %v4311, 4294901760
  %v5361 = vsub.f32 %v4311, %v5360
  %v5362 = vand.u32 %v5361, 4294901760
  %5363 = vmatmul.f32.gmra.mxu0 %v5362
  %v5364 = vpop.f32.mrf.mxu0
  %v5365 = vadd.f32 %v5256, %v5364
  %v5366 = vand.u32 %v4313, 4294901760
  %v5367 = vsub.f32 %v4313, %v5366
  %v5368 = vand.u32 %v5367, 4294901760
  %5369 = vmatmul.f32.gmra.mxu0 %v5368
  %v5370 = vpop.f32.mrf.mxu0
  %v5371 = vadd.f32 %v5261, %v5370
  %v5372 = vand.u32 %v4315, 4294901760
  %v5373 = vsub.f32 %v4315, %v5372
  %v5374 = vand.u32 %v5373, 4294901760
  %5375 = vmatmul.f32.gmra.mxu0 %v5374
  %v5376 = vpop.f32.mrf.mxu0
  %v5377 = vadd.f32 %v5266, %v5376
  %v5378 = vand.u32 %v4317, 4294901760
  %v5379 = vsub.f32 %v4317, %v5378
  %v5380 = vand.u32 %v5379, 4294901760
  %5381 = vmatmul.f32.gmra.mxu0 %v5380
  %v5382 = vpop.f32.mrf.mxu0
  %v5383 = vadd.f32 %v5271, %v5382
  %v5384 = vand.u32 %v4319, 4294901760
  %v5385 = vsub.f32 %v4319, %v5384
  %v5386 = vand.u32 %v5385, 4294901760
  %5387 = vmatmul.f32.gmra.mxu0 %v5386
  %v5388 = vpop.f32.mrf.mxu0
  %v5389 = vadd.f32 %v5276, %v5388
  %v5390 = vand.u32 %v4321, 4294901760
  %v5391 = vsub.f32 %v4321, %v5390
  %v5392 = vand.u32 %v5391, 4294901760
  %5393 = vmatmul.f32.gmra.mxu0 %v5392
  %v5394 = vpop.f32.mrf.mxu0
  %v5395 = vadd.f32 %v5281, %v5394
  %v5396 = vand.u32 %v4323, 4294901760
  %v5397 = vsub.f32 %v4323, %v5396
  %v5398 = vand.u32 %v5397, 4294901760
  %5399 = vmatmul.f32.gmra.mxu0 %v5398
  %v5400 = vpop.f32.mrf.mxu0
  %v5401 = vadd.f32 %v5286, %v5400
  %5402 = vdwg.mxu0
  %5403 = vmatpush.msra.mxu0 0.0
  %5404 = vmatpush.msra.mxu0 0.0
  %5405 = vmatpush.msra.mxu0 0.0
  %5406 = vmatpush.msra.mxu0 0.0
  %5407 = vmatpush.msra.mxu0 0.0
  %5408 = vmatpush.msra.mxu0 0.0
  %5409 = vmatpush.msra.mxu0 0.0
  %5410 = vmatpush.msra.mxu0 0.0
  %5411 = vmatpush.msra.mxu0 0.0
  %5412 = vmatpush.msra.mxu0 0.0
  %5413 = vmatpush.msra.mxu0 0.0
  %5414 = vmatpush.msra.mxu0 0.0
  %5415 = vmatpush.msra.mxu0 0.0
  %5416 = vmatpush.msra.mxu0 0.0
  %v5417 = vand.u32 %v2963, 4294901760
  %v5418 = vsub.f32 %v2963, %v5417
  %v5419 = vand.u32 %v5418, 4294901760
  %5420 = vmatpush.msra.mxu0 %v5419
  %v5421 = vand.u32 %v2961, 4294901760
  %v5422 = vsub.f32 %v2961, %v5421
  %v5423 = vand.u32 %v5422, 4294901760
  %5424 = vmatpush.msra.mxu0 %v5423
  %v5425 = vand.u32 %v4293, 4294901760
  %5426 = vmatmul.f32.gmra.mxu0 %v5425
  %v5427 = vpop.f32.mrf.mxu0
  %v5428 = vadd.f32 %v5311, %v5427
  %v5429 = vand.u32 %v4295, 4294901760
  %5430 = vmatmul.f32.gmra.mxu0 %v5429
  %v5431 = vpop.f32.mrf.mxu0
  %v5432 = vadd.f32 %v5317, %v5431
  %v5433 = vand.u32 %v4297, 4294901760
  %5434 = vmatmul.f32.gmra.mxu0 %v5433
  %v5435 = vpop.f32.mrf.mxu0
  %v5436 = vadd.f32 %v5323, %v5435
  %v5437 = vand.u32 %v4299, 4294901760
  %5438 = vmatmul.f32.gmra.mxu0 %v5437
  %v5439 = vpop.f32.mrf.mxu0
  %v5440 = vadd.f32 %v5329, %v5439
  %v5441 = vand.u32 %v4301, 4294901760
  %5442 = vmatmul.f32.gmra.mxu0 %v5441
  %v5443 = vpop.f32.mrf.mxu0
  %v5444 = vadd.f32 %v5335, %v5443
  %v5445 = vand.u32 %v4303, 4294901760
  %5446 = vmatmul.f32.gmra.mxu0 %v5445
  %v5447 = vpop.f32.mrf.mxu0
  %v5448 = vadd.f32 %v5341, %v5447
  %v5449 = vand.u32 %v4305, 4294901760
  %5450 = vmatmul.f32.gmra.mxu0 %v5449
  %v5451 = vpop.f32.mrf.mxu0
  %v5452 = vadd.f32 %v5347, %v5451
  %v5453 = vand.u32 %v4307, 4294901760
  %5454 = vmatmul.f32.gmra.mxu0 %v5453
  %v5455 = vpop.f32.mrf.mxu0
  %v5456 = vadd.f32 %v5353, %v5455
  %v5457 = vand.u32 %v4309, 4294901760
  %5458 = vmatmul.f32.gmra.mxu0 %v5457
  %v5459 = vpop.f32.mrf.mxu0
  %v5460 = vadd.f32 %v5359, %v5459
  %v5461 = vand.u32 %v4311, 4294901760
  %5462 = vmatmul.f32.gmra.mxu0 %v5461
  %v5463 = vpop.f32.mrf.mxu0
  %v5464 = vadd.f32 %v5365, %v5463
  %v5465 = vand.u32 %v4313, 4294901760
  %5466 = vmatmul.f32.gmra.mxu0 %v5465
  %v5467 = vpop.f32.mrf.mxu0
  %v5468 = vadd.f32 %v5371, %v5467
  %v5469 = vand.u32 %v4315, 4294901760
  %5470 = vmatmul.f32.gmra.mxu0 %v5469
  %v5471 = vpop.f32.mrf.mxu0
  %v5472 = vadd.f32 %v5377, %v5471
  %v5473 = vand.u32 %v4317, 4294901760
  %5474 = vmatmul.f32.gmra.mxu0 %v5473
  %v5475 = vpop.f32.mrf.mxu0
  %v5476 = vadd.f32 %v5383, %v5475
  %v5477 = vand.u32 %v4319, 4294901760
  %5478 = vmatmul.f32.gmra.mxu0 %v5477
  %v5479 = vpop.f32.mrf.mxu0
  %v5480 = vadd.f32 %v5389, %v5479
  %v5481 = vand.u32 %v4321, 4294901760
  %5482 = vmatmul.f32.gmra.mxu0 %v5481
  %v5483 = vpop.f32.mrf.mxu0
  %v5484 = vadd.f32 %v5395, %v5483
  %v5485 = vand.u32 %v4323, 4294901760
  %5486 = vmatmul.f32.gmra.mxu0 %v5485
  %v5487 = vpop.f32.mrf.mxu0
  %v5488 = vadd.f32 %v5401, %v5487
  %5489 = vdwg.mxu0
  %5490 = vmatpush.msra.mxu0 0.0
  %5491 = vmatpush.msra.mxu0 0.0
  %5492 = vmatpush.msra.mxu0 0.0
  %5493 = vmatpush.msra.mxu0 0.0
  %5494 = vmatpush.msra.mxu0 0.0
  %5495 = vmatpush.msra.mxu0 0.0
  %5496 = vmatpush.msra.mxu0 0.0
  %5497 = vmatpush.msra.mxu0 0.0
  %5498 = vmatpush.msra.mxu0 0.0
  %5499 = vmatpush.msra.mxu0 0.0
  %5500 = vmatpush.msra.mxu0 0.0
  %5501 = vmatpush.msra.mxu0 0.0
  %5502 = vmatpush.msra.mxu0 0.0
  %5503 = vmatpush.msra.mxu0 0.0
  %v5504 = vand.u32 %v2963, 4294901760
  %5505 = vmatpush.msra.mxu0 %v5504
  %v5506 = vand.u32 %v2961, 4294901760
  %5507 = vmatpush.msra.mxu0 %v5506
  %v5508 = vand.u32 %v4293, 4294901760
  %5509 = vmatmul.f32.gmra.mxu0 %v5508
  %v5510 = vpop.f32.mrf.mxu0
  %v5511 = vadd.f32 %v5428, %v5510
  %v5512 = vand.u32 %v4295, 4294901760
  %5513 = vmatmul.f32.gmra.mxu0 %v5512
  %v5514 = vpop.f32.mrf.mxu0
  %v5515 = vadd.f32 %v5432, %v5514
  %v5516 = vand.u32 %v4297, 4294901760
  %5517 = vmatmul.f32.gmra.mxu0 %v5516
  %v5518 = vpop.f32.mrf.mxu0
  %v5519 = vadd.f32 %v5436, %v5518
  %v5520 = vand.u32 %v4299, 4294901760
  %5521 = vmatmul.f32.gmra.mxu0 %v5520
  %v5522 = vpop.f32.mrf.mxu0
  %v5523 = vadd.f32 %v5440, %v5522
  %v5524 = vand.u32 %v4301, 4294901760
  %5525 = vmatmul.f32.gmra.mxu0 %v5524
  %v5526 = vpop.f32.mrf.mxu0
  %v5527 = vadd.f32 %v5444, %v5526
  %v5528 = vand.u32 %v4303, 4294901760
  %5529 = vmatmul.f32.gmra.mxu0 %v5528
  %v5530 = vpop.f32.mrf.mxu0
  %v5531 = vadd.f32 %v5448, %v5530
  %v5532 = vand.u32 %v4305, 4294901760
  %5533 = vmatmul.f32.gmra.mxu0 %v5532
  %v5534 = vpop.f32.mrf.mxu0
  %v5535 = vadd.f32 %v5452, %v5534
  %v5536 = vand.u32 %v4307, 4294901760
  %5537 = vmatmul.f32.gmra.mxu0 %v5536
  %v5538 = vpop.f32.mrf.mxu0
  %v5539 = vadd.f32 %v5456, %v5538
  %v5540 = vand.u32 %v4309, 4294901760
  %5541 = vmatmul.f32.gmra.mxu0 %v5540
  %v5542 = vpop.f32.mrf.mxu0
  %v5543 = vadd.f32 %v5460, %v5542
  %v5544 = vand.u32 %v4311, 4294901760
  %5545 = vmatmul.f32.gmra.mxu0 %v5544
  %v5546 = vpop.f32.mrf.mxu0
  %v5547 = vadd.f32 %v5464, %v5546
  %v5548 = vand.u32 %v4313, 4294901760
  %5549 = vmatmul.f32.gmra.mxu0 %v5548
  %v5550 = vpop.f32.mrf.mxu0
  %v5551 = vadd.f32 %v5468, %v5550
  %v5552 = vand.u32 %v4315, 4294901760
  %5553 = vmatmul.f32.gmra.mxu0 %v5552
  %v5554 = vpop.f32.mrf.mxu0
  %v5555 = vadd.f32 %v5472, %v5554
  %v5556 = vand.u32 %v4317, 4294901760
  %5557 = vmatmul.f32.gmra.mxu0 %v5556
  %v5558 = vpop.f32.mrf.mxu0
  %v5559 = vadd.f32 %v5476, %v5558
  %v5560 = vand.u32 %v4319, 4294901760
  %5561 = vmatmul.f32.gmra.mxu0 %v5560
  %v5562 = vpop.f32.mrf.mxu0
  %v5563 = vadd.f32 %v5480, %v5562
  %v5564 = vand.u32 %v4321, 4294901760
  %5565 = vmatmul.f32.gmra.mxu0 %v5564
  %v5566 = vpop.f32.mrf.mxu0
  %v5567 = vadd.f32 %v5484, %v5566
  %v5568 = vand.u32 %v4323, 4294901760
  %5569 = vmatmul.f32.gmra.mxu0 %v5568
  %v5570 = vpop.f32.mrf.mxu0
  %v5571 = vadd.f32 %v5488, %v5570
  %5572 = vdwg.mxu0
  %v5573 = vmul.f32 %v3575, %v4887
  %v5574 = vmul.f32 %v4199, %v5511
  %v5575 = vmul.f32 %v3579, %v4891
  %v5576 = vmul.f32 %v4203, %v5515
  %v5577 = vmul.f32 %v3583, %v4895
  %v5578 = vmul.f32 %v4207, %v5519
  %v5579 = vmul.f32 %v3587, %v4899
  %v5580 = vmul.f32 %v4211, %v5523
  %v5581 = vmul.f32 %v3591, %v4903
  %v5582 = vmul.f32 %v4215, %v5527
  %v5583 = vmul.f32 %v3595, %v4907
  %v5584 = vmul.f32 %v4219, %v5531
  %v5585 = vmul.f32 %v3599, %v4911
  %v5586 = vmul.f32 %v4223, %v5535
  %v5587 = vmul.f32 %v3603, %v4915
  %v5588 = vmul.f32 %v4227, %v5539
  %v5589 = vmul.f32 %v3607, %v4919
  %v5590 = vmul.f32 %v4231, %v5543
  %v5591 = vmul.f32 %v3611, %v4923
  %v5592 = vmul.f32 %v4235, %v5547
  %v5593 = vmul.f32 %v3615, %v4927
  %v5594 = vmul.f32 %v4239, %v5551
  %v5595 = vmul.f32 %v3619, %v4931
  %v5596 = vmul.f32 %v4243, %v5555
  %v5597 = vmul.f32 %v3623, %v4935
  %v5598 = vmul.f32 %v4247, %v5559
  %v5599 = vmul.f32 %v3627, %v4939
  %v5600 = vmul.f32 %v4251, %v5563
  %v5601 = vmul.f32 %v3631, %v4943
  %v5602 = vmul.f32 %v4255, %v5567
  %v5603 = vmul.f32 %v3635, %v4947
  %v5604 = vmul.f32 %v4259, %v5571
  %v5605 = vmul.f32 %v26, %v5573
  %v5606 = vmul.f32 %v27, %v5574
  %v5607 = vmul.f32 %v28, %v5575
  %v5608 = vmul.f32 %v29, %v5576
  %v5609 = vmul.f32 %v30, %v5577
  %v5610 = vmul.f32 %v31, %v5578
  %v5611 = vmul.f32 %v32, %v5579
  %v5612 = vmul.f32 %v33, %v5580
  %v5613 = vmul.f32 %v34, %v5581
  %v5614 = vmul.f32 %v35, %v5582
  %v5615 = vmul.f32 %v36, %v5583
  %v5616 = vmul.f32 %v37, %v5584
  %v5617 = vmul.f32 %v38, %v5585
  %v5618 = vmul.f32 %v39, %v5586
  %v5619 = vmul.f32 %v40, %v5587
  %v5620 = vmul.f32 %v41, %v5588
  %v5621 = vmul.f32 %v42, %v5589
  %v5622 = vmul.f32 %v43, %v5590
  %v5623 = vmul.f32 %v44, %v5591
  %v5624 = vmul.f32 %v45, %v5592
  %v5625 = vmul.f32 %v46, %v5593
  %v5626 = vmul.f32 %v47, %v5594
  %v5627 = vmul.f32 %v48, %v5595
  %v5628 = vmul.f32 %v49, %v5596
  %v5629 = vmul.f32 %v50, %v5597
  %v5630 = vmul.f32 %v51, %v5598
  %v5631 = vmul.f32 %v52, %v5599
  %v5632 = vmul.f32 %v53, %v5600
  %v5633 = vmul.f32 %v54, %v5601
  %v5634 = vmul.f32 %v55, %v5602
  %v5635 = vmul.f32 %v56, %v5603
  %v5636 = vmul.f32 %v57, %v5604
  %v5637 = vadd.f32 %v5605, %v5606
  %5638 = vadd.xlane.f32.xlu0 %v5637
  %v5639 = vpop.xlane.xlu0 %5638
  %v5640 = vadd.f32 %v5607, %v5608
  %5641 = vadd.xlane.f32.xlu0 %v5640
  %v5642 = vpop.xlane.xlu0 %5641
  %v5643 = vadd.f32 %v5609, %v5610
  %5644 = vadd.xlane.f32.xlu0 %v5643
  %v5645 = vpop.xlane.xlu0 %5644
  %v5646 = vadd.f32 %v5611, %v5612
  %5647 = vadd.xlane.f32.xlu0 %v5646
  %v5648 = vpop.xlane.xlu0 %5647
  %v5649 = vadd.f32 %v5613, %v5614
  %5650 = vadd.xlane.f32.xlu0 %v5649
  %v5651 = vpop.xlane.xlu0 %5650
  %v5652 = vadd.f32 %v5615, %v5616
  %5653 = vadd.xlane.f32.xlu0 %v5652
  %v5654 = vpop.xlane.xlu0 %5653
  %v5655 = vadd.f32 %v5617, %v5618
  %5656 = vadd.xlane.f32.xlu0 %v5655
  %v5657 = vpop.xlane.xlu0 %5656
  %v5658 = vadd.f32 %v5619, %v5620
  %5659 = vadd.xlane.f32.xlu0 %v5658
  %v5660 = vpop.xlane.xlu0 %5659
  %v5661 = vadd.f32 %v5621, %v5622
  %5662 = vadd.xlane.f32.xlu0 %v5661
  %v5663 = vpop.xlane.xlu0 %5662
  %v5664 = vadd.f32 %v5623, %v5624
  %5665 = vadd.xlane.f32.xlu0 %v5664
  %v5666 = vpop.xlane.xlu0 %5665
  %v5667 = vadd.f32 %v5625, %v5626
  %5668 = vadd.xlane.f32.xlu0 %v5667
  %v5669 = vpop.xlane.xlu0 %5668
  %v5670 = vadd.f32 %v5627, %v5628
  %5671 = vadd.xlane.f32.xlu0 %v5670
  %v5672 = vpop.xlane.xlu0 %5671
  %v5673 = vadd.f32 %v5629, %v5630
  %5674 = vadd.xlane.f32.xlu0 %v5673
  %v5675 = vpop.xlane.xlu0 %5674
  %v5676 = vadd.f32 %v5631, %v5632
  %5677 = vadd.xlane.f32.xlu0 %v5676
  %v5678 = vpop.xlane.xlu0 %5677
  %v5679 = vadd.f32 %v5633, %v5634
  %5680 = vadd.xlane.f32.xlu0 %v5679
  %v5681 = vpop.xlane.xlu0 %5680
  %v5682 = vadd.f32 %v5635, %v5636
  %5683 = vadd.xlane.f32.xlu0 %v5682
  %v5684 = vpop.xlane.xlu0 %5683
  %v5685 = vmul.f32 %v5639, 0.00390625
  %v5686 = vmul.f32 %v5642, 0.00390625
  %v5687 = vmul.f32 %v5645, 0.00390625
  %v5688 = vmul.f32 %v5648, 0.00390625
  %v5689 = vmul.f32 %v5651, 0.00390625
  %v5690 = vmul.f32 %v5654, 0.00390625
  %v5691 = vmul.f32 %v5657, 0.00390625
  %v5692 = vmul.f32 %v5660, 0.00390625
  %v5693 = vmul.f32 %v5663, 0.00390625
  %v5694 = vmul.f32 %v5666, 0.00390625
  %v5695 = vmul.f32 %v5669, 0.00390625
  %v5696 = vmul.f32 %v5672, 0.00390625
  %v5697 = vmul.f32 %v5675, 0.00390625
  %v5698 = vmul.f32 %v5678, 0.00390625
  %v5699 = vmul.f32 %v5681, 0.00390625
  %v5700 = vmul.f32 %v5684, 0.00390625
  %v5701 = vsub.f32 %v5605, %v5685
  %v5702 = vsub.f32 %v5606, %v5685
  %v5703 = vsub.f32 %v5607, %v5686
  %v5704 = vsub.f32 %v5608, %v5686
  %v5705 = vsub.f32 %v5609, %v5687
  %v5706 = vsub.f32 %v5610, %v5687
  %v5707 = vsub.f32 %v5611, %v5688
  %v5708 = vsub.f32 %v5612, %v5688
  %v5709 = vsub.f32 %v5613, %v5689
  %v5710 = vsub.f32 %v5614, %v5689
  %v5711 = vsub.f32 %v5615, %v5690
  %v5712 = vsub.f32 %v5616, %v5690
  %v5713 = vsub.f32 %v5617, %v5691
  %v5714 = vsub.f32 %v5618, %v5691
  %v5715 = vsub.f32 %v5619, %v5692
  %v5716 = vsub.f32 %v5620, %v5692
  %v5717 = vsub.f32 %v5621, %v5693
  %v5718 = vsub.f32 %v5622, %v5693
  %v5719 = vsub.f32 %v5623, %v5694
  %v5720 = vsub.f32 %v5624, %v5694
  %v5721 = vsub.f32 %v5625, %v5695
  %v5722 = vsub.f32 %v5626, %v5695
  %v5723 = vsub.f32 %v5627, %v5696
  %v5724 = vsub.f32 %v5628, %v5696
  %v5725 = vsub.f32 %v5629, %v5697
  %v5726 = vsub.f32 %v5630, %v5697
  %v5727 = vsub.f32 %v5631, %v5698
  %v5728 = vsub.f32 %v5632, %v5698
  %v5729 = vsub.f32 %v5633, %v5699
  %v5730 = vsub.f32 %v5634, %v5699
  %v5731 = vsub.f32 %v5635, %v5700
  %v5732 = vsub.f32 %v5636, %v5700
  %v5733 = vmul.f32 %v5701, %v5701
  %v5734 = vmul.f32 %v5702, %v5702
  %v5735 = vmul.f32 %v5703, %v5703
  %v5736 = vmul.f32 %v5704, %v5704
  %v5737 = vmul.f32 %v5705, %v5705
  %v5738 = vmul.f32 %v5706, %v5706
  %v5739 = vmul.f32 %v5707, %v5707
  %v5740 = vmul.f32 %v5708, %v5708
  %v5741 = vmul.f32 %v5709, %v5709
  %v5742 = vmul.f32 %v5710, %v5710
  %v5743 = vmul.f32 %v5711, %v5711
  %v5744 = vmul.f32 %v5712, %v5712
  %v5745 = vmul.f32 %v5713, %v5713
  %v5746 = vmul.f32 %v5714, %v5714
  %v5747 = vmul.f32 %v5715, %v5715
  %v5748 = vmul.f32 %v5716, %v5716
  %v5749 = vmul.f32 %v5717, %v5717
  %v5750 = vmul.f32 %v5718, %v5718
  %v5751 = vmul.f32 %v5719, %v5719
  %v5752 = vmul.f32 %v5720, %v5720
  %v5753 = vmul.f32 %v5721, %v5721
  %v5754 = vmul.f32 %v5722, %v5722
  %v5755 = vmul.f32 %v5723, %v5723
  %v5756 = vmul.f32 %v5724, %v5724
  %v5757 = vmul.f32 %v5725, %v5725
  %v5758 = vmul.f32 %v5726, %v5726
  %v5759 = vmul.f32 %v5727, %v5727
  %v5760 = vmul.f32 %v5728, %v5728
  %v5761 = vmul.f32 %v5729, %v5729
  %v5762 = vmul.f32 %v5730, %v5730
  %v5763 = vmul.f32 %v5731, %v5731
  %v5764 = vmul.f32 %v5732, %v5732
  %v5765 = vadd.f32 %v5733, %v5734
  %5766 = vadd.xlane.f32.xlu0 %v5765
  %v5767 = vpop.xlane.xlu0 %5766
  %v5768 = vadd.f32 %v5735, %v5736
  %5769 = vadd.xlane.f32.xlu0 %v5768
  %v5770 = vpop.xlane.xlu0 %5769
  %v5771 = vadd.f32 %v5737, %v5738
  %5772 = vadd.xlane.f32.xlu0 %v5771
  %v5773 = vpop.xlane.xlu0 %5772
  %v5774 = vadd.f32 %v5739, %v5740
  %5775 = vadd.xlane.f32.xlu0 %v5774
  %v5776 = vpop.xlane.xlu0 %5775
  %v5777 = vadd.f32 %v5741, %v5742
  %5778 = vadd.xlane.f32.xlu0 %v5777
  %v5779 = vpop.xlane.xlu0 %5778
  %v5780 = vadd.f32 %v5743, %v5744
  %5781 = vadd.xlane.f32.xlu0 %v5780
  %v5782 = vpop.xlane.xlu0 %5781
  %v5783 = vadd.f32 %v5745, %v5746
  %5784 = vadd.xlane.f32.xlu0 %v5783
  %v5785 = vpop.xlane.xlu0 %5784
  %v5786 = vadd.f32 %v5747, %v5748
  %5787 = vadd.xlane.f32.xlu0 %v5786
  %v5788 = vpop.xlane.xlu0 %5787
  %v5789 = vadd.f32 %v5749, %v5750
  %5790 = vadd.xlane.f32.xlu0 %v5789
  %v5791 = vpop.xlane.xlu0 %5790
  %v5792 = vadd.f32 %v5751, %v5752
  %5793 = vadd.xlane.f32.xlu0 %v5792
  %v5794 = vpop.xlane.xlu0 %5793
  %v5795 = vadd.f32 %v5753, %v5754
  %5796 = vadd.xlane.f32.xlu0 %v5795
  %v5797 = vpop.xlane.xlu0 %5796
  %v5798 = vadd.f32 %v5755, %v5756
  %5799 = vadd.xlane.f32.xlu0 %v5798
  %v5800 = vpop.xlane.xlu0 %5799
  %v5801 = vadd.f32 %v5757, %v5758
  %5802 = vadd.xlane.f32.xlu0 %v5801
  %v5803 = vpop.xlane.xlu0 %5802
  %v5804 = vadd.f32 %v5759, %v5760
  %5805 = vadd.xlane.f32.xlu0 %v5804
  %v5806 = vpop.xlane.xlu0 %5805
  %v5807 = vadd.f32 %v5761, %v5762
  %5808 = vadd.xlane.f32.xlu0 %v5807
  %v5809 = vpop.xlane.xlu0 %5808
  %v5810 = vadd.f32 %v5763, %v5764
  %5811 = vadd.xlane.f32.xlu0 %v5810
  %v5812 = vpop.xlane.xlu0 %5811
  %v5813 = vmul.f32 %v5767, 0.00390625
  %v5814 = vmul.f32 %v5770, 0.00390625
  %v5815 = vmul.f32 %v5773, 0.00390625
  %v5816 = vmul.f32 %v5776, 0.00390625
  %v5817 = vmul.f32 %v5779, 0.00390625
  %v5818 = vmul.f32 %v5782, 0.00390625
  %v5819 = vmul.f32 %v5785, 0.00390625
  %v5820 = vmul.f32 %v5788, 0.00390625
  %v5821 = vmul.f32 %v5791, 0.00390625
  %v5822 = vmul.f32 %v5794, 0.00390625
  %v5823 = vmul.f32 %v5797, 0.00390625
  %v5824 = vmul.f32 %v5800, 0.00390625
  %v5825 = vmul.f32 %v5803, 0.00390625
  %v5826 = vmul.f32 %v5806, 0.00390625
  %v5827 = vmul.f32 %v5809, 0.00390625
  %v5828 = vmul.f32 %v5812, 0.00390625
  %v5829 = vadd.f32 %v5813, 1e-05
  %v5830 = vadd.f32 %v5814, 1e-05
  %v5831 = vadd.f32 %v5815, 1e-05
  %v5832 = vadd.f32 %v5816, 1e-05
  %v5833 = vadd.f32 %v5817, 1e-05
  %v5834 = vadd.f32 %v5818, 1e-05
  %v5835 = vadd.f32 %v5819, 1e-05
  %v5836 = vadd.f32 %v5820, 1e-05
  %v5837 = vadd.f32 %v5821, 1e-05
  %v5838 = vadd.f32 %v5822, 1e-05
  %v5839 = vadd.f32 %v5823, 1e-05
  %v5840 = vadd.f32 %v5824, 1e-05
  %v5841 = vadd.f32 %v5825, 1e-05
  %v5842 = vadd.f32 %v5826, 1e-05
  %v5843 = vadd.f32 %v5827, 1e-05
  %v5844 = vadd.f32 %v5828, 1e-05
  %v5845 = vrsqrt.pop %v5829
  %v5846 = vmul.f32 %v5845, %v5829
  %v5847 = vmul.f32 %v5846, %v5845
  %v5848 = vmul.f32 0.5, %v5847
  %v5849 = vsub.f32 1.5, %v5848
  %v5850 = vmul.f32 %v5845, %v5849
  %vm5851 = vweird.f32 %v5829
  %vm5852 = vweird.f32 %v5845
  %vm5853 = vmor %vm5851, %vm5852
  %v5854 = vsel %vm5853, %v5845, %v5850
  %v5855 = vrsqrt.pop %v5830
  %v5856 = vmul.f32 %v5855, %v5830
  %v5857 = vmul.f32 %v5856, %v5855
  %v5858 = vmul.f32 0.5, %v5857
  %v5859 = vsub.f32 1.5, %v5858
  %v5860 = vmul.f32 %v5855, %v5859
  %vm5861 = vweird.f32 %v5830
  %vm5862 = vweird.f32 %v5855
  %vm5863 = vmor %vm5861, %vm5862
  %v5864 = vsel %vm5863, %v5855, %v5860
  %v5865 = vrsqrt.pop %v5831
  %v5866 = vmul.f32 %v5865, %v5831
  %v5867 = vmul.f32 %v5866, %v5865
  %v5868 = vmul.f32 0.5, %v5867
  %v5869 = vsub.f32 1.5, %v5868
  %v5870 = vmul.f32 %v5865, %v5869
  %vm5871 = vweird.f32 %v5831
  %vm5872 = vweird.f32 %v5865
  %vm5873 = vmor %vm5871, %vm5872
  %v5874 = vsel %vm5873, %v5865, %v5870
  %v5875 = vrsqrt.pop %v5832
  %v5876 = vmul.f32 %v5875, %v5832
  %v5877 = vmul.f32 %v5876, %v5875
  %v5878 = vmul.f32 0.5, %v5877
  %v5879 = vsub.f32 1.5, %v5878
  %v5880 = vmul.f32 %v5875, %v5879
  %vm5881 = vweird.f32 %v5832
  %vm5882 = vweird.f32 %v5875
  %vm5883 = vmor %vm5881, %vm5882
  %v5884 = vsel %vm5883, %v5875, %v5880
  %v5885 = vrsqrt.pop %v5833
  %v5886 = vmul.f32 %v5885, %v5833
  %v5887 = vmul.f32 %v5886, %v5885
  %v5888 = vmul.f32 0.5, %v5887
  %v5889 = vsub.f32 1.5, %v5888
  %v5890 = vmul.f32 %v5885, %v5889
  %vm5891 = vweird.f32 %v5833
  %vm5892 = vweird.f32 %v5885
  %vm5893 = vmor %vm5891, %vm5892
  %v5894 = vsel %vm5893, %v5885, %v5890
  %v5895 = vrsqrt.pop %v5834
  %v5896 = vmul.f32 %v5895, %v5834
  %v5897 = vmul.f32 %v5896, %v5895
  %v5898 = vmul.f32 0.5, %v5897
  %v5899 = vsub.f32 1.5, %v5898
  %v5900 = vmul.f32 %v5895, %v5899
  %vm5901 = vweird.f32 %v5834
  %vm5902 = vweird.f32 %v5895
  %vm5903 = vmor %vm5901, %vm5902
  %v5904 = vsel %vm5903, %v5895, %v5900
  %v5905 = vrsqrt.pop %v5835
  %v5906 = vmul.f32 %v5905, %v5835
  %v5907 = vmul.f32 %v5906, %v5905
  %v5908 = vmul.f32 0.5, %v5907
  %v5909 = vsub.f32 1.5, %v5908
  %v5910 = vmul.f32 %v5905, %v5909
  %vm5911 = vweird.f32 %v5835
  %vm5912 = vweird.f32 %v5905
  %vm5913 = vmor %vm5911, %vm5912
  %v5914 = vsel %vm5913, %v5905, %v5910
  %v5915 = vrsqrt.pop %v5836
  %v5916 = vmul.f32 %v5915, %v5836
  %v5917 = vmul.f32 %v5916, %v5915
  %v5918 = vmul.f32 0.5, %v5917
  %v5919 = vsub.f32 1.5, %v5918
  %v5920 = vmul.f32 %v5915, %v5919
  %vm5921 = vweird.f32 %v5836
  %vm5922 = vweird.f32 %v5915
  %vm5923 = vmor %vm5921, %vm5922
  %v5924 = vsel %vm5923, %v5915, %v5920
  %v5925 = vrsqrt.pop %v5837
  %v5926 = vmul.f32 %v5925, %v5837
  %v5927 = vmul.f32 %v5926, %v5925
  %v5928 = vmul.f32 0.5, %v5927
  %v5929 = vsub.f32 1.5, %v5928
  %v5930 = vmul.f32 %v5925, %v5929
  %vm5931 = vweird.f32 %v5837
  %vm5932 = vweird.f32 %v5925
  %vm5933 = vmor %vm5931, %vm5932
  %v5934 = vsel %vm5933, %v5925, %v5930
  %v5935 = vrsqrt.pop %v5838
  %v5936 = vmul.f32 %v5935, %v5838
  %v5937 = vmul.f32 %v5936, %v5935
  %v5938 = vmul.f32 0.5, %v5937
  %v5939 = vsub.f32 1.5, %v5938
  %v5940 = vmul.f32 %v5935, %v5939
  %vm5941 = vweird.f32 %v5838
  %vm5942 = vweird.f32 %v5935
  %vm5943 = vmor %vm5941, %vm5942
  %v5944 = vsel %vm5943, %v5935, %v5940
  %v5945 = vrsqrt.pop %v5839
  %v5946 = vmul.f32 %v5945, %v5839
  %v5947 = vmul.f32 %v5946, %v5945
  %v5948 = vmul.f32 0.5, %v5947
  %v5949 = vsub.f32 1.5, %v5948
  %v5950 = vmul.f32 %v5945, %v5949
  %vm5951 = vweird.f32 %v5839
  %vm5952 = vweird.f32 %v5945
  %vm5953 = vmor %vm5951, %vm5952
  %v5954 = vsel %vm5953, %v5945, %v5950
  %v5955 = vrsqrt.pop %v5840
  %v5956 = vmul.f32 %v5955, %v5840
  %v5957 = vmul.f32 %v5956, %v5955
  %v5958 = vmul.f32 0.5, %v5957
  %v5959 = vsub.f32 1.5, %v5958
  %v5960 = vmul.f32 %v5955, %v5959
  %vm5961 = vweird.f32 %v5840
  %vm5962 = vweird.f32 %v5955
  %vm5963 = vmor %vm5961, %vm5962
  %v5964 = vsel %vm5963, %v5955, %v5960
  %v5965 = vrsqrt.pop %v5841
  %v5966 = vmul.f32 %v5965, %v5841
  %v5967 = vmul.f32 %v5966, %v5965
  %v5968 = vmul.f32 0.5, %v5967
  %v5969 = vsub.f32 1.5, %v5968
  %v5970 = vmul.f32 %v5965, %v5969
  %vm5971 = vweird.f32 %v5841
  %vm5972 = vweird.f32 %v5965
  %vm5973 = vmor %vm5971, %vm5972
  %v5974 = vsel %vm5973, %v5965, %v5970
  %v5975 = vrsqrt.pop %v5842
  %v5976 = vmul.f32 %v5975, %v5842
  %v5977 = vmul.f32 %v5976, %v5975
  %v5978 = vmul.f32 0.5, %v5977
  %v5979 = vsub.f32 1.5, %v5978
  %v5980 = vmul.f32 %v5975, %v5979
  %vm5981 = vweird.f32 %v5842
  %vm5982 = vweird.f32 %v5975
  %vm5983 = vmor %vm5981, %vm5982
  %v5984 = vsel %vm5983, %v5975, %v5980
  %v5985 = vrsqrt.pop %v5843
  %v5986 = vmul.f32 %v5985, %v5843
  %v5987 = vmul.f32 %v5986, %v5985
  %v5988 = vmul.f32 0.5, %v5987
  %v5989 = vsub.f32 1.5, %v5988
  %v5990 = vmul.f32 %v5985, %v5989
  %vm5991 = vweird.f32 %v5843
  %vm5992 = vweird.f32 %v5985
  %vm5993 = vmor %vm5991, %vm5992
  %v5994 = vsel %vm5993, %v5985, %v5990
  %v5995 = vrsqrt.pop %v5844
  %v5996 = vmul.f32 %v5995, %v5844
  %v5997 = vmul.f32 %v5996, %v5995
  %v5998 = vmul.f32 0.5, %v5997
  %v5999 = vsub.f32 1.5, %v5998
  %v6000 = vmul.f32 %v5995, %v5999
  %vm6001 = vweird.f32 %v5844
  %vm6002 = vweird.f32 %v5995
  %vm6003 = vmor %vm6001, %vm6002
  %v6004 = vsel %vm6003, %v5995, %v6000
  %v6005 = vmul.f32 %v5701, %v5854
  %v6006 = vmul.f32 %v5702, %v5854
  %v6007 = vmul.f32 %v5703, %v5864
  %v6008 = vmul.f32 %v5704, %v5864
  %v6009 = vmul.f32 %v5705, %v5874
  %v6010 = vmul.f32 %v5706, %v5874
  %v6011 = vmul.f32 %v5707, %v5884
  %v6012 = vmul.f32 %v5708, %v5884
  %v6013 = vmul.f32 %v5709, %v5894
  %v6014 = vmul.f32 %v5710, %v5894
  %v6015 = vmul.f32 %v5711, %v5904
  %v6016 = vmul.f32 %v5712, %v5904
  %v6017 = vmul.f32 %v5713, %v5914
  %v6018 = vmul.f32 %v5714, %v5914
  %v6019 = vmul.f32 %v5715, %v5924
  %v6020 = vmul.f32 %v5716, %v5924
  %v6021 = vmul.f32 %v5717, %v5934
  %v6022 = vmul.f32 %v5718, %v5934
  %v6023 = vmul.f32 %v5719, %v5944
  %v6024 = vmul.f32 %v5720, %v5944
  %v6025 = vmul.f32 %v5721, %v5954
  %v6026 = vmul.f32 %v5722, %v5954
  %v6027 = vmul.f32 %v5723, %v5964
  %v6028 = vmul.f32 %v5724, %v5964
  %v6029 = vmul.f32 %v5725, %v5974
  %v6030 = vmul.f32 %v5726, %v5974
  %v6031 = vmul.f32 %v5727, %v5984
  %v6032 = vmul.f32 %v5728, %v5984
  %v6033 = vmul.f32 %v5729, %v5994
  %v6034 = vmul.f32 %v5730, %v5994
  %v6035 = vmul.f32 %v5731, %v6004
  %v6036 = vmul.f32 %v5732, %v6004
  %6037 = vset.pattern.permute.xlu0 1
  %6038 = vperm.xlu0 %6037, %v90
  %v6039 = vpop.permute.xlu0 %6038
  %6041 = vset.pattern.permute.xlu0 1
  %6042 = vperm.xlu0 %6041, %v91
  %v6043 = vpop.permute.xlu0 %6042
  %6045 = vset.pattern.permute.xlu0 1
  %6046 = vperm.xlu0 %6045, %v92
  %v6047 = vpop.permute.xlu0 %6046
  %6049 = vset.pattern.permute.xlu0 1
  %6050 = vperm.xlu0 %6049, %v93
  %v6051 = vpop.permute.xlu0 %6050
  %6053 = vset.pattern.permute.xlu0 1
  %6054 = vperm.xlu0 %6053, %v94
  %v6055 = vpop.permute.xlu0 %6054
  %6057 = vset.pattern.permute.xlu0 1
  %6058 = vperm.xlu0 %6057, %v95
  %v6059 = vpop.permute.xlu0 %6058
  %6061 = vset.pattern.permute.xlu0 1
  %6062 = vperm.xlu0 %6061, %v96
  %v6063 = vpop.permute.xlu0 %6062
  %6065 = vset.pattern.permute.xlu0 1
  %6066 = vperm.xlu0 %6065, %v97
  %v6067 = vpop.permute.xlu0 %6066
  %6069 = vset.pattern.permute.xlu0 1
  %6070 = vperm.xlu0 %6069, %v98
  %v6071 = vpop.permute.xlu0 %6070
  %6073 = vset.pattern.permute.xlu0 1
  %6074 = vperm.xlu0 %6073, %v99
  %v6075 = vpop.permute.xlu0 %6074
  %6077 = vset.pattern.permute.xlu0 1
  %6078 = vperm.xlu0 %6077, %v100
  %v6079 = vpop.permute.xlu0 %6078
  %6081 = vset.pattern.permute.xlu0 1
  %6082 = vperm.xlu0 %6081, %v101
  %v6083 = vpop.permute.xlu0 %6082
  %6085 = vset.pattern.permute.xlu0 1
  %6086 = vperm.xlu0 %6085, %v102
  %v6087 = vpop.permute.xlu0 %6086
  %6089 = vset.pattern.permute.xlu0 1
  %6090 = vperm.xlu0 %6089, %v103
  %v6091 = vpop.permute.xlu0 %6090
  %6093 = vset.pattern.permute.xlu0 1
  %6094 = vperm.xlu0 %6093, %v104
  %v6095 = vpop.permute.xlu0 %6094
  %6097 = vset.pattern.permute.xlu0 1
  %6098 = vperm.xlu0 %6097, %v105
  %v6099 = vpop.permute.xlu0 %6098
  %v6101 = vmul.f32 %v6005, %v6039
  %v6102 = vmul.f32 %v6006, %v6039
  %v6103 = vmul.f32 %v6007, %v6043
  %v6104 = vmul.f32 %v6008, %v6043
  %v6105 = vmul.f32 %v6009, %v6047
  %v6106 = vmul.f32 %v6010, %v6047
  %v6107 = vmul.f32 %v6011, %v6051
  %v6108 = vmul.f32 %v6012, %v6051
  %v6109 = vmul.f32 %v6013, %v6055
  %v6110 = vmul.f32 %v6014, %v6055
  %v6111 = vmul.f32 %v6015, %v6059
  %v6112 = vmul.f32 %v6016, %v6059
  %v6113 = vmul.f32 %v6017, %v6063
  %v6114 = vmul.f32 %v6018, %v6063
  %v6115 = vmul.f32 %v6019, %v6067
  %v6116 = vmul.f32 %v6020, %v6067
  %v6117 = vmul.f32 %v6021, %v6071
  %v6118 = vmul.f32 %v6022, %v6071
  %v6119 = vmul.f32 %v6023, %v6075
  %v6120 = vmul.f32 %v6024, %v6075
  %v6121 = vmul.f32 %v6025, %v6079
  %v6122 = vmul.f32 %v6026, %v6079
  %v6123 = vmul.f32 %v6027, %v6083
  %v6124 = vmul.f32 %v6028, %v6083
  %v6125 = vmul.f32 %v6029, %v6087
  %v6126 = vmul.f32 %v6030, %v6087
  %v6127 = vmul.f32 %v6031, %v6091
  %v6128 = vmul.f32 %v6032, %v6091
  %v6129 = vmul.f32 %v6033, %v6095
  %v6130 = vmul.f32 %v6034, %v6095
  %v6131 = vmul.f32 %v6035, %v6099
  %v6132 = vmul.f32 %v6036, %v6099
  %6133 = vset.pattern.permute.xlu0 2
  %6134 = vperm.xlu0 %6133, %v90
  %v6135 = vpop.permute.xlu0 %6134
  %6137 = vset.pattern.permute.xlu0 2
  %6138 = vperm.xlu0 %6137, %v91
  %v6139 = vpop.permute.xlu0 %6138
  %6141 = vset.pattern.permute.xlu0 2
  %6142 = vperm.xlu0 %6141, %v92
  %v6143 = vpop.permute.xlu0 %6142
  %6145 = vset.pattern.permute.xlu0 2
  %6146 = vperm.xlu0 %6145, %v93
  %v6147 = vpop.permute.xlu0 %6146
  %6149 = vset.pattern.permute.xlu0 2
  %6150 = vperm.xlu0 %6149, %v94
  %v6151 = vpop.permute.xlu0 %6150
  %6153 = vset.pattern.permute.xlu0 2
  %6154 = vperm.xlu0 %6153, %v95
  %v6155 = vpop.permute.xlu0 %6154
  %6157 = vset.pattern.permute.xlu0 2
  %6158 = vperm.xlu0 %6157, %v96
  %v6159 = vpop.permute.xlu0 %6158
  %6161 = vset.pattern.permute.xlu0 2
  %6162 = vperm.xlu0 %6161, %v97
  %v6163 = vpop.permute.xlu0 %6162
  %6165 = vset.pattern.permute.xlu0 2
  %6166 = vperm.xlu0 %6165, %v98
  %v6167 = vpop.permute.xlu0 %6166
  %6169 = vset.pattern.permute.xlu0 2
  %6170 = vperm.xlu0 %6169, %v99
  %v6171 = vpop.permute.xlu0 %6170
  %6173 = vset.pattern.permute.xlu0 2
  %6174 = vperm.xlu0 %6173, %v100
  %v6175 = vpop.permute.xlu0 %6174
  %6177 = vset.pattern.permute.xlu0 2
  %6178 = vperm.xlu0 %6177, %v101
  %v6179 = vpop.permute.xlu0 %6178
  %6181 = vset.pattern.permute.xlu0 2
  %6182 = vperm.xlu0 %6181, %v102
  %v6183 = vpop.permute.xlu0 %6182
  %6185 = vset.pattern.permute.xlu0 2
  %6186 = vperm.xlu0 %6185, %v103
  %v6187 = vpop.permute.xlu0 %6186
  %6189 = vset.pattern.permute.xlu0 2
  %6190 = vperm.xlu0 %6189, %v104
  %v6191 = vpop.permute.xlu0 %6190
  %6193 = vset.pattern.permute.xlu0 2
  %6194 = vperm.xlu0 %6193, %v105
  %v6195 = vpop.permute.xlu0 %6194
  %v6197 = vadd.f32 %v6101, %v6135
  %v6198 = vadd.f32 %v6102, %v6135
  %v6199 = vadd.f32 %v6103, %v6139
  %v6200 = vadd.f32 %v6104, %v6139
  %v6201 = vadd.f32 %v6105, %v6143
  %v6202 = vadd.f32 %v6106, %v6143
  %v6203 = vadd.f32 %v6107, %v6147
  %v6204 = vadd.f32 %v6108, %v6147
  %v6205 = vadd.f32 %v6109, %v6151
  %v6206 = vadd.f32 %v6110, %v6151
  %v6207 = vadd.f32 %v6111, %v6155
  %v6208 = vadd.f32 %v6112, %v6155
  %v6209 = vadd.f32 %v6113, %v6159
  %v6210 = vadd.f32 %v6114, %v6159
  %v6211 = vadd.f32 %v6115, %v6163
  %v6212 = vadd.f32 %v6116, %v6163
  %v6213 = vadd.f32 %v6117, %v6167
  %v6214 = vadd.f32 %v6118, %v6167
  %v6215 = vadd.f32 %v6119, %v6171
  %v6216 = vadd.f32 %v6120, %v6171
  %v6217 = vadd.f32 %v6121, %v6175
  %v6218 = vadd.f32 %v6122, %v6175
  %v6219 = vadd.f32 %v6123, %v6179
  %v6220 = vadd.f32 %v6124, %v6179
  %v6221 = vadd.f32 %v6125, %v6183
  %v6222 = vadd.f32 %v6126, %v6183
  %v6223 = vadd.f32 %v6127, %v6187
  %v6224 = vadd.f32 %v6128, %v6187
  %v6225 = vadd.f32 %v6129, %v6191
  %v6226 = vadd.f32 %v6130, %v6191
  %v6227 = vadd.f32 %v6131, %v6195
  %v6228 = vadd.f32 %v6132, %v6195
  %v6229 = vadd.f32 %v6197, %v6198
  %6230 = vadd.xlane.f32.xlu0 %v6229
  %v6231 = vpop.xlane.xlu0 %6230
  %v6232 = vadd.f32 %v6199, %v6200
  %6233 = vadd.xlane.f32.xlu0 %v6232
  %v6234 = vpop.xlane.xlu0 %6233
  %v6235 = vadd.f32 %v6201, %v6202
  %6236 = vadd.xlane.f32.xlu0 %v6235
  %v6237 = vpop.xlane.xlu0 %6236
  %v6238 = vadd.f32 %v6203, %v6204
  %6239 = vadd.xlane.f32.xlu0 %v6238
  %v6240 = vpop.xlane.xlu0 %6239
  %v6241 = vadd.f32 %v6205, %v6206
  %6242 = vadd.xlane.f32.xlu0 %v6241
  %v6243 = vpop.xlane.xlu0 %6242
  %v6244 = vadd.f32 %v6207, %v6208
  %6245 = vadd.xlane.f32.xlu0 %v6244
  %v6246 = vpop.xlane.xlu0 %6245
  %v6247 = vadd.f32 %v6209, %v6210
  %6248 = vadd.xlane.f32.xlu0 %v6247
  %v6249 = vpop.xlane.xlu0 %6248
  %v6250 = vadd.f32 %v6211, %v6212
  %6251 = vadd.xlane.f32.xlu0 %v6250
  %v6252 = vpop.xlane.xlu0 %6251
  %v6253 = vadd.f32 %v6213, %v6214
  %6254 = vadd.xlane.f32.xlu0 %v6253
  %v6255 = vpop.xlane.xlu0 %6254
  %v6256 = vadd.f32 %v6215, %v6216
  %6257 = vadd.xlane.f32.xlu0 %v6256
  %v6258 = vpop.xlane.xlu0 %6257
  %v6259 = vadd.f32 %v6217, %v6218
  %6260 = vadd.xlane.f32.xlu0 %v6259
  %v6261 = vpop.xlane.xlu0 %6260
  %v6262 = vadd.f32 %v6219, %v6220
  %6263 = vadd.xlane.f32.xlu0 %v6262
  %v6264 = vpop.xlane.xlu0 %6263
  %v6265 = vadd.f32 %v6221, %v6222
  %6266 = vadd.xlane.f32.xlu0 %v6265
  %v6267 = vpop.xlane.xlu0 %6266
  %v6268 = vadd.f32 %v6223, %v6224
  %6269 = vadd.xlane.f32.xlu0 %v6268
  %v6270 = vpop.xlane.xlu0 %6269
  %v6271 = vadd.f32 %v6225, %v6226
  %6272 = vadd.xlane.f32.xlu0 %v6271
  %v6273 = vpop.xlane.xlu0 %6272
  %v6274 = vadd.f32 %v6227, %v6228
  %6275 = vadd.xlane.f32.xlu0 %v6274
  %v6276 = vpop.xlane.xlu0 %6275
  %v6277 = vmul.f32 %v6231, 0.00390625
  %v6278 = vmul.f32 %v6234, 0.00390625
  %v6279 = vmul.f32 %v6237, 0.00390625
  %v6280 = vmul.f32 %v6240, 0.00390625
  %v6281 = vmul.f32 %v6243, 0.00390625
  %v6282 = vmul.f32 %v6246, 0.00390625
  %v6283 = vmul.f32 %v6249, 0.00390625
  %v6284 = vmul.f32 %v6252, 0.00390625
  %v6285 = vmul.f32 %v6255, 0.00390625
  %v6286 = vmul.f32 %v6258, 0.00390625
  %v6287 = vmul.f32 %v6261, 0.00390625
  %v6288 = vmul.f32 %v6264, 0.00390625
  %v6289 = vmul.f32 %v6267, 0.00390625
  %v6290 = vmul.f32 %v6270, 0.00390625
  %v6291 = vmul.f32 %v6273, 0.00390625
  %v6292 = vmul.f32 %v6276, 0.00390625
  %v6293 = vadd.f32 %v58, %v59
  %6294 = vadd.xlane.f32.xlu0 %v6293
  %v6295 = vpop.xlane.xlu0 %6294
  %v6296 = vadd.f32 %v60, %v61
  %6297 = vadd.xlane.f32.xlu0 %v6296
  %v6298 = vpop.xlane.xlu0 %6297
  %v6299 = vadd.f32 %v62, %v63
  %6300 = vadd.xlane.f32.xlu0 %v6299
  %v6301 = vpop.xlane.xlu0 %6300
  %v6302 = vadd.f32 %v64, %v65
  %6303 = vadd.xlane.f32.xlu0 %v6302
  %v6304 = vpop.xlane.xlu0 %6303
  %v6305 = vadd.f32 %v66, %v67
  %6306 = vadd.xlane.f32.xlu0 %v6305
  %v6307 = vpop.xlane.xlu0 %6306
  %v6308 = vadd.f32 %v68, %v69
  %6309 = vadd.xlane.f32.xlu0 %v6308
  %v6310 = vpop.xlane.xlu0 %6309
  %v6311 = vadd.f32 %v70, %v71
  %6312 = vadd.xlane.f32.xlu0 %v6311
  %v6313 = vpop.xlane.xlu0 %6312
  %v6314 = vadd.f32 %v72, %v73
  %6315 = vadd.xlane.f32.xlu0 %v6314
  %v6316 = vpop.xlane.xlu0 %6315
  %v6317 = vadd.f32 %v74, %v75
  %6318 = vadd.xlane.f32.xlu0 %v6317
  %v6319 = vpop.xlane.xlu0 %6318
  %v6320 = vadd.f32 %v76, %v77
  %6321 = vadd.xlane.f32.xlu0 %v6320
  %v6322 = vpop.xlane.xlu0 %6321
  %v6323 = vadd.f32 %v78, %v79
  %6324 = vadd.xlane.f32.xlu0 %v6323
  %v6325 = vpop.xlane.xlu0 %6324
  %v6326 = vadd.f32 %v80, %v81
  %6327 = vadd.xlane.f32.xlu0 %v6326
  %v6328 = vpop.xlane.xlu0 %6327
  %v6329 = vadd.f32 %v82, %v83
  %6330 = vadd.xlane.f32.xlu0 %v6329
  %v6331 = vpop.xlane.xlu0 %6330
  %v6332 = vadd.f32 %v84, %v85
  %6333 = vadd.xlane.f32.xlu0 %v6332
  %v6334 = vpop.xlane.xlu0 %6333
  %v6335 = vadd.f32 %v86, %v87
  %6336 = vadd.xlane.f32.xlu0 %v6335
  %v6337 = vpop.xlane.xlu0 %6336
  %v6338 = vadd.f32 %v88, %v89
  %6339 = vadd.xlane.f32.xlu0 %v6338
  %v6340 = vpop.xlane.xlu0 %6339
  %v6341 = vmul.f32 %v6295, 0.00390625
  %v6342 = vmul.f32 %v6298, 0.00390625
  %v6343 = vmul.f32 %v6301, 0.00390625
  %v6344 = vmul.f32 %v6304, 0.00390625
  %v6345 = vmul.f32 %v6307, 0.00390625
  %v6346 = vmul.f32 %v6310, 0.00390625
  %v6347 = vmul.f32 %v6313, 0.00390625
  %v6348 = vmul.f32 %v6316, 0.00390625
  %v6349 = vmul.f32 %v6319, 0.00390625
  %v6350 = vmul.f32 %v6322, 0.00390625
  %v6351 = vmul.f32 %v6325, 0.00390625
  %v6352 = vmul.f32 %v6328, 0.00390625
  %v6353 = vmul.f32 %v6331, 0.00390625
  %v6354 = vmul.f32 %v6334, 0.00390625
  %v6355 = vmul.f32 %v6337, 0.00390625
  %v6356 = vmul.f32 %v6340, 0.00390625
  %v6357 = vld [vmem:[%s5] sm:$0xff]
  %v6358 = vld [vmem:[%s5 + $0x8] sm:$0xff]
  %v6359 = vld [vmem:[%s5 + $0x10] sm:$0xff]
  %v6360 = vld [vmem:[%s5 + $0x18] sm:$0xff]
  %v6361 = vld [vmem:[%s5 + $0x20] sm:$0xff]
  %v6362 = vld [vmem:[%s5 + $0x28] sm:$0xff]
  %v6363 = vld [vmem:[%s5 + $0x30] sm:$0xff]
  %v6364 = vld [vmem:[%s5 + $0x38] sm:$0xff]
  %v6365 = vld [vmem:[%s5 + $0x40] sm:$0xff]
  %v6366 = vld [vmem:[%s5 + $0x48] sm:$0xff]
  %v6367 = vld [vmem:[%s5 + $0x50] sm:$0xff]
  %v6368 = vld [vmem:[%s5 + $0x58] sm:$0xff]
  %v6369 = vld [vmem:[%s5 + $0x60] sm:$0xff]
  %v6370 = vld [vmem:[%s5 + $0x68] sm:$0xff]
  %v6371 = vld [vmem:[%s5 + $0x70] sm:$0xff]
  %v6372 = vld [vmem:[%s5 + $0x78] sm:$0xff]
  %v6373 = vmax.f32 %v6277, %v6281
  %v6374 = vmax.f32 %v6278, %v6282
  %v6375 = vmax.f32 %v6279, %v6283
  %v6376 = vmax.f32 %v6280, %v6284
  %v6377 = vmax.f32 %v6373, %v6285
  %v6378 = vmax.f32 %v6374, %v6286
  %v6379 = vmax.f32 %v6375, %v6287
  %v6380 = vmax.f32 %v6376, %v6288
  %v6381 = vmax.f32 %v6377, %v6289
  %v6382 = vmax.f32 %v6378, %v6290
  %v6383 = vmax.f32 %v6379, %v6291
  %v6384 = vmax.f32 %v6380, %v6292
  %v6385 = vmax.f32 %v6381, %v6382
  %v6386 = vmax.f32 %v6383, %v6384
  %v6387 = vmax.f32 %v6385, %v6386
  %v6388 = vrot.slane %v6387, 4
  %v6389 = vmax.f32 %v6387, %v6388
  %v6390 = vrot.slane %v6389, 2
  %v6391 = vmax.f32 %v6389, %v6390
  %v6392 = vrot.slane %v6391, 1
  %v6393 = vmax.f32 %v6391, %v6392
  %v6394 = vsub.f32 %v6277, %v6393
  %v6395 = vsub.f32 %v6278, %v6393
  %v6396 = vsub.f32 %v6279, %v6393
  %v6397 = vsub.f32 %v6280, %v6393
  %v6398 = vsub.f32 %v6281, %v6393
  %v6399 = vsub.f32 %v6282, %v6393
  %v6400 = vsub.f32 %v6283, %v6393
  %v6401 = vsub.f32 %v6284, %v6393
  %v6402 = vsub.f32 %v6285, %v6393
  %v6403 = vsub.f32 %v6286, %v6393
  %v6404 = vsub.f32 %v6287, %v6393
  %v6405 = vsub.f32 %v6288, %v6393
  %v6406 = vsub.f32 %v6289, %v6393
  %v6407 = vsub.f32 %v6290, %v6393
  %v6408 = vsub.f32 %v6291, %v6393
  %v6409 = vsub.f32 %v6292, %v6393
  %v6410 = vmul.f32 %v6394, 1.442695
  %v6411 = vpow.pop %v6410
  %v6412 = vmul.f32 %v6395, 1.442695
  %v6413 = vpow.pop %v6412
  %v6414 = vmul.f32 %v6396, 1.442695
  %v6415 = vpow.pop %v6414
  %v6416 = vmul.f32 %v6397, 1.442695
  %v6417 = vpow.pop %v6416
  %v6418 = vmul.f32 %v6398, 1.442695
  %v6419 = vpow.pop %v6418
  %v6420 = vmul.f32 %v6399, 1.442695
  %v6421 = vpow.pop %v6420
  %v6422 = vmul.f32 %v6400, 1.442695
  %v6423 = vpow.pop %v6422
  %v6424 = vmul.f32 %v6401, 1.442695
  %v6425 = vpow.pop %v6424
  %v6426 = vmul.f32 %v6402, 1.442695
  %v6427 = vpow.pop %v6426
  %v6428 = vmul.f32 %v6403, 1.442695
  %v6429 = vpow.pop %v6428
  %v6430 = vmul.f32 %v6404, 1.442695
  %v6431 = vpow.pop %v6430
  %v6432 = vmul.f32 %v6405, 1.442695
  %v6433 = vpow.pop %v6432
  %v6434 = vmul.f32 %v6406, 1.442695
  %v6435 = vpow.pop %v6434
  %v6436 = vmul.f32 %v6407, 1.442695
  %v6437 = vpow.pop %v6436
  %v6438 = vmul.f32 %v6408, 1.442695
  %v6439 = vpow.pop %v6438
  %v6440 = vmul.f32 %v6409, 1.442695
  %v6441 = vpow.pop %v6440
  %v6442 = vmax.f32 %v6341, %v6345
  %v6443 = vmax.f32 %v6342, %v6346
  %v6444 = vmax.f32 %v6343, %v6347
  %v6445 = vmax.f32 %v6344, %v6348
  %v6446 = vmax.f32 %v6442, %v6349
  %v6447 = vmax.f32 %v6443, %v6350
  %v6448 = vmax.f32 %v6444, %v6351
  %v6449 = vmax.f32 %v6445, %v6352
  %v6450 = vmax.f32 %v6446, %v6353
  %v6451 = vmax.f32 %v6447, %v6354
  %v6452 = vmax.f32 %v6448, %v6355
  %v6453 = vmax.f32 %v6449, %v6356
  %v6454 = vmax.f32 %v6450, %v6451
  %v6455 = vmax.f32 %v6452, %v6453
  %v6456 = vmax.f32 %v6454, %v6455
  %v6457 = vrot.slane %v6456, 4
  %v6458 = vmax.f32 %v6456, %v6457
  %v6459 = vrot.slane %v6458, 2
  %v6460 = vmax.f32 %v6458, %v6459
  %v6461 = vrot.slane %v6460, 1
  %v6462 = vmax.f32 %v6460, %v6461
  %v6463 = vsub.f32 %v6341, %v6462
  %v6464 = vsub.f32 %v6342, %v6462
  %v6465 = vsub.f32 %v6343, %v6462
  %v6466 = vsub.f32 %v6344, %v6462
  %v6467 = vsub.f32 %v6345, %v6462
  %v6468 = vsub.f32 %v6346, %v6462
  %v6469 = vsub.f32 %v6347, %v6462
  %v6470 = vsub.f32 %v6348, %v6462
  %v6471 = vsub.f32 %v6349, %v6462
  %v6472 = vsub.f32 %v6350, %v6462
  %v6473 = vsub.f32 %v6351, %v6462
  %v6474 = vsub.f32 %v6352, %v6462
  %v6475 = vsub.f32 %v6353, %v6462
  %v6476 = vsub.f32 %v6354, %v6462
  %v6477 = vsub.f32 %v6355, %v6462
  %v6478 = vsub.f32 %v6356, %v6462
  %v6479 = vmul.f32 %v6463, 1.442695
  %v6480 = vpow.pop %v6479
  %v6481 = vmul.f32 %v6464, 1.442695
  %v6482 = vpow.pop %v6481
  %v6483 = vmul.f32 %v6465, 1.442695
  %v6484 = vpow.pop %v6483
  %v6485 = vmul.f32 %v6466, 1.442695
  %v6486 = vpow.pop %v6485
  %v6487 = vmul.f32 %v6467, 1.442695
  %v6488 = vpow.pop %v6487
  %v6489 = vmul.f32 %v6468, 1.442695
  %v6490 = vpow.pop %v6489
  %v6491 = vmul.f32 %v6469, 1.442695
  %v6492 = vpow.pop %v6491
  %v6493 = vmul.f32 %v6470, 1.442695
  %v6494 = vpow.pop %v6493
  %v6495 = vmul.f32 %v6471, 1.442695
  %v6496 = vpow.pop %v6495
  %v6497 = vmul.f32 %v6472, 1.442695
  %v6498 = vpow.pop %v6497
  %v6499 = vmul.f32 %v6473, 1.442695
  %v6500 = vpow.pop %v6499
  %v6501 = vmul.f32 %v6474, 1.442695
  %v6502 = vpow.pop %v6501
  %v6503 = vmul.f32 %v6475, 1.442695
  %v6504 = vpow.pop %v6503
  %v6505 = vmul.f32 %v6476, 1.442695
  %v6506 = vpow.pop %v6505
  %v6507 = vmul.f32 %v6477, 1.442695
  %v6508 = vpow.pop %v6507
  %v6509 = vmul.f32 %v6478, 1.442695
  %v6510 = vpow.pop %v6509
  %v6511 = vand.u32 %v6441, 4294901760
  %6512 = vmatpush.msra.mxu0 %v6511
  %v6513 = vand.u32 %v6439, 4294901760
  %6514 = vmatpush.msra.mxu0 %v6513
  %v6515 = vand.u32 %v6437, 4294901760
  %6516 = vmatpush.msra.mxu0 %v6515
  %v6517 = vand.u32 %v6435, 4294901760
  %6518 = vmatpush.msra.mxu0 %v6517
  %v6519 = vand.u32 %v6433, 4294901760
  %6520 = vmatpush.msra.mxu0 %v6519
  %v6521 = vand.u32 %v6431, 4294901760
  %6522 = vmatpush.msra.mxu0 %v6521
  %v6523 = vand.u32 %v6429, 4294901760
  %6524 = vmatpush.msra.mxu0 %v6523
  %v6525 = vand.u32 %v6427, 4294901760
  %6526 = vmatpush.msra.mxu0 %v6525
  %v6527 = vand.u32 %v6425, 4294901760
  %6528 = vmatpush.msra.mxu0 %v6527
  %v6529 = vand.u32 %v6423, 4294901760
  %6530 = vmatpush.msra.mxu0 %v6529
  %v6531 = vand.u32 %v6421, 4294901760
  %6532 = vmatpush.msra.mxu0 %v6531
  %v6533 = vand.u32 %v6419, 4294901760
  %6534 = vmatpush.msra.mxu0 %v6533
  %v6535 = vand.u32 %v6417, 4294901760
  %6536 = vmatpush.msra.mxu0 %v6535
  %v6537 = vand.u32 %v6415, 4294901760
  %6538 = vmatpush.msra.mxu0 %v6537
  %v6539 = vand.u32 %v6413, 4294901760
  %6540 = vmatpush.msra.mxu0 %v6539
  %v6541 = vand.u32 %v6411, 4294901760
  %6542 = vmatpush.msra.mxu0 %v6541
  %v6543 = vand.u32 %v6357, 4294901760
  %v6544 = vsub.f32 %v6357, %v6543
  %v6545 = vand.u32 %v6544, 4294901760
  %v6546 = vsub.f32 %v6544, %v6545
  %v6547 = vand.u32 %v6546, 4294901760
  %6548 = vmatmul.f32.gmra.mxu0 %v6547
  %v6549 = vpop.f32.mrf.mxu0
  %v6550 = vadd.f32 0.0, %v6549
  %v6551 = vand.u32 %v6358, 4294901760
  %v6552 = vsub.f32 %v6358, %v6551
  %v6553 = vand.u32 %v6552, 4294901760
  %v6554 = vsub.f32 %v6552, %v6553
  %v6555 = vand.u32 %v6554, 4294901760
  %6556 = vmatmul.f32.gmra.mxu0 %v6555
  %v6557 = vpop.f32.mrf.mxu0
  %v6558 = vadd.f32 0.0, %v6557
  %v6559 = vand.u32 %v6359, 4294901760
  %v6560 = vsub.f32 %v6359, %v6559
  %v6561 = vand.u32 %v6560, 4294901760
  %v6562 = vsub.f32 %v6560, %v6561
  %v6563 = vand.u32 %v6562, 4294901760
  %6564 = vmatmul.f32.gmra.mxu0 %v6563
  %v6565 = vpop.f32.mrf.mxu0
  %v6566 = vadd.f32 0.0, %v6565
  %v6567 = vand.u32 %v6360, 4294901760
  %v6568 = vsub.f32 %v6360, %v6567
  %v6569 = vand.u32 %v6568, 4294901760
  %v6570 = vsub.f32 %v6568, %v6569
  %v6571 = vand.u32 %v6570, 4294901760
  %6572 = vmatmul.f32.gmra.mxu0 %v6571
  %v6573 = vpop.f32.mrf.mxu0
  %v6574 = vadd.f32 0.0, %v6573
  %v6575 = vand.u32 %v6361, 4294901760
  %v6576 = vsub.f32 %v6361, %v6575
  %v6577 = vand.u32 %v6576, 4294901760
  %v6578 = vsub.f32 %v6576, %v6577
  %v6579 = vand.u32 %v6578, 4294901760
  %6580 = vmatmul.f32.gmra.mxu0 %v6579
  %v6581 = vpop.f32.mrf.mxu0
  %v6582 = vadd.f32 0.0, %v6581
  %v6583 = vand.u32 %v6362, 4294901760
  %v6584 = vsub.f32 %v6362, %v6583
  %v6585 = vand.u32 %v6584, 4294901760
  %v6586 = vsub.f32 %v6584, %v6585
  %v6587 = vand.u32 %v6586, 4294901760
  %6588 = vmatmul.f32.gmra.mxu0 %v6587
  %v6589 = vpop.f32.mrf.mxu0
  %v6590 = vadd.f32 0.0, %v6589
  %v6591 = vand.u32 %v6363, 4294901760
  %v6592 = vsub.f32 %v6363, %v6591
  %v6593 = vand.u32 %v6592, 4294901760
  %v6594 = vsub.f32 %v6592, %v6593
  %v6595 = vand.u32 %v6594, 4294901760
  %6596 = vmatmul.f32.gmra.mxu0 %v6595
  %v6597 = vpop.f32.mrf.mxu0
  %v6598 = vadd.f32 0.0, %v6597
  %v6599 = vand.u32 %v6364, 4294901760
  %v6600 = vsub.f32 %v6364, %v6599
  %v6601 = vand.u32 %v6600, 4294901760
  %v6602 = vsub.f32 %v6600, %v6601
  %v6603 = vand.u32 %v6602, 4294901760
  %6604 = vmatmul.f32.gmra.mxu0 %v6603
  %v6605 = vpop.f32.mrf.mxu0
  %v6606 = vadd.f32 0.0, %v6605
  %v6607 = vand.u32 %v6365, 4294901760
  %v6608 = vsub.f32 %v6365, %v6607
  %v6609 = vand.u32 %v6608, 4294901760
  %v6610 = vsub.f32 %v6608, %v6609
  %v6611 = vand.u32 %v6610, 4294901760
  %6612 = vmatmul.f32.gmra.mxu0 %v6611
  %v6613 = vpop.f32.mrf.mxu0
  %v6614 = vadd.f32 0.0, %v6613
  %v6615 = vand.u32 %v6366, 4294901760
  %v6616 = vsub.f32 %v6366, %v6615
  %v6617 = vand.u32 %v6616, 4294901760
  %v6618 = vsub.f32 %v6616, %v6617
  %v6619 = vand.u32 %v6618, 4294901760
  %6620 = vmatmul.f32.gmra.mxu0 %v6619
  %v6621 = vpop.f32.mrf.mxu0
  %v6622 = vadd.f32 0.0, %v6621
  %v6623 = vand.u32 %v6367, 4294901760
  %v6624 = vsub.f32 %v6367, %v6623
  %v6625 = vand.u32 %v6624, 4294901760
  %v6626 = vsub.f32 %v6624, %v6625
  %v6627 = vand.u32 %v6626, 4294901760
  %6628 = vmatmul.f32.gmra.mxu0 %v6627
  %v6629 = vpop.f32.mrf.mxu0
  %v6630 = vadd.f32 0.0, %v6629
  %v6631 = vand.u32 %v6368, 4294901760
  %v6632 = vsub.f32 %v6368, %v6631
  %v6633 = vand.u32 %v6632, 4294901760
  %v6634 = vsub.f32 %v6632, %v6633
  %v6635 = vand.u32 %v6634, 4294901760
  %6636 = vmatmul.f32.gmra.mxu0 %v6635
  %v6637 = vpop.f32.mrf.mxu0
  %v6638 = vadd.f32 0.0, %v6637
  %v6639 = vand.u32 %v6369, 4294901760
  %v6640 = vsub.f32 %v6369, %v6639
  %v6641 = vand.u32 %v6640, 4294901760
  %v6642 = vsub.f32 %v6640, %v6641
  %v6643 = vand.u32 %v6642, 4294901760
  %6644 = vmatmul.f32.gmra.mxu0 %v6643
  %v6645 = vpop.f32.mrf.mxu0
  %v6646 = vadd.f32 0.0, %v6645
  %v6647 = vand.u32 %v6370, 4294901760
  %v6648 = vsub.f32 %v6370, %v6647
  %v6649 = vand.u32 %v6648, 4294901760
  %v6650 = vsub.f32 %v6648, %v6649
  %v6651 = vand.u32 %v6650, 4294901760
  %6652 = vmatmul.f32.gmra.mxu0 %v6651
  %v6653 = vpop.f32.mrf.mxu0
  %v6654 = vadd.f32 0.0, %v6653
  %v6655 = vand.u32 %v6371, 4294901760
  %v6656 = vsub.f32 %v6371, %v6655
  %v6657 = vand.u32 %v6656, 4294901760
  %v6658 = vsub.f32 %v6656, %v6657
  %v6659 = vand.u32 %v6658, 4294901760
  %6660 = vmatmul.f32.gmra.mxu0 %v6659
  %v6661 = vpop.f32.mrf.mxu0
  %v6662 = vadd.f32 0.0, %v6661
  %v6663 = vand.u32 %v6372, 4294901760
  %v6664 = vsub.f32 %v6372, %v6663
  %v6665 = vand.u32 %v6664, 4294901760
  %v6666 = vsub.f32 %v6664, %v6665
  %v6667 = vand.u32 %v6666, 4294901760
  %6668 = vmatmul.f32.gmra.mxu0 %v6667
  %v6669 = vpop.f32.mrf.mxu0
  %v6670 = vadd.f32 0.0, %v6669
  %6671 = vdwg.mxu0
  %v6672 = vand.u32 %v6441, 4294901760
  %v6673 = vsub.f32 %v6441, %v6672
  %v6674 = vand.u32 %v6673, 4294901760
  %v6675 = vsub.f32 %v6673, %v6674
  %v6676 = vand.u32 %v6675, 4294901760
  %6677 = vmatpush.msra.mxu0 %v6676
  %v6678 = vand.u32 %v6439, 4294901760
  %v6679 = vsub.f32 %v6439, %v6678
  %v6680 = vand.u32 %v6679, 4294901760
  %v6681 = vsub.f32 %v6679, %v6680
  %v6682 = vand.u32 %v6681, 4294901760
  %6683 = vmatpush.msra.mxu0 %v6682
  %v6684 = vand.u32 %v6437, 4294901760
  %v6685 = vsub.f32 %v6437, %v6684
  %v6686 = vand.u32 %v6685, 4294901760
  %v6687 = vsub.f32 %v6685, %v6686
  %v6688 = vand.u32 %v6687, 4294901760
  %6689 = vmatpush.msra.mxu0 %v6688
  %v6690 = vand.u32 %v6435, 4294901760
  %v6691 = vsub.f32 %v6435, %v6690
  %v6692 = vand.u32 %v6691, 4294901760
  %v6693 = vsub.f32 %v6691, %v6692
  %v6694 = vand.u32 %v6693, 4294901760
  %6695 = vmatpush.msra.mxu0 %v6694
  %v6696 = vand.u32 %v6433, 4294901760
  %v6697 = vsub.f32 %v6433, %v6696
  %v6698 = vand.u32 %v6697, 4294901760
  %v6699 = vsub.f32 %v6697, %v6698
  %v6700 = vand.u32 %v6699, 4294901760
  %6701 = vmatpush.msra.mxu0 %v6700
  %v6702 = vand.u32 %v6431, 4294901760
  %v6703 = vsub.f32 %v6431, %v6702
  %v6704 = vand.u32 %v6703, 4294901760
  %v6705 = vsub.f32 %v6703, %v6704
  %v6706 = vand.u32 %v6705, 4294901760
  %6707 = vmatpush.msra.mxu0 %v6706
  %v6708 = vand.u32 %v6429, 4294901760
  %v6709 = vsub.f32 %v6429, %v6708
  %v6710 = vand.u32 %v6709, 4294901760
  %v6711 = vsub.f32 %v6709, %v6710
  %v6712 = vand.u32 %v6711, 4294901760
  %6713 = vmatpush.msra.mxu0 %v6712
  %v6714 = vand.u32 %v6427, 4294901760
  %v6715 = vsub.f32 %v6427, %v6714
  %v6716 = vand.u32 %v6715, 4294901760
  %v6717 = vsub.f32 %v6715, %v6716
  %v6718 = vand.u32 %v6717, 4294901760
  %6719 = vmatpush.msra.mxu0 %v6718
  %v6720 = vand.u32 %v6425, 4294901760
  %v6721 = vsub.f32 %v6425, %v6720
  %v6722 = vand.u32 %v6721, 4294901760
  %v6723 = vsub.f32 %v6721, %v6722
  %v6724 = vand.u32 %v6723, 4294901760
  %6725 = vmatpush.msra.mxu0 %v6724
  %v6726 = vand.u32 %v6423, 4294901760
  %v6727 = vsub.f32 %v6423, %v6726
  %v6728 = vand.u32 %v6727, 4294901760
  %v6729 = vsub.f32 %v6727, %v6728
  %v6730 = vand.u32 %v6729, 4294901760
  %6731 = vmatpush.msra.mxu0 %v6730
  %v6732 = vand.u32 %v6421, 4294901760
  %v6733 = vsub.f32 %v6421, %v6732
  %v6734 = vand.u32 %v6733, 4294901760
  %v6735 = vsub.f32 %v6733, %v6734
  %v6736 = vand.u32 %v6735, 4294901760
  %6737 = vmatpush.msra.mxu0 %v6736
  %v6738 = vand.u32 %v6419, 4294901760
  %v6739 = vsub.f32 %v6419, %v6738
  %v6740 = vand.u32 %v6739, 4294901760
  %v6741 = vsub.f32 %v6739, %v6740
  %v6742 = vand.u32 %v6741, 4294901760
  %6743 = vmatpush.msra.mxu0 %v6742
  %v6744 = vand.u32 %v6417, 4294901760
  %v6745 = vsub.f32 %v6417, %v6744
  %v6746 = vand.u32 %v6745, 4294901760
  %v6747 = vsub.f32 %v6745, %v6746
  %v6748 = vand.u32 %v6747, 4294901760
  %6749 = vmatpush.msra.mxu0 %v6748
  %v6750 = vand.u32 %v6415, 4294901760
  %v6751 = vsub.f32 %v6415, %v6750
  %v6752 = vand.u32 %v6751, 4294901760
  %v6753 = vsub.f32 %v6751, %v6752
  %v6754 = vand.u32 %v6753, 4294901760
  %6755 = vmatpush.msra.mxu0 %v6754
  %v6756 = vand.u32 %v6413, 4294901760
  %v6757 = vsub.f32 %v6413, %v6756
  %v6758 = vand.u32 %v6757, 4294901760
  %v6759 = vsub.f32 %v6757, %v6758
  %v6760 = vand.u32 %v6759, 4294901760
  %6761 = vmatpush.msra.mxu0 %v6760
  %v6762 = vand.u32 %v6411, 4294901760
  %v6763 = vsub.f32 %v6411, %v6762
  %v6764 = vand.u32 %v6763, 4294901760
  %v6765 = vsub.f32 %v6763, %v6764
  %v6766 = vand.u32 %v6765, 4294901760
  %6767 = vmatpush.msra.mxu0 %v6766
  %v6768 = vand.u32 %v6357, 4294901760
  %6769 = vmatmul.f32.gmra.mxu0 %v6768
  %v6770 = vpop.f32.mrf.mxu0
  %v6771 = vadd.f32 %v6550, %v6770
  %v6772 = vand.u32 %v6358, 4294901760
  %6773 = vmatmul.f32.gmra.mxu0 %v6772
  %v6774 = vpop.f32.mrf.mxu0
  %v6775 = vadd.f32 %v6558, %v6774
  %v6776 = vand.u32 %v6359, 4294901760
  %6777 = vmatmul.f32.gmra.mxu0 %v6776
  %v6778 = vpop.f32.mrf.mxu0
  %v6779 = vadd.f32 %v6566, %v6778
  %v6780 = vand.u32 %v6360, 4294901760
  %6781 = vmatmul.f32.gmra.mxu0 %v6780
  %v6782 = vpop.f32.mrf.mxu0
  %v6783 = vadd.f32 %v6574, %v6782
  %v6784 = vand.u32 %v6361, 4294901760
  %6785 = vmatmul.f32.gmra.mxu0 %v6784
  %v6786 = vpop.f32.mrf.mxu0
  %v6787 = vadd.f32 %v6582, %v6786
  %v6788 = vand.u32 %v6362, 4294901760
  %6789 = vmatmul.f32.gmra.mxu0 %v6788
  %v6790 = vpop.f32.mrf.mxu0
  %v6791 = vadd.f32 %v6590, %v6790
  %v6792 = vand.u32 %v6363, 4294901760
  %6793 = vmatmul.f32.gmra.mxu0 %v6792
  %v6794 = vpop.f32.mrf.mxu0
  %v6795 = vadd.f32 %v6598, %v6794
  %v6796 = vand.u32 %v6364, 4294901760
  %6797 = vmatmul.f32.gmra.mxu0 %v6796
  %v6798 = vpop.f32.mrf.mxu0
  %v6799 = vadd.f32 %v6606, %v6798
  %v6800 = vand.u32 %v6365, 4294901760
  %6801 = vmatmul.f32.gmra.mxu0 %v6800
  %v6802 = vpop.f32.mrf.mxu0
  %v6803 = vadd.f32 %v6614, %v6802
  %v6804 = vand.u32 %v6366, 4294901760
  %6805 = vmatmul.f32.gmra.mxu0 %v6804
  %v6806 = vpop.f32.mrf.mxu0
  %v6807 = vadd.f32 %v6622, %v6806
  %v6808 = vand.u32 %v6367, 4294901760
  %6809 = vmatmul.f32.gmra.mxu0 %v6808
  %v6810 = vpop.f32.mrf.mxu0
  %v6811 = vadd.f32 %v6630, %v6810
  %v6812 = vand.u32 %v6368, 4294901760
  %6813 = vmatmul.f32.gmra.mxu0 %v6812
  %v6814 = vpop.f32.mrf.mxu0
  %v6815 = vadd.f32 %v6638, %v6814
  %v6816 = vand.u32 %v6369, 4294901760
  %6817 = vmatmul.f32.gmra.mxu0 %v6816
  %v6818 = vpop.f32.mrf.mxu0
  %v6819 = vadd.f32 %v6646, %v6818
  %v6820 = vand.u32 %v6370, 4294901760
  %6821 = vmatmul.f32.gmra.mxu0 %v6820
  %v6822 = vpop.f32.mrf.mxu0
  %v6823 = vadd.f32 %v6654, %v6822
  %v6824 = vand.u32 %v6371, 4294901760
  %6825 = vmatmul.f32.gmra.mxu0 %v6824
  %v6826 = vpop.f32.mrf.mxu0
  %v6827 = vadd.f32 %v6662, %v6826
  %v6828 = vand.u32 %v6372, 4294901760
  %6829 = vmatmul.f32.gmra.mxu0 %v6828
  %v6830 = vpop.f32.mrf.mxu0
  %v6831 = vadd.f32 %v6670, %v6830
  %6832 = vdwg.mxu0
  %v6833 = vand.u32 %v6441, 4294901760
  %v6834 = vsub.f32 %v6441, %v6833
  %6835 = vmatpush.msra.mxu0 %v6834
  %v6836 = vand.u32 %v6439, 4294901760
  %v6837 = vsub.f32 %v6439, %v6836
  %6838 = vmatpush.msra.mxu0 %v6837
  %v6839 = vand.u32 %v6437, 4294901760
  %v6840 = vsub.f32 %v6437, %v6839
  %6841 = vmatpush.msra.mxu0 %v6840
  %v6842 = vand.u32 %v6435, 4294901760
  %v6843 = vsub.f32 %v6435, %v6842
  %6844 = vmatpush.msra.mxu0 %v6843
  %v6845 = vand.u32 %v6433, 4294901760
  %v6846 = vsub.f32 %v6433, %v6845
  %6847 = vmatpush.msra.mxu0 %v6846
  %v6848 = vand.u32 %v6431, 4294901760
  %v6849 = vsub.f32 %v6431, %v6848
  %6850 = vmatpush.msra.mxu0 %v6849
  %v6851 = vand.u32 %v6429, 4294901760
  %v6852 = vsub.f32 %v6429, %v6851
  %6853 = vmatpush.msra.mxu0 %v6852
  %v6854 = vand.u32 %v6427, 4294901760
  %v6855 = vsub.f32 %v6427, %v6854
  %6856 = vmatpush.msra.mxu0 %v6855
  %v6857 = vand.u32 %v6425, 4294901760
  %v6858 = vsub.f32 %v6425, %v6857
  %6859 = vmatpush.msra.mxu0 %v6858
  %v6860 = vand.u32 %v6423, 4294901760
  %v6861 = vsub.f32 %v6423, %v6860
  %6862 = vmatpush.msra.mxu0 %v6861
  %v6863 = vand.u32 %v6421, 4294901760
  %v6864 = vsub.f32 %v6421, %v6863
  %6865 = vmatpush.msra.mxu0 %v6864
  %v6866 = vand.u32 %v6419, 4294901760
  %v6867 = vsub.f32 %v6419, %v6866
  %6868 = vmatpush.msra.mxu0 %v6867
  %v6869 = vand.u32 %v6417, 4294901760
  %v6870 = vsub.f32 %v6417, %v6869
  %6871 = vmatpush.msra.mxu0 %v6870
  %v6872 = vand.u32 %v6415, 4294901760
  %v6873 = vsub.f32 %v6415, %v6872
  %6874 = vmatpush.msra.mxu0 %v6873
  %v6875 = vand.u32 %v6413, 4294901760
  %v6876 = vsub.f32 %v6413, %v6875
  %6877 = vmatpush.msra.mxu0 %v6876
  %v6878 = vand.u32 %v6411, 4294901760
  %v6879 = vsub.f32 %v6411, %v6878
  %6880 = vmatpush.msra.mxu0 %v6879
  %v6881 = vand.u32 %v6357, 4294901760
  %v6882 = vsub.f32 %v6357, %v6881
  %6883 = vmatmul.f32.gmra.mxu0 %v6882
  %v6884 = vpop.f32.mrf.mxu0
  %v6885 = vadd.f32 %v6771, %v6884
  %v6886 = vand.u32 %v6358, 4294901760
  %v6887 = vsub.f32 %v6358, %v6886
  %6888 = vmatmul.f32.gmra.mxu0 %v6887
  %v6889 = vpop.f32.mrf.mxu0
  %v6890 = vadd.f32 %v6775, %v6889
  %v6891 = vand.u32 %v6359, 4294901760
  %v6892 = vsub.f32 %v6359, %v6891
  %6893 = vmatmul.f32.gmra.mxu0 %v6892
  %v6894 = vpop.f32.mrf.mxu0
  %v6895 = vadd.f32 %v6779, %v6894
  %v6896 = vand.u32 %v6360, 4294901760
  %v6897 = vsub.f32 %v6360, %v6896
  %6898 = vmatmul.f32.gmra.mxu0 %v6897
  %v6899 = vpop.f32.mrf.mxu0
  %v6900 = vadd.f32 %v6783, %v6899
  %v6901 = vand.u32 %v6361, 4294901760
  %v6902 = vsub.f32 %v6361, %v6901
  %6903 = vmatmul.f32.gmra.mxu0 %v6902
  %v6904 = vpop.f32.mrf.mxu0
  %v6905 = vadd.f32 %v6787, %v6904
  %v6906 = vand.u32 %v6362, 4294901760
  %v6907 = vsub.f32 %v6362, %v6906
  %6908 = vmatmul.f32.gmra.mxu0 %v6907
  %v6909 = vpop.f32.mrf.mxu0
  %v6910 = vadd.f32 %v6791, %v6909
  %v6911 = vand.u32 %v6363, 4294901760
  %v6912 = vsub.f32 %v6363, %v6911
  %6913 = vmatmul.f32.gmra.mxu0 %v6912
  %v6914 = vpop.f32.mrf.mxu0
  %v6915 = vadd.f32 %v6795, %v6914
  %v6916 = vand.u32 %v6364, 4294901760
  %v6917 = vsub.f32 %v6364, %v6916
  %6918 = vmatmul.f32.gmra.mxu0 %v6917
  %v6919 = vpop.f32.mrf.mxu0
  %v6920 = vadd.f32 %v6799, %v6919
  %v6921 = vand.u32 %v6365, 4294901760
  %v6922 = vsub.f32 %v6365, %v6921
  %6923 = vmatmul.f32.gmra.mxu0 %v6922
  %v6924 = vpop.f32.mrf.mxu0
  %v6925 = vadd.f32 %v6803, %v6924
  %v6926 = vand.u32 %v6366, 4294901760
  %v6927 = vsub.f32 %v6366, %v6926
  %6928 = vmatmul.f32.gmra.mxu0 %v6927
  %v6929 = vpop.f32.mrf.mxu0
  %v6930 = vadd.f32 %v6807, %v6929
  %v6931 = vand.u32 %v6367, 4294901760
  %v6932 = vsub.f32 %v6367, %v6931
  %6933 = vmatmul.f32.gmra.mxu0 %v6932
  %v6934 = vpop.f32.mrf.mxu0
  %v6935 = vadd.f32 %v6811, %v6934
  %v6936 = vand.u32 %v6368, 4294901760
  %v6937 = vsub.f32 %v6368, %v6936
  %6938 = vmatmul.f32.gmra.mxu0 %v6937
  %v6939 = vpop.f32.mrf.mxu0
  %v6940 = vadd.f32 %v6815, %v6939
  %v6941 = vand.u32 %v6369, 4294901760
  %v6942 = vsub.f32 %v6369, %v6941
  %6943 = vmatmul.f32.gmra.mxu0 %v6942
  %v6944 = vpop.f32.mrf.mxu0
  %v6945 = vadd.f32 %v6819, %v6944
  %v6946 = vand.u32 %v6370, 4294901760
  %v6947 = vsub.f32 %v6370, %v6946
  %6948 = vmatmul.f32.gmra.mxu0 %v6947
  %v6949 = vpop.f32.mrf.mxu0
  %v6950 = vadd.f32 %v6823, %v6949
  %v6951 = vand.u32 %v6371, 4294901760
  %v6952 = vsub.f32 %v6371, %v6951
  %6953 = vmatmul.f32.gmra.mxu0 %v6952
  %v6954 = vpop.f32.mrf.mxu0
  %v6955 = vadd.f32 %v6827, %v6954
  %v6956 = vand.u32 %v6372, 4294901760
  %v6957 = vsub.f32 %v6372, %v6956
  %6958 = vmatmul.f32.gmra.mxu0 %v6957
  %v6959 = vpop.f32.mrf.mxu0
  %v6960 = vadd.f32 %v6831, %v6959
  %6961 = vdwg.mxu0
  %v6962 = vand.u32 %v6441, 4294901760
  %6963 = vmatpush.msra.mxu0 %v6962
  %v6964 = vand.u32 %v6439, 4294901760
  %6965 = vmatpush.msra.mxu0 %v6964
  %v6966 = vand.u32 %v6437, 4294901760
  %6967 = vmatpush.msra.mxu0 %v6966
  %v6968 = vand.u32 %v6435, 4294901760
  %6969 = vmatpush.msra.mxu0 %v6968
  %v6970 = vand.u32 %v6433, 4294901760
  %6971 = vmatpush.msra.mxu0 %v6970
  %v6972 = vand.u32 %v6431, 4294901760
  %6973 = vmatpush.msra.mxu0 %v6972
  %v6974 = vand.u32 %v6429, 4294901760
  %6975 = vmatpush.msra.mxu0 %v6974
  %v6976 = vand.u32 %v6427, 4294901760
  %6977 = vmatpush.msra.mxu0 %v6976
  %v6978 = vand.u32 %v6425, 4294901760
  %6979 = vmatpush.msra.mxu0 %v6978
  %v6980 = vand.u32 %v6423, 4294901760
  %6981 = vmatpush.msra.mxu0 %v6980
  %v6982 = vand.u32 %v6421, 4294901760
  %6983 = vmatpush.msra.mxu0 %v6982
  %v6984 = vand.u32 %v6419, 4294901760
  %6985 = vmatpush.msra.mxu0 %v6984
  %v6986 = vand.u32 %v6417, 4294901760
  %6987 = vmatpush.msra.mxu0 %v6986
  %v6988 = vand.u32 %v6415, 4294901760
  %6989 = vmatpush.msra.mxu0 %v6988
  %v6990 = vand.u32 %v6413, 4294901760
  %6991 = vmatpush.msra.mxu0 %v6990
  %v6992 = vand.u32 %v6411, 4294901760
  %6993 = vmatpush.msra.mxu0 %v6992
  %v6994 = vand.u32 %v6357, 4294901760
  %v6995 = vsub.f32 %v6357, %v6994
  %v6996 = vand.u32 %v6995, 4294901760
  %6997 = vmatmul.f32.gmra.mxu0 %v6996
  %v6998 = vpop.f32.mrf.mxu0
  %v6999 = vadd.f32 %v6885, %v6998
  %v7000 = vand.u32 %v6358, 4294901760
  %v7001 = vsub.f32 %v6358, %v7000
  %v7002 = vand.u32 %v7001, 4294901760
  %7003 = vmatmul.f32.gmra.mxu0 %v7002
  %v7004 = vpop.f32.mrf.mxu0
  %v7005 = vadd.f32 %v6890, %v7004
  %v7006 = vand.u32 %v6359, 4294901760
  %v7007 = vsub.f32 %v6359, %v7006
  %v7008 = vand.u32 %v7007, 4294901760
  %7009 = vmatmul.f32.gmra.mxu0 %v7008
  %v7010 = vpop.f32.mrf.mxu0
  %v7011 = vadd.f32 %v6895, %v7010
  %v7012 = vand.u32 %v6360, 4294901760
  %v7013 = vsub.f32 %v6360, %v7012
  %v7014 = vand.u32 %v7013, 4294901760
  %7015 = vmatmul.f32.gmra.mxu0 %v7014
  %v7016 = vpop.f32.mrf.mxu0
  %v7017 = vadd.f32 %v6900, %v7016
  %v7018 = vand.u32 %v6361, 4294901760
  %v7019 = vsub.f32 %v6361, %v7018
  %v7020 = vand.u32 %v7019, 4294901760
  %7021 = vmatmul.f32.gmra.mxu0 %v7020
  %v7022 = vpop.f32.mrf.mxu0
  %v7023 = vadd.f32 %v6905, %v7022
  %v7024 = vand.u32 %v6362, 4294901760
  %v7025 = vsub.f32 %v6362, %v7024
  %v7026 = vand.u32 %v7025, 4294901760
  %7027 = vmatmul.f32.gmra.mxu0 %v7026
  %v7028 = vpop.f32.mrf.mxu0
  %v7029 = vadd.f32 %v6910, %v7028
  %v7030 = vand.u32 %v6363, 4294901760
  %v7031 = vsub.f32 %v6363, %v7030
  %v7032 = vand.u32 %v7031, 4294901760
  %7033 = vmatmul.f32.gmra.mxu0 %v7032
  %v7034 = vpop.f32.mrf.mxu0
  %v7035 = vadd.f32 %v6915, %v7034
  %v7036 = vand.u32 %v6364, 4294901760
  %v7037 = vsub.f32 %v6364, %v7036
  %v7038 = vand.u32 %v7037, 4294901760
  %7039 = vmatmul.f32.gmra.mxu0 %v7038
  %v7040 = vpop.f32.mrf.mxu0
  %v7041 = vadd.f32 %v6920, %v7040
  %v7042 = vand.u32 %v6365, 4294901760
  %v7043 = vsub.f32 %v6365, %v7042
  %v7044 = vand.u32 %v7043, 4294901760
  %7045 = vmatmul.f32.gmra.mxu0 %v7044
  %v7046 = vpop.f32.mrf.mxu0
  %v7047 = vadd.f32 %v6925, %v7046
  %v7048 = vand.u32 %v6366, 4294901760
  %v7049 = vsub.f32 %v6366, %v7048
  %v7050 = vand.u32 %v7049, 4294901760
  %7051 = vmatmul.f32.gmra.mxu0 %v7050
  %v7052 = vpop.f32.mrf.mxu0
  %v7053 = vadd.f32 %v6930, %v7052
  %v7054 = vand.u32 %v6367, 4294901760
  %v7055 = vsub.f32 %v6367, %v7054
  %v7056 = vand.u32 %v7055, 4294901760
  %7057 = vmatmul.f32.gmra.mxu0 %v7056
  %v7058 = vpop.f32.mrf.mxu0
  %v7059 = vadd.f32 %v6935, %v7058
  %v7060 = vand.u32 %v6368, 4294901760
  %v7061 = vsub.f32 %v6368, %v7060
  %v7062 = vand.u32 %v7061, 4294901760
  %7063 = vmatmul.f32.gmra.mxu0 %v7062
  %v7064 = vpop.f32.mrf.mxu0
  %v7065 = vadd.f32 %v6940, %v7064
  %v7066 = vand.u32 %v6369, 4294901760
  %v7067 = vsub.f32 %v6369, %v7066
  %v7068 = vand.u32 %v7067, 4294901760
  %7069 = vmatmul.f32.gmra.mxu0 %v7068
  %v7070 = vpop.f32.mrf.mxu0
  %v7071 = vadd.f32 %v6945, %v7070
  %v7072 = vand.u32 %v6370, 4294901760
  %v7073 = vsub.f32 %v6370, %v7072
  %v7074 = vand.u32 %v7073, 4294901760
  %7075 = vmatmul.f32.gmra.mxu0 %v7074
  %v7076 = vpop.f32.mrf.mxu0
  %v7077 = vadd.f32 %v6950, %v7076
  %v7078 = vand.u32 %v6371, 4294901760
  %v7079 = vsub.f32 %v6371, %v7078
  %v7080 = vand.u32 %v7079, 4294901760
  %7081 = vmatmul.f32.gmra.mxu0 %v7080
  %v7082 = vpop.f32.mrf.mxu0
  %v7083 = vadd.f32 %v6955, %v7082
  %v7084 = vand.u32 %v6372, 4294901760
  %v7085 = vsub.f32 %v6372, %v7084
  %v7086 = vand.u32 %v7085, 4294901760
  %7087 = vmatmul.f32.gmra.mxu0 %v7086
  %v7088 = vpop.f32.mrf.mxu0
  %v7089 = vadd.f32 %v6960, %v7088
  %7090 = vdwg.mxu0
  %v7091 = vand.u32 %v6441, 4294901760
  %v7092 = vsub.f32 %v6441, %v7091
  %v7093 = vand.u32 %v7092, 4294901760
  %7094 = vmatpush.msra.mxu0 %v7093
  %v7095 = vand.u32 %v6439, 4294901760
  %v7096 = vsub.f32 %v6439, %v7095
  %v7097 = vand.u32 %v7096, 4294901760
  %7098 = vmatpush.msra.mxu0 %v7097
  %v7099 = vand.u32 %v6437, 4294901760
  %v7100 = vsub.f32 %v6437, %v7099
  %v7101 = vand.u32 %v7100, 4294901760
  %7102 = vmatpush.msra.mxu0 %v7101
  %v7103 = vand.u32 %v6435, 4294901760
  %v7104 = vsub.f32 %v6435, %v7103
  %v7105 = vand.u32 %v7104, 4294901760
  %7106 = vmatpush.msra.mxu0 %v7105
  %v7107 = vand.u32 %v6433, 4294901760
  %v7108 = vsub.f32 %v6433, %v7107
  %v7109 = vand.u32 %v7108, 4294901760
  %7110 = vmatpush.msra.mxu0 %v7109
  %v7111 = vand.u32 %v6431, 4294901760
  %v7112 = vsub.f32 %v6431, %v7111
  %v7113 = vand.u32 %v7112, 4294901760
  %7114 = vmatpush.msra.mxu0 %v7113
  %v7115 = vand.u32 %v6429, 4294901760
  %v7116 = vsub.f32 %v6429, %v7115
  %v7117 = vand.u32 %v7116, 4294901760
  %7118 = vmatpush.msra.mxu0 %v7117
  %v7119 = vand.u32 %v6427, 4294901760
  %v7120 = vsub.f32 %v6427, %v7119
  %v7121 = vand.u32 %v7120, 4294901760
  %7122 = vmatpush.msra.mxu0 %v7121
  %v7123 = vand.u32 %v6425, 4294901760
  %v7124 = vsub.f32 %v6425, %v7123
  %v7125 = vand.u32 %v7124, 4294901760
  %7126 = vmatpush.msra.mxu0 %v7125
  %v7127 = vand.u32 %v6423, 4294901760
  %v7128 = vsub.f32 %v6423, %v7127
  %v7129 = vand.u32 %v7128, 4294901760
  %7130 = vmatpush.msra.mxu0 %v7129
  %v7131 = vand.u32 %v6421, 4294901760
  %v7132 = vsub.f32 %v6421, %v7131
  %v7133 = vand.u32 %v7132, 4294901760
  %7134 = vmatpush.msra.mxu0 %v7133
  %v7135 = vand.u32 %v6419, 4294901760
  %v7136 = vsub.f32 %v6419, %v7135
  %v7137 = vand.u32 %v7136, 4294901760
  %7138 = vmatpush.msra.mxu0 %v7137
  %v7139 = vand.u32 %v6417, 4294901760
  %v7140 = vsub.f32 %v6417, %v7139
  %v7141 = vand.u32 %v7140, 4294901760
  %7142 = vmatpush.msra.mxu0 %v7141
  %v7143 = vand.u32 %v6415, 4294901760
  %v7144 = vsub.f32 %v6415, %v7143
  %v7145 = vand.u32 %v7144, 4294901760
  %7146 = vmatpush.msra.mxu0 %v7145
  %v7147 = vand.u32 %v6413, 4294901760
  %v7148 = vsub.f32 %v6413, %v7147
  %v7149 = vand.u32 %v7148, 4294901760
  %7150 = vmatpush.msra.mxu0 %v7149
  %v7151 = vand.u32 %v6411, 4294901760
  %v7152 = vsub.f32 %v6411, %v7151
  %v7153 = vand.u32 %v7152, 4294901760
  %7154 = vmatpush.msra.mxu0 %v7153
  %v7155 = vand.u32 %v6357, 4294901760
  %7156 = vmatmul.f32.gmra.mxu0 %v7155
  %v7157 = vpop.f32.mrf.mxu0
  %v7158 = vadd.f32 %v6999, %v7157
  %v7159 = vand.u32 %v6358, 4294901760
  %7160 = vmatmul.f32.gmra.mxu0 %v7159
  %v7161 = vpop.f32.mrf.mxu0
  %v7162 = vadd.f32 %v7005, %v7161
  %v7163 = vand.u32 %v6359, 4294901760
  %7164 = vmatmul.f32.gmra.mxu0 %v7163
  %v7165 = vpop.f32.mrf.mxu0
  %v7166 = vadd.f32 %v7011, %v7165
  %v7167 = vand.u32 %v6360, 4294901760
  %7168 = vmatmul.f32.gmra.mxu0 %v7167
  %v7169 = vpop.f32.mrf.mxu0
  %v7170 = vadd.f32 %v7017, %v7169
  %v7171 = vand.u32 %v6361, 4294901760
  %7172 = vmatmul.f32.gmra.mxu0 %v7171
  %v7173 = vpop.f32.mrf.mxu0
  %v7174 = vadd.f32 %v7023, %v7173
  %v7175 = vand.u32 %v6362, 4294901760
  %7176 = vmatmul.f32.gmra.mxu0 %v7175
  %v7177 = vpop.f32.mrf.mxu0
  %v7178 = vadd.f32 %v7029, %v7177
  %v7179 = vand.u32 %v6363, 4294901760
  %7180 = vmatmul.f32.gmra.mxu0 %v7179
  %v7181 = vpop.f32.mrf.mxu0
  %v7182 = vadd.f32 %v7035, %v7181
  %v7183 = vand.u32 %v6364, 4294901760
  %7184 = vmatmul.f32.gmra.mxu0 %v7183
  %v7185 = vpop.f32.mrf.mxu0
  %v7186 = vadd.f32 %v7041, %v7185
  %v7187 = vand.u32 %v6365, 4294901760
  %7188 = vmatmul.f32.gmra.mxu0 %v7187
  %v7189 = vpop.f32.mrf.mxu0
  %v7190 = vadd.f32 %v7047, %v7189
  %v7191 = vand.u32 %v6366, 4294901760
  %7192 = vmatmul.f32.gmra.mxu0 %v7191
  %v7193 = vpop.f32.mrf.mxu0
  %v7194 = vadd.f32 %v7053, %v7193
  %v7195 = vand.u32 %v6367, 4294901760
  %7196 = vmatmul.f32.gmra.mxu0 %v7195
  %v7197 = vpop.f32.mrf.mxu0
  %v7198 = vadd.f32 %v7059, %v7197
  %v7199 = vand.u32 %v6368, 4294901760
  %7200 = vmatmul.f32.gmra.mxu0 %v7199
  %v7201 = vpop.f32.mrf.mxu0
  %v7202 = vadd.f32 %v7065, %v7201
  %v7203 = vand.u32 %v6369, 4294901760
  %7204 = vmatmul.f32.gmra.mxu0 %v7203
  %v7205 = vpop.f32.mrf.mxu0
  %v7206 = vadd.f32 %v7071, %v7205
  %v7207 = vand.u32 %v6370, 4294901760
  %7208 = vmatmul.f32.gmra.mxu0 %v7207
  %v7209 = vpop.f32.mrf.mxu0
  %v7210 = vadd.f32 %v7077, %v7209
  %v7211 = vand.u32 %v6371, 4294901760
  %7212 = vmatmul.f32.gmra.mxu0 %v7211
  %v7213 = vpop.f32.mrf.mxu0
  %v7214 = vadd.f32 %v7083, %v7213
  %v7215 = vand.u32 %v6372, 4294901760
  %7216 = vmatmul.f32.gmra.mxu0 %v7215
  %v7217 = vpop.f32.mrf.mxu0
  %v7218 = vadd.f32 %v7089, %v7217
  %7219 = vdwg.mxu0
  %v7220 = vand.u32 %v6441, 4294901760
  %7221 = vmatpush.msra.mxu0 %v7220
  %v7222 = vand.u32 %v6439, 4294901760
  %7223 = vmatpush.msra.mxu0 %v7222
  %v7224 = vand.u32 %v6437, 4294901760
  %7225 = vmatpush.msra.mxu0 %v7224
  %v7226 = vand.u32 %v6435, 4294901760
  %7227 = vmatpush.msra.mxu0 %v7226
  %v7228 = vand.u32 %v6433, 4294901760
  %7229 = vmatpush.msra.mxu0 %v7228
  %v7230 = vand.u32 %v6431, 4294901760
  %7231 = vmatpush.msra.mxu0 %v7230
  %v7232 = vand.u32 %v6429, 4294901760
  %7233 = vmatpush.msra.mxu0 %v7232
  %v7234 = vand.u32 %v6427, 4294901760
  %7235 = vmatpush.msra.mxu0 %v7234
  %v7236 = vand.u32 %v6425, 4294901760
  %7237 = vmatpush.msra.mxu0 %v7236
  %v7238 = vand.u32 %v6423, 4294901760
  %7239 = vmatpush.msra.mxu0 %v7238
  %v7240 = vand.u32 %v6421, 4294901760
  %7241 = vmatpush.msra.mxu0 %v7240
  %v7242 = vand.u32 %v6419, 4294901760
  %7243 = vmatpush.msra.mxu0 %v7242
  %v7244 = vand.u32 %v6417, 4294901760
  %7245 = vmatpush.msra.mxu0 %v7244
  %v7246 = vand.u32 %v6415, 4294901760
  %7247 = vmatpush.msra.mxu0 %v7246
  %v7248 = vand.u32 %v6413, 4294901760
  %7249 = vmatpush.msra.mxu0 %v7248
  %v7250 = vand.u32 %v6411, 4294901760
  %7251 = vmatpush.msra.mxu0 %v7250
  %v7252 = vand.u32 %v6357, 4294901760
  %7253 = vmatmul.f32.gmra.mxu0 %v7252
  %v7254 = vpop.f32.mrf.mxu0
  %v7255 = vadd.f32 %v7158, %v7254
  %v7256 = vand.u32 %v6358, 4294901760
  %7257 = vmatmul.f32.gmra.mxu0 %v7256
  %v7258 = vpop.f32.mrf.mxu0
  %v7259 = vadd.f32 %v7162, %v7258
  %v7260 = vand.u32 %v6359, 4294901760
  %7261 = vmatmul.f32.gmra.mxu0 %v7260
  %v7262 = vpop.f32.mrf.mxu0
  %v7263 = vadd.f32 %v7166, %v7262
  %v7264 = vand.u32 %v6360, 4294901760
  %7265 = vmatmul.f32.gmra.mxu0 %v7264
  %v7266 = vpop.f32.mrf.mxu0
  %v7267 = vadd.f32 %v7170, %v7266
  %v7268 = vand.u32 %v6361, 4294901760
  %7269 = vmatmul.f32.gmra.mxu0 %v7268
  %v7270 = vpop.f32.mrf.mxu0
  %v7271 = vadd.f32 %v7174, %v7270
  %v7272 = vand.u32 %v6362, 4294901760
  %7273 = vmatmul.f32.gmra.mxu0 %v7272
  %v7274 = vpop.f32.mrf.mxu0
  %v7275 = vadd.f32 %v7178, %v7274
  %v7276 = vand.u32 %v6363, 4294901760
  %7277 = vmatmul.f32.gmra.mxu0 %v7276
  %v7278 = vpop.f32.mrf.mxu0
  %v7279 = vadd.f32 %v7182, %v7278
  %v7280 = vand.u32 %v6364, 4294901760
  %7281 = vmatmul.f32.gmra.mxu0 %v7280
  %v7282 = vpop.f32.mrf.mxu0
  %v7283 = vadd.f32 %v7186, %v7282
  %v7284 = vand.u32 %v6365, 4294901760
  %7285 = vmatmul.f32.gmra.mxu0 %v7284
  %v7286 = vpop.f32.mrf.mxu0
  %v7287 = vadd.f32 %v7190, %v7286
  %v7288 = vand.u32 %v6366, 4294901760
  %7289 = vmatmul.f32.gmra.mxu0 %v7288
  %v7290 = vpop.f32.mrf.mxu0
  %v7291 = vadd.f32 %v7194, %v7290
  %v7292 = vand.u32 %v6367, 4294901760
  %7293 = vmatmul.f32.gmra.mxu0 %v7292
  %v7294 = vpop.f32.mrf.mxu0
  %v7295 = vadd.f32 %v7198, %v7294
  %v7296 = vand.u32 %v6368, 4294901760
  %7297 = vmatmul.f32.gmra.mxu0 %v7296
  %v7298 = vpop.f32.mrf.mxu0
  %v7299 = vadd.f32 %v7202, %v7298
  %v7300 = vand.u32 %v6369, 4294901760
  %7301 = vmatmul.f32.gmra.mxu0 %v7300
  %v7302 = vpop.f32.mrf.mxu0
  %v7303 = vadd.f32 %v7206, %v7302
  %v7304 = vand.u32 %v6370, 4294901760
  %7305 = vmatmul.f32.gmra.mxu0 %v7304
  %v7306 = vpop.f32.mrf.mxu0
  %v7307 = vadd.f32 %v7210, %v7306
  %v7308 = vand.u32 %v6371, 4294901760
  %7309 = vmatmul.f32.gmra.mxu0 %v7308
  %v7310 = vpop.f32.mrf.mxu0
  %v7311 = vadd.f32 %v7214, %v7310
  %v7312 = vand.u32 %v6372, 4294901760
  %7313 = vmatmul.f32.gmra.mxu0 %v7312
  %v7314 = vpop.f32.mrf.mxu0
  %v7315 = vadd.f32 %v7218, %v7314
  %7316 = vdwg.mxu0
  %v7317 = vrcp.pop %v7255
  %v7318 = vmul.f32 %v7255, %v7317
  %v7319 = vsub.f32 1.0, %v7318
  %v7320 = vmul.f32 %v7317, %v7319
  %v7321 = vadd.f32 %v7317, %v7320
  %vm7322 = vweird.f32 %v7255
  %vm7323 = vweird.f32 %v7317
  %vm7324 = vmor %vm7322, %vm7323
  %v7325 = vsel %vm7324, %v7317, %v7321
  %v7326 = vand.u32 2147483647, %v7255
  %vm7327 = vcmp.eq.f32.partialorder %v7326, 8.507059e+37
  %v7328 = vand.u32 %v7255, 2147483648
  %v7329 = vor.u32 1.1754944e-38, %v7328
  %v7330 = vsel %vm7327, %v7329, %v7325
  %v7331 = vmul.f32 %v6411, %v7330
  %v7332 = vrcp.pop %v7259
  %v7333 = vmul.f32 %v7259, %v7332
  %v7334 = vsub.f32 1.0, %v7333
  %v7335 = vmul.f32 %v7332, %v7334
  %v7336 = vadd.f32 %v7332, %v7335
  %vm7337 = vweird.f32 %v7259
  %vm7338 = vweird.f32 %v7332
  %vm7339 = vmor %vm7337, %vm7338
  %v7340 = vsel %vm7339, %v7332, %v7336
  %v7341 = vand.u32 2147483647, %v7259
  %vm7342 = vcmp.eq.f32.partialorder %v7341, 8.507059e+37
  %v7343 = vand.u32 %v7259, 2147483648
  %v7344 = vor.u32 1.1754944e-38, %v7343
  %v7345 = vsel %vm7342, %v7344, %v7340
  %v7346 = vmul.f32 %v6413, %v7345
  %v7347 = vrcp.pop %v7263
  %v7348 = vmul.f32 %v7263, %v7347
  %v7349 = vsub.f32 1.0, %v7348
  %v7350 = vmul.f32 %v7347, %v7349
  %v7351 = vadd.f32 %v7347, %v7350
  %vm7352 = vweird.f32 %v7263
  %vm7353 = vweird.f32 %v7347
  %vm7354 = vmor %vm7352, %vm7353
  %v7355 = vsel %vm7354, %v7347, %v7351
  %v7356 = vand.u32 2147483647, %v7263
  %vm7357 = vcmp.eq.f32.partialorder %v7356, 8.507059e+37
  %v7358 = vand.u32 %v7263, 2147483648
  %v7359 = vor.u32 1.1754944e-38, %v7358
  %v7360 = vsel %vm7357, %v7359, %v7355
  %v7361 = vmul.f32 %v6415, %v7360
  %v7362 = vrcp.pop %v7267
  %v7363 = vmul.f32 %v7267, %v7362
  %v7364 = vsub.f32 1.0, %v7363
  %v7365 = vmul.f32 %v7362, %v7364
  %v7366 = vadd.f32 %v7362, %v7365
  %vm7367 = vweird.f32 %v7267
  %vm7368 = vweird.f32 %v7362
  %vm7369 = vmor %vm7367, %vm7368
  %v7370 = vsel %vm7369, %v7362, %v7366
  %v7371 = vand.u32 2147483647, %v7267
  %vm7372 = vcmp.eq.f32.partialorder %v7371, 8.507059e+37
  %v7373 = vand.u32 %v7267, 2147483648
  %v7374 = vor.u32 1.1754944e-38, %v7373
  %v7375 = vsel %vm7372, %v7374, %v7370
  %v7376 = vmul.f32 %v6417, %v7375
  %v7377 = vrcp.pop %v7271
  %v7378 = vmul.f32 %v7271, %v7377
  %v7379 = vsub.f32 1.0, %v7378
  %v7380 = vmul.f32 %v7377, %v7379
  %v7381 = vadd.f32 %v7377, %v7380
  %vm7382 = vweird.f32 %v7271
  %vm7383 = vweird.f32 %v7377
  %vm7384 = vmor %vm7382, %vm7383
  %v7385 = vsel %vm7384, %v7377, %v7381
  %v7386 = vand.u32 2147483647, %v7271
  %vm7387 = vcmp.eq.f32.partialorder %v7386, 8.507059e+37
  %v7388 = vand.u32 %v7271, 2147483648
  %v7389 = vor.u32 1.1754944e-38, %v7388
  %v7390 = vsel %vm7387, %v7389, %v7385
  %v7391 = vmul.f32 %v6419, %v7390
  %v7392 = vrcp.pop %v7275
  %v7393 = vmul.f32 %v7275, %v7392
  %v7394 = vsub.f32 1.0, %v7393
  %v7395 = vmul.f32 %v7392, %v7394
  %v7396 = vadd.f32 %v7392, %v7395
  %vm7397 = vweird.f32 %v7275
  %vm7398 = vweird.f32 %v7392
  %vm7399 = vmor %vm7397, %vm7398
  %v7400 = vsel %vm7399, %v7392, %v7396
  %v7401 = vand.u32 2147483647, %v7275
  %vm7402 = vcmp.eq.f32.partialorder %v7401, 8.507059e+37
  %v7403 = vand.u32 %v7275, 2147483648
  %v7404 = vor.u32 1.1754944e-38, %v7403
  %v7405 = vsel %vm7402, %v7404, %v7400
  %v7406 = vmul.f32 %v6421, %v7405
  %v7407 = vrcp.pop %v7279
  %v7408 = vmul.f32 %v7279, %v7407
  %v7409 = vsub.f32 1.0, %v7408
  %v7410 = vmul.f32 %v7407, %v7409
  %v7411 = vadd.f32 %v7407, %v7410
  %vm7412 = vweird.f32 %v7279
  %vm7413 = vweird.f32 %v7407
  %vm7414 = vmor %vm7412, %vm7413
  %v7415 = vsel %vm7414, %v7407, %v7411
  %v7416 = vand.u32 2147483647, %v7279
  %vm7417 = vcmp.eq.f32.partialorder %v7416, 8.507059e+37
  %v7418 = vand.u32 %v7279, 2147483648
  %v7419 = vor.u32 1.1754944e-38, %v7418
  %v7420 = vsel %vm7417, %v7419, %v7415
  %v7421 = vmul.f32 %v6423, %v7420
  %v7422 = vrcp.pop %v7283
  %v7423 = vmul.f32 %v7283, %v7422
  %v7424 = vsub.f32 1.0, %v7423
  %v7425 = vmul.f32 %v7422, %v7424
  %v7426 = vadd.f32 %v7422, %v7425
  %vm7427 = vweird.f32 %v7283
  %vm7428 = vweird.f32 %v7422
  %vm7429 = vmor %vm7427, %vm7428
  %v7430 = vsel %vm7429, %v7422, %v7426
  %v7431 = vand.u32 2147483647, %v7283
  %vm7432 = vcmp.eq.f32.partialorder %v7431, 8.507059e+37
  %v7433 = vand.u32 %v7283, 2147483648
  %v7434 = vor.u32 1.1754944e-38, %v7433
  %v7435 = vsel %vm7432, %v7434, %v7430
  %v7436 = vmul.f32 %v6425, %v7435
  %v7437 = vrcp.pop %v7287
  %v7438 = vmul.f32 %v7287, %v7437
  %v7439 = vsub.f32 1.0, %v7438
  %v7440 = vmul.f32 %v7437, %v7439
  %v7441 = vadd.f32 %v7437, %v7440
  %vm7442 = vweird.f32 %v7287
  %vm7443 = vweird.f32 %v7437
  %vm7444 = vmor %vm7442, %vm7443
  %v7445 = vsel %vm7444, %v7437, %v7441
  %v7446 = vand.u32 2147483647, %v7287
  %vm7447 = vcmp.eq.f32.partialorder %v7446, 8.507059e+37
  %v7448 = vand.u32 %v7287, 2147483648
  %v7449 = vor.u32 1.1754944e-38, %v7448
  %v7450 = vsel %vm7447, %v7449, %v7445
  %v7451 = vmul.f32 %v6427, %v7450
  %v7452 = vrcp.pop %v7291
  %v7453 = vmul.f32 %v7291, %v7452
  %v7454 = vsub.f32 1.0, %v7453
  %v7455 = vmul.f32 %v7452, %v7454
  %v7456 = vadd.f32 %v7452, %v7455
  %vm7457 = vweird.f32 %v7291
  %vm7458 = vweird.f32 %v7452
  %vm7459 = vmor %vm7457, %vm7458
  %v7460 = vsel %vm7459, %v7452, %v7456
  %v7461 = vand.u32 2147483647, %v7291
  %vm7462 = vcmp.eq.f32.partialorder %v7461, 8.507059e+37
  %v7463 = vand.u32 %v7291, 2147483648
  %v7464 = vor.u32 1.1754944e-38, %v7463
  %v7465 = vsel %vm7462, %v7464, %v7460
  %v7466 = vmul.f32 %v6429, %v7465
  %v7467 = vrcp.pop %v7295
  %v7468 = vmul.f32 %v7295, %v7467
  %v7469 = vsub.f32 1.0, %v7468
  %v7470 = vmul.f32 %v7467, %v7469
  %v7471 = vadd.f32 %v7467, %v7470
  %vm7472 = vweird.f32 %v7295
  %vm7473 = vweird.f32 %v7467
  %vm7474 = vmor %vm7472, %vm7473
  %v7475 = vsel %vm7474, %v7467, %v7471
  %v7476 = vand.u32 2147483647, %v7295
  %vm7477 = vcmp.eq.f32.partialorder %v7476, 8.507059e+37
  %v7478 = vand.u32 %v7295, 2147483648
  %v7479 = vor.u32 1.1754944e-38, %v7478
  %v7480 = vsel %vm7477, %v7479, %v7475
  %v7481 = vmul.f32 %v6431, %v7480
  %v7482 = vrcp.pop %v7299
  %v7483 = vmul.f32 %v7299, %v7482
  %v7484 = vsub.f32 1.0, %v7483
  %v7485 = vmul.f32 %v7482, %v7484
  %v7486 = vadd.f32 %v7482, %v7485
  %vm7487 = vweird.f32 %v7299
  %vm7488 = vweird.f32 %v7482
  %vm7489 = vmor %vm7487, %vm7488
  %v7490 = vsel %vm7489, %v7482, %v7486
  %v7491 = vand.u32 2147483647, %v7299
  %vm7492 = vcmp.eq.f32.partialorder %v7491, 8.507059e+37
  %v7493 = vand.u32 %v7299, 2147483648
  %v7494 = vor.u32 1.1754944e-38, %v7493
  %v7495 = vsel %vm7492, %v7494, %v7490
  %v7496 = vmul.f32 %v6433, %v7495
  %v7497 = vrcp.pop %v7303
  %v7498 = vmul.f32 %v7303, %v7497
  %v7499 = vsub.f32 1.0, %v7498
  %v7500 = vmul.f32 %v7497, %v7499
  %v7501 = vadd.f32 %v7497, %v7500
  %vm7502 = vweird.f32 %v7303
  %vm7503 = vweird.f32 %v7497
  %vm7504 = vmor %vm7502, %vm7503
  %v7505 = vsel %vm7504, %v7497, %v7501
  %v7506 = vand.u32 2147483647, %v7303
  %vm7507 = vcmp.eq.f32.partialorder %v7506, 8.507059e+37
  %v7508 = vand.u32 %v7303, 2147483648
  %v7509 = vor.u32 1.1754944e-38, %v7508
  %v7510 = vsel %vm7507, %v7509, %v7505
  %v7511 = vmul.f32 %v6435, %v7510
  %v7512 = vrcp.pop %v7307
  %v7513 = vmul.f32 %v7307, %v7512
  %v7514 = vsub.f32 1.0, %v7513
  %v7515 = vmul.f32 %v7512, %v7514
  %v7516 = vadd.f32 %v7512, %v7515
  %vm7517 = vweird.f32 %v7307
  %vm7518 = vweird.f32 %v7512
  %vm7519 = vmor %vm7517, %vm7518
  %v7520 = vsel %vm7519, %v7512, %v7516
  %v7521 = vand.u32 2147483647, %v7307
  %vm7522 = vcmp.eq.f32.partialorder %v7521, 8.507059e+37
  %v7523 = vand.u32 %v7307, 2147483648
  %v7524 = vor.u32 1.1754944e-38, %v7523
  %v7525 = vsel %vm7522, %v7524, %v7520
  %v7526 = vmul.f32 %v6437, %v7525
  %v7527 = vrcp.pop %v7311
  %v7528 = vmul.f32 %v7311, %v7527
  %v7529 = vsub.f32 1.0, %v7528
  %v7530 = vmul.f32 %v7527, %v7529
  %v7531 = vadd.f32 %v7527, %v7530
  %vm7532 = vweird.f32 %v7311
  %vm7533 = vweird.f32 %v7527
  %vm7534 = vmor %vm7532, %vm7533
  %v7535 = vsel %vm7534, %v7527, %v7531
  %v7536 = vand.u32 2147483647, %v7311
  %vm7537 = vcmp.eq.f32.partialorder %v7536, 8.507059e+37
  %v7538 = vand.u32 %v7311, 2147483648
  %v7539 = vor.u32 1.1754944e-38, %v7538
  %v7540 = vsel %vm7537, %v7539, %v7535
  %v7541 = vmul.f32 %v6439, %v7540
  %v7542 = vrcp.pop %v7315
  %v7543 = vmul.f32 %v7315, %v7542
  %v7544 = vsub.f32 1.0, %v7543
  %v7545 = vmul.f32 %v7542, %v7544
  %v7546 = vadd.f32 %v7542, %v7545
  %vm7547 = vweird.f32 %v7315
  %vm7548 = vweird.f32 %v7542
  %vm7549 = vmor %vm7547, %vm7548
  %v7550 = vsel %vm7549, %v7542, %v7546
  %v7551 = vand.u32 2147483647, %v7315
  %vm7552 = vcmp.eq.f32.partialorder %v7551, 8.507059e+37
  %v7553 = vand.u32 %v7315, 2147483648
  %v7554 = vor.u32 1.1754944e-38, %v7553
  %v7555 = vsel %vm7552, %v7554, %v7550
  %v7556 = vmul.f32 %v6441, %v7555
  %v7557 = vand.u32 %v6510, 4294901760
  %7558 = vmatpush.msra.mxu0 %v7557
  %v7559 = vand.u32 %v6508, 4294901760
  %7560 = vmatpush.msra.mxu0 %v7559
  %v7561 = vand.u32 %v6506, 4294901760
  %7562 = vmatpush.msra.mxu0 %v7561
  %v7563 = vand.u32 %v6504, 4294901760
  %7564 = vmatpush.msra.mxu0 %v7563
  %v7565 = vand.u32 %v6502, 4294901760
  %7566 = vmatpush.msra.mxu0 %v7565
  %v7567 = vand.u32 %v6500, 4294901760
  %7568 = vmatpush.msra.mxu0 %v7567
  %v7569 = vand.u32 %v6498, 4294901760
  %7570 = vmatpush.msra.mxu0 %v7569
  %v7571 = vand.u32 %v6496, 4294901760
  %7572 = vmatpush.msra.mxu0 %v7571
  %v7573 = vand.u32 %v6494, 4294901760
  %7574 = vmatpush.msra.mxu0 %v7573
  %v7575 = vand.u32 %v6492, 4294901760
  %7576 = vmatpush.msra.mxu0 %v7575
  %v7577 = vand.u32 %v6490, 4294901760
  %7578 = vmatpush.msra.mxu0 %v7577
  %v7579 = vand.u32 %v6488, 4294901760
  %7580 = vmatpush.msra.mxu0 %v7579
  %v7581 = vand.u32 %v6486, 4294901760
  %7582 = vmatpush.msra.mxu0 %v7581
  %v7583 = vand.u32 %v6484, 4294901760
  %7584 = vmatpush.msra.mxu0 %v7583
  %v7585 = vand.u32 %v6482, 4294901760
  %7586 = vmatpush.msra.mxu0 %v7585
  %v7587 = vand.u32 %v6480, 4294901760
  %7588 = vmatpush.msra.mxu0 %v7587
  %v7589 = vand.u32 %v6357, 4294901760
  %v7590 = vsub.f32 %v6357, %v7589
  %v7591 = vand.u32 %v7590, 4294901760
  %v7592 = vsub.f32 %v7590, %v7591
  %v7593 = vand.u32 %v7592, 4294901760
  %7594 = vmatmul.f32.gmra.mxu0 %v7593
  %v7595 = vpop.f32.mrf.mxu0
  %v7596 = vadd.f32 0.0, %v7595
  %v7597 = vand.u32 %v6358, 4294901760
  %v7598 = vsub.f32 %v6358, %v7597
  %v7599 = vand.u32 %v7598, 4294901760
  %v7600 = vsub.f32 %v7598, %v7599
  %v7601 = vand.u32 %v7600, 4294901760
  %7602 = vmatmul.f32.gmra.mxu0 %v7601
  %v7603 = vpop.f32.mrf.mxu0
  %v7604 = vadd.f32 0.0, %v7603
  %v7605 = vand.u32 %v6359, 4294901760
  %v7606 = vsub.f32 %v6359, %v7605
  %v7607 = vand.u32 %v7606, 4294901760
  %v7608 = vsub.f32 %v7606, %v7607
  %v7609 = vand.u32 %v7608, 4294901760
  %7610 = vmatmul.f32.gmra.mxu0 %v7609
  %v7611 = vpop.f32.mrf.mxu0
  %v7612 = vadd.f32 0.0, %v7611
  %v7613 = vand.u32 %v6360, 4294901760
  %v7614 = vsub.f32 %v6360, %v7613
  %v7615 = vand.u32 %v7614, 4294901760
  %v7616 = vsub.f32 %v7614, %v7615
  %v7617 = vand.u32 %v7616, 4294901760
  %7618 = vmatmul.f32.gmra.mxu0 %v7617
  %v7619 = vpop.f32.mrf.mxu0
  %v7620 = vadd.f32 0.0, %v7619
  %v7621 = vand.u32 %v6361, 4294901760
  %v7622 = vsub.f32 %v6361, %v7621
  %v7623 = vand.u32 %v7622, 4294901760
  %v7624 = vsub.f32 %v7622, %v7623
  %v7625 = vand.u32 %v7624, 4294901760
  %7626 = vmatmul.f32.gmra.mxu0 %v7625
  %v7627 = vpop.f32.mrf.mxu0
  %v7628 = vadd.f32 0.0, %v7627
  %v7629 = vand.u32 %v6362, 4294901760
  %v7630 = vsub.f32 %v6362, %v7629
  %v7631 = vand.u32 %v7630, 4294901760
  %v7632 = vsub.f32 %v7630, %v7631
  %v7633 = vand.u32 %v7632, 4294901760
  %7634 = vmatmul.f32.gmra.mxu0 %v7633
  %v7635 = vpop.f32.mrf.mxu0
  %v7636 = vadd.f32 0.0, %v7635
  %v7637 = vand.u32 %v6363, 4294901760
  %v7638 = vsub.f32 %v6363, %v7637
  %v7639 = vand.u32 %v7638, 4294901760
  %v7640 = vsub.f32 %v7638, %v7639
  %v7641 = vand.u32 %v7640, 4294901760
  %7642 = vmatmul.f32.gmra.mxu0 %v7641
  %v7643 = vpop.f32.mrf.mxu0
  %v7644 = vadd.f32 0.0, %v7643
  %v7645 = vand.u32 %v6364, 4294901760
  %v7646 = vsub.f32 %v6364, %v7645
  %v7647 = vand.u32 %v7646, 4294901760
  %v7648 = vsub.f32 %v7646, %v7647
  %v7649 = vand.u32 %v7648, 4294901760
  %7650 = vmatmul.f32.gmra.mxu0 %v7649
  %v7651 = vpop.f32.mrf.mxu0
  %v7652 = vadd.f32 0.0, %v7651
  %v7653 = vand.u32 %v6365, 4294901760
  %v7654 = vsub.f32 %v6365, %v7653
  %v7655 = vand.u32 %v7654, 4294901760
  %v7656 = vsub.f32 %v7654, %v7655
  %v7657 = vand.u32 %v7656, 4294901760
  %7658 = vmatmul.f32.gmra.mxu0 %v7657
  %v7659 = vpop.f32.mrf.mxu0
  %v7660 = vadd.f32 0.0, %v7659
  %v7661 = vand.u32 %v6366, 4294901760
  %v7662 = vsub.f32 %v6366, %v7661
  %v7663 = vand.u32 %v7662, 4294901760
  %v7664 = vsub.f32 %v7662, %v7663
  %v7665 = vand.u32 %v7664, 4294901760
  %7666 = vmatmul.f32.gmra.mxu0 %v7665
  %v7667 = vpop.f32.mrf.mxu0
  %v7668 = vadd.f32 0.0, %v7667
  %v7669 = vand.u32 %v6367, 4294901760
  %v7670 = vsub.f32 %v6367, %v7669
  %v7671 = vand.u32 %v7670, 4294901760
  %v7672 = vsub.f32 %v7670, %v7671
  %v7673 = vand.u32 %v7672, 4294901760
  %7674 = vmatmul.f32.gmra.mxu0 %v7673
  %v7675 = vpop.f32.mrf.mxu0
  %v7676 = vadd.f32 0.0, %v7675
  %v7677 = vand.u32 %v6368, 4294901760
  %v7678 = vsub.f32 %v6368, %v7677
  %v7679 = vand.u32 %v7678, 4294901760
  %v7680 = vsub.f32 %v7678, %v7679
  %v7681 = vand.u32 %v7680, 4294901760
  %7682 = vmatmul.f32.gmra.mxu0 %v7681
  %v7683 = vpop.f32.mrf.mxu0
  %v7684 = vadd.f32 0.0, %v7683
  %v7685 = vand.u32 %v6369, 4294901760
  %v7686 = vsub.f32 %v6369, %v7685
  %v7687 = vand.u32 %v7686, 4294901760
  %v7688 = vsub.f32 %v7686, %v7687
  %v7689 = vand.u32 %v7688, 4294901760
  %7690 = vmatmul.f32.gmra.mxu0 %v7689
  %v7691 = vpop.f32.mrf.mxu0
  %v7692 = vadd.f32 0.0, %v7691
  %v7693 = vand.u32 %v6370, 4294901760
  %v7694 = vsub.f32 %v6370, %v7693
  %v7695 = vand.u32 %v7694, 4294901760
  %v7696 = vsub.f32 %v7694, %v7695
  %v7697 = vand.u32 %v7696, 4294901760
  %7698 = vmatmul.f32.gmra.mxu0 %v7697
  %v7699 = vpop.f32.mrf.mxu0
  %v7700 = vadd.f32 0.0, %v7699
  %v7701 = vand.u32 %v6371, 4294901760
  %v7702 = vsub.f32 %v6371, %v7701
  %v7703 = vand.u32 %v7702, 4294901760
  %v7704 = vsub.f32 %v7702, %v7703
  %v7705 = vand.u32 %v7704, 4294901760
  %7706 = vmatmul.f32.gmra.mxu0 %v7705
  %v7707 = vpop.f32.mrf.mxu0
  %v7708 = vadd.f32 0.0, %v7707
  %v7709 = vand.u32 %v6372, 4294901760
  %v7710 = vsub.f32 %v6372, %v7709
  %v7711 = vand.u32 %v7710, 4294901760
  %v7712 = vsub.f32 %v7710, %v7711
  %v7713 = vand.u32 %v7712, 4294901760
  %7714 = vmatmul.f32.gmra.mxu0 %v7713
  %v7715 = vpop.f32.mrf.mxu0
  %v7716 = vadd.f32 0.0, %v7715
  %7717 = vdwg.mxu0
  %v7718 = vand.u32 %v6510, 4294901760
  %v7719 = vsub.f32 %v6510, %v7718
  %v7720 = vand.u32 %v7719, 4294901760
  %v7721 = vsub.f32 %v7719, %v7720
  %v7722 = vand.u32 %v7721, 4294901760
  %7723 = vmatpush.msra.mxu0 %v7722
  %v7724 = vand.u32 %v6508, 4294901760
  %v7725 = vsub.f32 %v6508, %v7724
  %v7726 = vand.u32 %v7725, 4294901760
  %v7727 = vsub.f32 %v7725, %v7726
  %v7728 = vand.u32 %v7727, 4294901760
  %7729 = vmatpush.msra.mxu0 %v7728
  %v7730 = vand.u32 %v6506, 4294901760
  %v7731 = vsub.f32 %v6506, %v7730
  %v7732 = vand.u32 %v7731, 4294901760
  %v7733 = vsub.f32 %v7731, %v7732
  %v7734 = vand.u32 %v7733, 4294901760
  %7735 = vmatpush.msra.mxu0 %v7734
  %v7736 = vand.u32 %v6504, 4294901760
  %v7737 = vsub.f32 %v6504, %v7736
  %v7738 = vand.u32 %v7737, 4294901760
  %v7739 = vsub.f32 %v7737, %v7738
  %v7740 = vand.u32 %v7739, 4294901760
  %7741 = vmatpush.msra.mxu0 %v7740
  %v7742 = vand.u32 %v6502, 4294901760
  %v7743 = vsub.f32 %v6502, %v7742
  %v7744 = vand.u32 %v7743, 4294901760
  %v7745 = vsub.f32 %v7743, %v7744
  %v7746 = vand.u32 %v7745, 4294901760
  %7747 = vmatpush.msra.mxu0 %v7746
  %v7748 = vand.u32 %v6500, 4294901760
  %v7749 = vsub.f32 %v6500, %v7748
  %v7750 = vand.u32 %v7749, 4294901760
  %v7751 = vsub.f32 %v7749, %v7750
  %v7752 = vand.u32 %v7751, 4294901760
  %7753 = vmatpush.msra.mxu0 %v7752
  %v7754 = vand.u32 %v6498, 4294901760
  %v7755 = vsub.f32 %v6498, %v7754
  %v7756 = vand.u32 %v7755, 4294901760
  %v7757 = vsub.f32 %v7755, %v7756
  %v7758 = vand.u32 %v7757, 4294901760
  %7759 = vmatpush.msra.mxu0 %v7758
  %v7760 = vand.u32 %v6496, 4294901760
  %v7761 = vsub.f32 %v6496, %v7760
  %v7762 = vand.u32 %v7761, 4294901760
  %v7763 = vsub.f32 %v7761, %v7762
  %v7764 = vand.u32 %v7763, 4294901760
  %7765 = vmatpush.msra.mxu0 %v7764
  %v7766 = vand.u32 %v6494, 4294901760
  %v7767 = vsub.f32 %v6494, %v7766
  %v7768 = vand.u32 %v7767, 4294901760
  %v7769 = vsub.f32 %v7767, %v7768
  %v7770 = vand.u32 %v7769, 4294901760
  %7771 = vmatpush.msra.mxu0 %v7770
  %v7772 = vand.u32 %v6492, 4294901760
  %v7773 = vsub.f32 %v6492, %v7772
  %v7774 = vand.u32 %v7773, 4294901760
  %v7775 = vsub.f32 %v7773, %v7774
  %v7776 = vand.u32 %v7775, 4294901760
  %7777 = vmatpush.msra.mxu0 %v7776
  %v7778 = vand.u32 %v6490, 4294901760
  %v7779 = vsub.f32 %v6490, %v7778
  %v7780 = vand.u32 %v7779, 4294901760
  %v7781 = vsub.f32 %v7779, %v7780
  %v7782 = vand.u32 %v7781, 4294901760
  %7783 = vmatpush.msra.mxu0 %v7782
  %v7784 = vand.u32 %v6488, 4294901760
  %v7785 = vsub.f32 %v6488, %v7784
  %v7786 = vand.u32 %v7785, 4294901760
  %v7787 = vsub.f32 %v7785, %v7786
  %v7788 = vand.u32 %v7787, 4294901760
  %7789 = vmatpush.msra.mxu0 %v7788
  %v7790 = vand.u32 %v6486, 4294901760
  %v7791 = vsub.f32 %v6486, %v7790
  %v7792 = vand.u32 %v7791, 4294901760
  %v7793 = vsub.f32 %v7791, %v7792
  %v7794 = vand.u32 %v7793, 4294901760
  %7795 = vmatpush.msra.mxu0 %v7794
  %v7796 = vand.u32 %v6484, 4294901760
  %v7797 = vsub.f32 %v6484, %v7796
  %v7798 = vand.u32 %v7797, 4294901760
  %v7799 = vsub.f32 %v7797, %v7798
  %v7800 = vand.u32 %v7799, 4294901760
  %7801 = vmatpush.msra.mxu0 %v7800
  %v7802 = vand.u32 %v6482, 4294901760
  %v7803 = vsub.f32 %v6482, %v7802
  %v7804 = vand.u32 %v7803, 4294901760
  %v7805 = vsub.f32 %v7803, %v7804
  %v7806 = vand.u32 %v7805, 4294901760
  %7807 = vmatpush.msra.mxu0 %v7806
  %v7808 = vand.u32 %v6480, 4294901760
  %v7809 = vsub.f32 %v6480, %v7808
  %v7810 = vand.u32 %v7809, 4294901760
  %v7811 = vsub.f32 %v7809, %v7810
  %v7812 = vand.u32 %v7811, 4294901760
  %7813 = vmatpush.msra.mxu0 %v7812
  %v7814 = vand.u32 %v6357, 4294901760
  %7815 = vmatmul.f32.gmra.mxu0 %v7814
  %v7816 = vpop.f32.mrf.mxu0
  %v7817 = vadd.f32 %v7596, %v7816
  %v7818 = vand.u32 %v6358, 4294901760
  %7819 = vmatmul.f32.gmra.mxu0 %v7818
  %v7820 = vpop.f32.mrf.mxu0
  %v7821 = vadd.f32 %v7604, %v7820
  %v7822 = vand.u32 %v6359, 4294901760
  %7823 = vmatmul.f32.gmra.mxu0 %v7822
  %v7824 = vpop.f32.mrf.mxu0
  %v7825 = vadd.f32 %v7612, %v7824
  %v7826 = vand.u32 %v6360, 4294901760
  %7827 = vmatmul.f32.gmra.mxu0 %v7826
  %v7828 = vpop.f32.mrf.mxu0
  %v7829 = vadd.f32 %v7620, %v7828
  %v7830 = vand.u32 %v6361, 4294901760
  %7831 = vmatmul.f32.gmra.mxu0 %v7830
  %v7832 = vpop.f32.mrf.mxu0
  %v7833 = vadd.f32 %v7628, %v7832
  %v7834 = vand.u32 %v6362, 4294901760
  %7835 = vmatmul.f32.gmra.mxu0 %v7834
  %v7836 = vpop.f32.mrf.mxu0
  %v7837 = vadd.f32 %v7636, %v7836
  %v7838 = vand.u32 %v6363, 4294901760
  %7839 = vmatmul.f32.gmra.mxu0 %v7838
  %v7840 = vpop.f32.mrf.mxu0
  %v7841 = vadd.f32 %v7644, %v7840
  %v7842 = vand.u32 %v6364, 4294901760
  %7843 = vmatmul.f32.gmra.mxu0 %v7842
  %v7844 = vpop.f32.mrf.mxu0
  %v7845 = vadd.f32 %v7652, %v7844
  %v7846 = vand.u32 %v6365, 4294901760
  %7847 = vmatmul.f32.gmra.mxu0 %v7846
  %v7848 = vpop.f32.mrf.mxu0
  %v7849 = vadd.f32 %v7660, %v7848
  %v7850 = vand.u32 %v6366, 4294901760
  %7851 = vmatmul.f32.gmra.mxu0 %v7850
  %v7852 = vpop.f32.mrf.mxu0
  %v7853 = vadd.f32 %v7668, %v7852
  %v7854 = vand.u32 %v6367, 4294901760
  %7855 = vmatmul.f32.gmra.mxu0 %v7854
  %v7856 = vpop.f32.mrf.mxu0
  %v7857 = vadd.f32 %v7676, %v7856
  %v7858 = vand.u32 %v6368, 4294901760
  %7859 = vmatmul.f32.gmra.mxu0 %v7858
  %v7860 = vpop.f32.mrf.mxu0
  %v7861 = vadd.f32 %v7684, %v7860
  %v7862 = vand.u32 %v6369, 4294901760
  %7863 = vmatmul.f32.gmra.mxu0 %v7862
  %v7864 = vpop.f32.mrf.mxu0
  %v7865 = vadd.f32 %v7692, %v7864
  %v7866 = vand.u32 %v6370, 4294901760
  %7867 = vmatmul.f32.gmra.mxu0 %v7866
  %v7868 = vpop.f32.mrf.mxu0
  %v7869 = vadd.f32 %v7700, %v7868
  %v7870 = vand.u32 %v6371, 4294901760
  %7871 = vmatmul.f32.gmra.mxu0 %v7870
  %v7872 = vpop.f32.mrf.mxu0
  %v7873 = vadd.f32 %v7708, %v7872
  %v7874 = vand.u32 %v6372, 4294901760
  %7875 = vmatmul.f32.gmra.mxu0 %v7874
  %v7876 = vpop.f32.mrf.mxu0
  %v7877 = vadd.f32 %v7716, %v7876
  %7878 = vdwg.mxu0
  %v7879 = vand.u32 %v6510, 4294901760
  %v7880 = vsub.f32 %v6510, %v7879
  %7881 = vmatpush.msra.mxu0 %v7880
  %v7882 = vand.u32 %v6508, 4294901760
  %v7883 = vsub.f32 %v6508, %v7882
  %7884 = vmatpush.msra.mxu0 %v7883
  %v7885 = vand.u32 %v6506, 4294901760
  %v7886 = vsub.f32 %v6506, %v7885
  %7887 = vmatpush.msra.mxu0 %v7886
  %v7888 = vand.u32 %v6504, 4294901760
  %v7889 = vsub.f32 %v6504, %v7888
  %7890 = vmatpush.msra.mxu0 %v7889
  %v7891 = vand.u32 %v6502, 4294901760
  %v7892 = vsub.f32 %v6502, %v7891
  %7893 = vmatpush.msra.mxu0 %v7892
  %v7894 = vand.u32 %v6500, 4294901760
  %v7895 = vsub.f32 %v6500, %v7894
  %7896 = vmatpush.msra.mxu0 %v7895
  %v7897 = vand.u32 %v6498, 4294901760
  %v7898 = vsub.f32 %v6498, %v7897
  %7899 = vmatpush.msra.mxu0 %v7898
  %v7900 = vand.u32 %v6496, 4294901760
  %v7901 = vsub.f32 %v6496, %v7900
  %7902 = vmatpush.msra.mxu0 %v7901
  %v7903 = vand.u32 %v6494, 4294901760
  %v7904 = vsub.f32 %v6494, %v7903
  %7905 = vmatpush.msra.mxu0 %v7904
  %v7906 = vand.u32 %v6492, 4294901760
  %v7907 = vsub.f32 %v6492, %v7906
  %7908 = vmatpush.msra.mxu0 %v7907
  %v7909 = vand.u32 %v6490, 4294901760
  %v7910 = vsub.f32 %v6490, %v7909
  %7911 = vmatpush.msra.mxu0 %v7910
  %v7912 = vand.u32 %v6488, 4294901760
  %v7913 = vsub.f32 %v6488, %v7912
  %7914 = vmatpush.msra.mxu0 %v7913
  %v7915 = vand.u32 %v6486, 4294901760
  %v7916 = vsub.f32 %v6486, %v7915
  %7917 = vmatpush.msra.mxu0 %v7916
  %v7918 = vand.u32 %v6484, 4294901760
  %v7919 = vsub.f32 %v6484, %v7918
  %7920 = vmatpush.msra.mxu0 %v7919
  %v7921 = vand.u32 %v6482, 4294901760
  %v7922 = vsub.f32 %v6482, %v7921
  %7923 = vmatpush.msra.mxu0 %v7922
  %v7924 = vand.u32 %v6480, 4294901760
  %v7925 = vsub.f32 %v6480, %v7924
  %7926 = vmatpush.msra.mxu0 %v7925
  %v7927 = vand.u32 %v6357, 4294901760
  %v7928 = vsub.f32 %v6357, %v7927
  %7929 = vmatmul.f32.gmra.mxu0 %v7928
  %v7930 = vpop.f32.mrf.mxu0
  %v7931 = vadd.f32 %v7817, %v7930
  %v7932 = vand.u32 %v6358, 4294901760
  %v7933 = vsub.f32 %v6358, %v7932
  %7934 = vmatmul.f32.gmra.mxu0 %v7933
  %v7935 = vpop.f32.mrf.mxu0
  %v7936 = vadd.f32 %v7821, %v7935
  %v7937 = vand.u32 %v6359, 4294901760
  %v7938 = vsub.f32 %v6359, %v7937
  %7939 = vmatmul.f32.gmra.mxu0 %v7938
  %v7940 = vpop.f32.mrf.mxu0
  %v7941 = vadd.f32 %v7825, %v7940
  %v7942 = vand.u32 %v6360, 4294901760
  %v7943 = vsub.f32 %v6360, %v7942
  %7944 = vmatmul.f32.gmra.mxu0 %v7943
  %v7945 = vpop.f32.mrf.mxu0
  %v7946 = vadd.f32 %v7829, %v7945
  %v7947 = vand.u32 %v6361, 4294901760
  %v7948 = vsub.f32 %v6361, %v7947
  %7949 = vmatmul.f32.gmra.mxu0 %v7948
  %v7950 = vpop.f32.mrf.mxu0
  %v7951 = vadd.f32 %v7833, %v7950
  %v7952 = vand.u32 %v6362, 4294901760
  %v7953 = vsub.f32 %v6362, %v7952
  %7954 = vmatmul.f32.gmra.mxu0 %v7953
  %v7955 = vpop.f32.mrf.mxu0
  %v7956 = vadd.f32 %v7837, %v7955
  %v7957 = vand.u32 %v6363, 4294901760
  %v7958 = vsub.f32 %v6363, %v7957
  %7959 = vmatmul.f32.gmra.mxu0 %v7958
  %v7960 = vpop.f32.mrf.mxu0
  %v7961 = vadd.f32 %v7841, %v7960
  %v7962 = vand.u32 %v6364, 4294901760
  %v7963 = vsub.f32 %v6364, %v7962
  %7964 = vmatmul.f32.gmra.mxu0 %v7963
  %v7965 = vpop.f32.mrf.mxu0
  %v7966 = vadd.f32 %v7845, %v7965
  %v7967 = vand.u32 %v6365, 4294901760
  %v7968 = vsub.f32 %v6365, %v7967
  %7969 = vmatmul.f32.gmra.mxu0 %v7968
  %v7970 = vpop.f32.mrf.mxu0
  %v7971 = vadd.f32 %v7849, %v7970
  %v7972 = vand.u32 %v6366, 4294901760
  %v7973 = vsub.f32 %v6366, %v7972
  %7974 = vmatmul.f32.gmra.mxu0 %v7973
  %v7975 = vpop.f32.mrf.mxu0
  %v7976 = vadd.f32 %v7853, %v7975
  %v7977 = vand.u32 %v6367, 4294901760
  %v7978 = vsub.f32 %v6367, %v7977
  %7979 = vmatmul.f32.gmra.mxu0 %v7978
  %v7980 = vpop.f32.mrf.mxu0
  %v7981 = vadd.f32 %v7857, %v7980
  %v7982 = vand.u32 %v6368, 4294901760
  %v7983 = vsub.f32 %v6368, %v7982
  %7984 = vmatmul.f32.gmra.mxu0 %v7983
  %v7985 = vpop.f32.mrf.mxu0
  %v7986 = vadd.f32 %v7861, %v7985
  %v7987 = vand.u32 %v6369, 4294901760
  %v7988 = vsub.f32 %v6369, %v7987
  %7989 = vmatmul.f32.gmra.mxu0 %v7988
  %v7990 = vpop.f32.mrf.mxu0
  %v7991 = vadd.f32 %v7865, %v7990
  %v7992 = vand.u32 %v6370, 4294901760
  %v7993 = vsub.f32 %v6370, %v7992
  %7994 = vmatmul.f32.gmra.mxu0 %v7993
  %v7995 = vpop.f32.mrf.mxu0
  %v7996 = vadd.f32 %v7869, %v7995
  %v7997 = vand.u32 %v6371, 4294901760
  %v7998 = vsub.f32 %v6371, %v7997
  %7999 = vmatmul.f32.gmra.mxu0 %v7998
  %v8000 = vpop.f32.mrf.mxu0
  %v8001 = vadd.f32 %v7873, %v8000
  %v8002 = vand.u32 %v6372, 4294901760
  %v8003 = vsub.f32 %v6372, %v8002
  %8004 = vmatmul.f32.gmra.mxu0 %v8003
  %v8005 = vpop.f32.mrf.mxu0
  %v8006 = vadd.f32 %v7877, %v8005
  %8007 = vdwg.mxu0
  %v8008 = vand.u32 %v6510, 4294901760
  %8009 = vmatpush.msra.mxu0 %v8008
  %v8010 = vand.u32 %v6508, 4294901760
  %8011 = vmatpush.msra.mxu0 %v8010
  %v8012 = vand.u32 %v6506, 4294901760
  %8013 = vmatpush.msra.mxu0 %v8012
  %v8014 = vand.u32 %v6504, 4294901760
  %8015 = vmatpush.msra.mxu0 %v8014
  %v8016 = vand.u32 %v6502, 4294901760
  %8017 = vmatpush.msra.mxu0 %v8016
  %v8018 = vand.u32 %v6500, 4294901760
  %8019 = vmatpush.msra.mxu0 %v8018
  %v8020 = vand.u32 %v6498, 4294901760
  %8021 = vmatpush.msra.mxu0 %v8020
  %v8022 = vand.u32 %v6496, 4294901760
  %8023 = vmatpush.msra.mxu0 %v8022
  %v8024 = vand.u32 %v6494, 4294901760
  %8025 = vmatpush.msra.mxu0 %v8024
  %v8026 = vand.u32 %v6492, 4294901760
  %8027 = vmatpush.msra.mxu0 %v8026
  %v8028 = vand.u32 %v6490, 4294901760
  %8029 = vmatpush.msra.mxu0 %v8028
  %v8030 = vand.u32 %v6488, 4294901760
  %8031 = vmatpush.msra.mxu0 %v8030
  %v8032 = vand.u32 %v6486, 4294901760
  %8033 = vmatpush.msra.mxu0 %v8032
  %v8034 = vand.u32 %v6484, 4294901760
  %8035 = vmatpush.msra.mxu0 %v8034
  %v8036 = vand.u32 %v6482, 4294901760
  %8037 = vmatpush.msra.mxu0 %v8036
  %v8038 = vand.u32 %v6480, 4294901760
  %8039 = vmatpush.msra.mxu0 %v8038
  %v8040 = vand.u32 %v6357, 4294901760
  %v8041 = vsub.f32 %v6357, %v8040
  %v8042 = vand.u32 %v8041, 4294901760
  %8043 = vmatmul.f32.gmra.mxu0 %v8042
  %v8044 = vpop.f32.mrf.mxu0
  %v8045 = vadd.f32 %v7931, %v8044
  %v8046 = vand.u32 %v6358, 4294901760
  %v8047 = vsub.f32 %v6358, %v8046
  %v8048 = vand.u32 %v8047, 4294901760
  %8049 = vmatmul.f32.gmra.mxu0 %v8048
  %v8050 = vpop.f32.mrf.mxu0
  %v8051 = vadd.f32 %v7936, %v8050
  %v8052 = vand.u32 %v6359, 4294901760
  %v8053 = vsub.f32 %v6359, %v8052
  %v8054 = vand.u32 %v8053, 4294901760
  %8055 = vmatmul.f32.gmra.mxu0 %v8054
  %v8056 = vpop.f32.mrf.mxu0
  %v8057 = vadd.f32 %v7941, %v8056
  %v8058 = vand.u32 %v6360, 4294901760
  %v8059 = vsub.f32 %v6360, %v8058
  %v8060 = vand.u32 %v8059, 4294901760
  %8061 = vmatmul.f32.gmra.mxu0 %v8060
  %v8062 = vpop.f32.mrf.mxu0
  %v8063 = vadd.f32 %v7946, %v8062
  %v8064 = vand.u32 %v6361, 4294901760
  %v8065 = vsub.f32 %v6361, %v8064
  %v8066 = vand.u32 %v8065, 4294901760
  %8067 = vmatmul.f32.gmra.mxu0 %v8066
  %v8068 = vpop.f32.mrf.mxu0
  %v8069 = vadd.f32 %v7951, %v8068
  %v8070 = vand.u32 %v6362, 4294901760
  %v8071 = vsub.f32 %v6362, %v8070
  %v8072 = vand.u32 %v8071, 4294901760
  %8073 = vmatmul.f32.gmra.mxu0 %v8072
  %v8074 = vpop.f32.mrf.mxu0
  %v8075 = vadd.f32 %v7956, %v8074
  %v8076 = vand.u32 %v6363, 4294901760
  %v8077 = vsub.f32 %v6363, %v8076
  %v8078 = vand.u32 %v8077, 4294901760
  %8079 = vmatmul.f32.gmra.mxu0 %v8078
  %v8080 = vpop.f32.mrf.mxu0
  %v8081 = vadd.f32 %v7961, %v8080
  %v8082 = vand.u32 %v6364, 4294901760
  %v8083 = vsub.f32 %v6364, %v8082
  %v8084 = vand.u32 %v8083, 4294901760
  %8085 = vmatmul.f32.gmra.mxu0 %v8084
  %v8086 = vpop.f32.mrf.mxu0
  %v8087 = vadd.f32 %v7966, %v8086
  %v8088 = vand.u32 %v6365, 4294901760
  %v8089 = vsub.f32 %v6365, %v8088
  %v8090 = vand.u32 %v8089, 4294901760
  %8091 = vmatmul.f32.gmra.mxu0 %v8090
  %v8092 = vpop.f32.mrf.mxu0
  %v8093 = vadd.f32 %v7971, %v8092
  %v8094 = vand.u32 %v6366, 4294901760
  %v8095 = vsub.f32 %v6366, %v8094
  %v8096 = vand.u32 %v8095, 4294901760
  %8097 = vmatmul.f32.gmra.mxu0 %v8096
  %v8098 = vpop.f32.mrf.mxu0
  %v8099 = vadd.f32 %v7976, %v8098
  %v8100 = vand.u32 %v6367, 4294901760
  %v8101 = vsub.f32 %v6367, %v8100
  %v8102 = vand.u32 %v8101, 4294901760
  %8103 = vmatmul.f32.gmra.mxu0 %v8102
  %v8104 = vpop.f32.mrf.mxu0
  %v8105 = vadd.f32 %v7981, %v8104
  %v8106 = vand.u32 %v6368, 4294901760
  %v8107 = vsub.f32 %v6368, %v8106
  %v8108 = vand.u32 %v8107, 4294901760
  %8109 = vmatmul.f32.gmra.mxu0 %v8108
  %v8110 = vpop.f32.mrf.mxu0
  %v8111 = vadd.f32 %v7986, %v8110
  %v8112 = vand.u32 %v6369, 4294901760
  %v8113 = vsub.f32 %v6369, %v8112
  %v8114 = vand.u32 %v8113, 4294901760
  %8115 = vmatmul.f32.gmra.mxu0 %v8114
  %v8116 = vpop.f32.mrf.mxu0
  %v8117 = vadd.f32 %v7991, %v8116
  %v8118 = vand.u32 %v6370, 4294901760
  %v8119 = vsub.f32 %v6370, %v8118
  %v8120 = vand.u32 %v8119, 4294901760
  %8121 = vmatmul.f32.gmra.mxu0 %v8120
  %v8122 = vpop.f32.mrf.mxu0
  %v8123 = vadd.f32 %v7996, %v8122
  %v8124 = vand.u32 %v6371, 4294901760
  %v8125 = vsub.f32 %v6371, %v8124
  %v8126 = vand.u32 %v8125, 4294901760
  %8127 = vmatmul.f32.gmra.mxu0 %v8126
  %v8128 = vpop.f32.mrf.mxu0
  %v8129 = vadd.f32 %v8001, %v8128
  %v8130 = vand.u32 %v6372, 4294901760
  %v8131 = vsub.f32 %v6372, %v8130
  %v8132 = vand.u32 %v8131, 4294901760
  %8133 = vmatmul.f32.gmra.mxu0 %v8132
  %v8134 = vpop.f32.mrf.mxu0
  %v8135 = vadd.f32 %v8006, %v8134
  %8136 = vdwg.mxu0
  %v8137 = vand.u32 %v6510, 4294901760
  %v8138 = vsub.f32 %v6510, %v8137
  %v8139 = vand.u32 %v8138, 4294901760
  %8140 = vmatpush.msra.mxu0 %v8139
  %v8141 = vand.u32 %v6508, 4294901760
  %v8142 = vsub.f32 %v6508, %v8141
  %v8143 = vand.u32 %v8142, 4294901760
  %8144 = vmatpush.msra.mxu0 %v8143
  %v8145 = vand.u32 %v6506, 4294901760
  %v8146 = vsub.f32 %v6506, %v8145
  %v8147 = vand.u32 %v8146, 4294901760
  %8148 = vmatpush.msra.mxu0 %v8147
  %v8149 = vand.u32 %v6504, 4294901760
  %v8150 = vsub.f32 %v6504, %v8149
  %v8151 = vand.u32 %v8150, 4294901760
  %8152 = vmatpush.msra.mxu0 %v8151
  %v8153 = vand.u32 %v6502, 4294901760
  %v8154 = vsub.f32 %v6502, %v8153
  %v8155 = vand.u32 %v8154, 4294901760
  %8156 = vmatpush.msra.mxu0 %v8155
  %v8157 = vand.u32 %v6500, 4294901760
  %v8158 = vsub.f32 %v6500, %v8157
  %v8159 = vand.u32 %v8158, 4294901760
  %8160 = vmatpush.msra.mxu0 %v8159
  %v8161 = vand.u32 %v6498, 4294901760
  %v8162 = vsub.f32 %v6498, %v8161
  %v8163 = vand.u32 %v8162, 4294901760
  %8164 = vmatpush.msra.mxu0 %v8163
  %v8165 = vand.u32 %v6496, 4294901760
  %v8166 = vsub.f32 %v6496, %v8165
  %v8167 = vand.u32 %v8166, 4294901760
  %8168 = vmatpush.msra.mxu0 %v8167
  %v8169 = vand.u32 %v6494, 4294901760
  %v8170 = vsub.f32 %v6494, %v8169
  %v8171 = vand.u32 %v8170, 4294901760
  %8172 = vmatpush.msra.mxu0 %v8171
  %v8173 = vand.u32 %v6492, 4294901760
  %v8174 = vsub.f32 %v6492, %v8173
  %v8175 = vand.u32 %v8174, 4294901760
  %8176 = vmatpush.msra.mxu0 %v8175
  %v8177 = vand.u32 %v6490, 4294901760
  %v8178 = vsub.f32 %v6490, %v8177
  %v8179 = vand.u32 %v8178, 4294901760
  %8180 = vmatpush.msra.mxu0 %v8179
  %v8181 = vand.u32 %v6488, 4294901760
  %v8182 = vsub.f32 %v6488, %v8181
  %v8183 = vand.u32 %v8182, 4294901760
  %8184 = vmatpush.msra.mxu0 %v8183
  %v8185 = vand.u32 %v6486, 4294901760
  %v8186 = vsub.f32 %v6486, %v8185
  %v8187 = vand.u32 %v8186, 4294901760
  %8188 = vmatpush.msra.mxu0 %v8187
  %v8189 = vand.u32 %v6484, 4294901760
  %v8190 = vsub.f32 %v6484, %v8189
  %v8191 = vand.u32 %v8190, 4294901760
  %8192 = vmatpush.msra.mxu0 %v8191
  %v8193 = vand.u32 %v6482, 4294901760
  %v8194 = vsub.f32 %v6482, %v8193
  %v8195 = vand.u32 %v8194, 4294901760
  %8196 = vmatpush.msra.mxu0 %v8195
  %v8197 = vand.u32 %v6480, 4294901760
  %v8198 = vsub.f32 %v6480, %v8197
  %v8199 = vand.u32 %v8198, 4294901760
  %8200 = vmatpush.msra.mxu0 %v8199
  %v8201 = vand.u32 %v6357, 4294901760
  %8202 = vmatmul.f32.gmra.mxu0 %v8201
  %v8203 = vpop.f32.mrf.mxu0
  %v8204 = vadd.f32 %v8045, %v8203
  %v8205 = vand.u32 %v6358, 4294901760
  %8206 = vmatmul.f32.gmra.mxu0 %v8205
  %v8207 = vpop.f32.mrf.mxu0
  %v8208 = vadd.f32 %v8051, %v8207
  %v8209 = vand.u32 %v6359, 4294901760
  %8210 = vmatmul.f32.gmra.mxu0 %v8209
  %v8211 = vpop.f32.mrf.mxu0
  %v8212 = vadd.f32 %v8057, %v8211
  %v8213 = vand.u32 %v6360, 4294901760
  %8214 = vmatmul.f32.gmra.mxu0 %v8213
  %v8215 = vpop.f32.mrf.mxu0
  %v8216 = vadd.f32 %v8063, %v8215
  %v8217 = vand.u32 %v6361, 4294901760
  %8218 = vmatmul.f32.gmra.mxu0 %v8217
  %v8219 = vpop.f32.mrf.mxu0
  %v8220 = vadd.f32 %v8069, %v8219
  %v8221 = vand.u32 %v6362, 4294901760
  %8222 = vmatmul.f32.gmra.mxu0 %v8221
  %v8223 = vpop.f32.mrf.mxu0
  %v8224 = vadd.f32 %v8075, %v8223
  %v8225 = vand.u32 %v6363, 4294901760
  %8226 = vmatmul.f32.gmra.mxu0 %v8225
  %v8227 = vpop.f32.mrf.mxu0
  %v8228 = vadd.f32 %v8081, %v8227
  %v8229 = vand.u32 %v6364, 4294901760
  %8230 = vmatmul.f32.gmra.mxu0 %v8229
  %v8231 = vpop.f32.mrf.mxu0
  %v8232 = vadd.f32 %v8087, %v8231
  %v8233 = vand.u32 %v6365, 4294901760
  %8234 = vmatmul.f32.gmra.mxu0 %v8233
  %v8235 = vpop.f32.mrf.mxu0
  %v8236 = vadd.f32 %v8093, %v8235
  %v8237 = vand.u32 %v6366, 4294901760
  %8238 = vmatmul.f32.gmra.mxu0 %v8237
  %v8239 = vpop.f32.mrf.mxu0
  %v8240 = vadd.f32 %v8099, %v8239
  %v8241 = vand.u32 %v6367, 4294901760
  %8242 = vmatmul.f32.gmra.mxu0 %v8241
  %v8243 = vpop.f32.mrf.mxu0
  %v8244 = vadd.f32 %v8105, %v8243
  %v8245 = vand.u32 %v6368, 4294901760
  %8246 = vmatmul.f32.gmra.mxu0 %v8245
  %v8247 = vpop.f32.mrf.mxu0
  %v8248 = vadd.f32 %v8111, %v8247
  %v8249 = vand.u32 %v6369, 4294901760
  %8250 = vmatmul.f32.gmra.mxu0 %v8249
  %v8251 = vpop.f32.mrf.mxu0
  %v8252 = vadd.f32 %v8117, %v8251
  %v8253 = vand.u32 %v6370, 4294901760
  %8254 = vmatmul.f32.gmra.mxu0 %v8253
  %v8255 = vpop.f32.mrf.mxu0
  %v8256 = vadd.f32 %v8123, %v8255
  %v8257 = vand.u32 %v6371, 4294901760
  %8258 = vmatmul.f32.gmra.mxu0 %v8257
  %v8259 = vpop.f32.mrf.mxu0
  %v8260 = vadd.f32 %v8129, %v8259
  %v8261 = vand.u32 %v6372, 4294901760
  %8262 = vmatmul.f32.gmra.mxu0 %v8261
  %v8263 = vpop.f32.mrf.mxu0
  %v8264 = vadd.f32 %v8135, %v8263
  %8265 = vdwg.mxu0
  %v8266 = vand.u32 %v6510, 4294901760
  %8267 = vmatpush.msra.mxu0 %v8266
  %v8268 = vand.u32 %v6508, 4294901760
  %8269 = vmatpush.msra.mxu0 %v8268
  %v8270 = vand.u32 %v6506, 4294901760
  %8271 = vmatpush.msra.mxu0 %v8270
  %v8272 = vand.u32 %v6504, 4294901760
  %8273 = vmatpush.msra.mxu0 %v8272
  %v8274 = vand.u32 %v6502, 4294901760
  %8275 = vmatpush.msra.mxu0 %v8274
  %v8276 = vand.u32 %v6500, 4294901760
  %8277 = vmatpush.msra.mxu0 %v8276
  %v8278 = vand.u32 %v6498, 4294901760
  %8279 = vmatpush.msra.mxu0 %v8278
  %v8280 = vand.u32 %v6496, 4294901760
  %8281 = vmatpush.msra.mxu0 %v8280
  %v8282 = vand.u32 %v6494, 4294901760
  %8283 = vmatpush.msra.mxu0 %v8282
  %v8284 = vand.u32 %v6492, 4294901760
  %8285 = vmatpush.msra.mxu0 %v8284
  %v8286 = vand.u32 %v6490, 4294901760
  %8287 = vmatpush.msra.mxu0 %v8286
  %v8288 = vand.u32 %v6488, 4294901760
  %8289 = vmatpush.msra.mxu0 %v8288
  %v8290 = vand.u32 %v6486, 4294901760
  %8291 = vmatpush.msra.mxu0 %v8290
  %v8292 = vand.u32 %v6484, 4294901760
  %8293 = vmatpush.msra.mxu0 %v8292
  %v8294 = vand.u32 %v6482, 4294901760
  %8295 = vmatpush.msra.mxu0 %v8294
  %v8296 = vand.u32 %v6480, 4294901760
  %8297 = vmatpush.msra.mxu0 %v8296
  %v8298 = vand.u32 %v6357, 4294901760
  %8299 = vmatmul.f32.gmra.mxu0 %v8298
  %v8300 = vpop.f32.mrf.mxu0
  %v8301 = vadd.f32 %v8204, %v8300
  %v8302 = vand.u32 %v6358, 4294901760
  %8303 = vmatmul.f32.gmra.mxu0 %v8302
  %v8304 = vpop.f32.mrf.mxu0
  %v8305 = vadd.f32 %v8208, %v8304
  %v8306 = vand.u32 %v6359, 4294901760
  %8307 = vmatmul.f32.gmra.mxu0 %v8306
  %v8308 = vpop.f32.mrf.mxu0
  %v8309 = vadd.f32 %v8212, %v8308
  %v8310 = vand.u32 %v6360, 4294901760
  %8311 = vmatmul.f32.gmra.mxu0 %v8310
  %v8312 = vpop.f32.mrf.mxu0
  %v8313 = vadd.f32 %v8216, %v8312
  %v8314 = vand.u32 %v6361, 4294901760
  %8315 = vmatmul.f32.gmra.mxu0 %v8314
  %v8316 = vpop.f32.mrf.mxu0
  %v8317 = vadd.f32 %v8220, %v8316
  %v8318 = vand.u32 %v6362, 4294901760
  %8319 = vmatmul.f32.gmra.mxu0 %v8318
  %v8320 = vpop.f32.mrf.mxu0
  %v8321 = vadd.f32 %v8224, %v8320
  %v8322 = vand.u32 %v6363, 4294901760
  %8323 = vmatmul.f32.gmra.mxu0 %v8322
  %v8324 = vpop.f32.mrf.mxu0
  %v8325 = vadd.f32 %v8228, %v8324
  %v8326 = vand.u32 %v6364, 4294901760
  %8327 = vmatmul.f32.gmra.mxu0 %v8326
  %v8328 = vpop.f32.mrf.mxu0
  %v8329 = vadd.f32 %v8232, %v8328
  %v8330 = vand.u32 %v6365, 4294901760
  %8331 = vmatmul.f32.gmra.mxu0 %v8330
  %v8332 = vpop.f32.mrf.mxu0
  %v8333 = vadd.f32 %v8236, %v8332
  %v8334 = vand.u32 %v6366, 4294901760
  %8335 = vmatmul.f32.gmra.mxu0 %v8334
  %v8336 = vpop.f32.mrf.mxu0
  %v8337 = vadd.f32 %v8240, %v8336
  %v8338 = vand.u32 %v6367, 4294901760
  %8339 = vmatmul.f32.gmra.mxu0 %v8338
  %v8340 = vpop.f32.mrf.mxu0
  %v8341 = vadd.f32 %v8244, %v8340
  %v8342 = vand.u32 %v6368, 4294901760
  %8343 = vmatmul.f32.gmra.mxu0 %v8342
  %v8344 = vpop.f32.mrf.mxu0
  %v8345 = vadd.f32 %v8248, %v8344
  %v8346 = vand.u32 %v6369, 4294901760
  %8347 = vmatmul.f32.gmra.mxu0 %v8346
  %v8348 = vpop.f32.mrf.mxu0
  %v8349 = vadd.f32 %v8252, %v8348
  %v8350 = vand.u32 %v6370, 4294901760
  %8351 = vmatmul.f32.gmra.mxu0 %v8350
  %v8352 = vpop.f32.mrf.mxu0
  %v8353 = vadd.f32 %v8256, %v8352
  %v8354 = vand.u32 %v6371, 4294901760
  %8355 = vmatmul.f32.gmra.mxu0 %v8354
  %v8356 = vpop.f32.mrf.mxu0
  %v8357 = vadd.f32 %v8260, %v8356
  %v8358 = vand.u32 %v6372, 4294901760
  %8359 = vmatmul.f32.gmra.mxu0 %v8358
  %v8360 = vpop.f32.mrf.mxu0
  %v8361 = vadd.f32 %v8264, %v8360
  %8362 = vdwg.mxu0
  %v8363 = vrcp.pop %v8301
  %v8364 = vmul.f32 %v8301, %v8363
  %v8365 = vsub.f32 1.0, %v8364
  %v8366 = vmul.f32 %v8363, %v8365
  %v8367 = vadd.f32 %v8363, %v8366
  %vm8368 = vweird.f32 %v8301
  %vm8369 = vweird.f32 %v8363
  %vm8370 = vmor %vm8368, %vm8369
  %v8371 = vsel %vm8370, %v8363, %v8367
  %v8372 = vand.u32 2147483647, %v8301
  %vm8373 = vcmp.eq.f32.partialorder %v8372, 8.507059e+37
  %v8374 = vand.u32 %v8301, 2147483648
  %v8375 = vor.u32 1.1754944e-38, %v8374
  %v8376 = vsel %vm8373, %v8375, %v8371
  %v8377 = vmul.f32 %v6480, %v8376
  %v8378 = vrcp.pop %v8305
  %v8379 = vmul.f32 %v8305, %v8378
  %v8380 = vsub.f32 1.0, %v8379
  %v8381 = vmul.f32 %v8378, %v8380
  %v8382 = vadd.f32 %v8378, %v8381
  %vm8383 = vweird.f32 %v8305
  %vm8384 = vweird.f32 %v8378
  %vm8385 = vmor %vm8383, %vm8384
  %v8386 = vsel %vm8385, %v8378, %v8382
  %v8387 = vand.u32 2147483647, %v8305
  %vm8388 = vcmp.eq.f32.partialorder %v8387, 8.507059e+37
  %v8389 = vand.u32 %v8305, 2147483648
  %v8390 = vor.u32 1.1754944e-38, %v8389
  %v8391 = vsel %vm8388, %v8390, %v8386
  %v8392 = vmul.f32 %v6482, %v8391
  %v8393 = vrcp.pop %v8309
  %v8394 = vmul.f32 %v8309, %v8393
  %v8395 = vsub.f32 1.0, %v8394
  %v8396 = vmul.f32 %v8393, %v8395
  %v8397 = vadd.f32 %v8393, %v8396
  %vm8398 = vweird.f32 %v8309
  %vm8399 = vweird.f32 %v8393
  %vm8400 = vmor %vm8398, %vm8399
  %v8401 = vsel %vm8400, %v8393, %v8397
  %v8402 = vand.u32 2147483647, %v8309
  %vm8403 = vcmp.eq.f32.partialorder %v8402, 8.507059e+37
  %v8404 = vand.u32 %v8309, 2147483648
  %v8405 = vor.u32 1.1754944e-38, %v8404
  %v8406 = vsel %vm8403, %v8405, %v8401
  %v8407 = vmul.f32 %v6484, %v8406
  %v8408 = vrcp.pop %v8313
  %v8409 = vmul.f32 %v8313, %v8408
  %v8410 = vsub.f32 1.0, %v8409
  %v8411 = vmul.f32 %v8408, %v8410
  %v8412 = vadd.f32 %v8408, %v8411
  %vm8413 = vweird.f32 %v8313
  %vm8414 = vweird.f32 %v8408
  %vm8415 = vmor %vm8413, %vm8414
  %v8416 = vsel %vm8415, %v8408, %v8412
  %v8417 = vand.u32 2147483647, %v8313
  %vm8418 = vcmp.eq.f32.partialorder %v8417, 8.507059e+37
  %v8419 = vand.u32 %v8313, 2147483648
  %v8420 = vor.u32 1.1754944e-38, %v8419
  %v8421 = vsel %vm8418, %v8420, %v8416
  %v8422 = vmul.f32 %v6486, %v8421
  %v8423 = vrcp.pop %v8317
  %v8424 = vmul.f32 %v8317, %v8423
  %v8425 = vsub.f32 1.0, %v8424
  %v8426 = vmul.f32 %v8423, %v8425
  %v8427 = vadd.f32 %v8423, %v8426
  %vm8428 = vweird.f32 %v8317
  %vm8429 = vweird.f32 %v8423
  %vm8430 = vmor %vm8428, %vm8429
  %v8431 = vsel %vm8430, %v8423, %v8427
  %v8432 = vand.u32 2147483647, %v8317
  %vm8433 = vcmp.eq.f32.partialorder %v8432, 8.507059e+37
  %v8434 = vand.u32 %v8317, 2147483648
  %v8435 = vor.u32 1.1754944e-38, %v8434
  %v8436 = vsel %vm8433, %v8435, %v8431
  %v8437 = vmul.f32 %v6488, %v8436
  %v8438 = vrcp.pop %v8321
  %v8439 = vmul.f32 %v8321, %v8438
  %v8440 = vsub.f32 1.0, %v8439
  %v8441 = vmul.f32 %v8438, %v8440
  %v8442 = vadd.f32 %v8438, %v8441
  %vm8443 = vweird.f32 %v8321
  %vm8444 = vweird.f32 %v8438
  %vm8445 = vmor %vm8443, %vm8444
  %v8446 = vsel %vm8445, %v8438, %v8442
  %v8447 = vand.u32 2147483647, %v8321
  %vm8448 = vcmp.eq.f32.partialorder %v8447, 8.507059e+37
  %v8449 = vand.u32 %v8321, 2147483648
  %v8450 = vor.u32 1.1754944e-38, %v8449
  %v8451 = vsel %vm8448, %v8450, %v8446
  %v8452 = vmul.f32 %v6490, %v8451
  %v8453 = vrcp.pop %v8325
  %v8454 = vmul.f32 %v8325, %v8453
  %v8455 = vsub.f32 1.0, %v8454
  %v8456 = vmul.f32 %v8453, %v8455
  %v8457 = vadd.f32 %v8453, %v8456
  %vm8458 = vweird.f32 %v8325
  %vm8459 = vweird.f32 %v8453
  %vm8460 = vmor %vm8458, %vm8459
  %v8461 = vsel %vm8460, %v8453, %v8457
  %v8462 = vand.u32 2147483647, %v8325
  %vm8463 = vcmp.eq.f32.partialorder %v8462, 8.507059e+37
  %v8464 = vand.u32 %v8325, 2147483648
  %v8465 = vor.u32 1.1754944e-38, %v8464
  %v8466 = vsel %vm8463, %v8465, %v8461
  %v8467 = vmul.f32 %v6492, %v8466
  %v8468 = vrcp.pop %v8329
  %v8469 = vmul.f32 %v8329, %v8468
  %v8470 = vsub.f32 1.0, %v8469
  %v8471 = vmul.f32 %v8468, %v8470
  %v8472 = vadd.f32 %v8468, %v8471
  %vm8473 = vweird.f32 %v8329
  %vm8474 = vweird.f32 %v8468
  %vm8475 = vmor %vm8473, %vm8474
  %v8476 = vsel %vm8475, %v8468, %v8472
  %v8477 = vand.u32 2147483647, %v8329
  %vm8478 = vcmp.eq.f32.partialorder %v8477, 8.507059e+37
  %v8479 = vand.u32 %v8329, 2147483648
  %v8480 = vor.u32 1.1754944e-38, %v8479
  %v8481 = vsel %vm8478, %v8480, %v8476
  %v8482 = vmul.f32 %v6494, %v8481
  %v8483 = vrcp.pop %v8333
  %v8484 = vmul.f32 %v8333, %v8483
  %v8485 = vsub.f32 1.0, %v8484
  %v8486 = vmul.f32 %v8483, %v8485
  %v8487 = vadd.f32 %v8483, %v8486
  %vm8488 = vweird.f32 %v8333
  %vm8489 = vweird.f32 %v8483
  %vm8490 = vmor %vm8488, %vm8489
  %v8491 = vsel %vm8490, %v8483, %v8487
  %v8492 = vand.u32 2147483647, %v8333
  %vm8493 = vcmp.eq.f32.partialorder %v8492, 8.507059e+37
  %v8494 = vand.u32 %v8333, 2147483648
  %v8495 = vor.u32 1.1754944e-38, %v8494
  %v8496 = vsel %vm8493, %v8495, %v8491
  %v8497 = vmul.f32 %v6496, %v8496
  %v8498 = vrcp.pop %v8337
  %v8499 = vmul.f32 %v8337, %v8498
  %v8500 = vsub.f32 1.0, %v8499
  %v8501 = vmul.f32 %v8498, %v8500
  %v8502 = vadd.f32 %v8498, %v8501
  %vm8503 = vweird.f32 %v8337
  %vm8504 = vweird.f32 %v8498
  %vm8505 = vmor %vm8503, %vm8504
  %v8506 = vsel %vm8505, %v8498, %v8502
  %v8507 = vand.u32 2147483647, %v8337
  %vm8508 = vcmp.eq.f32.partialorder %v8507, 8.507059e+37
  %v8509 = vand.u32 %v8337, 2147483648
  %v8510 = vor.u32 1.1754944e-38, %v8509
  %v8511 = vsel %vm8508, %v8510, %v8506
  %v8512 = vmul.f32 %v6498, %v8511
  %v8513 = vrcp.pop %v8341
  %v8514 = vmul.f32 %v8341, %v8513
  %v8515 = vsub.f32 1.0, %v8514
  %v8516 = vmul.f32 %v8513, %v8515
  %v8517 = vadd.f32 %v8513, %v8516
  %vm8518 = vweird.f32 %v8341
  %vm8519 = vweird.f32 %v8513
  %vm8520 = vmor %vm8518, %vm8519
  %v8521 = vsel %vm8520, %v8513, %v8517
  %v8522 = vand.u32 2147483647, %v8341
  %vm8523 = vcmp.eq.f32.partialorder %v8522, 8.507059e+37
  %v8524 = vand.u32 %v8341, 2147483648
  %v8525 = vor.u32 1.1754944e-38, %v8524
  %v8526 = vsel %vm8523, %v8525, %v8521
  %v8527 = vmul.f32 %v6500, %v8526
  %v8528 = vrcp.pop %v8345
  %v8529 = vmul.f32 %v8345, %v8528
  %v8530 = vsub.f32 1.0, %v8529
  %v8531 = vmul.f32 %v8528, %v8530
  %v8532 = vadd.f32 %v8528, %v8531
  %vm8533 = vweird.f32 %v8345
  %vm8534 = vweird.f32 %v8528
  %vm8535 = vmor %vm8533, %vm8534
  %v8536 = vsel %vm8535, %v8528, %v8532
  %v8537 = vand.u32 2147483647, %v8345
  %vm8538 = vcmp.eq.f32.partialorder %v8537, 8.507059e+37
  %v8539 = vand.u32 %v8345, 2147483648
  %v8540 = vor.u32 1.1754944e-38, %v8539
  %v8541 = vsel %vm8538, %v8540, %v8536
  %v8542 = vmul.f32 %v6502, %v8541
  %v8543 = vrcp.pop %v8349
  %v8544 = vmul.f32 %v8349, %v8543
  %v8545 = vsub.f32 1.0, %v8544
  %v8546 = vmul.f32 %v8543, %v8545
  %v8547 = vadd.f32 %v8543, %v8546
  %vm8548 = vweird.f32 %v8349
  %vm8549 = vweird.f32 %v8543
  %vm8550 = vmor %vm8548, %vm8549
  %v8551 = vsel %vm8550, %v8543, %v8547
  %v8552 = vand.u32 2147483647, %v8349
  %vm8553 = vcmp.eq.f32.partialorder %v8552, 8.507059e+37
  %v8554 = vand.u32 %v8349, 2147483648
  %v8555 = vor.u32 1.1754944e-38, %v8554
  %v8556 = vsel %vm8553, %v8555, %v8551
  %v8557 = vmul.f32 %v6504, %v8556
  %v8558 = vrcp.pop %v8353
  %v8559 = vmul.f32 %v8353, %v8558
  %v8560 = vsub.f32 1.0, %v8559
  %v8561 = vmul.f32 %v8558, %v8560
  %v8562 = vadd.f32 %v8558, %v8561
  %vm8563 = vweird.f32 %v8353
  %vm8564 = vweird.f32 %v8558
  %vm8565 = vmor %vm8563, %vm8564
  %v8566 = vsel %vm8565, %v8558, %v8562
  %v8567 = vand.u32 2147483647, %v8353
  %vm8568 = vcmp.eq.f32.partialorder %v8567, 8.507059e+37
  %v8569 = vand.u32 %v8353, 2147483648
  %v8570 = vor.u32 1.1754944e-38, %v8569
  %v8571 = vsel %vm8568, %v8570, %v8566
  %v8572 = vmul.f32 %v6506, %v8571
  %v8573 = vrcp.pop %v8357
  %v8574 = vmul.f32 %v8357, %v8573
  %v8575 = vsub.f32 1.0, %v8574
  %v8576 = vmul.f32 %v8573, %v8575
  %v8577 = vadd.f32 %v8573, %v8576
  %vm8578 = vweird.f32 %v8357
  %vm8579 = vweird.f32 %v8573
  %vm8580 = vmor %vm8578, %vm8579
  %v8581 = vsel %vm8580, %v8573, %v8577
  %v8582 = vand.u32 2147483647, %v8357
  %vm8583 = vcmp.eq.f32.partialorder %v8582, 8.507059e+37
  %v8584 = vand.u32 %v8357, 2147483648
  %v8585 = vor.u32 1.1754944e-38, %v8584
  %v8586 = vsel %vm8583, %v8585, %v8581
  %v8587 = vmul.f32 %v6508, %v8586
  %v8588 = vrcp.pop %v8361
  %v8589 = vmul.f32 %v8361, %v8588
  %v8590 = vsub.f32 1.0, %v8589
  %v8591 = vmul.f32 %v8588, %v8590
  %v8592 = vadd.f32 %v8588, %v8591
  %vm8593 = vweird.f32 %v8361
  %vm8594 = vweird.f32 %v8588
  %vm8595 = vmor %vm8593, %vm8594
  %v8596 = vsel %vm8595, %v8588, %v8592
  %v8597 = vand.u32 2147483647, %v8361
  %vm8598 = vcmp.eq.f32.partialorder %v8597, 8.507059e+37
  %v8599 = vand.u32 %v8361, 2147483648
  %v8600 = vor.u32 1.1754944e-38, %v8599
  %v8601 = vsel %vm8598, %v8600, %v8596
  %v8602 = vmul.f32 %v6510, %v8601
  %8604 = vset.pattern.permute.xlu0 0
  %8605 = vperm.xlu0 %8604, %v7331
  %v8606 = vpop.permute.xlu0 %8605
  %8609 = vset.pattern.permute.xlu0 0
  %8610 = vperm.xlu0 %8609, %v7346
  %v8611 = vpop.permute.xlu0 %8610
  %8614 = vset.pattern.permute.xlu0 0
  %8615 = vperm.xlu0 %8614, %v7361
  %v8616 = vpop.permute.xlu0 %8615
  %8619 = vset.pattern.permute.xlu0 0
  %8620 = vperm.xlu0 %8619, %v7376
  %v8621 = vpop.permute.xlu0 %8620
  %8624 = vset.pattern.permute.xlu0 0
  %8625 = vperm.xlu0 %8624, %v7391
  %v8626 = vpop.permute.xlu0 %8625
  %8629 = vset.pattern.permute.xlu0 0
  %8630 = vperm.xlu0 %8629, %v7406
  %v8631 = vpop.permute.xlu0 %8630
  %8634 = vset.pattern.permute.xlu0 0
  %8635 = vperm.xlu0 %8634, %v7421
  %v8636 = vpop.permute.xlu0 %8635
  %8639 = vset.pattern.permute.xlu0 0
  %8640 = vperm.xlu0 %8639, %v7436
  %v8641 = vpop.permute.xlu0 %8640
  %8644 = vset.pattern.permute.xlu0 0
  %8645 = vperm.xlu0 %8644, %v7451
  %v8646 = vpop.permute.xlu0 %8645
  %8649 = vset.pattern.permute.xlu0 0
  %8650 = vperm.xlu0 %8649, %v7466
  %v8651 = vpop.permute.xlu0 %8650
  %8654 = vset.pattern.permute.xlu0 0
  %8655 = vperm.xlu0 %8654, %v7481
  %v8656 = vpop.permute.xlu0 %8655
  %8659 = vset.pattern.permute.xlu0 0
  %8660 = vperm.xlu0 %8659, %v7496
  %v8661 = vpop.permute.xlu0 %8660
  %8664 = vset.pattern.permute.xlu0 0
  %8665 = vperm.xlu0 %8664, %v7511
  %v8666 = vpop.permute.xlu0 %8665
  %8669 = vset.pattern.permute.xlu0 0
  %8670 = vperm.xlu0 %8669, %v7526
  %v8671 = vpop.permute.xlu0 %8670
  %8674 = vset.pattern.permute.xlu0 0
  %8675 = vperm.xlu0 %8674, %v7541
  %v8676 = vpop.permute.xlu0 %8675
  %8679 = vset.pattern.permute.xlu0 0
  %8680 = vperm.xlu0 %8679, %v7556
  %v8681 = vpop.permute.xlu0 %8680
  %v8683 = vmul.f32 %v8606, %v58
  %v8684 = vmul.f32 %v8606, %v59
  %v8685 = vmul.f32 %v8611, %v60
  %v8686 = vmul.f32 %v8611, %v61
  %v8687 = vmul.f32 %v8616, %v62
  %v8688 = vmul.f32 %v8616, %v63
  %v8689 = vmul.f32 %v8621, %v64
  %v8690 = vmul.f32 %v8621, %v65
  %v8691 = vmul.f32 %v8626, %v66
  %v8692 = vmul.f32 %v8626, %v67
  %v8693 = vmul.f32 %v8631, %v68
  %v8694 = vmul.f32 %v8631, %v69
  %v8695 = vmul.f32 %v8636, %v70
  %v8696 = vmul.f32 %v8636, %v71
  %v8697 = vmul.f32 %v8641, %v72
  %v8698 = vmul.f32 %v8641, %v73
  %v8699 = vmul.f32 %v8646, %v74
  %v8700 = vmul.f32 %v8646, %v75
  %v8701 = vmul.f32 %v8651, %v76
  %v8702 = vmul.f32 %v8651, %v77
  %v8703 = vmul.f32 %v8656, %v78
  %v8704 = vmul.f32 %v8656, %v79
  %v8705 = vmul.f32 %v8661, %v80
  %v8706 = vmul.f32 %v8661, %v81
  %v8707 = vmul.f32 %v8666, %v82
  %v8708 = vmul.f32 %v8666, %v83
  %v8709 = vmul.f32 %v8671, %v84
  %v8710 = vmul.f32 %v8671, %v85
  %v8711 = vmul.f32 %v8676, %v86
  %v8712 = vmul.f32 %v8676, %v87
  %v8713 = vmul.f32 %v8681, %v88
  %v8714 = vmul.f32 %v8681, %v89
  %8716 = vset.pattern.permute.xlu0 0
  %8717 = vperm.xlu0 %8716, %v8377
  %v8718 = vpop.permute.xlu0 %8717
  %8721 = vset.pattern.permute.xlu0 0
  %8722 = vperm.xlu0 %8721, %v8392
  %v8723 = vpop.permute.xlu0 %8722
  %8726 = vset.pattern.permute.xlu0 0
  %8727 = vperm.xlu0 %8726, %v8407
  %v8728 = vpop.permute.xlu0 %8727
  %8731 = vset.pattern.permute.xlu0 0
  %8732 = vperm.xlu0 %8731, %v8422
  %v8733 = vpop.permute.xlu0 %8732
  %8736 = vset.pattern.permute.xlu0 0
  %8737 = vperm.xlu0 %8736, %v8437
  %v8738 = vpop.permute.xlu0 %8737
  %8741 = vset.pattern.permute.xlu0 0
  %8742 = vperm.xlu0 %8741, %v8452
  %v8743 = vpop.permute.xlu0 %8742
  %8746 = vset.pattern.permute.xlu0 0
  %8747 = vperm.xlu0 %8746, %v8467
  %v8748 = vpop.permute.xlu0 %8747
  %8751 = vset.pattern.permute.xlu0 0
  %8752 = vperm.xlu0 %8751, %v8482
  %v8753 = vpop.permute.xlu0 %8752
  %8756 = vset.pattern.permute.xlu0 0
  %8757 = vperm.xlu0 %8756, %v8497
  %v8758 = vpop.permute.xlu0 %8757
  %8761 = vset.pattern.permute.xlu0 0
  %8762 = vperm.xlu0 %8761, %v8512
  %v8763 = vpop.permute.xlu0 %8762
  %8766 = vset.pattern.permute.xlu0 0
  %8767 = vperm.xlu0 %8766, %v8527
  %v8768 = vpop.permute.xlu0 %8767
  %8771 = vset.pattern.permute.xlu0 0
  %8772 = vperm.xlu0 %8771, %v8542
  %v8773 = vpop.permute.xlu0 %8772
  %8776 = vset.pattern.permute.xlu0 0
  %8777 = vperm.xlu0 %8776, %v8557
  %v8778 = vpop.permute.xlu0 %8777
  %8781 = vset.pattern.permute.xlu0 0
  %8782 = vperm.xlu0 %8781, %v8572
  %v8783 = vpop.permute.xlu0 %8782
  %8786 = vset.pattern.permute.xlu0 0
  %8787 = vperm.xlu0 %8786, %v8587
  %v8788 = vpop.permute.xlu0 %8787
  %8791 = vset.pattern.permute.xlu0 0
  %8792 = vperm.xlu0 %8791, %v8602
  %v8793 = vpop.permute.xlu0 %8792
  %v8795 = vmul.f32 %v8718, %v6197
  %v8796 = vmul.f32 %v8718, %v6198
  %v8797 = vmul.f32 %v8723, %v6199
  %v8798 = vmul.f32 %v8723, %v6200
  %v8799 = vmul.f32 %v8728, %v6201
  %v8800 = vmul.f32 %v8728, %v6202
  %v8801 = vmul.f32 %v8733, %v6203
  %v8802 = vmul.f32 %v8733, %v6204
  %v8803 = vmul.f32 %v8738, %v6205
  %v8804 = vmul.f32 %v8738, %v6206
  %v8805 = vmul.f32 %v8743, %v6207
  %v8806 = vmul.f32 %v8743, %v6208
  %v8807 = vmul.f32 %v8748, %v6209
  %v8808 = vmul.f32 %v8748, %v6210
  %v8809 = vmul.f32 %v8753, %v6211
  %v8810 = vmul.f32 %v8753, %v6212
  %v8811 = vmul.f32 %v8758, %v6213
  %v8812 = vmul.f32 %v8758, %v6214
  %v8813 = vmul.f32 %v8763, %v6215
  %v8814 = vmul.f32 %v8763, %v6216
  %v8815 = vmul.f32 %v8768, %v6217
  %v8816 = vmul.f32 %v8768, %v6218
  %v8817 = vmul.f32 %v8773, %v6219
  %v8818 = vmul.f32 %v8773, %v6220
  %v8819 = vmul.f32 %v8778, %v6221
  %v8820 = vmul.f32 %v8778, %v6222
  %v8821 = vmul.f32 %v8783, %v6223
  %v8822 = vmul.f32 %v8783, %v6224
  %v8823 = vmul.f32 %v8788, %v6225
  %v8824 = vmul.f32 %v8788, %v6226
  %v8825 = vmul.f32 %v8793, %v6227
  %v8826 = vmul.f32 %v8793, %v6228
  %v8827 = vadd.f32 %v8683, %v8795
  %v8828 = vadd.f32 %v8684, %v8796
  %v8829 = vadd.f32 %v8685, %v8797
  %v8830 = vadd.f32 %v8686, %v8798
  %v8831 = vadd.f32 %v8687, %v8799
  %v8832 = vadd.f32 %v8688, %v8800
  %v8833 = vadd.f32 %v8689, %v8801
  %v8834 = vadd.f32 %v8690, %v8802
  %v8835 = vadd.f32 %v8691, %v8803
  %v8836 = vadd.f32 %v8692, %v8804
  %v8837 = vadd.f32 %v8693, %v8805
  %v8838 = vadd.f32 %v8694, %v8806
  %v8839 = vadd.f32 %v8695, %v8807
  %v8840 = vadd.f32 %v8696, %v8808
  %v8841 = vadd.f32 %v8697, %v8809
  %v8842 = vadd.f32 %v8698, %v8810
  %v8843 = vadd.f32 %v8699, %v8811
  %v8844 = vadd.f32 %v8700, %v8812
  %v8845 = vadd.f32 %v8701, %v8813
  %v8846 = vadd.f32 %v8702, %v8814
  %v8847 = vadd.f32 %v8703, %v8815
  %v8848 = vadd.f32 %v8704, %v8816
  %v8849 = vadd.f32 %v8705, %v8817
  %v8850 = vadd.f32 %v8706, %v8818
  %v8851 = vadd.f32 %v8707, %v8819
  %v8852 = vadd.f32 %v8708, %v8820
  %v8853 = vadd.f32 %v8709, %v8821
  %v8854 = vadd.f32 %v8710, %v8822
  %v8855 = vadd.f32 %v8711, %v8823
  %v8856 = vadd.f32 %v8712, %v8824
  %v8857 = vadd.f32 %v8713, %v8825
  %v8858 = vadd.f32 %v8714, %v8826
  %v8859 = vand.u32 %v8857, 4294901760
  %8860 = vmatpush.msra.mxu0 %v8859
  %v8861 = vand.u32 %v8855, 4294901760
  %8862 = vmatpush.msra.mxu0 %v8861
  %v8863 = vand.u32 %v8853, 4294901760
  %8864 = vmatpush.msra.mxu0 %v8863
  %v8865 = vand.u32 %v8851, 4294901760
  %8866 = vmatpush.msra.mxu0 %v8865
  %v8867 = vand.u32 %v8849, 4294901760
  %8868 = vmatpush.msra.mxu0 %v8867
  %v8869 = vand.u32 %v8847, 4294901760
  %8870 = vmatpush.msra.mxu0 %v8869
  %v8871 = vand.u32 %v8845, 4294901760
  %8872 = vmatpush.msra.mxu0 %v8871
  %v8873 = vand.u32 %v8843, 4294901760
  %8874 = vmatpush.msra.mxu0 %v8873
  %v8875 = vand.u32 %v8841, 4294901760
  %8876 = vmatpush.msra.mxu0 %v8875
  %v8877 = vand.u32 %v8839, 4294901760
  %8878 = vmatpush.msra.mxu0 %v8877
  %v8879 = vand.u32 %v8837, 4294901760
  %8880 = vmatpush.msra.mxu0 %v8879
  %v8881 = vand.u32 %v8835, 4294901760
  %8882 = vmatpush.msra.mxu0 %v8881
  %v8883 = vand.u32 %v8833, 4294901760
  %8884 = vmatpush.msra.mxu0 %v8883
  %v8885 = vand.u32 %v8831, 4294901760
  %8886 = vmatpush.msra.mxu0 %v8885
  %v8887 = vand.u32 %v8829, 4294901760
  %8888 = vmatpush.msra.mxu0 %v8887
  %v8889 = vand.u32 %v8827, 4294901760
  %8890 = vmatpush.msra.mxu0 %v8889
  %v8891 = vand.u32 %v6357, 4294901760
  %v8892 = vsub.f32 %v6357, %v8891
  %v8893 = vand.u32 %v8892, 4294901760
  %v8894 = vsub.f32 %v8892, %v8893
  %v8895 = vand.u32 %v8894, 4294901760
  %8896 = vmatmul.f32.gmra.mxu0 %v8895
  %v8897 = vpop.f32.mrf.mxu0
  %v8898 = vadd.f32 0.0, %v8897
  %v8899 = vand.u32 %v6358, 4294901760
  %v8900 = vsub.f32 %v6358, %v8899
  %v8901 = vand.u32 %v8900, 4294901760
  %v8902 = vsub.f32 %v8900, %v8901
  %v8903 = vand.u32 %v8902, 4294901760
  %8904 = vmatmul.f32.gmra.mxu0 %v8903
  %v8905 = vpop.f32.mrf.mxu0
  %v8906 = vadd.f32 0.0, %v8905
  %v8907 = vand.u32 %v6359, 4294901760
  %v8908 = vsub.f32 %v6359, %v8907
  %v8909 = vand.u32 %v8908, 4294901760
  %v8910 = vsub.f32 %v8908, %v8909
  %v8911 = vand.u32 %v8910, 4294901760
  %8912 = vmatmul.f32.gmra.mxu0 %v8911
  %v8913 = vpop.f32.mrf.mxu0
  %v8914 = vadd.f32 0.0, %v8913
  %v8915 = vand.u32 %v6360, 4294901760
  %v8916 = vsub.f32 %v6360, %v8915
  %v8917 = vand.u32 %v8916, 4294901760
  %v8918 = vsub.f32 %v8916, %v8917
  %v8919 = vand.u32 %v8918, 4294901760
  %8920 = vmatmul.f32.gmra.mxu0 %v8919
  %v8921 = vpop.f32.mrf.mxu0
  %v8922 = vadd.f32 0.0, %v8921
  %v8923 = vand.u32 %v6361, 4294901760
  %v8924 = vsub.f32 %v6361, %v8923
  %v8925 = vand.u32 %v8924, 4294901760
  %v8926 = vsub.f32 %v8924, %v8925
  %v8927 = vand.u32 %v8926, 4294901760
  %8928 = vmatmul.f32.gmra.mxu0 %v8927
  %v8929 = vpop.f32.mrf.mxu0
  %v8930 = vadd.f32 0.0, %v8929
  %v8931 = vand.u32 %v6362, 4294901760
  %v8932 = vsub.f32 %v6362, %v8931
  %v8933 = vand.u32 %v8932, 4294901760
  %v8934 = vsub.f32 %v8932, %v8933
  %v8935 = vand.u32 %v8934, 4294901760
  %8936 = vmatmul.f32.gmra.mxu0 %v8935
  %v8937 = vpop.f32.mrf.mxu0
  %v8938 = vadd.f32 0.0, %v8937
  %v8939 = vand.u32 %v6363, 4294901760
  %v8940 = vsub.f32 %v6363, %v8939
  %v8941 = vand.u32 %v8940, 4294901760
  %v8942 = vsub.f32 %v8940, %v8941
  %v8943 = vand.u32 %v8942, 4294901760
  %8944 = vmatmul.f32.gmra.mxu0 %v8943
  %v8945 = vpop.f32.mrf.mxu0
  %v8946 = vadd.f32 0.0, %v8945
  %v8947 = vand.u32 %v6364, 4294901760
  %v8948 = vsub.f32 %v6364, %v8947
  %v8949 = vand.u32 %v8948, 4294901760
  %v8950 = vsub.f32 %v8948, %v8949
  %v8951 = vand.u32 %v8950, 4294901760
  %8952 = vmatmul.f32.gmra.mxu0 %v8951
  %v8953 = vpop.f32.mrf.mxu0
  %v8954 = vadd.f32 0.0, %v8953
  %v8955 = vand.u32 %v6365, 4294901760
  %v8956 = vsub.f32 %v6365, %v8955
  %v8957 = vand.u32 %v8956, 4294901760
  %v8958 = vsub.f32 %v8956, %v8957
  %v8959 = vand.u32 %v8958, 4294901760
  %8960 = vmatmul.f32.gmra.mxu0 %v8959
  %v8961 = vpop.f32.mrf.mxu0
  %v8962 = vadd.f32 0.0, %v8961
  %v8963 = vand.u32 %v6366, 4294901760
  %v8964 = vsub.f32 %v6366, %v8963
  %v8965 = vand.u32 %v8964, 4294901760
  %v8966 = vsub.f32 %v8964, %v8965
  %v8967 = vand.u32 %v8966, 4294901760
  %8968 = vmatmul.f32.gmra.mxu0 %v8967
  %v8969 = vpop.f32.mrf.mxu0
  %v8970 = vadd.f32 0.0, %v8969
  %v8971 = vand.u32 %v6367, 4294901760
  %v8972 = vsub.f32 %v6367, %v8971
  %v8973 = vand.u32 %v8972, 4294901760
  %v8974 = vsub.f32 %v8972, %v8973
  %v8975 = vand.u32 %v8974, 4294901760
  %8976 = vmatmul.f32.gmra.mxu0 %v8975
  %v8977 = vpop.f32.mrf.mxu0
  %v8978 = vadd.f32 0.0, %v8977
  %v8979 = vand.u32 %v6368, 4294901760
  %v8980 = vsub.f32 %v6368, %v8979
  %v8981 = vand.u32 %v8980, 4294901760
  %v8982 = vsub.f32 %v8980, %v8981
  %v8983 = vand.u32 %v8982, 4294901760
  %8984 = vmatmul.f32.gmra.mxu0 %v8983
  %v8985 = vpop.f32.mrf.mxu0
  %v8986 = vadd.f32 0.0, %v8985
  %v8987 = vand.u32 %v6369, 4294901760
  %v8988 = vsub.f32 %v6369, %v8987
  %v8989 = vand.u32 %v8988, 4294901760
  %v8990 = vsub.f32 %v8988, %v8989
  %v8991 = vand.u32 %v8990, 4294901760
  %8992 = vmatmul.f32.gmra.mxu0 %v8991
  %v8993 = vpop.f32.mrf.mxu0
  %v8994 = vadd.f32 0.0, %v8993
  %v8995 = vand.u32 %v6370, 4294901760
  %v8996 = vsub.f32 %v6370, %v8995
  %v8997 = vand.u32 %v8996, 4294901760
  %v8998 = vsub.f32 %v8996, %v8997
  %v8999 = vand.u32 %v8998, 4294901760
  %9000 = vmatmul.f32.gmra.mxu0 %v8999
  %v9001 = vpop.f32.mrf.mxu0
  %v9002 = vadd.f32 0.0, %v9001
  %v9003 = vand.u32 %v6371, 4294901760
  %v9004 = vsub.f32 %v6371, %v9003
  %v9005 = vand.u32 %v9004, 4294901760
  %v9006 = vsub.f32 %v9004, %v9005
  %v9007 = vand.u32 %v9006, 4294901760
  %9008 = vmatmul.f32.gmra.mxu0 %v9007
  %v9009 = vpop.f32.mrf.mxu0
  %v9010 = vadd.f32 0.0, %v9009
  %v9011 = vand.u32 %v6372, 4294901760
  %v9012 = vsub.f32 %v6372, %v9011
  %v9013 = vand.u32 %v9012, 4294901760
  %v9014 = vsub.f32 %v9012, %v9013
  %v9015 = vand.u32 %v9014, 4294901760
  %9016 = vmatmul.f32.gmra.mxu0 %v9015
  %v9017 = vpop.f32.mrf.mxu0
  %v9018 = vadd.f32 0.0, %v9017
  %9019 = vdwg.mxu0
  %v9020 = vand.u32 %v8857, 4294901760
  %v9021 = vsub.f32 %v8857, %v9020
  %v9022 = vand.u32 %v9021, 4294901760
  %v9023 = vsub.f32 %v9021, %v9022
  %v9024 = vand.u32 %v9023, 4294901760
  %9025 = vmatpush.msra.mxu0 %v9024
  %v9026 = vand.u32 %v8855, 4294901760
  %v9027 = vsub.f32 %v8855, %v9026
  %v9028 = vand.u32 %v9027, 4294901760
  %v9029 = vsub.f32 %v9027, %v9028
  %v9030 = vand.u32 %v9029, 4294901760
  %9031 = vmatpush.msra.mxu0 %v9030
  %v9032 = vand.u32 %v8853, 4294901760
  %v9033 = vsub.f32 %v8853, %v9032
  %v9034 = vand.u32 %v9033, 4294901760
  %v9035 = vsub.f32 %v9033, %v9034
  %v9036 = vand.u32 %v9035, 4294901760
  %9037 = vmatpush.msra.mxu0 %v9036
  %v9038 = vand.u32 %v8851, 4294901760
  %v9039 = vsub.f32 %v8851, %v9038
  %v9040 = vand.u32 %v9039, 4294901760
  %v9041 = vsub.f32 %v9039, %v9040
  %v9042 = vand.u32 %v9041, 4294901760
  %9043 = vmatpush.msra.mxu0 %v9042
  %v9044 = vand.u32 %v8849, 4294901760
  %v9045 = vsub.f32 %v8849, %v9044
  %v9046 = vand.u32 %v9045, 4294901760
  %v9047 = vsub.f32 %v9045, %v9046
  %v9048 = vand.u32 %v9047, 4294901760
  %9049 = vmatpush.msra.mxu0 %v9048
  %v9050 = vand.u32 %v8847, 4294901760
  %v9051 = vsub.f32 %v8847, %v9050
  %v9052 = vand.u32 %v9051, 4294901760
  %v9053 = vsub.f32 %v9051, %v9052
  %v9054 = vand.u32 %v9053, 4294901760
  %9055 = vmatpush.msra.mxu0 %v9054
  %v9056 = vand.u32 %v8845, 4294901760
  %v9057 = vsub.f32 %v8845, %v9056
  %v9058 = vand.u32 %v9057, 4294901760
  %v9059 = vsub.f32 %v9057, %v9058
  %v9060 = vand.u32 %v9059, 4294901760
  %9061 = vmatpush.msra.mxu0 %v9060
  %v9062 = vand.u32 %v8843, 4294901760
  %v9063 = vsub.f32 %v8843, %v9062
  %v9064 = vand.u32 %v9063, 4294901760
  %v9065 = vsub.f32 %v9063, %v9064
  %v9066 = vand.u32 %v9065, 4294901760
  %9067 = vmatpush.msra.mxu0 %v9066
  %v9068 = vand.u32 %v8841, 4294901760
  %v9069 = vsub.f32 %v8841, %v9068
  %v9070 = vand.u32 %v9069, 4294901760
  %v9071 = vsub.f32 %v9069, %v9070
  %v9072 = vand.u32 %v9071, 4294901760
  %9073 = vmatpush.msra.mxu0 %v9072
  %v9074 = vand.u32 %v8839, 4294901760
  %v9075 = vsub.f32 %v8839, %v9074
  %v9076 = vand.u32 %v9075, 4294901760
  %v9077 = vsub.f32 %v9075, %v9076
  %v9078 = vand.u32 %v9077, 4294901760
  %9079 = vmatpush.msra.mxu0 %v9078
  %v9080 = vand.u32 %v8837, 4294901760
  %v9081 = vsub.f32 %v8837, %v9080
  %v9082 = vand.u32 %v9081, 4294901760
  %v9083 = vsub.f32 %v9081, %v9082
  %v9084 = vand.u32 %v9083, 4294901760
  %9085 = vmatpush.msra.mxu0 %v9084
  %v9086 = vand.u32 %v8835, 4294901760
  %v9087 = vsub.f32 %v8835, %v9086
  %v9088 = vand.u32 %v9087, 4294901760
  %v9089 = vsub.f32 %v9087, %v9088
  %v9090 = vand.u32 %v9089, 4294901760
  %9091 = vmatpush.msra.mxu0 %v9090
  %v9092 = vand.u32 %v8833, 4294901760
  %v9093 = vsub.f32 %v8833, %v9092
  %v9094 = vand.u32 %v9093, 4294901760
  %v9095 = vsub.f32 %v9093, %v9094
  %v9096 = vand.u32 %v9095, 4294901760
  %9097 = vmatpush.msra.mxu0 %v9096
  %v9098 = vand.u32 %v8831, 4294901760
  %v9099 = vsub.f32 %v8831, %v9098
  %v9100 = vand.u32 %v9099, 4294901760
  %v9101 = vsub.f32 %v9099, %v9100
  %v9102 = vand.u32 %v9101, 4294901760
  %9103 = vmatpush.msra.mxu0 %v9102
  %v9104 = vand.u32 %v8829, 4294901760
  %v9105 = vsub.f32 %v8829, %v9104
  %v9106 = vand.u32 %v9105, 4294901760
  %v9107 = vsub.f32 %v9105, %v9106
  %v9108 = vand.u32 %v9107, 4294901760
  %9109 = vmatpush.msra.mxu0 %v9108
  %v9110 = vand.u32 %v8827, 4294901760
  %v9111 = vsub.f32 %v8827, %v9110
  %v9112 = vand.u32 %v9111, 4294901760
  %v9113 = vsub.f32 %v9111, %v9112
  %v9114 = vand.u32 %v9113, 4294901760
  %9115 = vmatpush.msra.mxu0 %v9114
  %v9116 = vand.u32 %v6357, 4294901760
  %9117 = vmatmul.f32.gmra.mxu0 %v9116
  %v9118 = vpop.f32.mrf.mxu0
  %v9119 = vadd.f32 %v8898, %v9118
  %v9120 = vand.u32 %v6358, 4294901760
  %9121 = vmatmul.f32.gmra.mxu0 %v9120
  %v9122 = vpop.f32.mrf.mxu0
  %v9123 = vadd.f32 %v8906, %v9122
  %v9124 = vand.u32 %v6359, 4294901760
  %9125 = vmatmul.f32.gmra.mxu0 %v9124
  %v9126 = vpop.f32.mrf.mxu0
  %v9127 = vadd.f32 %v8914, %v9126
  %v9128 = vand.u32 %v6360, 4294901760
  %9129 = vmatmul.f32.gmra.mxu0 %v9128
  %v9130 = vpop.f32.mrf.mxu0
  %v9131 = vadd.f32 %v8922, %v9130
  %v9132 = vand.u32 %v6361, 4294901760
  %9133 = vmatmul.f32.gmra.mxu0 %v9132
  %v9134 = vpop.f32.mrf.mxu0
  %v9135 = vadd.f32 %v8930, %v9134
  %v9136 = vand.u32 %v6362, 4294901760
  %9137 = vmatmul.f32.gmra.mxu0 %v9136
  %v9138 = vpop.f32.mrf.mxu0
  %v9139 = vadd.f32 %v8938, %v9138
  %v9140 = vand.u32 %v6363, 4294901760
  %9141 = vmatmul.f32.gmra.mxu0 %v9140
  %v9142 = vpop.f32.mrf.mxu0
  %v9143 = vadd.f32 %v8946, %v9142
  %v9144 = vand.u32 %v6364, 4294901760
  %9145 = vmatmul.f32.gmra.mxu0 %v9144
  %v9146 = vpop.f32.mrf.mxu0
  %v9147 = vadd.f32 %v8954, %v9146
  %v9148 = vand.u32 %v6365, 4294901760
  %9149 = vmatmul.f32.gmra.mxu0 %v9148
  %v9150 = vpop.f32.mrf.mxu0
  %v9151 = vadd.f32 %v8962, %v9150
  %v9152 = vand.u32 %v6366, 4294901760
  %9153 = vmatmul.f32.gmra.mxu0 %v9152
  %v9154 = vpop.f32.mrf.mxu0
  %v9155 = vadd.f32 %v8970, %v9154
  %v9156 = vand.u32 %v6367, 4294901760
  %9157 = vmatmul.f32.gmra.mxu0 %v9156
  %v9158 = vpop.f32.mrf.mxu0
  %v9159 = vadd.f32 %v8978, %v9158
  %v9160 = vand.u32 %v6368, 4294901760
  %9161 = vmatmul.f32.gmra.mxu0 %v9160
  %v9162 = vpop.f32.mrf.mxu0
  %v9163 = vadd.f32 %v8986, %v9162
  %v9164 = vand.u32 %v6369, 4294901760
  %9165 = vmatmul.f32.gmra.mxu0 %v9164
  %v9166 = vpop.f32.mrf.mxu0
  %v9167 = vadd.f32 %v8994, %v9166
  %v9168 = vand.u32 %v6370, 4294901760
  %9169 = vmatmul.f32.gmra.mxu0 %v9168
  %v9170 = vpop.f32.mrf.mxu0
  %v9171 = vadd.f32 %v9002, %v9170
  %v9172 = vand.u32 %v6371, 4294901760
  %9173 = vmatmul.f32.gmra.mxu0 %v9172
  %v9174 = vpop.f32.mrf.mxu0
  %v9175 = vadd.f32 %v9010, %v9174
  %v9176 = vand.u32 %v6372, 4294901760
  %9177 = vmatmul.f32.gmra.mxu0 %v9176
  %v9178 = vpop.f32.mrf.mxu0
  %v9179 = vadd.f32 %v9018, %v9178
  %9180 = vdwg.mxu0
  %v9181 = vand.u32 %v8857, 4294901760
  %v9182 = vsub.f32 %v8857, %v9181
  %9183 = vmatpush.msra.mxu0 %v9182
  %v9184 = vand.u32 %v8855, 4294901760
  %v9185 = vsub.f32 %v8855, %v9184
  %9186 = vmatpush.msra.mxu0 %v9185
  %v9187 = vand.u32 %v8853, 4294901760
  %v9188 = vsub.f32 %v8853, %v9187
  %9189 = vmatpush.msra.mxu0 %v9188
  %v9190 = vand.u32 %v8851, 4294901760
  %v9191 = vsub.f32 %v8851, %v9190
  %9192 = vmatpush.msra.mxu0 %v9191
  %v9193 = vand.u32 %v8849, 4294901760
  %v9194 = vsub.f32 %v8849, %v9193
  %9195 = vmatpush.msra.mxu0 %v9194
  %v9196 = vand.u32 %v8847, 4294901760
  %v9197 = vsub.f32 %v8847, %v9196
  %9198 = vmatpush.msra.mxu0 %v9197
  %v9199 = vand.u32 %v8845, 4294901760
  %v9200 = vsub.f32 %v8845, %v9199
  %9201 = vmatpush.msra.mxu0 %v9200
  %v9202 = vand.u32 %v8843, 4294901760
  %v9203 = vsub.f32 %v8843, %v9202
  %9204 = vmatpush.msra.mxu0 %v9203
  %v9205 = vand.u32 %v8841, 4294901760
  %v9206 = vsub.f32 %v8841, %v9205
  %9207 = vmatpush.msra.mxu0 %v9206
  %v9208 = vand.u32 %v8839, 4294901760
  %v9209 = vsub.f32 %v8839, %v9208
  %9210 = vmatpush.msra.mxu0 %v9209
  %v9211 = vand.u32 %v8837, 4294901760
  %v9212 = vsub.f32 %v8837, %v9211
  %9213 = vmatpush.msra.mxu0 %v9212
  %v9214 = vand.u32 %v8835, 4294901760
  %v9215 = vsub.f32 %v8835, %v9214
  %9216 = vmatpush.msra.mxu0 %v9215
  %v9217 = vand.u32 %v8833, 4294901760
  %v9218 = vsub.f32 %v8833, %v9217
  %9219 = vmatpush.msra.mxu0 %v9218
  %v9220 = vand.u32 %v8831, 4294901760
  %v9221 = vsub.f32 %v8831, %v9220
  %9222 = vmatpush.msra.mxu0 %v9221
  %v9223 = vand.u32 %v8829, 4294901760
  %v9224 = vsub.f32 %v8829, %v9223
  %9225 = vmatpush.msra.mxu0 %v9224
  %v9226 = vand.u32 %v8827, 4294901760
  %v9227 = vsub.f32 %v8827, %v9226
  %9228 = vmatpush.msra.mxu0 %v9227
  %v9229 = vand.u32 %v6357, 4294901760
  %v9230 = vsub.f32 %v6357, %v9229
  %9231 = vmatmul.f32.gmra.mxu0 %v9230
  %v9232 = vpop.f32.mrf.mxu0
  %v9233 = vadd.f32 %v9119, %v9232
  %v9234 = vand.u32 %v6358, 4294901760
  %v9235 = vsub.f32 %v6358, %v9234
  %9236 = vmatmul.f32.gmra.mxu0 %v9235
  %v9237 = vpop.f32.mrf.mxu0
  %v9238 = vadd.f32 %v9123, %v9237
  %v9239 = vand.u32 %v6359, 4294901760
  %v9240 = vsub.f32 %v6359, %v9239
  %9241 = vmatmul.f32.gmra.mxu0 %v9240
  %v9242 = vpop.f32.mrf.mxu0
  %v9243 = vadd.f32 %v9127, %v9242
  %v9244 = vand.u32 %v6360, 4294901760
  %v9245 = vsub.f32 %v6360, %v9244
  %9246 = vmatmul.f32.gmra.mxu0 %v9245
  %v9247 = vpop.f32.mrf.mxu0
  %v9248 = vadd.f32 %v9131, %v9247
  %v9249 = vand.u32 %v6361, 4294901760
  %v9250 = vsub.f32 %v6361, %v9249
  %9251 = vmatmul.f32.gmra.mxu0 %v9250
  %v9252 = vpop.f32.mrf.mxu0
  %v9253 = vadd.f32 %v9135, %v9252
  %v9254 = vand.u32 %v6362, 4294901760
  %v9255 = vsub.f32 %v6362, %v9254
  %9256 = vmatmul.f32.gmra.mxu0 %v9255
  %v9257 = vpop.f32.mrf.mxu0
  %v9258 = vadd.f32 %v9139, %v9257
  %v9259 = vand.u32 %v6363, 4294901760
  %v9260 = vsub.f32 %v6363, %v9259
  %9261 = vmatmul.f32.gmra.mxu0 %v9260
  %v9262 = vpop.f32.mrf.mxu0
  %v9263 = vadd.f32 %v9143, %v9262
  %v9264 = vand.u32 %v6364, 4294901760
  %v9265 = vsub.f32 %v6364, %v9264
  %9266 = vmatmul.f32.gmra.mxu0 %v9265
  %v9267 = vpop.f32.mrf.mxu0
  %v9268 = vadd.f32 %v9147, %v9267
  %v9269 = vand.u32 %v6365, 4294901760
  %v9270 = vsub.f32 %v6365, %v9269
  %9271 = vmatmul.f32.gmra.mxu0 %v9270
  %v9272 = vpop.f32.mrf.mxu0
  %v9273 = vadd.f32 %v9151, %v9272
  %v9274 = vand.u32 %v6366, 4294901760
  %v9275 = vsub.f32 %v6366, %v9274
  %9276 = vmatmul.f32.gmra.mxu0 %v9275
  %v9277 = vpop.f32.mrf.mxu0
  %v9278 = vadd.f32 %v9155, %v9277
  %v9279 = vand.u32 %v6367, 4294901760
  %v9280 = vsub.f32 %v6367, %v9279
  %9281 = vmatmul.f32.gmra.mxu0 %v9280
  %v9282 = vpop.f32.mrf.mxu0
  %v9283 = vadd.f32 %v9159, %v9282
  %v9284 = vand.u32 %v6368, 4294901760
  %v9285 = vsub.f32 %v6368, %v9284
  %9286 = vmatmul.f32.gmra.mxu0 %v9285
  %v9287 = vpop.f32.mrf.mxu0
  %v9288 = vadd.f32 %v9163, %v9287
  %v9289 = vand.u32 %v6369, 4294901760
  %v9290 = vsub.f32 %v6369, %v9289
  %9291 = vmatmul.f32.gmra.mxu0 %v9290
  %v9292 = vpop.f32.mrf.mxu0
  %v9293 = vadd.f32 %v9167, %v9292
  %v9294 = vand.u32 %v6370, 4294901760
  %v9295 = vsub.f32 %v6370, %v9294
  %9296 = vmatmul.f32.gmra.mxu0 %v9295
  %v9297 = vpop.f32.mrf.mxu0
  %v9298 = vadd.f32 %v9171, %v9297
  %v9299 = vand.u32 %v6371, 4294901760
  %v9300 = vsub.f32 %v6371, %v9299
  %9301 = vmatmul.f32.gmra.mxu0 %v9300
  %v9302 = vpop.f32.mrf.mxu0
  %v9303 = vadd.f32 %v9175, %v9302
  %v9304 = vand.u32 %v6372, 4294901760
  %v9305 = vsub.f32 %v6372, %v9304
  %9306 = vmatmul.f32.gmra.mxu0 %v9305
  %v9307 = vpop.f32.mrf.mxu0
  %v9308 = vadd.f32 %v9179, %v9307
  %9309 = vdwg.mxu0
  %v9310 = vand.u32 %v8857, 4294901760
  %9311 = vmatpush.msra.mxu0 %v9310
  %v9312 = vand.u32 %v8855, 4294901760
  %9313 = vmatpush.msra.mxu0 %v9312
  %v9314 = vand.u32 %v8853, 4294901760
  %9315 = vmatpush.msra.mxu0 %v9314
  %v9316 = vand.u32 %v8851, 4294901760
  %9317 = vmatpush.msra.mxu0 %v9316
  %v9318 = vand.u32 %v8849, 4294901760
  %9319 = vmatpush.msra.mxu0 %v9318
  %v9320 = vand.u32 %v8847, 4294901760
  %9321 = vmatpush.msra.mxu0 %v9320
  %v9322 = vand.u32 %v8845, 4294901760
  %9323 = vmatpush.msra.mxu0 %v9322
  %v9324 = vand.u32 %v8843, 4294901760
  %9325 = vmatpush.msra.mxu0 %v9324
  %v9326 = vand.u32 %v8841, 4294901760
  %9327 = vmatpush.msra.mxu0 %v9326
  %v9328 = vand.u32 %v8839, 4294901760
  %9329 = vmatpush.msra.mxu0 %v9328
  %v9330 = vand.u32 %v8837, 4294901760
  %9331 = vmatpush.msra.mxu0 %v9330
  %v9332 = vand.u32 %v8835, 4294901760
  %9333 = vmatpush.msra.mxu0 %v9332
  %v9334 = vand.u32 %v8833, 4294901760
  %9335 = vmatpush.msra.mxu0 %v9334
  %v9336 = vand.u32 %v8831, 4294901760
  %9337 = vmatpush.msra.mxu0 %v9336
  %v9338 = vand.u32 %v8829, 4294901760
  %9339 = vmatpush.msra.mxu0 %v9338
  %v9340 = vand.u32 %v8827, 4294901760
  %9341 = vmatpush.msra.mxu0 %v9340
  %v9342 = vand.u32 %v6357, 4294901760
  %v9343 = vsub.f32 %v6357, %v9342
  %v9344 = vand.u32 %v9343, 4294901760
  %9345 = vmatmul.f32.gmra.mxu0 %v9344
  %v9346 = vpop.f32.mrf.mxu0
  %v9347 = vadd.f32 %v9233, %v9346
  %v9348 = vand.u32 %v6358, 4294901760
  %v9349 = vsub.f32 %v6358, %v9348
  %v9350 = vand.u32 %v9349, 4294901760
  %9351 = vmatmul.f32.gmra.mxu0 %v9350
  %v9352 = vpop.f32.mrf.mxu0
  %v9353 = vadd.f32 %v9238, %v9352
  %v9354 = vand.u32 %v6359, 4294901760
  %v9355 = vsub.f32 %v6359, %v9354
  %v9356 = vand.u32 %v9355, 4294901760
  %9357 = vmatmul.f32.gmra.mxu0 %v9356
  %v9358 = vpop.f32.mrf.mxu0
  %v9359 = vadd.f32 %v9243, %v9358
  %v9360 = vand.u32 %v6360, 4294901760
  %v9361 = vsub.f32 %v6360, %v9360
  %v9362 = vand.u32 %v9361, 4294901760
  %9363 = vmatmul.f32.gmra.mxu0 %v9362
  %v9364 = vpop.f32.mrf.mxu0
  %v9365 = vadd.f32 %v9248, %v9364
  %v9366 = vand.u32 %v6361, 4294901760
  %v9367 = vsub.f32 %v6361, %v9366
  %v9368 = vand.u32 %v9367, 4294901760
  %9369 = vmatmul.f32.gmra.mxu0 %v9368
  %v9370 = vpop.f32.mrf.mxu0
  %v9371 = vadd.f32 %v9253, %v9370
  %v9372 = vand.u32 %v6362, 4294901760
  %v9373 = vsub.f32 %v6362, %v9372
  %v9374 = vand.u32 %v9373, 4294901760
  %9375 = vmatmul.f32.gmra.mxu0 %v9374
  %v9376 = vpop.f32.mrf.mxu0
  %v9377 = vadd.f32 %v9258, %v9376
  %v9378 = vand.u32 %v6363, 4294901760
  %v9379 = vsub.f32 %v6363, %v9378
  %v9380 = vand.u32 %v9379, 4294901760
  %9381 = vmatmul.f32.gmra.mxu0 %v9380
  %v9382 = vpop.f32.mrf.mxu0
  %v9383 = vadd.f32 %v9263, %v9382
  %v9384 = vand.u32 %v6364, 4294901760
  %v9385 = vsub.f32 %v6364, %v9384
  %v9386 = vand.u32 %v9385, 4294901760
  %9387 = vmatmul.f32.gmra.mxu0 %v9386
  %v9388 = vpop.f32.mrf.mxu0
  %v9389 = vadd.f32 %v9268, %v9388
  %v9390 = vand.u32 %v6365, 4294901760
  %v9391 = vsub.f32 %v6365, %v9390
  %v9392 = vand.u32 %v9391, 4294901760
  %9393 = vmatmul.f32.gmra.mxu0 %v9392
  %v9394 = vpop.f32.mrf.mxu0
  %v9395 = vadd.f32 %v9273, %v9394
  %v9396 = vand.u32 %v6366, 4294901760
  %v9397 = vsub.f32 %v6366, %v9396
  %v9398 = vand.u32 %v9397, 4294901760
  %9399 = vmatmul.f32.gmra.mxu0 %v9398
  %v9400 = vpop.f32.mrf.mxu0
  %v9401 = vadd.f32 %v9278, %v9400
  %v9402 = vand.u32 %v6367, 4294901760
  %v9403 = vsub.f32 %v6367, %v9402
  %v9404 = vand.u32 %v9403, 4294901760
  %9405 = vmatmul.f32.gmra.mxu0 %v9404
  %v9406 = vpop.f32.mrf.mxu0
  %v9407 = vadd.f32 %v9283, %v9406
  %v9408 = vand.u32 %v6368, 4294901760
  %v9409 = vsub.f32 %v6368, %v9408
  %v9410 = vand.u32 %v9409, 4294901760
  %9411 = vmatmul.f32.gmra.mxu0 %v9410
  %v9412 = vpop.f32.mrf.mxu0
  %v9413 = vadd.f32 %v9288, %v9412
  %v9414 = vand.u32 %v6369, 4294901760
  %v9415 = vsub.f32 %v6369, %v9414
  %v9416 = vand.u32 %v9415, 4294901760
  %9417 = vmatmul.f32.gmra.mxu0 %v9416
  %v9418 = vpop.f32.mrf.mxu0
  %v9419 = vadd.f32 %v9293, %v9418
  %v9420 = vand.u32 %v6370, 4294901760
  %v9421 = vsub.f32 %v6370, %v9420
  %v9422 = vand.u32 %v9421, 4294901760
  %9423 = vmatmul.f32.gmra.mxu0 %v9422
  %v9424 = vpop.f32.mrf.mxu0
  %v9425 = vadd.f32 %v9298, %v9424
  %v9426 = vand.u32 %v6371, 4294901760
  %v9427 = vsub.f32 %v6371, %v9426
  %v9428 = vand.u32 %v9427, 4294901760
  %9429 = vmatmul.f32.gmra.mxu0 %v9428
  %v9430 = vpop.f32.mrf.mxu0
  %v9431 = vadd.f32 %v9303, %v9430
  %v9432 = vand.u32 %v6372, 4294901760
  %v9433 = vsub.f32 %v6372, %v9432
  %v9434 = vand.u32 %v9433, 4294901760
  %9435 = vmatmul.f32.gmra.mxu0 %v9434
  %v9436 = vpop.f32.mrf.mxu0
  %v9437 = vadd.f32 %v9308, %v9436
  %9438 = vdwg.mxu0
  %v9439 = vand.u32 %v8857, 4294901760
  %v9440 = vsub.f32 %v8857, %v9439
  %v9441 = vand.u32 %v9440, 4294901760
  %9442 = vmatpush.msra.mxu0 %v9441
  %v9443 = vand.u32 %v8855, 4294901760
  %v9444 = vsub.f32 %v8855, %v9443
  %v9445 = vand.u32 %v9444, 4294901760
  %9446 = vmatpush.msra.mxu0 %v9445
  %v9447 = vand.u32 %v8853, 4294901760
  %v9448 = vsub.f32 %v8853, %v9447
  %v9449 = vand.u32 %v9448, 4294901760
  %9450 = vmatpush.msra.mxu0 %v9449
  %v9451 = vand.u32 %v8851, 4294901760
  %v9452 = vsub.f32 %v8851, %v9451
  %v9453 = vand.u32 %v9452, 4294901760
  %9454 = vmatpush.msra.mxu0 %v9453
  %v9455 = vand.u32 %v8849, 4294901760
  %v9456 = vsub.f32 %v8849, %v9455
  %v9457 = vand.u32 %v9456, 4294901760
  %9458 = vmatpush.msra.mxu0 %v9457
  %v9459 = vand.u32 %v8847, 4294901760
  %v9460 = vsub.f32 %v8847, %v9459
  %v9461 = vand.u32 %v9460, 4294901760
  %9462 = vmatpush.msra.mxu0 %v9461
  %v9463 = vand.u32 %v8845, 4294901760
  %v9464 = vsub.f32 %v8845, %v9463
  %v9465 = vand.u32 %v9464, 4294901760
  %9466 = vmatpush.msra.mxu0 %v9465
  %v9467 = vand.u32 %v8843, 4294901760
  %v9468 = vsub.f32 %v8843, %v9467
  %v9469 = vand.u32 %v9468, 4294901760
  %9470 = vmatpush.msra.mxu0 %v9469
  %v9471 = vand.u32 %v8841, 4294901760
  %v9472 = vsub.f32 %v8841, %v9471
  %v9473 = vand.u32 %v9472, 4294901760
  %9474 = vmatpush.msra.mxu0 %v9473
  %v9475 = vand.u32 %v8839, 4294901760
  %v9476 = vsub.f32 %v8839, %v9475
  %v9477 = vand.u32 %v9476, 4294901760
  %9478 = vmatpush.msra.mxu0 %v9477
  %v9479 = vand.u32 %v8837, 4294901760
  %v9480 = vsub.f32 %v8837, %v9479
  %v9481 = vand.u32 %v9480, 4294901760
  %9482 = vmatpush.msra.mxu0 %v9481
  %v9483 = vand.u32 %v8835, 4294901760
  %v9484 = vsub.f32 %v8835, %v9483
  %v9485 = vand.u32 %v9484, 4294901760
  %9486 = vmatpush.msra.mxu0 %v9485
  %v9487 = vand.u32 %v8833, 4294901760
  %v9488 = vsub.f32 %v8833, %v9487
  %v9489 = vand.u32 %v9488, 4294901760
  %9490 = vmatpush.msra.mxu0 %v9489
  %v9491 = vand.u32 %v8831, 4294901760
  %v9492 = vsub.f32 %v8831, %v9491
  %v9493 = vand.u32 %v9492, 4294901760
  %9494 = vmatpush.msra.mxu0 %v9493
  %v9495 = vand.u32 %v8829, 4294901760
  %v9496 = vsub.f32 %v8829, %v9495
  %v9497 = vand.u32 %v9496, 4294901760
  %9498 = vmatpush.msra.mxu0 %v9497
  %v9499 = vand.u32 %v8827, 4294901760
  %v9500 = vsub.f32 %v8827, %v9499
  %v9501 = vand.u32 %v9500, 4294901760
  %9502 = vmatpush.msra.mxu0 %v9501
  %v9503 = vand.u32 %v6357, 4294901760
  %9504 = vmatmul.f32.gmra.mxu0 %v9503
  %v9505 = vpop.f32.mrf.mxu0
  %v9506 = vadd.f32 %v9347, %v9505
  %v9507 = vand.u32 %v6358, 4294901760
  %9508 = vmatmul.f32.gmra.mxu0 %v9507
  %v9509 = vpop.f32.mrf.mxu0
  %v9510 = vadd.f32 %v9353, %v9509
  %v9511 = vand.u32 %v6359, 4294901760
  %9512 = vmatmul.f32.gmra.mxu0 %v9511
  %v9513 = vpop.f32.mrf.mxu0
  %v9514 = vadd.f32 %v9359, %v9513
  %v9515 = vand.u32 %v6360, 4294901760
  %9516 = vmatmul.f32.gmra.mxu0 %v9515
  %v9517 = vpop.f32.mrf.mxu0
  %v9518 = vadd.f32 %v9365, %v9517
  %v9519 = vand.u32 %v6361, 4294901760
  %9520 = vmatmul.f32.gmra.mxu0 %v9519
  %v9521 = vpop.f32.mrf.mxu0
  %v9522 = vadd.f32 %v9371, %v9521
  %v9523 = vand.u32 %v6362, 4294901760
  %9524 = vmatmul.f32.gmra.mxu0 %v9523
  %v9525 = vpop.f32.mrf.mxu0
  %v9526 = vadd.f32 %v9377, %v9525
  %v9527 = vand.u32 %v6363, 4294901760
  %9528 = vmatmul.f32.gmra.mxu0 %v9527
  %v9529 = vpop.f32.mrf.mxu0
  %v9530 = vadd.f32 %v9383, %v9529
  %v9531 = vand.u32 %v6364, 4294901760
  %9532 = vmatmul.f32.gmra.mxu0 %v9531
  %v9533 = vpop.f32.mrf.mxu0
  %v9534 = vadd.f32 %v9389, %v9533
  %v9535 = vand.u32 %v6365, 4294901760
  %9536 = vmatmul.f32.gmra.mxu0 %v9535
  %v9537 = vpop.f32.mrf.mxu0
  %v9538 = vadd.f32 %v9395, %v9537
  %v9539 = vand.u32 %v6366, 4294901760
  %9540 = vmatmul.f32.gmra.mxu0 %v9539
  %v9541 = vpop.f32.mrf.mxu0
  %v9542 = vadd.f32 %v9401, %v9541
  %v9543 = vand.u32 %v6367, 4294901760
  %9544 = vmatmul.f32.gmra.mxu0 %v9543
  %v9545 = vpop.f32.mrf.mxu0
  %v9546 = vadd.f32 %v9407, %v9545
  %v9547 = vand.u32 %v6368, 4294901760
  %9548 = vmatmul.f32.gmra.mxu0 %v9547
  %v9549 = vpop.f32.mrf.mxu0
  %v9550 = vadd.f32 %v9413, %v9549
  %v9551 = vand.u32 %v6369, 4294901760
  %9552 = vmatmul.f32.gmra.mxu0 %v9551
  %v9553 = vpop.f32.mrf.mxu0
  %v9554 = vadd.f32 %v9419, %v9553
  %v9555 = vand.u32 %v6370, 4294901760
  %9556 = vmatmul.f32.gmra.mxu0 %v9555
  %v9557 = vpop.f32.mrf.mxu0
  %v9558 = vadd.f32 %v9425, %v9557
  %v9559 = vand.u32 %v6371, 4294901760
  %9560 = vmatmul.f32.gmra.mxu0 %v9559
  %v9561 = vpop.f32.mrf.mxu0
  %v9562 = vadd.f32 %v9431, %v9561
  %v9563 = vand.u32 %v6372, 4294901760
  %9564 = vmatmul.f32.gmra.mxu0 %v9563
  %v9565 = vpop.f32.mrf.mxu0
  %v9566 = vadd.f32 %v9437, %v9565
  %9567 = vdwg.mxu0
  %v9568 = vand.u32 %v8857, 4294901760
  %9569 = vmatpush.msra.mxu0 %v9568
  %v9570 = vand.u32 %v8855, 4294901760
  %9571 = vmatpush.msra.mxu0 %v9570
  %v9572 = vand.u32 %v8853, 4294901760
  %9573 = vmatpush.msra.mxu0 %v9572
  %v9574 = vand.u32 %v8851, 4294901760
  %9575 = vmatpush.msra.mxu0 %v9574
  %v9576 = vand.u32 %v8849, 4294901760
  %9577 = vmatpush.msra.mxu0 %v9576
  %v9578 = vand.u32 %v8847, 4294901760
  %9579 = vmatpush.msra.mxu0 %v9578
  %v9580 = vand.u32 %v8845, 4294901760
  %9581 = vmatpush.msra.mxu0 %v9580
  %v9582 = vand.u32 %v8843, 4294901760
  %9583 = vmatpush.msra.mxu0 %v9582
  %v9584 = vand.u32 %v8841, 4294901760
  %9585 = vmatpush.msra.mxu0 %v9584
  %v9586 = vand.u32 %v8839, 4294901760
  %9587 = vmatpush.msra.mxu0 %v9586
  %v9588 = vand.u32 %v8837, 4294901760
  %9589 = vmatpush.msra.mxu0 %v9588
  %v9590 = vand.u32 %v8835, 4294901760
  %9591 = vmatpush.msra.mxu0 %v9590
  %v9592 = vand.u32 %v8833, 4294901760
  %9593 = vmatpush.msra.mxu0 %v9592
  %v9594 = vand.u32 %v8831, 4294901760
  %9595 = vmatpush.msra.mxu0 %v9594
  %v9596 = vand.u32 %v8829, 4294901760
  %9597 = vmatpush.msra.mxu0 %v9596
  %v9598 = vand.u32 %v8827, 4294901760
  %9599 = vmatpush.msra.mxu0 %v9598
  %v9600 = vand.u32 %v6357, 4294901760
  %9601 = vmatmul.f32.gmra.mxu0 %v9600
  %v9602 = vpop.f32.mrf.mxu0
  %v9603 = vadd.f32 %v9506, %v9602
  %v9604 = vand.u32 %v6358, 4294901760
  %9605 = vmatmul.f32.gmra.mxu0 %v9604
  %v9606 = vpop.f32.mrf.mxu0
  %v9607 = vadd.f32 %v9510, %v9606
  %v9608 = vand.u32 %v6359, 4294901760
  %9609 = vmatmul.f32.gmra.mxu0 %v9608
  %v9610 = vpop.f32.mrf.mxu0
  %v9611 = vadd.f32 %v9514, %v9610
  %v9612 = vand.u32 %v6360, 4294901760
  %9613 = vmatmul.f32.gmra.mxu0 %v9612
  %v9614 = vpop.f32.mrf.mxu0
  %v9615 = vadd.f32 %v9518, %v9614
  %v9616 = vand.u32 %v6361, 4294901760
  %9617 = vmatmul.f32.gmra.mxu0 %v9616
  %v9618 = vpop.f32.mrf.mxu0
  %v9619 = vadd.f32 %v9522, %v9618
  %v9620 = vand.u32 %v6362, 4294901760
  %9621 = vmatmul.f32.gmra.mxu0 %v9620
  %v9622 = vpop.f32.mrf.mxu0
  %v9623 = vadd.f32 %v9526, %v9622
  %v9624 = vand.u32 %v6363, 4294901760
  %9625 = vmatmul.f32.gmra.mxu0 %v9624
  %v9626 = vpop.f32.mrf.mxu0
  %v9627 = vadd.f32 %v9530, %v9626
  %v9628 = vand.u32 %v6364, 4294901760
  %9629 = vmatmul.f32.gmra.mxu0 %v9628
  %v9630 = vpop.f32.mrf.mxu0
  %v9631 = vadd.f32 %v9534, %v9630
  %v9632 = vand.u32 %v6365, 4294901760
  %9633 = vmatmul.f32.gmra.mxu0 %v9632
  %v9634 = vpop.f32.mrf.mxu0
  %v9635 = vadd.f32 %v9538, %v9634
  %v9636 = vand.u32 %v6366, 4294901760
  %9637 = vmatmul.f32.gmra.mxu0 %v9636
  %v9638 = vpop.f32.mrf.mxu0
  %v9639 = vadd.f32 %v9542, %v9638
  %v9640 = vand.u32 %v6367, 4294901760
  %9641 = vmatmul.f32.gmra.mxu0 %v9640
  %v9642 = vpop.f32.mrf.mxu0
  %v9643 = vadd.f32 %v9546, %v9642
  %v9644 = vand.u32 %v6368, 4294901760
  %9645 = vmatmul.f32.gmra.mxu0 %v9644
  %v9646 = vpop.f32.mrf.mxu0
  %v9647 = vadd.f32 %v9550, %v9646
  %v9648 = vand.u32 %v6369, 4294901760
  %9649 = vmatmul.f32.gmra.mxu0 %v9648
  %v9650 = vpop.f32.mrf.mxu0
  %v9651 = vadd.f32 %v9554, %v9650
  %v9652 = vand.u32 %v6370, 4294901760
  %9653 = vmatmul.f32.gmra.mxu0 %v9652
  %v9654 = vpop.f32.mrf.mxu0
  %v9655 = vadd.f32 %v9558, %v9654
  %v9656 = vand.u32 %v6371, 4294901760
  %9657 = vmatmul.f32.gmra.mxu0 %v9656
  %v9658 = vpop.f32.mrf.mxu0
  %v9659 = vadd.f32 %v9562, %v9658
  %v9660 = vand.u32 %v6372, 4294901760
  %9661 = vmatmul.f32.gmra.mxu0 %v9660
  %v9662 = vpop.f32.mrf.mxu0
  %v9663 = vadd.f32 %v9566, %v9662
  %9664 = vdwg.mxu0
  %v9665 = vand.u32 %v8858, 4294901760
  %9666 = vmatpush.msra.mxu0 %v9665
  %v9667 = vand.u32 %v8856, 4294901760
  %9668 = vmatpush.msra.mxu0 %v9667
  %v9669 = vand.u32 %v8854, 4294901760
  %9670 = vmatpush.msra.mxu0 %v9669
  %v9671 = vand.u32 %v8852, 4294901760
  %9672 = vmatpush.msra.mxu0 %v9671
  %v9673 = vand.u32 %v8850, 4294901760
  %9674 = vmatpush.msra.mxu0 %v9673
  %v9675 = vand.u32 %v8848, 4294901760
  %9676 = vmatpush.msra.mxu0 %v9675
  %v9677 = vand.u32 %v8846, 4294901760
  %9678 = vmatpush.msra.mxu0 %v9677
  %v9679 = vand.u32 %v8844, 4294901760
  %9680 = vmatpush.msra.mxu0 %v9679
  %v9681 = vand.u32 %v8842, 4294901760
  %9682 = vmatpush.msra.mxu0 %v9681
  %v9683 = vand.u32 %v8840, 4294901760
  %9684 = vmatpush.msra.mxu0 %v9683
  %v9685 = vand.u32 %v8838, 4294901760
  %9686 = vmatpush.msra.mxu0 %v9685
  %v9687 = vand.u32 %v8836, 4294901760
  %9688 = vmatpush.msra.mxu0 %v9687
  %v9689 = vand.u32 %v8834, 4294901760
  %9690 = vmatpush.msra.mxu0 %v9689
  %v9691 = vand.u32 %v8832, 4294901760
  %9692 = vmatpush.msra.mxu0 %v9691
  %v9693 = vand.u32 %v8830, 4294901760
  %9694 = vmatpush.msra.mxu0 %v9693
  %v9695 = vand.u32 %v8828, 4294901760
  %9696 = vmatpush.msra.mxu0 %v9695
  %v9697 = vand.u32 %v6357, 4294901760
  %v9698 = vsub.f32 %v6357, %v9697
  %v9699 = vand.u32 %v9698, 4294901760
  %v9700 = vsub.f32 %v9698, %v9699
  %v9701 = vand.u32 %v9700, 4294901760
  %9702 = vmatmul.f32.gmra.mxu0 %v9701
  %v9703 = vpop.f32.mrf.mxu0
  %v9704 = vadd.f32 0.0, %v9703
  %v9705 = vand.u32 %v6358, 4294901760
  %v9706 = vsub.f32 %v6358, %v9705
  %v9707 = vand.u32 %v9706, 4294901760
  %v9708 = vsub.f32 %v9706, %v9707
  %v9709 = vand.u32 %v9708, 4294901760
  %9710 = vmatmul.f32.gmra.mxu0 %v9709
  %v9711 = vpop.f32.mrf.mxu0
  %v9712 = vadd.f32 0.0, %v9711
  %v9713 = vand.u32 %v6359, 4294901760
  %v9714 = vsub.f32 %v6359, %v9713
  %v9715 = vand.u32 %v9714, 4294901760
  %v9716 = vsub.f32 %v9714, %v9715
  %v9717 = vand.u32 %v9716, 4294901760
  %9718 = vmatmul.f32.gmra.mxu0 %v9717
  %v9719 = vpop.f32.mrf.mxu0
  %v9720 = vadd.f32 0.0, %v9719
  %v9721 = vand.u32 %v6360, 4294901760
  %v9722 = vsub.f32 %v6360, %v9721
  %v9723 = vand.u32 %v9722, 4294901760
  %v9724 = vsub.f32 %v9722, %v9723
  %v9725 = vand.u32 %v9724, 4294901760
  %9726 = vmatmul.f32.gmra.mxu0 %v9725
  %v9727 = vpop.f32.mrf.mxu0
  %v9728 = vadd.f32 0.0, %v9727
  %v9729 = vand.u32 %v6361, 4294901760
  %v9730 = vsub.f32 %v6361, %v9729
  %v9731 = vand.u32 %v9730, 4294901760
  %v9732 = vsub.f32 %v9730, %v9731
  %v9733 = vand.u32 %v9732, 4294901760
  %9734 = vmatmul.f32.gmra.mxu0 %v9733
  %v9735 = vpop.f32.mrf.mxu0
  %v9736 = vadd.f32 0.0, %v9735
  %v9737 = vand.u32 %v6362, 4294901760
  %v9738 = vsub.f32 %v6362, %v9737
  %v9739 = vand.u32 %v9738, 4294901760
  %v9740 = vsub.f32 %v9738, %v9739
  %v9741 = vand.u32 %v9740, 4294901760
  %9742 = vmatmul.f32.gmra.mxu0 %v9741
  %v9743 = vpop.f32.mrf.mxu0
  %v9744 = vadd.f32 0.0, %v9743
  %v9745 = vand.u32 %v6363, 4294901760
  %v9746 = vsub.f32 %v6363, %v9745
  %v9747 = vand.u32 %v9746, 4294901760
  %v9748 = vsub.f32 %v9746, %v9747
  %v9749 = vand.u32 %v9748, 4294901760
  %9750 = vmatmul.f32.gmra.mxu0 %v9749
  %v9751 = vpop.f32.mrf.mxu0
  %v9752 = vadd.f32 0.0, %v9751
  %v9753 = vand.u32 %v6364, 4294901760
  %v9754 = vsub.f32 %v6364, %v9753
  %v9755 = vand.u32 %v9754, 4294901760
  %v9756 = vsub.f32 %v9754, %v9755
  %v9757 = vand.u32 %v9756, 4294901760
  %9758 = vmatmul.f32.gmra.mxu0 %v9757
  %v9759 = vpop.f32.mrf.mxu0
  %v9760 = vadd.f32 0.0, %v9759
  %v9761 = vand.u32 %v6365, 4294901760
  %v9762 = vsub.f32 %v6365, %v9761
  %v9763 = vand.u32 %v9762, 4294901760
  %v9764 = vsub.f32 %v9762, %v9763
  %v9765 = vand.u32 %v9764, 4294901760
  %9766 = vmatmul.f32.gmra.mxu0 %v9765
  %v9767 = vpop.f32.mrf.mxu0
  %v9768 = vadd.f32 0.0, %v9767
  %v9769 = vand.u32 %v6366, 4294901760
  %v9770 = vsub.f32 %v6366, %v9769
  %v9771 = vand.u32 %v9770, 4294901760
  %v9772 = vsub.f32 %v9770, %v9771
  %v9773 = vand.u32 %v9772, 4294901760
  %9774 = vmatmul.f32.gmra.mxu0 %v9773
  %v9775 = vpop.f32.mrf.mxu0
  %v9776 = vadd.f32 0.0, %v9775
  %v9777 = vand.u32 %v6367, 4294901760
  %v9778 = vsub.f32 %v6367, %v9777
  %v9779 = vand.u32 %v9778, 4294901760
  %v9780 = vsub.f32 %v9778, %v9779
  %v9781 = vand.u32 %v9780, 4294901760
  %9782 = vmatmul.f32.gmra.mxu0 %v9781
  %v9783 = vpop.f32.mrf.mxu0
  %v9784 = vadd.f32 0.0, %v9783
  %v9785 = vand.u32 %v6368, 4294901760
  %v9786 = vsub.f32 %v6368, %v9785
  %v9787 = vand.u32 %v9786, 4294901760
  %v9788 = vsub.f32 %v9786, %v9787
  %v9789 = vand.u32 %v9788, 4294901760
  %9790 = vmatmul.f32.gmra.mxu0 %v9789
  %v9791 = vpop.f32.mrf.mxu0
  %v9792 = vadd.f32 0.0, %v9791
  %v9793 = vand.u32 %v6369, 4294901760
  %v9794 = vsub.f32 %v6369, %v9793
  %v9795 = vand.u32 %v9794, 4294901760
  %v9796 = vsub.f32 %v9794, %v9795
  %v9797 = vand.u32 %v9796, 4294901760
  %9798 = vmatmul.f32.gmra.mxu0 %v9797
  %v9799 = vpop.f32.mrf.mxu0
  %v9800 = vadd.f32 0.0, %v9799
  %v9801 = vand.u32 %v6370, 4294901760
  %v9802 = vsub.f32 %v6370, %v9801
  %v9803 = vand.u32 %v9802, 4294901760
  %v9804 = vsub.f32 %v9802, %v9803
  %v9805 = vand.u32 %v9804, 4294901760
  %9806 = vmatmul.f32.gmra.mxu0 %v9805
  %v9807 = vpop.f32.mrf.mxu0
  %v9808 = vadd.f32 0.0, %v9807
  %v9809 = vand.u32 %v6371, 4294901760
  %v9810 = vsub.f32 %v6371, %v9809
  %v9811 = vand.u32 %v9810, 4294901760
  %v9812 = vsub.f32 %v9810, %v9811
  %v9813 = vand.u32 %v9812, 4294901760
  %9814 = vmatmul.f32.gmra.mxu0 %v9813
  %v9815 = vpop.f32.mrf.mxu0
  %v9816 = vadd.f32 0.0, %v9815
  %v9817 = vand.u32 %v6372, 4294901760
  %v9818 = vsub.f32 %v6372, %v9817
  %v9819 = vand.u32 %v9818, 4294901760
  %v9820 = vsub.f32 %v9818, %v9819
  %v9821 = vand.u32 %v9820, 4294901760
  %9822 = vmatmul.f32.gmra.mxu0 %v9821
  %v9823 = vpop.f32.mrf.mxu0
  %v9824 = vadd.f32 0.0, %v9823
  %9825 = vdwg.mxu0
  %v9826 = vand.u32 %v8858, 4294901760
  %v9827 = vsub.f32 %v8858, %v9826
  %v9828 = vand.u32 %v9827, 4294901760
  %v9829 = vsub.f32 %v9827, %v9828
  %v9830 = vand.u32 %v9829, 4294901760
  %9831 = vmatpush.msra.mxu0 %v9830
  %v9832 = vand.u32 %v8856, 4294901760
  %v9833 = vsub.f32 %v8856, %v9832
  %v9834 = vand.u32 %v9833, 4294901760
  %v9835 = vsub.f32 %v9833, %v9834
  %v9836 = vand.u32 %v9835, 4294901760
  %9837 = vmatpush.msra.mxu0 %v9836
  %v9838 = vand.u32 %v8854, 4294901760
  %v9839 = vsub.f32 %v8854, %v9838
  %v9840 = vand.u32 %v9839, 4294901760
  %v9841 = vsub.f32 %v9839, %v9840
  %v9842 = vand.u32 %v9841, 4294901760
  %9843 = vmatpush.msra.mxu0 %v9842
  %v9844 = vand.u32 %v8852, 4294901760
  %v9845 = vsub.f32 %v8852, %v9844
  %v9846 = vand.u32 %v9845, 4294901760
  %v9847 = vsub.f32 %v9845, %v9846
  %v9848 = vand.u32 %v9847, 4294901760
  %9849 = vmatpush.msra.mxu0 %v9848
  %v9850 = vand.u32 %v8850, 4294901760
  %v9851 = vsub.f32 %v8850, %v9850
  %v9852 = vand.u32 %v9851, 4294901760
  %v9853 = vsub.f32 %v9851, %v9852
  %v9854 = vand.u32 %v9853, 4294901760
  %9855 = vmatpush.msra.mxu0 %v9854
  %v9856 = vand.u32 %v8848, 4294901760
  %v9857 = vsub.f32 %v8848, %v9856
  %v9858 = vand.u32 %v9857, 4294901760
  %v9859 = vsub.f32 %v9857, %v9858
  %v9860 = vand.u32 %v9859, 4294901760
  %9861 = vmatpush.msra.mxu0 %v9860
  %v9862 = vand.u32 %v8846, 4294901760
  %v9863 = vsub.f32 %v8846, %v9862
  %v9864 = vand.u32 %v9863, 4294901760
  %v9865 = vsub.f32 %v9863, %v9864
  %v9866 = vand.u32 %v9865, 4294901760
  %9867 = vmatpush.msra.mxu0 %v9866
  %v9868 = vand.u32 %v8844, 4294901760
  %v9869 = vsub.f32 %v8844, %v9868
  %v9870 = vand.u32 %v9869, 4294901760
  %v9871 = vsub.f32 %v9869, %v9870
  %v9872 = vand.u32 %v9871, 4294901760
  %9873 = vmatpush.msra.mxu0 %v9872
  %v9874 = vand.u32 %v8842, 4294901760
  %v9875 = vsub.f32 %v8842, %v9874
  %v9876 = vand.u32 %v9875, 4294901760
  %v9877 = vsub.f32 %v9875, %v9876
  %v9878 = vand.u32 %v9877, 4294901760
  %9879 = vmatpush.msra.mxu0 %v9878
  %v9880 = vand.u32 %v8840, 4294901760
  %v9881 = vsub.f32 %v8840, %v9880
  %v9882 = vand.u32 %v9881, 4294901760
  %v9883 = vsub.f32 %v9881, %v9882
  %v9884 = vand.u32 %v9883, 4294901760
  %9885 = vmatpush.msra.mxu0 %v9884
  %v9886 = vand.u32 %v8838, 4294901760
  %v9887 = vsub.f32 %v8838, %v9886
  %v9888 = vand.u32 %v9887, 4294901760
  %v9889 = vsub.f32 %v9887, %v9888
  %v9890 = vand.u32 %v9889, 4294901760
  %9891 = vmatpush.msra.mxu0 %v9890
  %v9892 = vand.u32 %v8836, 4294901760
  %v9893 = vsub.f32 %v8836, %v9892
  %v9894 = vand.u32 %v9893, 4294901760
  %v9895 = vsub.f32 %v9893, %v9894
  %v9896 = vand.u32 %v9895, 4294901760
  %9897 = vmatpush.msra.mxu0 %v9896
  %v9898 = vand.u32 %v8834, 4294901760
  %v9899 = vsub.f32 %v8834, %v9898
  %v9900 = vand.u32 %v9899, 4294901760
  %v9901 = vsub.f32 %v9899, %v9900
  %v9902 = vand.u32 %v9901, 4294901760
  %9903 = vmatpush.msra.mxu0 %v9902
  %v9904 = vand.u32 %v8832, 4294901760
  %v9905 = vsub.f32 %v8832, %v9904
  %v9906 = vand.u32 %v9905, 4294901760
  %v9907 = vsub.f32 %v9905, %v9906
  %v9908 = vand.u32 %v9907, 4294901760
  %9909 = vmatpush.msra.mxu0 %v9908
  %v9910 = vand.u32 %v8830, 4294901760
  %v9911 = vsub.f32 %v8830, %v9910
  %v9912 = vand.u32 %v9911, 4294901760
  %v9913 = vsub.f32 %v9911, %v9912
  %v9914 = vand.u32 %v9913, 4294901760
  %9915 = vmatpush.msra.mxu0 %v9914
  %v9916 = vand.u32 %v8828, 4294901760
  %v9917 = vsub.f32 %v8828, %v9916
  %v9918 = vand.u32 %v9917, 4294901760
  %v9919 = vsub.f32 %v9917, %v9918
  %v9920 = vand.u32 %v9919, 4294901760
  %9921 = vmatpush.msra.mxu0 %v9920
  %v9922 = vand.u32 %v6357, 4294901760
  %9923 = vmatmul.f32.gmra.mxu0 %v9922
  %v9924 = vpop.f32.mrf.mxu0
  %v9925 = vadd.f32 %v9704, %v9924
  %v9926 = vand.u32 %v6358, 4294901760
  %9927 = vmatmul.f32.gmra.mxu0 %v9926
  %v9928 = vpop.f32.mrf.mxu0
  %v9929 = vadd.f32 %v9712, %v9928
  %v9930 = vand.u32 %v6359, 4294901760
  %9931 = vmatmul.f32.gmra.mxu0 %v9930
  %v9932 = vpop.f32.mrf.mxu0
  %v9933 = vadd.f32 %v9720, %v9932
  %v9934 = vand.u32 %v6360, 4294901760
  %9935 = vmatmul.f32.gmra.mxu0 %v9934
  %v9936 = vpop.f32.mrf.mxu0
  %v9937 = vadd.f32 %v9728, %v9936
  %v9938 = vand.u32 %v6361, 4294901760
  %9939 = vmatmul.f32.gmra.mxu0 %v9938
  %v9940 = vpop.f32.mrf.mxu0
  %v9941 = vadd.f32 %v9736, %v9940
  %v9942 = vand.u32 %v6362, 4294901760
  %9943 = vmatmul.f32.gmra.mxu0 %v9942
  %v9944 = vpop.f32.mrf.mxu0
  %v9945 = vadd.f32 %v9744, %v9944
  %v9946 = vand.u32 %v6363, 4294901760
  %9947 = vmatmul.f32.gmra.mxu0 %v9946
  %v9948 = vpop.f32.mrf.mxu0
  %v9949 = vadd.f32 %v9752, %v9948
  %v9950 = vand.u32 %v6364, 4294901760
  %9951 = vmatmul.f32.gmra.mxu0 %v9950
  %v9952 = vpop.f32.mrf.mxu0
  %v9953 = vadd.f32 %v9760, %v9952
  %v9954 = vand.u32 %v6365, 4294901760
  %9955 = vmatmul.f32.gmra.mxu0 %v9954
  %v9956 = vpop.f32.mrf.mxu0
  %v9957 = vadd.f32 %v9768, %v9956
  %v9958 = vand.u32 %v6366, 4294901760
  %9959 = vmatmul.f32.gmra.mxu0 %v9958
  %v9960 = vpop.f32.mrf.mxu0
  %v9961 = vadd.f32 %v9776, %v9960
  %v9962 = vand.u32 %v6367, 4294901760
  %9963 = vmatmul.f32.gmra.mxu0 %v9962
  %v9964 = vpop.f32.mrf.mxu0
  %v9965 = vadd.f32 %v9784, %v9964
  %v9966 = vand.u32 %v6368, 4294901760
  %9967 = vmatmul.f32.gmra.mxu0 %v9966
  %v9968 = vpop.f32.mrf.mxu0
  %v9969 = vadd.f32 %v9792, %v9968
  %v9970 = vand.u32 %v6369, 4294901760
  %9971 = vmatmul.f32.gmra.mxu0 %v9970
  %v9972 = vpop.f32.mrf.mxu0
  %v9973 = vadd.f32 %v9800, %v9972
  %v9974 = vand.u32 %v6370, 4294901760
  %9975 = vmatmul.f32.gmra.mxu0 %v9974
  %v9976 = vpop.f32.mrf.mxu0
  %v9977 = vadd.f32 %v9808, %v9976
  %v9978 = vand.u32 %v6371, 4294901760
  %9979 = vmatmul.f32.gmra.mxu0 %v9978
  %v9980 = vpop.f32.mrf.mxu0
  %v9981 = vadd.f32 %v9816, %v9980
  %v9982 = vand.u32 %v6372, 4294901760
  %9983 = vmatmul.f32.gmra.mxu0 %v9982
  %v9984 = vpop.f32.mrf.mxu0
  %v9985 = vadd.f32 %v9824, %v9984
  %9986 = vdwg.mxu0
  %v9987 = vand.u32 %v8858, 4294901760
  %v9988 = vsub.f32 %v8858, %v9987
  %9989 = vmatpush.msra.mxu0 %v9988
  %v9990 = vand.u32 %v8856, 4294901760
  %v9991 = vsub.f32 %v8856, %v9990
  %9992 = vmatpush.msra.mxu0 %v9991
  %v9993 = vand.u32 %v8854, 4294901760
  %v9994 = vsub.f32 %v8854, %v9993
  %9995 = vmatpush.msra.mxu0 %v9994
  %v9996 = vand.u32 %v8852, 4294901760
  %v9997 = vsub.f32 %v8852, %v9996
  %9998 = vmatpush.msra.mxu0 %v9997
  %v9999 = vand.u32 %v8850, 4294901760
  %v10000 = vsub.f32 %v8850, %v9999
  %10001 = vmatpush.msra.mxu0 %v10000
  %v10002 = vand.u32 %v8848, 4294901760
  %v10003 = vsub.f32 %v8848, %v10002
  %10004 = vmatpush.msra.mxu0 %v10003
  %v10005 = vand.u32 %v8846, 4294901760
  %v10006 = vsub.f32 %v8846, %v10005
  %10007 = vmatpush.msra.mxu0 %v10006
  %v10008 = vand.u32 %v8844, 4294901760
  %v10009 = vsub.f32 %v8844, %v10008
  %10010 = vmatpush.msra.mxu0 %v10009
  %v10011 = vand.u32 %v8842, 4294901760
  %v10012 = vsub.f32 %v8842, %v10011
  %10013 = vmatpush.msra.mxu0 %v10012
  %v10014 = vand.u32 %v8840, 4294901760
  %v10015 = vsub.f32 %v8840, %v10014
  %10016 = vmatpush.msra.mxu0 %v10015
  %v10017 = vand.u32 %v8838, 4294901760
  %v10018 = vsub.f32 %v8838, %v10017
  %10019 = vmatpush.msra.mxu0 %v10018
  %v10020 = vand.u32 %v8836, 4294901760
  %v10021 = vsub.f32 %v8836, %v10020
  %10022 = vmatpush.msra.mxu0 %v10021
  %v10023 = vand.u32 %v8834, 4294901760
  %v10024 = vsub.f32 %v8834, %v10023
  %10025 = vmatpush.msra.mxu0 %v10024
  %v10026 = vand.u32 %v8832, 4294901760
  %v10027 = vsub.f32 %v8832, %v10026
  %10028 = vmatpush.msra.mxu0 %v10027
  %v10029 = vand.u32 %v8830, 4294901760
  %v10030 = vsub.f32 %v8830, %v10029
  %10031 = vmatpush.msra.mxu0 %v10030
  %v10032 = vand.u32 %v8828, 4294901760
  %v10033 = vsub.f32 %v8828, %v10032
  %10034 = vmatpush.msra.mxu0 %v10033
  %v10035 = vand.u32 %v6357, 4294901760
  %v10036 = vsub.f32 %v6357, %v10035
  %10037 = vmatmul.f32.gmra.mxu0 %v10036
  %v10038 = vpop.f32.mrf.mxu0
  %v10039 = vadd.f32 %v9925, %v10038
  %v10040 = vand.u32 %v6358, 4294901760
  %v10041 = vsub.f32 %v6358, %v10040
  %10042 = vmatmul.f32.gmra.mxu0 %v10041
  %v10043 = vpop.f32.mrf.mxu0
  %v10044 = vadd.f32 %v9929, %v10043
  %v10045 = vand.u32 %v6359, 4294901760
  %v10046 = vsub.f32 %v6359, %v10045
  %10047 = vmatmul.f32.gmra.mxu0 %v10046
  %v10048 = vpop.f32.mrf.mxu0
  %v10049 = vadd.f32 %v9933, %v10048
  %v10050 = vand.u32 %v6360, 4294901760
  %v10051 = vsub.f32 %v6360, %v10050
  %10052 = vmatmul.f32.gmra.mxu0 %v10051
  %v10053 = vpop.f32.mrf.mxu0
  %v10054 = vadd.f32 %v9937, %v10053
  %v10055 = vand.u32 %v6361, 4294901760
  %v10056 = vsub.f32 %v6361, %v10055
  %10057 = vmatmul.f32.gmra.mxu0 %v10056
  %v10058 = vpop.f32.mrf.mxu0
  %v10059 = vadd.f32 %v9941, %v10058
  %v10060 = vand.u32 %v6362, 4294901760
  %v10061 = vsub.f32 %v6362, %v10060
  %10062 = vmatmul.f32.gmra.mxu0 %v10061
  %v10063 = vpop.f32.mrf.mxu0
  %v10064 = vadd.f32 %v9945, %v10063
  %v10065 = vand.u32 %v6363, 4294901760
  %v10066 = vsub.f32 %v6363, %v10065
  %10067 = vmatmul.f32.gmra.mxu0 %v10066
  %v10068 = vpop.f32.mrf.mxu0
  %v10069 = vadd.f32 %v9949, %v10068
  %v10070 = vand.u32 %v6364, 4294901760
  %v10071 = vsub.f32 %v6364, %v10070
  %10072 = vmatmul.f32.gmra.mxu0 %v10071
  %v10073 = vpop.f32.mrf.mxu0
  %v10074 = vadd.f32 %v9953, %v10073
  %v10075 = vand.u32 %v6365, 4294901760
  %v10076 = vsub.f32 %v6365, %v10075
  %10077 = vmatmul.f32.gmra.mxu0 %v10076
  %v10078 = vpop.f32.mrf.mxu0
  %v10079 = vadd.f32 %v9957, %v10078
  %v10080 = vand.u32 %v6366, 4294901760
  %v10081 = vsub.f32 %v6366, %v10080
  %10082 = vmatmul.f32.gmra.mxu0 %v10081
  %v10083 = vpop.f32.mrf.mxu0
  %v10084 = vadd.f32 %v9961, %v10083
  %v10085 = vand.u32 %v6367, 4294901760
  %v10086 = vsub.f32 %v6367, %v10085
  %10087 = vmatmul.f32.gmra.mxu0 %v10086
  %v10088 = vpop.f32.mrf.mxu0
  %v10089 = vadd.f32 %v9965, %v10088
  %v10090 = vand.u32 %v6368, 4294901760
  %v10091 = vsub.f32 %v6368, %v10090
  %10092 = vmatmul.f32.gmra.mxu0 %v10091
  %v10093 = vpop.f32.mrf.mxu0
  %v10094 = vadd.f32 %v9969, %v10093
  %v10095 = vand.u32 %v6369, 4294901760
  %v10096 = vsub.f32 %v6369, %v10095
  %10097 = vmatmul.f32.gmra.mxu0 %v10096
  %v10098 = vpop.f32.mrf.mxu0
  %v10099 = vadd.f32 %v9973, %v10098
  %v10100 = vand.u32 %v6370, 4294901760
  %v10101 = vsub.f32 %v6370, %v10100
  %10102 = vmatmul.f32.gmra.mxu0 %v10101
  %v10103 = vpop.f32.mrf.mxu0
  %v10104 = vadd.f32 %v9977, %v10103
  %v10105 = vand.u32 %v6371, 4294901760
  %v10106 = vsub.f32 %v6371, %v10105
  %10107 = vmatmul.f32.gmra.mxu0 %v10106
  %v10108 = vpop.f32.mrf.mxu0
  %v10109 = vadd.f32 %v9981, %v10108
  %v10110 = vand.u32 %v6372, 4294901760
  %v10111 = vsub.f32 %v6372, %v10110
  %10112 = vmatmul.f32.gmra.mxu0 %v10111
  %v10113 = vpop.f32.mrf.mxu0
  %v10114 = vadd.f32 %v9985, %v10113
  %10115 = vdwg.mxu0
  %v10116 = vand.u32 %v8858, 4294901760
  %10117 = vmatpush.msra.mxu0 %v10116
  %v10118 = vand.u32 %v8856, 4294901760
  %10119 = vmatpush.msra.mxu0 %v10118
  %v10120 = vand.u32 %v8854, 4294901760
  %10121 = vmatpush.msra.mxu0 %v10120
  %v10122 = vand.u32 %v8852, 4294901760
  %10123 = vmatpush.msra.mxu0 %v10122
  %v10124 = vand.u32 %v8850, 4294901760
  %10125 = vmatpush.msra.mxu0 %v10124
  %v10126 = vand.u32 %v8848, 4294901760
  %10127 = vmatpush.msra.mxu0 %v10126
  %v10128 = vand.u32 %v8846, 4294901760
  %10129 = vmatpush.msra.mxu0 %v10128
  %v10130 = vand.u32 %v8844, 4294901760
  %10131 = vmatpush.msra.mxu0 %v10130
  %v10132 = vand.u32 %v8842, 4294901760
  %10133 = vmatpush.msra.mxu0 %v10132
  %v10134 = vand.u32 %v8840, 4294901760
  %10135 = vmatpush.msra.mxu0 %v10134
  %v10136 = vand.u32 %v8838, 4294901760
  %10137 = vmatpush.msra.mxu0 %v10136
  %v10138 = vand.u32 %v8836, 4294901760
  %10139 = vmatpush.msra.mxu0 %v10138
  %v10140 = vand.u32 %v8834, 4294901760
  %10141 = vmatpush.msra.mxu0 %v10140
  %v10142 = vand.u32 %v8832, 4294901760
  %10143 = vmatpush.msra.mxu0 %v10142
  %v10144 = vand.u32 %v8830, 4294901760
  %10145 = vmatpush.msra.mxu0 %v10144
  %v10146 = vand.u32 %v8828, 4294901760
  %10147 = vmatpush.msra.mxu0 %v10146
  %v10148 = vand.u32 %v6357, 4294901760
  %v10149 = vsub.f32 %v6357, %v10148
  %v10150 = vand.u32 %v10149, 4294901760
  %10151 = vmatmul.f32.gmra.mxu0 %v10150
  %v10152 = vpop.f32.mrf.mxu0
  %v10153 = vadd.f32 %v10039, %v10152
  %v10154 = vand.u32 %v6358, 4294901760
  %v10155 = vsub.f32 %v6358, %v10154
  %v10156 = vand.u32 %v10155, 4294901760
  %10157 = vmatmul.f32.gmra.mxu0 %v10156
  %v10158 = vpop.f32.mrf.mxu0
  %v10159 = vadd.f32 %v10044, %v10158
  %v10160 = vand.u32 %v6359, 4294901760
  %v10161 = vsub.f32 %v6359, %v10160
  %v10162 = vand.u32 %v10161, 4294901760
  %10163 = vmatmul.f32.gmra.mxu0 %v10162
  %v10164 = vpop.f32.mrf.mxu0
  %v10165 = vadd.f32 %v10049, %v10164
  %v10166 = vand.u32 %v6360, 4294901760
  %v10167 = vsub.f32 %v6360, %v10166
  %v10168 = vand.u32 %v10167, 4294901760
  %10169 = vmatmul.f32.gmra.mxu0 %v10168
  %v10170 = vpop.f32.mrf.mxu0
  %v10171 = vadd.f32 %v10054, %v10170
  %v10172 = vand.u32 %v6361, 4294901760
  %v10173 = vsub.f32 %v6361, %v10172
  %v10174 = vand.u32 %v10173, 4294901760
  %10175 = vmatmul.f32.gmra.mxu0 %v10174
  %v10176 = vpop.f32.mrf.mxu0
  %v10177 = vadd.f32 %v10059, %v10176
  %v10178 = vand.u32 %v6362, 4294901760
  %v10179 = vsub.f32 %v6362, %v10178
  %v10180 = vand.u32 %v10179, 4294901760
  %10181 = vmatmul.f32.gmra.mxu0 %v10180
  %v10182 = vpop.f32.mrf.mxu0
  %v10183 = vadd.f32 %v10064, %v10182
  %v10184 = vand.u32 %v6363, 4294901760
  %v10185 = vsub.f32 %v6363, %v10184
  %v10186 = vand.u32 %v10185, 4294901760
  %10187 = vmatmul.f32.gmra.mxu0 %v10186
  %v10188 = vpop.f32.mrf.mxu0
  %v10189 = vadd.f32 %v10069, %v10188
  %v10190 = vand.u32 %v6364, 4294901760
  %v10191 = vsub.f32 %v6364, %v10190
  %v10192 = vand.u32 %v10191, 4294901760
  %10193 = vmatmul.f32.gmra.mxu0 %v10192
  %v10194 = vpop.f32.mrf.mxu0
  %v10195 = vadd.f32 %v10074, %v10194
  %v10196 = vand.u32 %v6365, 4294901760
  %v10197 = vsub.f32 %v6365, %v10196
  %v10198 = vand.u32 %v10197, 4294901760
  %10199 = vmatmul.f32.gmra.mxu0 %v10198
  %v10200 = vpop.f32.mrf.mxu0
  %v10201 = vadd.f32 %v10079, %v10200
  %v10202 = vand.u32 %v6366, 4294901760
  %v10203 = vsub.f32 %v6366, %v10202
  %v10204 = vand.u32 %v10203, 4294901760
  %10205 = vmatmul.f32.gmra.mxu0 %v10204
  %v10206 = vpop.f32.mrf.mxu0
  %v10207 = vadd.f32 %v10084, %v10206
  %v10208 = vand.u32 %v6367, 4294901760
  %v10209 = vsub.f32 %v6367, %v10208
  %v10210 = vand.u32 %v10209, 4294901760
  %10211 = vmatmul.f32.gmra.mxu0 %v10210
  %v10212 = vpop.f32.mrf.mxu0
  %v10213 = vadd.f32 %v10089, %v10212
  %v10214 = vand.u32 %v6368, 4294901760
  %v10215 = vsub.f32 %v6368, %v10214
  %v10216 = vand.u32 %v10215, 4294901760
  %10217 = vmatmul.f32.gmra.mxu0 %v10216
  %v10218 = vpop.f32.mrf.mxu0
  %v10219 = vadd.f32 %v10094, %v10218
  %v10220 = vand.u32 %v6369, 4294901760
  %v10221 = vsub.f32 %v6369, %v10220
  %v10222 = vand.u32 %v10221, 4294901760
  %10223 = vmatmul.f32.gmra.mxu0 %v10222
  %v10224 = vpop.f32.mrf.mxu0
  %v10225 = vadd.f32 %v10099, %v10224
  %v10226 = vand.u32 %v6370, 4294901760
  %v10227 = vsub.f32 %v6370, %v10226
  %v10228 = vand.u32 %v10227, 4294901760
  %10229 = vmatmul.f32.gmra.mxu0 %v10228
  %v10230 = vpop.f32.mrf.mxu0
  %v10231 = vadd.f32 %v10104, %v10230
  %v10232 = vand.u32 %v6371, 4294901760
  %v10233 = vsub.f32 %v6371, %v10232
  %v10234 = vand.u32 %v10233, 4294901760
  %10235 = vmatmul.f32.gmra.mxu0 %v10234
  %v10236 = vpop.f32.mrf.mxu0
  %v10237 = vadd.f32 %v10109, %v10236
  %v10238 = vand.u32 %v6372, 4294901760
  %v10239 = vsub.f32 %v6372, %v10238
  %v10240 = vand.u32 %v10239, 4294901760
  %10241 = vmatmul.f32.gmra.mxu0 %v10240
  %v10242 = vpop.f32.mrf.mxu0
  %v10243 = vadd.f32 %v10114, %v10242
  %10244 = vdwg.mxu0
  %v10245 = vand.u32 %v8858, 4294901760
  %v10246 = vsub.f32 %v8858, %v10245
  %v10247 = vand.u32 %v10246, 4294901760
  %10248 = vmatpush.msra.mxu0 %v10247
  %v10249 = vand.u32 %v8856, 4294901760
  %v10250 = vsub.f32 %v8856, %v10249
  %v10251 = vand.u32 %v10250, 4294901760
  %10252 = vmatpush.msra.mxu0 %v10251
  %v10253 = vand.u32 %v8854, 4294901760
  %v10254 = vsub.f32 %v8854, %v10253
  %v10255 = vand.u32 %v10254, 4294901760
  %10256 = vmatpush.msra.mxu0 %v10255
  %v10257 = vand.u32 %v8852, 4294901760
  %v10258 = vsub.f32 %v8852, %v10257
  %v10259 = vand.u32 %v10258, 4294901760
  %10260 = vmatpush.msra.mxu0 %v10259
  %v10261 = vand.u32 %v8850, 4294901760
  %v10262 = vsub.f32 %v8850, %v10261
  %v10263 = vand.u32 %v10262, 4294901760
  %10264 = vmatpush.msra.mxu0 %v10263
  %v10265 = vand.u32 %v8848, 4294901760
  %v10266 = vsub.f32 %v8848, %v10265
  %v10267 = vand.u32 %v10266, 4294901760
  %10268 = vmatpush.msra.mxu0 %v10267
  %v10269 = vand.u32 %v8846, 4294901760
  %v10270 = vsub.f32 %v8846, %v10269
  %v10271 = vand.u32 %v10270, 4294901760
  %10272 = vmatpush.msra.mxu0 %v10271
  %v10273 = vand.u32 %v8844, 4294901760
  %v10274 = vsub.f32 %v8844, %v10273
  %v10275 = vand.u32 %v10274, 4294901760
  %10276 = vmatpush.msra.mxu0 %v10275
  %v10277 = vand.u32 %v8842, 4294901760
  %v10278 = vsub.f32 %v8842, %v10277
  %v10279 = vand.u32 %v10278, 4294901760
  %10280 = vmatpush.msra.mxu0 %v10279
  %v10281 = vand.u32 %v8840, 4294901760
  %v10282 = vsub.f32 %v8840, %v10281
  %v10283 = vand.u32 %v10282, 4294901760
  %10284 = vmatpush.msra.mxu0 %v10283
  %v10285 = vand.u32 %v8838, 4294901760
  %v10286 = vsub.f32 %v8838, %v10285
  %v10287 = vand.u32 %v10286, 4294901760
  %10288 = vmatpush.msra.mxu0 %v10287
  %v10289 = vand.u32 %v8836, 4294901760
  %v10290 = vsub.f32 %v8836, %v10289
  %v10291 = vand.u32 %v10290, 4294901760
  %10292 = vmatpush.msra.mxu0 %v10291
  %v10293 = vand.u32 %v8834, 4294901760
  %v10294 = vsub.f32 %v8834, %v10293
  %v10295 = vand.u32 %v10294, 4294901760
  %10296 = vmatpush.msra.mxu0 %v10295
  %v10297 = vand.u32 %v8832, 4294901760
  %v10298 = vsub.f32 %v8832, %v10297
  %v10299 = vand.u32 %v10298, 4294901760
  %10300 = vmatpush.msra.mxu0 %v10299
  %v10301 = vand.u32 %v8830, 4294901760
  %v10302 = vsub.f32 %v8830, %v10301
  %v10303 = vand.u32 %v10302, 4294901760
  %10304 = vmatpush.msra.mxu0 %v10303
  %v10305 = vand.u32 %v8828, 4294901760
  %v10306 = vsub.f32 %v8828, %v10305
  %v10307 = vand.u32 %v10306, 4294901760
  %10308 = vmatpush.msra.mxu0 %v10307
  %v10309 = vand.u32 %v6357, 4294901760
  %10310 = vmatmul.f32.gmra.mxu0 %v10309
  %v10311 = vpop.f32.mrf.mxu0
  %v10312 = vadd.f32 %v10153, %v10311
  %v10313 = vand.u32 %v6358, 4294901760
  %10314 = vmatmul.f32.gmra.mxu0 %v10313
  %v10315 = vpop.f32.mrf.mxu0
  %v10316 = vadd.f32 %v10159, %v10315
  %v10317 = vand.u32 %v6359, 4294901760
  %10318 = vmatmul.f32.gmra.mxu0 %v10317
  %v10319 = vpop.f32.mrf.mxu0
  %v10320 = vadd.f32 %v10165, %v10319
  %v10321 = vand.u32 %v6360, 4294901760
  %10322 = vmatmul.f32.gmra.mxu0 %v10321
  %v10323 = vpop.f32.mrf.mxu0
  %v10324 = vadd.f32 %v10171, %v10323
  %v10325 = vand.u32 %v6361, 4294901760
  %10326 = vmatmul.f32.gmra.mxu0 %v10325
  %v10327 = vpop.f32.mrf.mxu0
  %v10328 = vadd.f32 %v10177, %v10327
  %v10329 = vand.u32 %v6362, 4294901760
  %10330 = vmatmul.f32.gmra.mxu0 %v10329
  %v10331 = vpop.f32.mrf.mxu0
  %v10332 = vadd.f32 %v10183, %v10331
  %v10333 = vand.u32 %v6363, 4294901760
  %10334 = vmatmul.f32.gmra.mxu0 %v10333
  %v10335 = vpop.f32.mrf.mxu0
  %v10336 = vadd.f32 %v10189, %v10335
  %v10337 = vand.u32 %v6364, 4294901760
  %10338 = vmatmul.f32.gmra.mxu0 %v10337
  %v10339 = vpop.f32.mrf.mxu0
  %v10340 = vadd.f32 %v10195, %v10339
  %v10341 = vand.u32 %v6365, 4294901760
  %10342 = vmatmul.f32.gmra.mxu0 %v10341
  %v10343 = vpop.f32.mrf.mxu0
  %v10344 = vadd.f32 %v10201, %v10343
  %v10345 = vand.u32 %v6366, 4294901760
  %10346 = vmatmul.f32.gmra.mxu0 %v10345
  %v10347 = vpop.f32.mrf.mxu0
  %v10348 = vadd.f32 %v10207, %v10347
  %v10349 = vand.u32 %v6367, 4294901760
  %10350 = vmatmul.f32.gmra.mxu0 %v10349
  %v10351 = vpop.f32.mrf.mxu0
  %v10352 = vadd.f32 %v10213, %v10351
  %v10353 = vand.u32 %v6368, 4294901760
  %10354 = vmatmul.f32.gmra.mxu0 %v10353
  %v10355 = vpop.f32.mrf.mxu0
  %v10356 = vadd.f32 %v10219, %v10355
  %v10357 = vand.u32 %v6369, 4294901760
  %10358 = vmatmul.f32.gmra.mxu0 %v10357
  %v10359 = vpop.f32.mrf.mxu0
  %v10360 = vadd.f32 %v10225, %v10359
  %v10361 = vand.u32 %v6370, 4294901760
  %10362 = vmatmul.f32.gmra.mxu0 %v10361
  %v10363 = vpop.f32.mrf.mxu0
  %v10364 = vadd.f32 %v10231, %v10363
  %v10365 = vand.u32 %v6371, 4294901760
  %10366 = vmatmul.f32.gmra.mxu0 %v10365
  %v10367 = vpop.f32.mrf.mxu0
  %v10368 = vadd.f32 %v10237, %v10367
  %v10369 = vand.u32 %v6372, 4294901760
  %10370 = vmatmul.f32.gmra.mxu0 %v10369
  %v10371 = vpop.f32.mrf.mxu0
  %v10372 = vadd.f32 %v10243, %v10371
  %10373 = vdwg.mxu0
  %v10374 = vand.u32 %v8858, 4294901760
  %10375 = vmatpush.msra.mxu0 %v10374
  %v10376 = vand.u32 %v8856, 4294901760
  %10377 = vmatpush.msra.mxu0 %v10376
  %v10378 = vand.u32 %v8854, 4294901760
  %10379 = vmatpush.msra.mxu0 %v10378
  %v10380 = vand.u32 %v8852, 4294901760
  %10381 = vmatpush.msra.mxu0 %v10380
  %v10382 = vand.u32 %v8850, 4294901760
  %10383 = vmatpush.msra.mxu0 %v10382
  %v10384 = vand.u32 %v8848, 4294901760
  %10385 = vmatpush.msra.mxu0 %v10384
  %v10386 = vand.u32 %v8846, 4294901760
  %10387 = vmatpush.msra.mxu0 %v10386
  %v10388 = vand.u32 %v8844, 4294901760
  %10389 = vmatpush.msra.mxu0 %v10388
  %v10390 = vand.u32 %v8842, 4294901760
  %10391 = vmatpush.msra.mxu0 %v10390
  %v10392 = vand.u32 %v8840, 4294901760
  %10393 = vmatpush.msra.mxu0 %v10392
  %v10394 = vand.u32 %v8838, 4294901760
  %10395 = vmatpush.msra.mxu0 %v10394
  %v10396 = vand.u32 %v8836, 4294901760
  %10397 = vmatpush.msra.mxu0 %v10396
  %v10398 = vand.u32 %v8834, 4294901760
  %10399 = vmatpush.msra.mxu0 %v10398
  %v10400 = vand.u32 %v8832, 4294901760
  %10401 = vmatpush.msra.mxu0 %v10400
  %v10402 = vand.u32 %v8830, 4294901760
  %10403 = vmatpush.msra.mxu0 %v10402
  %v10404 = vand.u32 %v8828, 4294901760
  %10405 = vmatpush.msra.mxu0 %v10404
  %v10406 = vand.u32 %v6357, 4294901760
  %10407 = vmatmul.f32.gmra.mxu0 %v10406
  %v10408 = vpop.f32.mrf.mxu0
  %v10409 = vadd.f32 %v10312, %v10408
  %v10410 = vand.u32 %v6358, 4294901760
  %10411 = vmatmul.f32.gmra.mxu0 %v10410
  %v10412 = vpop.f32.mrf.mxu0
  %v10413 = vadd.f32 %v10316, %v10412
  %v10414 = vand.u32 %v6359, 4294901760
  %10415 = vmatmul.f32.gmra.mxu0 %v10414
  %v10416 = vpop.f32.mrf.mxu0
  %v10417 = vadd.f32 %v10320, %v10416
  %v10418 = vand.u32 %v6360, 4294901760
  %10419 = vmatmul.f32.gmra.mxu0 %v10418
  %v10420 = vpop.f32.mrf.mxu0
  %v10421 = vadd.f32 %v10324, %v10420
  %v10422 = vand.u32 %v6361, 4294901760
  %10423 = vmatmul.f32.gmra.mxu0 %v10422
  %v10424 = vpop.f32.mrf.mxu0
  %v10425 = vadd.f32 %v10328, %v10424
  %v10426 = vand.u32 %v6362, 4294901760
  %10427 = vmatmul.f32.gmra.mxu0 %v10426
  %v10428 = vpop.f32.mrf.mxu0
  %v10429 = vadd.f32 %v10332, %v10428
  %v10430 = vand.u32 %v6363, 4294901760
  %10431 = vmatmul.f32.gmra.mxu0 %v10430
  %v10432 = vpop.f32.mrf.mxu0
  %v10433 = vadd.f32 %v10336, %v10432
  %v10434 = vand.u32 %v6364, 4294901760
  %10435 = vmatmul.f32.gmra.mxu0 %v10434
  %v10436 = vpop.f32.mrf.mxu0
  %v10437 = vadd.f32 %v10340, %v10436
  %v10438 = vand.u32 %v6365, 4294901760
  %10439 = vmatmul.f32.gmra.mxu0 %v10438
  %v10440 = vpop.f32.mrf.mxu0
  %v10441 = vadd.f32 %v10344, %v10440
  %v10442 = vand.u32 %v6366, 4294901760
  %10443 = vmatmul.f32.gmra.mxu0 %v10442
  %v10444 = vpop.f32.mrf.mxu0
  %v10445 = vadd.f32 %v10348, %v10444
  %v10446 = vand.u32 %v6367, 4294901760
  %10447 = vmatmul.f32.gmra.mxu0 %v10446
  %v10448 = vpop.f32.mrf.mxu0
  %v10449 = vadd.f32 %v10352, %v10448
  %v10450 = vand.u32 %v6368, 4294901760
  %10451 = vmatmul.f32.gmra.mxu0 %v10450
  %v10452 = vpop.f32.mrf.mxu0
  %v10453 = vadd.f32 %v10356, %v10452
  %v10454 = vand.u32 %v6369, 4294901760
  %10455 = vmatmul.f32.gmra.mxu0 %v10454
  %v10456 = vpop.f32.mrf.mxu0
  %v10457 = vadd.f32 %v10360, %v10456
  %v10458 = vand.u32 %v6370, 4294901760
  %10459 = vmatmul.f32.gmra.mxu0 %v10458
  %v10460 = vpop.f32.mrf.mxu0
  %v10461 = vadd.f32 %v10364, %v10460
  %v10462 = vand.u32 %v6371, 4294901760
  %10463 = vmatmul.f32.gmra.mxu0 %v10462
  %v10464 = vpop.f32.mrf.mxu0
  %v10465 = vadd.f32 %v10368, %v10464
  %v10466 = vand.u32 %v6372, 4294901760
  %10467 = vmatmul.f32.gmra.mxu0 %v10466
  %v10468 = vpop.f32.mrf.mxu0
  %v10469 = vadd.f32 %v10372, %v10468
  %10470 = vdwg.mxu0
  %v10471 = vxor.u32 %v9603, 2147483648
  %v10472 = vxor.u32 %v10409, 2147483648
  %v10473 = vxor.u32 %v9607, 2147483648
  %v10474 = vxor.u32 %v10413, 2147483648
  %v10475 = vxor.u32 %v9611, 2147483648
  %v10476 = vxor.u32 %v10417, 2147483648
  %v10477 = vxor.u32 %v9615, 2147483648
  %v10478 = vxor.u32 %v10421, 2147483648
  %v10479 = vxor.u32 %v9619, 2147483648
  %v10480 = vxor.u32 %v10425, 2147483648
  %v10481 = vxor.u32 %v9623, 2147483648
  %v10482 = vxor.u32 %v10429, 2147483648
  %v10483 = vxor.u32 %v9627, 2147483648
  %v10484 = vxor.u32 %v10433, 2147483648
  %v10485 = vxor.u32 %v9631, 2147483648
  %v10486 = vxor.u32 %v10437, 2147483648
  %v10487 = vxor.u32 %v9635, 2147483648
  %v10488 = vxor.u32 %v10441, 2147483648
  %v10489 = vxor.u32 %v9639, 2147483648
  %v10490 = vxor.u32 %v10445, 2147483648
  %v10491 = vxor.u32 %v9643, 2147483648
  %v10492 = vxor.u32 %v10449, 2147483648
  %v10493 = vxor.u32 %v9647, 2147483648
  %v10494 = vxor.u32 %v10453, 2147483648
  %v10495 = vxor.u32 %v9651, 2147483648
  %v10496 = vxor.u32 %v10457, 2147483648
  %v10497 = vxor.u32 %v9655, 2147483648
  %v10498 = vxor.u32 %v10461, 2147483648
  %v10499 = vxor.u32 %v9659, 2147483648
  %v10500 = vxor.u32 %v10465, 2147483648
  %v10501 = vxor.u32 %v9663, 2147483648
  %v10502 = vxor.u32 %v10469, 2147483648
  %v10503 = vmul.f32 %v10471, 1.442695
  %v10504 = vpow.pop %v10503
  %v10505 = vmul.f32 %v10472, 1.442695
  %v10506 = vpow.pop %v10505
  %v10507 = vmul.f32 %v10473, 1.442695
  %v10508 = vpow.pop %v10507
  %v10509 = vmul.f32 %v10474, 1.442695
  %v10510 = vpow.pop %v10509
  %v10511 = vmul.f32 %v10475, 1.442695
  %v10512 = vpow.pop %v10511
  %v10513 = vmul.f32 %v10476, 1.442695
  %v10514 = vpow.pop %v10513
  %v10515 = vmul.f32 %v10477, 1.442695
  %v10516 = vpow.pop %v10515
  %v10517 = vmul.f32 %v10478, 1.442695
  %v10518 = vpow.pop %v10517
  %v10519 = vmul.f32 %v10479, 1.442695
  %v10520 = vpow.pop %v10519
  %v10521 = vmul.f32 %v10480, 1.442695
  %v10522 = vpow.pop %v10521
  %v10523 = vmul.f32 %v10481, 1.442695
  %v10524 = vpow.pop %v10523
  %v10525 = vmul.f32 %v10482, 1.442695
  %v10526 = vpow.pop %v10525
  %v10527 = vmul.f32 %v10483, 1.442695
  %v10528 = vpow.pop %v10527
  %v10529 = vmul.f32 %v10484, 1.442695
  %v10530 = vpow.pop %v10529
  %v10531 = vmul.f32 %v10485, 1.442695
  %v10532 = vpow.pop %v10531
  %v10533 = vmul.f32 %v10486, 1.442695
  %v10534 = vpow.pop %v10533
  %v10535 = vmul.f32 %v10487, 1.442695
  %v10536 = vpow.pop %v10535
  %v10537 = vmul.f32 %v10488, 1.442695
  %v10538 = vpow.pop %v10537
  %v10539 = vmul.f32 %v10489, 1.442695
  %v10540 = vpow.pop %v10539
  %v10541 = vmul.f32 %v10490, 1.442695
  %v10542 = vpow.pop %v10541
  %v10543 = vmul.f32 %v10491, 1.442695
  %v10544 = vpow.pop %v10543
  %v10545 = vmul.f32 %v10492, 1.442695
  %v10546 = vpow.pop %v10545
  %v10547 = vmul.f32 %v10493, 1.442695
  %v10548 = vpow.pop %v10547
  %v10549 = vmul.f32 %v10494, 1.442695
  %v10550 = vpow.pop %v10549
  %v10551 = vmul.f32 %v10495, 1.442695
  %v10552 = vpow.pop %v10551
  %v10553 = vmul.f32 %v10496, 1.442695
  %v10554 = vpow.pop %v10553
  %v10555 = vmul.f32 %v10497, 1.442695
  %v10556 = vpow.pop %v10555
  %v10557 = vmul.f32 %v10498, 1.442695
  %v10558 = vpow.pop %v10557
  %v10559 = vmul.f32 %v10499, 1.442695
  %v10560 = vpow.pop %v10559
  %v10561 = vmul.f32 %v10500, 1.442695
  %v10562 = vpow.pop %v10561
  %v10563 = vmul.f32 %v10501, 1.442695
  %v10564 = vpow.pop %v10563
  %v10565 = vmul.f32 %v10502, 1.442695
  %v10566 = vpow.pop %v10565
  %v10567 = vadd.f32 %v10504, 1.0
  %v10568 = vadd.f32 %v10506, 1.0
  %v10569 = vadd.f32 %v10508, 1.0
  %v10570 = vadd.f32 %v10510, 1.0
  %v10571 = vadd.f32 %v10512, 1.0
  %v10572 = vadd.f32 %v10514, 1.0
  %v10573 = vadd.f32 %v10516, 1.0
  %v10574 = vadd.f32 %v10518, 1.0
  %v10575 = vadd.f32 %v10520, 1.0
  %v10576 = vadd.f32 %v10522, 1.0
  %v10577 = vadd.f32 %v10524, 1.0
  %v10578 = vadd.f32 %v10526, 1.0
  %v10579 = vadd.f32 %v10528, 1.0
  %v10580 = vadd.f32 %v10530, 1.0
  %v10581 = vadd.f32 %v10532, 1.0
  %v10582 = vadd.f32 %v10534, 1.0
  %v10583 = vadd.f32 %v10536, 1.0
  %v10584 = vadd.f32 %v10538, 1.0
  %v10585 = vadd.f32 %v10540, 1.0
  %v10586 = vadd.f32 %v10542, 1.0
  %v10587 = vadd.f32 %v10544, 1.0
  %v10588 = vadd.f32 %v10546, 1.0
  %v10589 = vadd.f32 %v10548, 1.0
  %v10590 = vadd.f32 %v10550, 1.0
  %v10591 = vadd.f32 %v10552, 1.0
  %v10592 = vadd.f32 %v10554, 1.0
  %v10593 = vadd.f32 %v10556, 1.0
  %v10594 = vadd.f32 %v10558, 1.0
  %v10595 = vadd.f32 %v10560, 1.0
  %v10596 = vadd.f32 %v10562, 1.0
  %v10597 = vadd.f32 %v10564, 1.0
  %v10598 = vadd.f32 %v10566, 1.0
  %v10599 = vrcp.pop %v10567
  %v10600 = vmul.f32 %v10567, %v10599
  %v10601 = vsub.f32 1.0, %v10600
  %v10602 = vmul.f32 %v10599, %v10601
  %v10603 = vadd.f32 %v10599, %v10602
  %vm10604 = vweird.f32 %v10567
  %vm10605 = vweird.f32 %v10599
  %vm10606 = vmor %vm10604, %vm10605
  %v10607 = vsel %vm10606, %v10599, %v10603
  %v10608 = vand.u32 2147483647, %v10567
  %vm10609 = vcmp.eq.f32.partialorder %v10608, 8.507059e+37
  %v10610 = vand.u32 %v10567, 2147483648
  %v10611 = vor.u32 1.1754944e-38, %v10610
  %v10612 = vsel %vm10609, %v10611, %v10607
  %v10613 = vmul.f32 1.0, %v10612
  %v10614 = vrcp.pop %v10568
  %v10615 = vmul.f32 %v10568, %v10614
  %v10616 = vsub.f32 1.0, %v10615
  %v10617 = vmul.f32 %v10614, %v10616
  %v10618 = vadd.f32 %v10614, %v10617
  %vm10619 = vweird.f32 %v10568
  %vm10620 = vweird.f32 %v10614
  %vm10621 = vmor %vm10619, %vm10620
  %v10622 = vsel %vm10621, %v10614, %v10618
  %v10623 = vand.u32 2147483647, %v10568
  %vm10624 = vcmp.eq.f32.partialorder %v10623, 8.507059e+37
  %v10625 = vand.u32 %v10568, 2147483648
  %v10626 = vor.u32 1.1754944e-38, %v10625
  %v10627 = vsel %vm10624, %v10626, %v10622
  %v10628 = vmul.f32 1.0, %v10627
  %v10629 = vrcp.pop %v10569
  %v10630 = vmul.f32 %v10569, %v10629
  %v10631 = vsub.f32 1.0, %v10630
  %v10632 = vmul.f32 %v10629, %v10631
  %v10633 = vadd.f32 %v10629, %v10632
  %vm10634 = vweird.f32 %v10569
  %vm10635 = vweird.f32 %v10629
  %vm10636 = vmor %vm10634, %vm10635
  %v10637 = vsel %vm10636, %v10629, %v10633
  %v10638 = vand.u32 2147483647, %v10569
  %vm10639 = vcmp.eq.f32.partialorder %v10638, 8.507059e+37
  %v10640 = vand.u32 %v10569, 2147483648
  %v10641 = vor.u32 1.1754944e-38, %v10640
  %v10642 = vsel %vm10639, %v10641, %v10637
  %v10643 = vmul.f32 1.0, %v10642
  %v10644 = vrcp.pop %v10570
  %v10645 = vmul.f32 %v10570, %v10644
  %v10646 = vsub.f32 1.0, %v10645
  %v10647 = vmul.f32 %v10644, %v10646
  %v10648 = vadd.f32 %v10644, %v10647
  %vm10649 = vweird.f32 %v10570
  %vm10650 = vweird.f32 %v10644
  %vm10651 = vmor %vm10649, %vm10650
  %v10652 = vsel %vm10651, %v10644, %v10648
  %v10653 = vand.u32 2147483647, %v10570
  %vm10654 = vcmp.eq.f32.partialorder %v10653, 8.507059e+37
  %v10655 = vand.u32 %v10570, 2147483648
  %v10656 = vor.u32 1.1754944e-38, %v10655
  %v10657 = vsel %vm10654, %v10656, %v10652
  %v10658 = vmul.f32 1.0, %v10657
  %v10659 = vrcp.pop %v10571
  %v10660 = vmul.f32 %v10571, %v10659
  %v10661 = vsub.f32 1.0, %v10660
  %v10662 = vmul.f32 %v10659, %v10661
  %v10663 = vadd.f32 %v10659, %v10662
  %vm10664 = vweird.f32 %v10571
  %vm10665 = vweird.f32 %v10659
  %vm10666 = vmor %vm10664, %vm10665
  %v10667 = vsel %vm10666, %v10659, %v10663
  %v10668 = vand.u32 2147483647, %v10571
  %vm10669 = vcmp.eq.f32.partialorder %v10668, 8.507059e+37
  %v10670 = vand.u32 %v10571, 2147483648
  %v10671 = vor.u32 1.1754944e-38, %v10670
  %v10672 = vsel %vm10669, %v10671, %v10667
  %v10673 = vmul.f32 1.0, %v10672
  %v10674 = vrcp.pop %v10572
  %v10675 = vmul.f32 %v10572, %v10674
  %v10676 = vsub.f32 1.0, %v10675
  %v10677 = vmul.f32 %v10674, %v10676
  %v10678 = vadd.f32 %v10674, %v10677
  %vm10679 = vweird.f32 %v10572
  %vm10680 = vweird.f32 %v10674
  %vm10681 = vmor %vm10679, %vm10680
  %v10682 = vsel %vm10681, %v10674, %v10678
  %v10683 = vand.u32 2147483647, %v10572
  %vm10684 = vcmp.eq.f32.partialorder %v10683, 8.507059e+37
  %v10685 = vand.u32 %v10572, 2147483648
  %v10686 = vor.u32 1.1754944e-38, %v10685
  %v10687 = vsel %vm10684, %v10686, %v10682
  %v10688 = vmul.f32 1.0, %v10687
  %v10689 = vrcp.pop %v10573
  %v10690 = vmul.f32 %v10573, %v10689
  %v10691 = vsub.f32 1.0, %v10690
  %v10692 = vmul.f32 %v10689, %v10691
  %v10693 = vadd.f32 %v10689, %v10692
  %vm10694 = vweird.f32 %v10573
  %vm10695 = vweird.f32 %v10689
  %vm10696 = vmor %vm10694, %vm10695
  %v10697 = vsel %vm10696, %v10689, %v10693
  %v10698 = vand.u32 2147483647, %v10573
  %vm10699 = vcmp.eq.f32.partialorder %v10698, 8.507059e+37
  %v10700 = vand.u32 %v10573, 2147483648
  %v10701 = vor.u32 1.1754944e-38, %v10700
  %v10702 = vsel %vm10699, %v10701, %v10697
  %v10703 = vmul.f32 1.0, %v10702
  %v10704 = vrcp.pop %v10574
  %v10705 = vmul.f32 %v10574, %v10704
  %v10706 = vsub.f32 1.0, %v10705
  %v10707 = vmul.f32 %v10704, %v10706
  %v10708 = vadd.f32 %v10704, %v10707
  %vm10709 = vweird.f32 %v10574
  %vm10710 = vweird.f32 %v10704
  %vm10711 = vmor %vm10709, %vm10710
  %v10712 = vsel %vm10711, %v10704, %v10708
  %v10713 = vand.u32 2147483647, %v10574
  %vm10714 = vcmp.eq.f32.partialorder %v10713, 8.507059e+37
  %v10715 = vand.u32 %v10574, 2147483648
  %v10716 = vor.u32 1.1754944e-38, %v10715
  %v10717 = vsel %vm10714, %v10716, %v10712
  %v10718 = vmul.f32 1.0, %v10717
  %v10719 = vrcp.pop %v10575
  %v10720 = vmul.f32 %v10575, %v10719
  %v10721 = vsub.f32 1.0, %v10720
  %v10722 = vmul.f32 %v10719, %v10721
  %v10723 = vadd.f32 %v10719, %v10722
  %vm10724 = vweird.f32 %v10575
  %vm10725 = vweird.f32 %v10719
  %vm10726 = vmor %vm10724, %vm10725
  %v10727 = vsel %vm10726, %v10719, %v10723
  %v10728 = vand.u32 2147483647, %v10575
  %vm10729 = vcmp.eq.f32.partialorder %v10728, 8.507059e+37
  %v10730 = vand.u32 %v10575, 2147483648
  %v10731 = vor.u32 1.1754944e-38, %v10730
  %v10732 = vsel %vm10729, %v10731, %v10727
  %v10733 = vmul.f32 1.0, %v10732
  %v10734 = vrcp.pop %v10576
  %v10735 = vmul.f32 %v10576, %v10734
  %v10736 = vsub.f32 1.0, %v10735
  %v10737 = vmul.f32 %v10734, %v10736
  %v10738 = vadd.f32 %v10734, %v10737
  %vm10739 = vweird.f32 %v10576
  %vm10740 = vweird.f32 %v10734
  %vm10741 = vmor %vm10739, %vm10740
  %v10742 = vsel %vm10741, %v10734, %v10738
  %v10743 = vand.u32 2147483647, %v10576
  %vm10744 = vcmp.eq.f32.partialorder %v10743, 8.507059e+37
  %v10745 = vand.u32 %v10576, 2147483648
  %v10746 = vor.u32 1.1754944e-38, %v10745
  %v10747 = vsel %vm10744, %v10746, %v10742
  %v10748 = vmul.f32 1.0, %v10747
  %v10749 = vrcp.pop %v10577
  %v10750 = vmul.f32 %v10577, %v10749
  %v10751 = vsub.f32 1.0, %v10750
  %v10752 = vmul.f32 %v10749, %v10751
  %v10753 = vadd.f32 %v10749, %v10752
  %vm10754 = vweird.f32 %v10577
  %vm10755 = vweird.f32 %v10749
  %vm10756 = vmor %vm10754, %vm10755
  %v10757 = vsel %vm10756, %v10749, %v10753
  %v10758 = vand.u32 2147483647, %v10577
  %vm10759 = vcmp.eq.f32.partialorder %v10758, 8.507059e+37
  %v10760 = vand.u32 %v10577, 2147483648
  %v10761 = vor.u32 1.1754944e-38, %v10760
  %v10762 = vsel %vm10759, %v10761, %v10757
  %v10763 = vmul.f32 1.0, %v10762
  %v10764 = vrcp.pop %v10578
  %v10765 = vmul.f32 %v10578, %v10764
  %v10766 = vsub.f32 1.0, %v10765
  %v10767 = vmul.f32 %v10764, %v10766
  %v10768 = vadd.f32 %v10764, %v10767
  %vm10769 = vweird.f32 %v10578
  %vm10770 = vweird.f32 %v10764
  %vm10771 = vmor %vm10769, %vm10770
  %v10772 = vsel %vm10771, %v10764, %v10768
  %v10773 = vand.u32 2147483647, %v10578
  %vm10774 = vcmp.eq.f32.partialorder %v10773, 8.507059e+37
  %v10775 = vand.u32 %v10578, 2147483648
  %v10776 = vor.u32 1.1754944e-38, %v10775
  %v10777 = vsel %vm10774, %v10776, %v10772
  %v10778 = vmul.f32 1.0, %v10777
  %v10779 = vrcp.pop %v10579
  %v10780 = vmul.f32 %v10579, %v10779
  %v10781 = vsub.f32 1.0, %v10780
  %v10782 = vmul.f32 %v10779, %v10781
  %v10783 = vadd.f32 %v10779, %v10782
  %vm10784 = vweird.f32 %v10579
  %vm10785 = vweird.f32 %v10779
  %vm10786 = vmor %vm10784, %vm10785
  %v10787 = vsel %vm10786, %v10779, %v10783
  %v10788 = vand.u32 2147483647, %v10579
  %vm10789 = vcmp.eq.f32.partialorder %v10788, 8.507059e+37
  %v10790 = vand.u32 %v10579, 2147483648
  %v10791 = vor.u32 1.1754944e-38, %v10790
  %v10792 = vsel %vm10789, %v10791, %v10787
  %v10793 = vmul.f32 1.0, %v10792
  %v10794 = vrcp.pop %v10580
  %v10795 = vmul.f32 %v10580, %v10794
  %v10796 = vsub.f32 1.0, %v10795
  %v10797 = vmul.f32 %v10794, %v10796
  %v10798 = vadd.f32 %v10794, %v10797
  %vm10799 = vweird.f32 %v10580
  %vm10800 = vweird.f32 %v10794
  %vm10801 = vmor %vm10799, %vm10800
  %v10802 = vsel %vm10801, %v10794, %v10798
  %v10803 = vand.u32 2147483647, %v10580
  %vm10804 = vcmp.eq.f32.partialorder %v10803, 8.507059e+37
  %v10805 = vand.u32 %v10580, 2147483648
  %v10806 = vor.u32 1.1754944e-38, %v10805
  %v10807 = vsel %vm10804, %v10806, %v10802
  %v10808 = vmul.f32 1.0, %v10807
  %v10809 = vrcp.pop %v10581
  %v10810 = vmul.f32 %v10581, %v10809
  %v10811 = vsub.f32 1.0, %v10810
  %v10812 = vmul.f32 %v10809, %v10811
  %v10813 = vadd.f32 %v10809, %v10812
  %vm10814 = vweird.f32 %v10581
  %vm10815 = vweird.f32 %v10809
  %vm10816 = vmor %vm10814, %vm10815
  %v10817 = vsel %vm10816, %v10809, %v10813
  %v10818 = vand.u32 2147483647, %v10581
  %vm10819 = vcmp.eq.f32.partialorder %v10818, 8.507059e+37
  %v10820 = vand.u32 %v10581, 2147483648
  %v10821 = vor.u32 1.1754944e-38, %v10820
  %v10822 = vsel %vm10819, %v10821, %v10817
  %v10823 = vmul.f32 1.0, %v10822
  %v10824 = vrcp.pop %v10582
  %v10825 = vmul.f32 %v10582, %v10824
  %v10826 = vsub.f32 1.0, %v10825
  %v10827 = vmul.f32 %v10824, %v10826
  %v10828 = vadd.f32 %v10824, %v10827
  %vm10829 = vweird.f32 %v10582
  %vm10830 = vweird.f32 %v10824
  %vm10831 = vmor %vm10829, %vm10830
  %v10832 = vsel %vm10831, %v10824, %v10828
  %v10833 = vand.u32 2147483647, %v10582
  %vm10834 = vcmp.eq.f32.partialorder %v10833, 8.507059e+37
  %v10835 = vand.u32 %v10582, 2147483648
  %v10836 = vor.u32 1.1754944e-38, %v10835
  %v10837 = vsel %vm10834, %v10836, %v10832
  %v10838 = vmul.f32 1.0, %v10837
  %v10839 = vrcp.pop %v10583
  %v10840 = vmul.f32 %v10583, %v10839
  %v10841 = vsub.f32 1.0, %v10840
  %v10842 = vmul.f32 %v10839, %v10841
  %v10843 = vadd.f32 %v10839, %v10842
  %vm10844 = vweird.f32 %v10583
  %vm10845 = vweird.f32 %v10839
  %vm10846 = vmor %vm10844, %vm10845
  %v10847 = vsel %vm10846, %v10839, %v10843
  %v10848 = vand.u32 2147483647, %v10583
  %vm10849 = vcmp.eq.f32.partialorder %v10848, 8.507059e+37
  %v10850 = vand.u32 %v10583, 2147483648
  %v10851 = vor.u32 1.1754944e-38, %v10850
  %v10852 = vsel %vm10849, %v10851, %v10847
  %v10853 = vmul.f32 1.0, %v10852
  %v10854 = vrcp.pop %v10584
  %v10855 = vmul.f32 %v10584, %v10854
  %v10856 = vsub.f32 1.0, %v10855
  %v10857 = vmul.f32 %v10854, %v10856
  %v10858 = vadd.f32 %v10854, %v10857
  %vm10859 = vweird.f32 %v10584
  %vm10860 = vweird.f32 %v10854
  %vm10861 = vmor %vm10859, %vm10860
  %v10862 = vsel %vm10861, %v10854, %v10858
  %v10863 = vand.u32 2147483647, %v10584
  %vm10864 = vcmp.eq.f32.partialorder %v10863, 8.507059e+37
  %v10865 = vand.u32 %v10584, 2147483648
  %v10866 = vor.u32 1.1754944e-38, %v10865
  %v10867 = vsel %vm10864, %v10866, %v10862
  %v10868 = vmul.f32 1.0, %v10867
  %v10869 = vrcp.pop %v10585
  %v10870 = vmul.f32 %v10585, %v10869
  %v10871 = vsub.f32 1.0, %v10870
  %v10872 = vmul.f32 %v10869, %v10871
  %v10873 = vadd.f32 %v10869, %v10872
  %vm10874 = vweird.f32 %v10585
  %vm10875 = vweird.f32 %v10869
  %vm10876 = vmor %vm10874, %vm10875
  %v10877 = vsel %vm10876, %v10869, %v10873
  %v10878 = vand.u32 2147483647, %v10585
  %vm10879 = vcmp.eq.f32.partialorder %v10878, 8.507059e+37
  %v10880 = vand.u32 %v10585, 2147483648
  %v10881 = vor.u32 1.1754944e-38, %v10880
  %v10882 = vsel %vm10879, %v10881, %v10877
  %v10883 = vmul.f32 1.0, %v10882
  %v10884 = vrcp.pop %v10586
  %v10885 = vmul.f32 %v10586, %v10884
  %v10886 = vsub.f32 1.0, %v10885
  %v10887 = vmul.f32 %v10884, %v10886
  %v10888 = vadd.f32 %v10884, %v10887
  %vm10889 = vweird.f32 %v10586
  %vm10890 = vweird.f32 %v10884
  %vm10891 = vmor %vm10889, %vm10890
  %v10892 = vsel %vm10891, %v10884, %v10888
  %v10893 = vand.u32 2147483647, %v10586
  %vm10894 = vcmp.eq.f32.partialorder %v10893, 8.507059e+37
  %v10895 = vand.u32 %v10586, 2147483648
  %v10896 = vor.u32 1.1754944e-38, %v10895
  %v10897 = vsel %vm10894, %v10896, %v10892
  %v10898 = vmul.f32 1.0, %v10897
  %v10899 = vrcp.pop %v10587
  %v10900 = vmul.f32 %v10587, %v10899
  %v10901 = vsub.f32 1.0, %v10900
  %v10902 = vmul.f32 %v10899, %v10901
  %v10903 = vadd.f32 %v10899, %v10902
  %vm10904 = vweird.f32 %v10587
  %vm10905 = vweird.f32 %v10899
  %vm10906 = vmor %vm10904, %vm10905
  %v10907 = vsel %vm10906, %v10899, %v10903
  %v10908 = vand.u32 2147483647, %v10587
  %vm10909 = vcmp.eq.f32.partialorder %v10908, 8.507059e+37
  %v10910 = vand.u32 %v10587, 2147483648
  %v10911 = vor.u32 1.1754944e-38, %v10910
  %v10912 = vsel %vm10909, %v10911, %v10907
  %v10913 = vmul.f32 1.0, %v10912
  %v10914 = vrcp.pop %v10588
  %v10915 = vmul.f32 %v10588, %v10914
  %v10916 = vsub.f32 1.0, %v10915
  %v10917 = vmul.f32 %v10914, %v10916
  %v10918 = vadd.f32 %v10914, %v10917
  %vm10919 = vweird.f32 %v10588
  %vm10920 = vweird.f32 %v10914
  %vm10921 = vmor %vm10919, %vm10920
  %v10922 = vsel %vm10921, %v10914, %v10918
  %v10923 = vand.u32 2147483647, %v10588
  %vm10924 = vcmp.eq.f32.partialorder %v10923, 8.507059e+37
  %v10925 = vand.u32 %v10588, 2147483648
  %v10926 = vor.u32 1.1754944e-38, %v10925
  %v10927 = vsel %vm10924, %v10926, %v10922
  %v10928 = vmul.f32 1.0, %v10927
  %v10929 = vrcp.pop %v10589
  %v10930 = vmul.f32 %v10589, %v10929
  %v10931 = vsub.f32 1.0, %v10930
  %v10932 = vmul.f32 %v10929, %v10931
  %v10933 = vadd.f32 %v10929, %v10932
  %vm10934 = vweird.f32 %v10589
  %vm10935 = vweird.f32 %v10929
  %vm10936 = vmor %vm10934, %vm10935
  %v10937 = vsel %vm10936, %v10929, %v10933
  %v10938 = vand.u32 2147483647, %v10589
  %vm10939 = vcmp.eq.f32.partialorder %v10938, 8.507059e+37
  %v10940 = vand.u32 %v10589, 2147483648
  %v10941 = vor.u32 1.1754944e-38, %v10940
  %v10942 = vsel %vm10939, %v10941, %v10937
  %v10943 = vmul.f32 1.0, %v10942
  %v10944 = vrcp.pop %v10590
  %v10945 = vmul.f32 %v10590, %v10944
  %v10946 = vsub.f32 1.0, %v10945
  %v10947 = vmul.f32 %v10944, %v10946
  %v10948 = vadd.f32 %v10944, %v10947
  %vm10949 = vweird.f32 %v10590
  %vm10950 = vweird.f32 %v10944
  %vm10951 = vmor %vm10949, %vm10950
  %v10952 = vsel %vm10951, %v10944, %v10948
  %v10953 = vand.u32 2147483647, %v10590
  %vm10954 = vcmp.eq.f32.partialorder %v10953, 8.507059e+37
  %v10955 = vand.u32 %v10590, 2147483648
  %v10956 = vor.u32 1.1754944e-38, %v10955
  %v10957 = vsel %vm10954, %v10956, %v10952
  %v10958 = vmul.f32 1.0, %v10957
  %v10959 = vrcp.pop %v10591
  %v10960 = vmul.f32 %v10591, %v10959
  %v10961 = vsub.f32 1.0, %v10960
  %v10962 = vmul.f32 %v10959, %v10961
  %v10963 = vadd.f32 %v10959, %v10962
  %vm10964 = vweird.f32 %v10591
  %vm10965 = vweird.f32 %v10959
  %vm10966 = vmor %vm10964, %vm10965
  %v10967 = vsel %vm10966, %v10959, %v10963
  %v10968 = vand.u32 2147483647, %v10591
  %vm10969 = vcmp.eq.f32.partialorder %v10968, 8.507059e+37
  %v10970 = vand.u32 %v10591, 2147483648
  %v10971 = vor.u32 1.1754944e-38, %v10970
  %v10972 = vsel %vm10969, %v10971, %v10967
  %v10973 = vmul.f32 1.0, %v10972
  %v10974 = vrcp.pop %v10592
  %v10975 = vmul.f32 %v10592, %v10974
  %v10976 = vsub.f32 1.0, %v10975
  %v10977 = vmul.f32 %v10974, %v10976
  %v10978 = vadd.f32 %v10974, %v10977
  %vm10979 = vweird.f32 %v10592
  %vm10980 = vweird.f32 %v10974
  %vm10981 = vmor %vm10979, %vm10980
  %v10982 = vsel %vm10981, %v10974, %v10978
  %v10983 = vand.u32 2147483647, %v10592
  %vm10984 = vcmp.eq.f32.partialorder %v10983, 8.507059e+37
  %v10985 = vand.u32 %v10592, 2147483648
  %v10986 = vor.u32 1.1754944e-38, %v10985
  %v10987 = vsel %vm10984, %v10986, %v10982
  %v10988 = vmul.f32 1.0, %v10987
  %v10989 = vrcp.pop %v10593
  %v10990 = vmul.f32 %v10593, %v10989
  %v10991 = vsub.f32 1.0, %v10990
  %v10992 = vmul.f32 %v10989, %v10991
  %v10993 = vadd.f32 %v10989, %v10992
  %vm10994 = vweird.f32 %v10593
  %vm10995 = vweird.f32 %v10989
  %vm10996 = vmor %vm10994, %vm10995
  %v10997 = vsel %vm10996, %v10989, %v10993
  %v10998 = vand.u32 2147483647, %v10593
  %vm10999 = vcmp.eq.f32.partialorder %v10998, 8.507059e+37
  %v11000 = vand.u32 %v10593, 2147483648
  %v11001 = vor.u32 1.1754944e-38, %v11000
  %v11002 = vsel %vm10999, %v11001, %v10997
  %v11003 = vmul.f32 1.0, %v11002
  %v11004 = vrcp.pop %v10594
  %v11005 = vmul.f32 %v10594, %v11004
  %v11006 = vsub.f32 1.0, %v11005
  %v11007 = vmul.f32 %v11004, %v11006
  %v11008 = vadd.f32 %v11004, %v11007
  %vm11009 = vweird.f32 %v10594
  %vm11010 = vweird.f32 %v11004
  %vm11011 = vmor %vm11009, %vm11010
  %v11012 = vsel %vm11011, %v11004, %v11008
  %v11013 = vand.u32 2147483647, %v10594
  %vm11014 = vcmp.eq.f32.partialorder %v11013, 8.507059e+37
  %v11015 = vand.u32 %v10594, 2147483648
  %v11016 = vor.u32 1.1754944e-38, %v11015
  %v11017 = vsel %vm11014, %v11016, %v11012
  %v11018 = vmul.f32 1.0, %v11017
  %v11019 = vrcp.pop %v10595
  %v11020 = vmul.f32 %v10595, %v11019
  %v11021 = vsub.f32 1.0, %v11020
  %v11022 = vmul.f32 %v11019, %v11021
  %v11023 = vadd.f32 %v11019, %v11022
  %vm11024 = vweird.f32 %v10595
  %vm11025 = vweird.f32 %v11019
  %vm11026 = vmor %vm11024, %vm11025
  %v11027 = vsel %vm11026, %v11019, %v11023
  %v11028 = vand.u32 2147483647, %v10595
  %vm11029 = vcmp.eq.f32.partialorder %v11028, 8.507059e+37
  %v11030 = vand.u32 %v10595, 2147483648
  %v11031 = vor.u32 1.1754944e-38, %v11030
  %v11032 = vsel %vm11029, %v11031, %v11027
  %v11033 = vmul.f32 1.0, %v11032
  %v11034 = vrcp.pop %v10596
  %v11035 = vmul.f32 %v10596, %v11034
  %v11036 = vsub.f32 1.0, %v11035
  %v11037 = vmul.f32 %v11034, %v11036
  %v11038 = vadd.f32 %v11034, %v11037
  %vm11039 = vweird.f32 %v10596
  %vm11040 = vweird.f32 %v11034
  %vm11041 = vmor %vm11039, %vm11040
  %v11042 = vsel %vm11041, %v11034, %v11038
  %v11043 = vand.u32 2147483647, %v10596
  %vm11044 = vcmp.eq.f32.partialorder %v11043, 8.507059e+37
  %v11045 = vand.u32 %v10596, 2147483648
  %v11046 = vor.u32 1.1754944e-38, %v11045
  %v11047 = vsel %vm11044, %v11046, %v11042
  %v11048 = vmul.f32 1.0, %v11047
  %v11049 = vrcp.pop %v10597
  %v11050 = vmul.f32 %v10597, %v11049
  %v11051 = vsub.f32 1.0, %v11050
  %v11052 = vmul.f32 %v11049, %v11051
  %v11053 = vadd.f32 %v11049, %v11052
  %vm11054 = vweird.f32 %v10597
  %vm11055 = vweird.f32 %v11049
  %vm11056 = vmor %vm11054, %vm11055
  %v11057 = vsel %vm11056, %v11049, %v11053
  %v11058 = vand.u32 2147483647, %v10597
  %vm11059 = vcmp.eq.f32.partialorder %v11058, 8.507059e+37
  %v11060 = vand.u32 %v10597, 2147483648
  %v11061 = vor.u32 1.1754944e-38, %v11060
  %v11062 = vsel %vm11059, %v11061, %v11057
  %v11063 = vmul.f32 1.0, %v11062
  %v11064 = vrcp.pop %v10598
  %v11065 = vmul.f32 %v10598, %v11064
  %v11066 = vsub.f32 1.0, %v11065
  %v11067 = vmul.f32 %v11064, %v11066
  %v11068 = vadd.f32 %v11064, %v11067
  %vm11069 = vweird.f32 %v10598
  %vm11070 = vweird.f32 %v11064
  %vm11071 = vmor %vm11069, %vm11070
  %v11072 = vsel %vm11071, %v11064, %v11068
  %v11073 = vand.u32 2147483647, %v10598
  %vm11074 = vcmp.eq.f32.partialorder %v11073, 8.507059e+37
  %v11075 = vand.u32 %v10598, 2147483648
  %v11076 = vor.u32 1.1754944e-38, %v11075
  %v11077 = vsel %vm11074, %v11076, %v11072
  %v11078 = vmul.f32 1.0, %v11077
  %v11079 = vmul.f32 %v26, %v10613
  %v11080 = vmul.f32 %v27, %v10628
  %v11081 = vmul.f32 %v28, %v10643
  %v11082 = vmul.f32 %v29, %v10658
  %v11083 = vmul.f32 %v30, %v10673
  %v11084 = vmul.f32 %v31, %v10688
  %v11085 = vmul.f32 %v32, %v10703
  %v11086 = vmul.f32 %v33, %v10718
  %v11087 = vmul.f32 %v34, %v10733
  %v11088 = vmul.f32 %v35, %v10748
  %v11089 = vmul.f32 %v36, %v10763
  %v11090 = vmul.f32 %v37, %v10778
  %v11091 = vmul.f32 %v38, %v10793
  %v11092 = vmul.f32 %v39, %v10808
  %v11093 = vmul.f32 %v40, %v10823
  %v11094 = vmul.f32 %v41, %v10838
  %v11095 = vmul.f32 %v42, %v10853
  %v11096 = vmul.f32 %v43, %v10868
  %v11097 = vmul.f32 %v44, %v10883
  %v11098 = vmul.f32 %v45, %v10898
  %v11099 = vmul.f32 %v46, %v10913
  %v11100 = vmul.f32 %v47, %v10928
  %v11101 = vmul.f32 %v48, %v10943
  %v11102 = vmul.f32 %v49, %v10958
  %v11103 = vmul.f32 %v50, %v10973
  %v11104 = vmul.f32 %v51, %v10988
  %v11105 = vmul.f32 %v52, %v11003
  %v11106 = vmul.f32 %v53, %v11018
  %v11107 = vmul.f32 %v54, %v11033
  %v11108 = vmul.f32 %v55, %v11048
  %v11109 = vmul.f32 %v56, %v11063
  %v11110 = vmul.f32 %v57, %v11078
  %11111 = vst [vmem:[%s7] sm:$0xff] %v11079
  %11112 = vst [vmem:[%s7 + $0x8] sm:$0xff] %v11080
  %11113 = vst [vmem:[%s7 + $0x10] sm:$0xff] %v11081
  %11114 = vst [vmem:[%s7 + $0x18] sm:$0xff] %v11082
  %11115 = vst [vmem:[%s7 + $0x20] sm:$0xff] %v11083
  %11116 = vst [vmem:[%s7 + $0x28] sm:$0xff] %v11084
  %11117 = vst [vmem:[%s7 + $0x30] sm:$0xff] %v11085
  %11118 = vst [vmem:[%s7 + $0x38] sm:$0xff] %v11086
  %11119 = vst [vmem:[%s7 + $0x40] sm:$0xff] %v11087
  %11120 = vst [vmem:[%s7 + $0x48] sm:$0xff] %v11088
  %11121 = vst [vmem:[%s7 + $0x50] sm:$0xff] %v11089
  %11122 = vst [vmem:[%s7 + $0x58] sm:$0xff] %v11090
  %11123 = vst [vmem:[%s7 + $0x60] sm:$0xff] %v11091
  %11124 = vst [vmem:[%s7 + $0x68] sm:$0xff] %v11092
  %11125 = vst [vmem:[%s7 + $0x70] sm:$0xff] %v11093
  %11126 = vst [vmem:[%s7 + $0x78] sm:$0xff] %v11094
  %11127 = vst [vmem:[%s7 + $0x80] sm:$0xff] %v11095
  %11128 = vst [vmem:[%s7 + $0x88] sm:$0xff] %v11096
  %11129 = vst [vmem:[%s7 + $0x90] sm:$0xff] %v11097
  %11130 = vst [vmem:[%s7 + $0x98] sm:$0xff] %v11098
  %11131 = vst [vmem:[%s7 + $0xa0] sm:$0xff] %v11099
  %11132 = vst [vmem:[%s7 + $0xa8] sm:$0xff] %v11100
  %11133 = vst [vmem:[%s7 + $0xb0] sm:$0xff] %v11101
  %11134 = vst [vmem:[%s7 + $0xb8] sm:$0xff] %v11102
  %11135 = vst [vmem:[%s7 + $0xc0] sm:$0xff] %v11103
  %11136 = vst [vmem:[%s7 + $0xc8] sm:$0xff] %v11104
  %11137 = vst [vmem:[%s7 + $0xd0] sm:$0xff] %v11105
  %11138 = vst [vmem:[%s7 + $0xd8] sm:$0xff] %v11106
  %11139 = vst [vmem:[%s7 + $0xe0] sm:$0xff] %v11107
  %11140 = vst [vmem:[%s7 + $0xe8] sm:$0xff] %v11108
  %11141 = vst [vmem:[%s7 + $0xf0] sm:$0xff] %v11109
  %11142 = vst [vmem:[%s7 + $0xf8] sm:$0xff] %v11110
  // Predicated region
  $region30: #{c2f_ema_forward.1} parent=0 // pred_check
    _
  $region31: #{c2f_ema_forward.1} parent=0 // pred_check_branch
    %11144 = sbr.rel (0) target = $region33
  $region32: #{c2f_ema_forward.1} parent=0 // pred_region
    _
  $region33: #{c2f_ema_forward.1} parent=0 // pred_fallthru
    _
  // Predicated region
  $region34: #{c2f_ema_forward.1} parent=0 // pred_check
    _
  $region35: #{c2f_ema_forward.1} parent=0 // pred_check_branch
    %11146 = sbr.rel (0) target = $region37
  $region36: #{c2f_ema_forward.1} parent=0 // pred_region
    _
  $region37: #{c2f_ema_forward.1} parent=0 // pred_fallthru
    _

</llo_original>
